<compile_context>
chip_gen: v7x
topology: tpu7x:2x2x1
jax: 0.10.0
libtpu: 0.0.40
codegen_flags: <defaults>
</compile_context>

<pallas_src>
import jax
import jax.numpy as jnp
import numpy as np
from jax.experimental import pallas as pl
from jax.experimental.pallas import tpu as pltpu


def _pool2x2_relu(acc2d, nb, h, w, c):
    """relu(2x2 max-pool) of a (nb*h*w, c) conv result whose rows are ordered (n, y, x).

    Returns (nb*(h//2), w//2, c) with rows ordered (n, y//2) and second-minor = x//2.
    Only last-dim-preserving reshapes + maxima (no scratch traffic).
    """
    a = acc2d.reshape(nb * h * (w // 2), 2, c)
    a = jnp.max(a, axis=1)                          # pool along x
    a = a.reshape(nb * (h // 2), 2, w // 2, c)
    a = jnp.max(a, axis=1)                          # pool along y
    return jnp.maximum(a, 0.0)                      # relu(maxpool) == PyTorch order


def _make_cnn_kernel(nb, h, w, cin, c):
    h1, w1 = h // 2, w // 2
    h2, w2 = h1 // 2, w1 // 2
    s_tot = h2 * w2

    def kernel(xcol_ref, w1_ref, b1_ref, w2_ref, b2_ref,
               fc1w_ref, fc1b_ref, fc2w_ref, fc2b_ref,
               o_ref, pad2_scr):
        # ---- conv1: one im2col matmul (M = nb*h*w, K = 9*cin) -----------------
        patches = xcol_ref[...].reshape(nb * h * w, 9 * cin)
        acc1 = jnp.dot(patches, w1_ref[...], preferred_element_type=jnp.float32)
        acc1 = acc1 + b1_ref[...]
        pooled1 = _pool2x2_relu(acc1, nb, h, w, c)          # (nb*h1, w1, c)

        # ---- conv2: zero-padded VMEM scratch, 9 accumulated K=c matmuls -------
        # Zero the halo every step (interior is fully overwritten); this keeps the
        # kernel correct even when grid steps are sharded across TensorCores.
        pad2_scr[...] = jnp.zeros_like(pad2_scr)
        pad2_scr[:, 1:h1 + 1, 1:w1 + 1, :] = pooled1.reshape(nb, h1, w1, c)

        acc2 = None
        for kh in range(3):
            for kw in range(3):
                xs = pad2_scr[:, kh:kh + h1, kw:kw + w1, :].reshape(nb * h1 * w1, c)
                p = jnp.dot(xs, w2_ref[kh * 3 + kw],
                            preferred_element_type=jnp.float32)
                acc2 = p if acc2 is None else acc2 + p
        acc2 = acc2 + b2_ref[...]
        pooled2 = _pool2x2_relu(acc2, nb, h1, w1, c)        # (nb*h2, w2, c)
        feat = pooled2.reshape(nb, s_tot, c)

        # ---- fc1: contraction over (spatial, channel), one matmul per position -
        hidden = jnp.dot(feat[:, 0, :], fc1w_ref[0],
                         preferred_element_type=jnp.float32)
        for s in range(1, s_tot):
            hidden = hidden + jnp.dot(feat[:, s, :], fc1w_ref[s],
                                      preferred_element_type=jnp.float32)
        hidden = jnp.maximum(hidden + fc1b_ref[...], 0.0)

        # ---- fc2 + log_softmax -------------------------------------------------
        z = jnp.dot(hidden, fc2w_ref[...], preferred_element_type=jnp.float32)
        z = z + fc2b_ref[...]
        m = jnp.max(z, axis=1, keepdims=True)
        lse = jnp.log(jnp.sum(jnp.exp(z - m), axis=1, keepdims=True)) + m
        o_ref[...] = (z - lse).astype(o_ref.dtype)

    return kernel


@jax.jit
def cnn_forward(x_nchw, params):
    """Forward pass matching the PyTorch CNN. Input NCHW, returns log-probs."""
    x = jnp.transpose(x_nchw, (0, 2, 3, 1)).astype(jnp.float32)      # NHWC
    n, h, w, cin = x.shape
    c = params["conv1_w"].shape[0]                                    # 64
    num_classes = params["fc2_w"].shape[0]
    o1 = params["fc1_w"].shape[0]                                     # 64
    assert h % 4 == 0 and w % 4 == 0, "img_size must be a multiple of 4"
    h1, w1 = h // 2, w // 2
    h2, w2 = h1 // 2, w1 // 2
    s_tot = h2 * w2

    # conv1 im2col in the wrapper (tiny: 9*cin channels); taps in (kh, kw) order.
    xp = jnp.pad(x, ((0, 0), (1, 1), (1, 1), (0, 0)))
    cols = [xp[:, kh:kh + h, kw:kw + w, :] for kh in range(3) for kw in range(3)]
    xcol = jnp.concatenate(cols, axis=-1).reshape(n, h * w, 9 * cin)

    # One-time weight rearrangements (trace time).
    w1m = jnp.transpose(params["conv1_w"], (2, 3, 1, 0)).reshape(9 * cin, c)
    b1 = params["conv1_b"].reshape(1, c)
    w2m = jnp.transpose(params["conv2_w"], (2, 3, 1, 0)).reshape(9, c, c)
    b2 = params["conv2_b"].reshape(1, c)
    # Fold PyTorch's NCHW flatten (f = ch*S + s) into fc1: fc1w[s, ch, o] = W[o, ch*S + s]
    fc1w = jnp.transpose(params["fc1_w"].reshape(o1, c, s_tot), (2, 1, 0))
    fc1b = params["fc1_b"].reshape(1, o1)
    fc2w = jnp.transpose(params["fc2_w"])                             # (o1, classes)
    fc2b = params["fc2_b"].reshape(1, num_classes)

    # Batch tiling: pack up to 8 images per grid step (M = nb*h*w for conv1).
    # NOTE: for very large img_size the per-step activations grow; row-striping
    # would be needed for v7x's 64 MiB VMEM, not relevant at these sizes.
    nb = n if n <= 8 else 8
    pad_n = (-n) % nb
    if pad_n:
        xcol = jnp.pad(xcol, ((0, pad_n), (0, 0), (0, 0)))
    n_steps = (n + pad_n) // nb

    kernel = _make_cnn_kernel(nb, h, w, cin, c)
    out = pl.pallas_call(
        kernel,
        out_shape=jax.ShapeDtypeStruct((n + pad_n, num_classes), jnp.float32),
        grid=(n_steps,),
        in_specs=[
            pl.BlockSpec((nb, h * w, 9 * cin), lambda b: (b, 0, 0)),
            pl.BlockSpec((9 * cin, c), lambda b: (0, 0)),
            pl.BlockSpec((1, c), lambda b: (0, 0)),
            pl.BlockSpec((9, c, c), lambda b: (0, 0, 0)),
            pl.BlockSpec((1, c), lambda b: (0, 0)),
            pl.BlockSpec((s_tot, c, o1), lambda b: (0, 0, 0)),
            pl.BlockSpec((1, o1), lambda b: (0, 0)),
            pl.BlockSpec((o1, num_classes), lambda b: (0, 0)),
            pl.BlockSpec((1, num_classes), lambda b: (0, 0)),
        ],
        out_specs=pl.BlockSpec((nb, num_classes), lambda b: (b, 0)),
        scratch_shapes=[pltpu.VMEM((nb, h1 + 2, w1 + 2, c), jnp.float32)],
        compiler_params=pltpu.CompilerParams(
            dimension_semantics=("parallel",)),
    )(xcol, w1m, b1, w2m, b2, fc1w, fc1b, fc2w, fc2b)
    return out[:n]


def init_params(key, in_channels, num_classes, img_size):
    def kaiming(k, shape, fan_in):
        return jax.random.normal(k, shape, jnp.float32) * jnp.sqrt(2.0 / fan_in)

    k1, k2, k3, k4 = jax.random.split(key, 4)
    cmid = 64
    feat = cmid * (img_size // 4) * (img_size // 4)
    return {
        # PyTorch layouts: conv (Cout, Cin, kh, kw); linear (out, in)
        "conv1_w": kaiming(k1, (cmid, in_channels, 3, 3), in_channels * 9),
        "conv1_b": jnp.zeros((cmid,), jnp.float32),
        "conv2_w": kaiming(k2, (cmid, cmid, 3, 3), cmid * 9),
        "conv2_b": jnp.zeros((cmid,), jnp.float32),
        "fc1_w": kaiming(k3, (64, feat), feat),
        "fc1_b": jnp.zeros((64,), jnp.float32),
        "fc2_w": kaiming(k4, (num_classes, 64), 64),
        "fc2_b": jnp.zeros((num_classes,), jnp.float32),
    }


def _reference_forward(x_nchw, params):
    """Pure-JAX (XLA) reference mirroring the PyTorch forward exactly."""
    x = jnp.transpose(x_nchw, (0, 2, 3, 1)).astype(jnp.float32)      # NHWC

    def conv(y, wgt, b):
        w_hwio = jnp.transpose(wgt, (2, 3, 1, 0))
        y = jax.lax.conv_general_dilated(
            y, w_hwio, window_strides=(1, 1), padding="SAME",
            dimension_numbers=("NHWC", "HWIO", "NHWC"))
        return y + b.reshape(1, 1, 1, -1)

    def pool_relu(y):
        n, h, w, c = y.shape
        y = y.reshape(n, h // 2, 2, w // 2, 2, c).max(axis=(2, 4))
        return jnp.maximum(y, 0.0)

    y = pool_relu(conv(x, params["conv1_w"], params["conv1_b"]))
    y = pool_relu(conv(y, params["conv2_w"], params["conv2_b"]))
    feat = jnp.transpose(y, (0, 3, 1, 2)).reshape(y.shape[0], -1)    # NCHW flatten
    hdn = jnp.maximum(feat @ params["fc1_w"].T + params["fc1_b"], 0.0)
    z = hdn @ params["fc2_w"].T + params["fc2_b"]
    return jax.nn.log_softmax(z, axis=1)


if __name__ == "__main__":
    batch, in_channels, img_size, num_classes = 2, 4, 16, 10
    key = jax.random.PRNGKey(0)
    kp, kx = jax.random.split(key)
    params = init_params(kp, in_channels, num_classes, img_size)
    x = jax.random.normal(kx, (batch, in_channels, img_size, img_size), jnp.float32)

    out = jax.block_until_ready(cnn_forward(x, params))
    assert out.shape == (batch, num_classes)

    ref = jax.block_until_ready(_reference_forward(x, params))
    np.testing.assert_allclose(np.asarray(out), np.asarray(ref), atol=2e-2, rtol=2e-2)
    print("KERNEL_OK")
</pallas_src>

<mosaic_0001>
module attributes {stable_mosaic.version = 11 : i64} {
  func.func @kernel(%arg0: i32, %arg1: memref<2x256x36xf32, #tpu.memory_space<vmem>>, %arg2: memref<36x64xf32, #tpu.memory_space<vmem>>, %arg3: memref<1x64xf32, #tpu.memory_space<vmem>>, %arg4: memref<9x64x64xf32, #tpu.memory_space<vmem>>, %arg5: memref<1x64xf32, #tpu.memory_space<vmem>>, %arg6: memref<16x64x64xf32, #tpu.memory_space<vmem>>, %arg7: memref<1x64xf32, #tpu.memory_space<vmem>>, %arg8: memref<64x10xf32, #tpu.memory_space<vmem>>, %arg9: memref<1x10xf32, #tpu.memory_space<vmem>>, %arg10: memref<2x10xf32, #tpu.memory_space<vmem>>, %arg11: memref<2x10x10x64xf32, #tpu.memory_space<vmem>>) attributes {dimension_semantics = [#tpu.dimension_semantics<parallel>], iteration_bounds = array<i64: 1>, scalar_prefetch = 0 : i64, scratch_operands = 1 : i64, tpu.core_type = #tpu.core_type<tc>, window_params = [{transform_indices = @transform_0, window_bounds = array<i64: 2, 256, 36>}, {pipeline_mode = #tpu.pipeline_mode<synchronous>, transform_indices = @transform_1, window_bounds = array<i64: 36, 64>}, {pipeline_mode = #tpu.pipeline_mode<synchronous>, transform_indices = @transform_2, window_bounds = array<i64: 1, 64>}, {pipeline_mode = #tpu.pipeline_mode<synchronous>, transform_indices = @transform_3, window_bounds = array<i64: 9, 64, 64>}, {pipeline_mode = #tpu.pipeline_mode<synchronous>, transform_indices = @transform_4, window_bounds = array<i64: 1, 64>}, {pipeline_mode = #tpu.pipeline_mode<synchronous>, transform_indices = @transform_5, window_bounds = array<i64: 16, 64, 64>}, {pipeline_mode = #tpu.pipeline_mode<synchronous>, transform_indices = @transform_6, window_bounds = array<i64: 1, 64>}, {pipeline_mode = #tpu.pipeline_mode<synchronous>, transform_indices = @transform_7, window_bounds = array<i64: 64, 10>}, {pipeline_mode = #tpu.pipeline_mode<synchronous>, transform_indices = @transform_8, window_bounds = array<i64: 1, 10>}, {transform_indices = @transform_9, window_bounds = array<i64: 2, 10>}]} {
    %c0 = arith.constant 0 : index
    %c0_0 = arith.constant 0 : index
    %c0_1 = arith.constant 0 : index
    %0 = vector.load %arg1[%c0, %c0_0, %c0_1] : memref<2x256x36xf32, #tpu.memory_space<vmem>>, vector<2x256x36xf32>
    %1 = vector.shape_cast %0 : vector<2x256x36xf32> to vector<512x36xf32>
    %c0_2 = arith.constant 0 : index
    %c0_3 = arith.constant 0 : index
    %2 = vector.load %arg2[%c0_2, %c0_3] : memref<36x64xf32, #tpu.memory_space<vmem>>, vector<36x64xf32>
    %cst = arith.constant dense<0.000000e+00> : vector<512x64xf32>
    %3 = tpu.matmul %1, %2, %cst {dimension_numbers = #tpu.dot_dimension_numbers<[1], [0], [0], [1], [0, 0, 1, 1], [], []>} : vector<512x36xf32>, vector<36x64xf32>, vector<512x64xf32> -> vector<512x64xf32>
    %c0_4 = arith.constant 0 : index
    %c0_5 = arith.constant 0 : index
    %4 = vector.load %arg3[%c0_4, %c0_5] : memref<1x64xf32, #tpu.memory_space<vmem>>, vector<1x64xf32>
    %5 = vector.broadcast %4 : vector<1x64xf32> to vector<512x64xf32>
    %6 = arith.addf %3, %5 : vector<512x64xf32>
    %7 = vector.shape_cast %6 : vector<512x64xf32> to vector<256x2x64xf32>
    %cst_6 = arith.constant dense<0xFF800000> : vector<256x64xf32>
    %8 = vector.multi_reduction <maximumf>, %7, %cst_6 [1] : vector<256x2x64xf32> to vector<256x64xf32>
    %9 = vector.shape_cast %8 : vector<256x64xf32> to vector<16x2x8x64xf32>
    %cst_7 = arith.constant dense<0xFF800000> : vector<16x8x64xf32>
    %10 = vector.multi_reduction <maximumf>, %9, %cst_7 [1] : vector<16x2x8x64xf32> to vector<16x8x64xf32>
    %cst_8 = arith.constant 0.000000e+00 : f32
    %11 = vector.broadcast %cst_8 : f32 to vector<16x8x64xf32>
    %12 = arith.maximumf %10, %11 : vector<16x8x64xf32>
    %cst_9 = arith.constant 0.000000e+00 : f32
    %13 = vector.broadcast %cst_9 : f32 to vector<2x10x10x64xf32>
    %c0_10 = arith.constant 0 : index
    %c0_11 = arith.constant 0 : index
    %c0_12 = arith.constant 0 : index
    %c0_13 = arith.constant 0 : index
    %14 = vector.load %arg11[%c0_10, %c0_11, %c0_12, %c0_13] : memref<2x10x10x64xf32, #tpu.memory_space<vmem>>, vector<2x10x10x64xf32>
    tpu.vector_store %arg11[%c0_10, %c0_11, %c0_12, %c0_13], %13 {strides = array<i32>} : memref<2x10x10x64xf32, #tpu.memory_space<vmem>>, vector<2x10x10x64xf32>,
    %15 = vector.shape_cast %12 : vector<16x8x64xf32> to vector<2x8x8x64xf32>
    %c0_14 = arith.constant 0 : index
    %c1 = arith.constant 1 : index
    %c1_15 = arith.constant 1 : index
    %c0_16 = arith.constant 0 : index
    %16 = vector.load %arg11[%c0_14, %c1, %c1_15, %c0_16] : memref<2x10x10x64xf32, #tpu.memory_space<vmem>>, vector<2x8x8x64xf32>
    tpu.vector_store %arg11[%c0_14, %c1, %c1_15, %c0_16], %15 {strides = array<i32>} : memref<2x10x10x64xf32, #tpu.memory_space<vmem>>, vector<2x8x8x64xf32>,
    %c0_17 = arith.constant 0 : index
    %c0_18 = arith.constant 0 : index
    %c0_19 = arith.constant 0 : index
    %c0_20 = arith.constant 0 : index
    %17 = vector.load %arg11[%c0_17, %c0_18, %c0_19, %c0_20] : memref<2x10x10x64xf32, #tpu.memory_space<vmem>>, vector<2x8x8x64xf32>
    %18 = vector.shape_cast %17 : vector<2x8x8x64xf32> to vector<128x64xf32>
    %c0_21 = arith.constant 0 : index
    %c0_22 = arith.constant 0 : index
    %c0_23 = arith.constant 0 : index
    %19 = vector.load %arg4[%c0_21, %c0_22, %c0_23] : memref<9x64x64xf32, #tpu.memory_space<vmem>>, vector<1x64x64xf32>
    %20 = vector.shape_cast %19 : vector<1x64x64xf32> to vector<64x64xf32>
    %cst_24 = arith.constant dense<0.000000e+00> : vector<128x64xf32>
    %21 = tpu.matmul %18, %20, %cst_24 {dimension_numbers = #tpu.dot_dimension_numbers<[1], [0], [0], [1], [0, 0, 1, 1], [], []>} : vector<128x64xf32>, vector<64x64xf32>, vector<128x64xf32> -> vector<128x64xf32>
    %c0_25 = arith.constant 0 : index
    %c0_26 = arith.constant 0 : index
    %c1_27 = arith.constant 1 : index
    %c0_28 = arith.constant 0 : index
    %22 = vector.load %arg11[%c0_25, %c0_26, %c1_27, %c0_28] : memref<2x10x10x64xf32, #tpu.memory_space<vmem>>, vector<2x8x8x64xf32>
    %23 = vector.shape_cast %22 : vector<2x8x8x64xf32> to vector<128x64xf32>
    %c1_29 = arith.constant 1 : index
    %c0_30 = arith.constant 0 : index
    %c0_31 = arith.constant 0 : index
    %24 = vector.load %arg4[%c1_29, %c0_30, %c0_31] : memref<9x64x64xf32, #tpu.memory_space<vmem>>, vector<1x64x64xf32>
    %25 = vector.shape_cast %24 : vector<1x64x64xf32> to vector<64x64xf32>
    %cst_32 = arith.constant dense<0.000000e+00> : vector<128x64xf32>
    %26 = tpu.matmul %23, %25, %cst_32 {dimension_numbers = #tpu.dot_dimension_numbers<[1], [0], [0], [1], [0, 0, 1, 1], [], []>} : vector<128x64xf32>, vector<64x64xf32>, vector<128x64xf32> -> vector<128x64xf32>
    %27 = arith.addf %21, %26 : vector<128x64xf32>
    %c0_33 = arith.constant 0 : index
    %c0_34 = arith.constant 0 : index
    %c2 = arith.constant 2 : index
    %c0_35 = arith.constant 0 : index
    %28 = vector.load %arg11[%c0_33, %c0_34, %c2, %c0_35] : memref<2x10x10x64xf32, #tpu.memory_space<vmem>>, vector<2x8x8x64xf32>
    %29 = vector.shape_cast %28 : vector<2x8x8x64xf32> to vector<128x64xf32>
    %c2_36 = arith.constant 2 : index
    %c0_37 = arith.constant 0 : index
    %c0_38 = arith.constant 0 : index
    %30 = vector.load %arg4[%c2_36, %c0_37, %c0_38] : memref<9x64x64xf32, #tpu.memory_space<vmem>>, vector<1x64x64xf32>
    %31 = vector.shape_cast %30 : vector<1x64x64xf32> to vector<64x64xf32>
    %cst_39 = arith.constant dense<0.000000e+00> : vector<128x64xf32>
    %32 = tpu.matmul %29, %31, %cst_39 {dimension_numbers = #tpu.dot_dimension_numbers<[1], [0], [0], [1], [0, 0, 1, 1], [], []>} : vector<128x64xf32>, vector<64x64xf32>, vector<128x64xf32> -> vector<128x64xf32>
    %33 = arith.addf %27, %32 : vector<128x64xf32>
    %c0_40 = arith.constant 0 : index
    %c1_41 = arith.constant 1 : index
    %c0_42 = arith.constant 0 : index
    %c0_43 = arith.constant 0 : index
    %34 = vector.load %arg11[%c0_40, %c1_41, %c0_42, %c0_43] : memref<2x10x10x64xf32, #tpu.memory_space<vmem>>, vector<2x8x8x64xf32>
    %35 = vector.shape_cast %34 : vector<2x8x8x64xf32> to vector<128x64xf32>
    %c3 = arith.constant 3 : index
    %c0_44 = arith.constant 0 : index
    %c0_45 = arith.constant 0 : index
    %36 = vector.load %arg4[%c3, %c0_44, %c0_45] : memref<9x64x64xf32, #tpu.memory_space<vmem>>, vector<1x64x64xf32>
    %37 = vector.shape_cast %36 : vector<1x64x64xf32> to vector<64x64xf32>
    %cst_46 = arith.constant dense<0.000000e+00> : vector<128x64xf32>
    %38 = tpu.matmul %35, %37, %cst_46 {dimension_numbers = #tpu.dot_dimension_numbers<[1], [0], [0], [1], [0, 0, 1, 1], [], []>} : vector<128x64xf32>, vector<64x64xf32>, vector<128x64xf32> -> vector<128x64xf32>
    %39 = arith.addf %33, %38 : vector<128x64xf32>
    %c0_47 = arith.constant 0 : index
    %c1_48 = arith.constant 1 : index
    %c1_49 = arith.constant 1 : index
    %c0_50 = arith.constant 0 : index
    %40 = vector.load %arg11[%c0_47, %c1_48, %c1_49, %c0_50] : memref<2x10x10x64xf32, #tpu.memory_space<vmem>>, vector<2x8x8x64xf32>
    %41 = vector.shape_cast %40 : vector<2x8x8x64xf32> to vector<128x64xf32>
    %c4 = arith.constant 4 : index
    %c0_51 = arith.constant 0 : index
    %c0_52 = arith.constant 0 : index
    %42 = vector.load %arg4[%c4, %c0_51, %c0_52] : memref<9x64x64xf32, #tpu.memory_space<vmem>>, vector<1x64x64xf32>
    %43 = vector.shape_cast %42 : vector<1x64x64xf32> to vector<64x64xf32>
    %cst_53 = arith.constant dense<0.000000e+00> : vector<128x64xf32>
    %44 = tpu.matmul %41, %43, %cst_53 {dimension_numbers = #tpu.dot_dimension_numbers<[1], [0], [0], [1], [0, 0, 1, 1], [], []>} : vector<128x64xf32>, vector<64x64xf32>, vector<128x64xf32> -> vector<128x64xf32>
    %45 = arith.addf %39, %44 : vector<128x64xf32>
    %c0_54 = arith.constant 0 : index
    %c1_55 = arith.constant 1 : index
    %c2_56 = arith.constant 2 : index
    %c0_57 = arith.constant 0 : index
    %46 = vector.load %arg11[%c0_54, %c1_55, %c2_56, %c0_57] : memref<2x10x10x64xf32, #tpu.memory_space<vmem>>, vector<2x8x8x64xf32>
    %47 = vector.shape_cast %46 : vector<2x8x8x64xf32> to vector<128x64xf32>
    %c5 = arith.constant 5 : index
    %c0_58 = arith.constant 0 : index
    %c0_59 = arith.constant 0 : index
    %48 = vector.load %arg4[%c5, %c0_58, %c0_59] : memref<9x64x64xf32, #tpu.memory_space<vmem>>, vector<1x64x64xf32>
    %49 = vector.shape_cast %48 : vector<1x64x64xf32> to vector<64x64xf32>
    %cst_60 = arith.constant dense<0.000000e+00> : vector<128x64xf32>
    %50 = tpu.matmul %47, %49, %cst_60 {dimension_numbers = #tpu.dot_dimension_numbers<[1], [0], [0], [1], [0, 0, 1, 1], [], []>} : vector<128x64xf32>, vector<64x64xf32>, vector<128x64xf32> -> vector<128x64xf32>
    %51 = arith.addf %45, %50 : vector<128x64xf32>
    %c0_61 = arith.constant 0 : index
    %c2_62 = arith.constant 2 : index
    %c0_63 = arith.constant 0 : index
    %c0_64 = arith.constant 0 : index
    %52 = vector.load %arg11[%c0_61, %c2_62, %c0_63, %c0_64] : memref<2x10x10x64xf32, #tpu.memory_space<vmem>>, vector<2x8x8x64xf32>
    %53 = vector.shape_cast %52 : vector<2x8x8x64xf32> to vector<128x64xf32>
    %c6 = arith.constant 6 : index
    %c0_65 = arith.constant 0 : index
    %c0_66 = arith.constant 0 : index
    %54 = vector.load %arg4[%c6, %c0_65, %c0_66] : memref<9x64x64xf32, #tpu.memory_space<vmem>>, vector<1x64x64xf32>
    %55 = vector.shape_cast %54 : vector<1x64x64xf32> to vector<64x64xf32>
    %cst_67 = arith.constant dense<0.000000e+00> : vector<128x64xf32>
    %56 = tpu.matmul %53, %55, %cst_67 {dimension_numbers = #tpu.dot_dimension_numbers<[1], [0], [0], [1], [0, 0, 1, 1], [], []>} : vector<128x64xf32>, vector<64x64xf32>, vector<128x64xf32> -> vector<128x64xf32>
    %57 = arith.addf %51, %56 : vector<128x64xf32>
    %c0_68 = arith.constant 0 : index
    %c2_69 = arith.constant 2 : index
    %c1_70 = arith.constant 1 : index
    %c0_71 = arith.constant 0 : index
    %58 = vector.load %arg11[%c0_68, %c2_69, %c1_70, %c0_71] : memref<2x10x10x64xf32, #tpu.memory_space<vmem>>, vector<2x8x8x64xf32>
    %59 = vector.shape_cast %58 : vector<2x8x8x64xf32> to vector<128x64xf32>
    %c7 = arith.constant 7 : index
    %c0_72 = arith.constant 0 : index
    %c0_73 = arith.constant 0 : index
    %60 = vector.load %arg4[%c7, %c0_72, %c0_73] : memref<9x64x64xf32, #tpu.memory_space<vmem>>, vector<1x64x64xf32>
    %61 = vector.shape_cast %60 : vector<1x64x64xf32> to vector<64x64xf32>
    %cst_74 = arith.constant dense<0.000000e+00> : vector<128x64xf32>
    %62 = tpu.matmul %59, %61, %cst_74 {dimension_numbers = #tpu.dot_dimension_numbers<[1], [0], [0], [1], [0, 0, 1, 1], [], []>} : vector<128x64xf32>, vector<64x64xf32>, vector<128x64xf32> -> vector<128x64xf32>
    %63 = arith.addf %57, %62 : vector<128x64xf32>
    %c0_75 = arith.constant 0 : index
    %c2_76 = arith.constant 2 : index
    %c2_77 = arith.constant 2 : index
    %c0_78 = arith.constant 0 : index
    %64 = vector.load %arg11[%c0_75, %c2_76, %c2_77, %c0_78] : memref<2x10x10x64xf32, #tpu.memory_space<vmem>>, vector<2x8x8x64xf32>
    %65 = vector.shape_cast %64 : vector<2x8x8x64xf32> to vector<128x64xf32>
    %c8 = arith.constant 8 : index
    %c0_79 = arith.constant 0 : index
    %c0_80 = arith.constant 0 : index
    %66 = vector.load %arg4[%c8, %c0_79, %c0_80] : memref<9x64x64xf32, #tpu.memory_space<vmem>>, vector<1x64x64xf32>
    %67 = vector.shape_cast %66 : vector<1x64x64xf32> to vector<64x64xf32>
    %cst_81 = arith.constant dense<0.000000e+00> : vector<128x64xf32>
    %68 = tpu.matmul %65, %67, %cst_81 {dimension_numbers = #tpu.dot_dimension_numbers<[1], [0], [0], [1], [0, 0, 1, 1], [], []>} : vector<128x64xf32>, vector<64x64xf32>, vector<128x64xf32> -> vector<128x64xf32>
    %69 = arith.addf %63, %68 : vector<128x64xf32>
    %c0_82 = arith.constant 0 : index
    %c0_83 = arith.constant 0 : index
    %70 = vector.load %arg5[%c0_82, %c0_83] : memref<1x64xf32, #tpu.memory_space<vmem>>, vector<1x64xf32>
    %71 = vector.broadcast %70 : vector<1x64xf32> to vector<128x64xf32>
    %72 = arith.addf %69, %71 : vector<128x64xf32>
    %73 = vector.shape_cast %72 : vector<128x64xf32> to vector<64x2x64xf32>
    %cst_84 = arith.constant dense<0xFF800000> : vector<64x64xf32>
    %74 = vector.multi_reduction <maximumf>, %73, %cst_84 [1] : vector<64x2x64xf32> to vector<64x64xf32>
    %75 = vector.shape_cast %74 : vector<64x64xf32> to vector<8x2x4x64xf32>
    %cst_85 = arith.constant dense<0xFF800000> : vector<8x4x64xf32>
    %76 = vector.multi_reduction <maximumf>, %75, %cst_85 [1] : vector<8x2x4x64xf32> to vector<8x4x64xf32>
    %cst_86 = arith.constant 0.000000e+00 : f32
    %77 = vector.broadcast %cst_86 : f32 to vector<8x4x64xf32>
    %78 = arith.maximumf %76, %77 : vector<8x4x64xf32>
    %79 = vector.shape_cast %78 : vector<8x4x64xf32> to vector<2x16x64xf32>
    %80 = vector.extract_strided_slice %79 {offsets = [0, 0, 0], sizes = [2, 1, 64], strides = [1, 1, 1]} : vector<2x16x64xf32> to vector<2x1x64xf32>
    %81 = vector.shape_cast %80 : vector<2x1x64xf32> to vector<2x64xf32>
    %c0_87 = arith.constant 0 : index
    %c0_88 = arith.constant 0 : index
    %c0_89 = arith.constant 0 : index
    %82 = vector.load %arg6[%c0_87, %c0_88, %c0_89] : memref<16x64x64xf32, #tpu.memory_space<vmem>>, vector<1x64x64xf32>
    %83 = vector.shape_cast %82 : vector<1x64x64xf32> to vector<64x64xf32>
    %cst_90 = arith.constant dense<0.000000e+00> : vector<2x64xf32>
    %84 = tpu.matmul %81, %83, %cst_90 {dimension_numbers = #tpu.dot_dimension_numbers<[1], [0], [0], [1], [0, 0, 1, 1], [], []>} : vector<2x64xf32>, vector<64x64xf32>, vector<2x64xf32> -> vector<2x64xf32>
    %85 = vector.extract_strided_slice %79 {offsets = [0, 1, 0], sizes = [2, 1, 64], strides = [1, 1, 1]} : vector<2x16x64xf32> to vector<2x1x64xf32>
    %86 = vector.shape_cast %85 : vector<2x1x64xf32> to vector<2x64xf32>
    %c1_91 = arith.constant 1 : index
    %c0_92 = arith.constant 0 : index
    %c0_93 = arith.constant 0 : index
    %87 = vector.load %arg6[%c1_91, %c0_92, %c0_93] : memref<16x64x64xf32, #tpu.memory_space<vmem>>, vector<1x64x64xf32>
    %88 = vector.shape_cast %87 : vector<1x64x64xf32> to vector<64x64xf32>
    %cst_94 = arith.constant dense<0.000000e+00> : vector<2x64xf32>
    %89 = tpu.matmul %86, %88, %cst_94 {dimension_numbers = #tpu.dot_dimension_numbers<[1], [0], [0], [1], [0, 0, 1, 1], [], []>} : vector<2x64xf32>, vector<64x64xf32>, vector<2x64xf32> -> vector<2x64xf32>
    %90 = arith.addf %84, %89 : vector<2x64xf32>
    %91 = vector.extract_strided_slice %79 {offsets = [0, 2, 0], sizes = [2, 1, 64], strides = [1, 1, 1]} : vector<2x16x64xf32> to vector<2x1x64xf32>
    %92 = vector.shape_cast %91 : vector<2x1x64xf32> to vector<2x64xf32>
    %c2_95 = arith.constant 2 : index
    %c0_96 = arith.constant 0 : index
    %c0_97 = arith.constant 0 : index
    %93 = vector.load %arg6[%c2_95, %c0_96, %c0_97] : memref<16x64x64xf32, #tpu.memory_space<vmem>>, vector<1x64x64xf32>
    %94 = vector.shape_cast %93 : vector<1x64x64xf32> to vector<64x64xf32>
    %cst_98 = arith.constant dense<0.000000e+00> : vector<2x64xf32>
    %95 = tpu.matmul %92, %94, %cst_98 {dimension_numbers = #tpu.dot_dimension_numbers<[1], [0], [0], [1], [0, 0, 1, 1], [], []>} : vector<2x64xf32>, vector<64x64xf32>, vector<2x64xf32> -> vector<2x64xf32>
    %96 = arith.addf %90, %95 : vector<2x64xf32>
    %97 = vector.extract_strided_slice %79 {offsets = [0, 3, 0], sizes = [2, 1, 64], strides = [1, 1, 1]} : vector<2x16x64xf32> to vector<2x1x64xf32>
    %98 = vector.shape_cast %97 : vector<2x1x64xf32> to vector<2x64xf32>
    %c3_99 = arith.constant 3 : index
    %c0_100 = arith.constant 0 : index
    %c0_101 = arith.constant 0 : index
    %99 = vector.load %arg6[%c3_99, %c0_100, %c0_101] : memref<16x64x64xf32, #tpu.memory_space<vmem>>, vector<1x64x64xf32>
    %100 = vector.shape_cast %99 : vector<1x64x64xf32> to vector<64x64xf32>
    %cst_102 = arith.constant dense<0.000000e+00> : vector<2x64xf32>
    %101 = tpu.matmul %98, %100, %cst_102 {dimension_numbers = #tpu.dot_dimension_numbers<[1], [0], [0], [1], [0, 0, 1, 1], [], []>} : vector<2x64xf32>, vector<64x64xf32>, vector<2x64xf32> -> vector<2x64xf32>
    %102 = arith.addf %96, %101 : vector<2x64xf32>
    %103 = vector.extract_strided_slice %79 {offsets = [0, 4, 0], sizes = [2, 1, 64], strides = [1, 1, 1]} : vector<2x16x64xf32> to vector<2x1x64xf32>
    %104 = vector.shape_cast %103 : vector<2x1x64xf32> to vector<2x64xf32>
    %c4_103 = arith.constant 4 : index
    %c0_104 = arith.constant 0 : index
    %c0_105 = arith.constant 0 : index
    %105 = vector.load %arg6[%c4_103, %c0_104, %c0_105] : memref<16x64x64xf32, #tpu.memory_space<vmem>>, vector<1x64x64xf32>
    %106 = vector.shape_cast %105 : vector<1x64x64xf32> to vector<64x64xf32>
    %cst_106 = arith.constant dense<0.000000e+00> : vector<2x64xf32>
    %107 = tpu.matmul %104, %106, %cst_106 {dimension_numbers = #tpu.dot_dimension_numbers<[1], [0], [0], [1], [0, 0, 1, 1], [], []>} : vector<2x64xf32>, vector<64x64xf32>, vector<2x64xf32> -> vector<2x64xf32>
    %108 = arith.addf %102, %107 : vector<2x64xf32>
    %109 = vector.extract_strided_slice %79 {offsets = [0, 5, 0], sizes = [2, 1, 64], strides = [1, 1, 1]} : vector<2x16x64xf32> to vector<2x1x64xf32>
    %110 = vector.shape_cast %109 : vector<2x1x64xf32> to vector<2x64xf32>
    %c5_107 = arith.constant 5 : index
    %c0_108 = arith.constant 0 : index
    %c0_109 = arith.constant 0 : index
    %111 = vector.load %arg6[%c5_107, %c0_108, %c0_109] : memref<16x64x64xf32, #tpu.memory_space<vmem>>, vector<1x64x64xf32>
    %112 = vector.shape_cast %111 : vector<1x64x64xf32> to vector<64x64xf32>
    %cst_110 = arith.constant dense<0.000000e+00> : vector<2x64xf32>
    %113 = tpu.matmul %110, %112, %cst_110 {dimension_numbers = #tpu.dot_dimension_numbers<[1], [0], [0], [1], [0, 0, 1, 1], [], []>} : vector<2x64xf32>, vector<64x64xf32>, vector<2x64xf32> -> vector<2x64xf32>
    %114 = arith.addf %108, %113 : vector<2x64xf32>
    %115 = vector.extract_strided_slice %79 {offsets = [0, 6, 0], sizes = [2, 1, 64], strides = [1, 1, 1]} : vector<2x16x64xf32> to vector<2x1x64xf32>
    %116 = vector.shape_cast %115 : vector<2x1x64xf32> to vector<2x64xf32>
    %c6_111 = arith.constant 6 : index
    %c0_112 = arith.constant 0 : index
    %c0_113 = arith.constant 0 : index
    %117 = vector.load %arg6[%c6_111, %c0_112, %c0_113] : memref<16x64x64xf32, #tpu.memory_space<vmem>>, vector<1x64x64xf32>
    %118 = vector.shape_cast %117 : vector<1x64x64xf32> to vector<64x64xf32>
    %cst_114 = arith.constant dense<0.000000e+00> : vector<2x64xf32>
    %119 = tpu.matmul %116, %118, %cst_114 {dimension_numbers = #tpu.dot_dimension_numbers<[1], [0], [0], [1], [0, 0, 1, 1], [], []>} : vector<2x64xf32>, vector<64x64xf32>, vector<2x64xf32> -> vector<2x64xf32>
    %120 = arith.addf %114, %119 : vector<2x64xf32>
    %121 = vector.extract_strided_slice %79 {offsets = [0, 7, 0], sizes = [2, 1, 64], strides = [1, 1, 1]} : vector<2x16x64xf32> to vector<2x1x64xf32>
    %122 = vector.shape_cast %121 : vector<2x1x64xf32> to vector<2x64xf32>
    %c7_115 = arith.constant 7 : index
    %c0_116 = arith.constant 0 : index
    %c0_117 = arith.constant 0 : index
    %123 = vector.load %arg6[%c7_115, %c0_116, %c0_117] : memref<16x64x64xf32, #tpu.memory_space<vmem>>, vector<1x64x64xf32>
    %124 = vector.shape_cast %123 : vector<1x64x64xf32> to vector<64x64xf32>
    %cst_118 = arith.constant dense<0.000000e+00> : vector<2x64xf32>
    %125 = tpu.matmul %122, %124, %cst_118 {dimension_numbers = #tpu.dot_dimension_numbers<[1], [0], [0], [1], [0, 0, 1, 1], [], []>} : vector<2x64xf32>, vector<64x64xf32>, vector<2x64xf32> -> vector<2x64xf32>
    %126 = arith.addf %120, %125 : vector<2x64xf32>
    %127 = vector.extract_strided_slice %79 {offsets = [0, 8, 0], sizes = [2, 1, 64], strides = [1, 1, 1]} : vector<2x16x64xf32> to vector<2x1x64xf32>
    %128 = vector.shape_cast %127 : vector<2x1x64xf32> to vector<2x64xf32>
    %c8_119 = arith.constant 8 : index
    %c0_120 = arith.constant 0 : index
    %c0_121 = arith.constant 0 : index
    %129 = vector.load %arg6[%c8_119, %c0_120, %c0_121] : memref<16x64x64xf32, #tpu.memory_space<vmem>>, vector<1x64x64xf32>
    %130 = vector.shape_cast %129 : vector<1x64x64xf32> to vector<64x64xf32>
    %cst_122 = arith.constant dense<0.000000e+00> : vector<2x64xf32>
    %131 = tpu.matmul %128, %130, %cst_122 {dimension_numbers = #tpu.dot_dimension_numbers<[1], [0], [0], [1], [0, 0, 1, 1], [], []>} : vector<2x64xf32>, vector<64x64xf32>, vector<2x64xf32> -> vector<2x64xf32>
    %132 = arith.addf %126, %131 : vector<2x64xf32>
    %133 = vector.extract_strided_slice %79 {offsets = [0, 9, 0], sizes = [2, 1, 64], strides = [1, 1, 1]} : vector<2x16x64xf32> to vector<2x1x64xf32>
    %134 = vector.shape_cast %133 : vector<2x1x64xf32> to vector<2x64xf32>
    %c9 = arith.constant 9 : index
    %c0_123 = arith.constant 0 : index
    %c0_124 = arith.constant 0 : index
    %135 = vector.load %arg6[%c9, %c0_123, %c0_124] : memref<16x64x64xf32, #tpu.memory_space<vmem>>, vector<1x64x64xf32>
    %136 = vector.shape_cast %135 : vector<1x64x64xf32> to vector<64x64xf32>
    %cst_125 = arith.constant dense<0.000000e+00> : vector<2x64xf32>
    %137 = tpu.matmul %134, %136, %cst_125 {dimension_numbers = #tpu.dot_dimension_numbers<[1], [0], [0], [1], [0, 0, 1, 1], [], []>} : vector<2x64xf32>, vector<64x64xf32>, vector<2x64xf32> -> vector<2x64xf32>
    %138 = arith.addf %132, %137 : vector<2x64xf32>
    %139 = vector.extract_strided_slice %79 {offsets = [0, 10, 0], sizes = [2, 1, 64], strides = [1, 1, 1]} : vector<2x16x64xf32> to vector<2x1x64xf32>
    %140 = vector.shape_cast %139 : vector<2x1x64xf32> to vector<2x64xf32>
    %c10 = arith.constant 10 : index
    %c0_126 = arith.constant 0 : index
    %c0_127 = arith.constant 0 : index
    %141 = vector.load %arg6[%c10, %c0_126, %c0_127] : memref<16x64x64xf32, #tpu.memory_space<vmem>>, vector<1x64x64xf32>
    %142 = vector.shape_cast %141 : vector<1x64x64xf32> to vector<64x64xf32>
    %cst_128 = arith.constant dense<0.000000e+00> : vector<2x64xf32>
    %143 = tpu.matmul %140, %142, %cst_128 {dimension_numbers = #tpu.dot_dimension_numbers<[1], [0], [0], [1], [0, 0, 1, 1], [], []>} : vector<2x64xf32>, vector<64x64xf32>, vector<2x64xf32> -> vector<2x64xf32>
    %144 = arith.addf %138, %143 : vector<2x64xf32>
    %145 = vector.extract_strided_slice %79 {offsets = [0, 11, 0], sizes = [2, 1, 64], strides = [1, 1, 1]} : vector<2x16x64xf32> to vector<2x1x64xf32>
    %146 = vector.shape_cast %145 : vector<2x1x64xf32> to vector<2x64xf32>
    %c11 = arith.constant 11 : index
    %c0_129 = arith.constant 0 : index
    %c0_130 = arith.constant 0 : index
    %147 = vector.load %arg6[%c11, %c0_129, %c0_130] : memref<16x64x64xf32, #tpu.memory_space<vmem>>, vector<1x64x64xf32>
    %148 = vector.shape_cast %147 : vector<1x64x64xf32> to vector<64x64xf32>
    %cst_131 = arith.constant dense<0.000000e+00> : vector<2x64xf32>
    %149 = tpu.matmul %146, %148, %cst_131 {dimension_numbers = #tpu.dot_dimension_numbers<[1], [0], [0], [1], [0, 0, 1, 1], [], []>} : vector<2x64xf32>, vector<64x64xf32>, vector<2x64xf32> -> vector<2x64xf32>
    %150 = arith.addf %144, %149 : vector<2x64xf32>
    %151 = vector.extract_strided_slice %79 {offsets = [0, 12, 0], sizes = [2, 1, 64], strides = [1, 1, 1]} : vector<2x16x64xf32> to vector<2x1x64xf32>
    %152 = vector.shape_cast %151 : vector<2x1x64xf32> to vector<2x64xf32>
    %c12 = arith.constant 12 : index
    %c0_132 = arith.constant 0 : index
    %c0_133 = arith.constant 0 : index
    %153 = vector.load %arg6[%c12, %c0_132, %c0_133] : memref<16x64x64xf32, #tpu.memory_space<vmem>>, vector<1x64x64xf32>
    %154 = vector.shape_cast %153 : vector<1x64x64xf32> to vector<64x64xf32>
    %cst_134 = arith.constant dense<0.000000e+00> : vector<2x64xf32>
    %155 = tpu.matmul %152, %154, %cst_134 {dimension_numbers = #tpu.dot_dimension_numbers<[1], [0], [0], [1], [0, 0, 1, 1], [], []>} : vector<2x64xf32>, vector<64x64xf32>, vector<2x64xf32> -> vector<2x64xf32>
    %156 = arith.addf %150, %155 : vector<2x64xf32>
    %157 = vector.extract_strided_slice %79 {offsets = [0, 13, 0], sizes = [2, 1, 64], strides = [1, 1, 1]} : vector<2x16x64xf32> to vector<2x1x64xf32>
    %158 = vector.shape_cast %157 : vector<2x1x64xf32> to vector<2x64xf32>
    %c13 = arith.constant 13 : index
    %c0_135 = arith.constant 0 : index
    %c0_136 = arith.constant 0 : index
    %159 = vector.load %arg6[%c13, %c0_135, %c0_136] : memref<16x64x64xf32, #tpu.memory_space<vmem>>, vector<1x64x64xf32>
    %160 = vector.shape_cast %159 : vector<1x64x64xf32> to vector<64x64xf32>
    %cst_137 = arith.constant dense<0.000000e+00> : vector<2x64xf32>
    %161 = tpu.matmul %158, %160, %cst_137 {dimension_numbers = #tpu.dot_dimension_numbers<[1], [0], [0], [1], [0, 0, 1, 1], [], []>} : vector<2x64xf32>, vector<64x64xf32>, vector<2x64xf32> -> vector<2x64xf32>
    %162 = arith.addf %156, %161 : vector<2x64xf32>
    %163 = vector.extract_strided_slice %79 {offsets = [0, 14, 0], sizes = [2, 1, 64], strides = [1, 1, 1]} : vector<2x16x64xf32> to vector<2x1x64xf32>
    %164 = vector.shape_cast %163 : vector<2x1x64xf32> to vector<2x64xf32>
    %c14 = arith.constant 14 : index
    %c0_138 = arith.constant 0 : index
    %c0_139 = arith.constant 0 : index
    %165 = vector.load %arg6[%c14, %c0_138, %c0_139] : memref<16x64x64xf32, #tpu.memory_space<vmem>>, vector<1x64x64xf32>
    %166 = vector.shape_cast %165 : vector<1x64x64xf32> to vector<64x64xf32>
    %cst_140 = arith.constant dense<0.000000e+00> : vector<2x64xf32>
    %167 = tpu.matmul %164, %166, %cst_140 {dimension_numbers = #tpu.dot_dimension_numbers<[1], [0], [0], [1], [0, 0, 1, 1], [], []>} : vector<2x64xf32>, vector<64x64xf32>, vector<2x64xf32> -> vector<2x64xf32>
    %168 = arith.addf %162, %167 : vector<2x64xf32>
    %169 = vector.extract_strided_slice %79 {offsets = [0, 15, 0], sizes = [2, 1, 64], strides = [1, 1, 1]} : vector<2x16x64xf32> to vector<2x1x64xf32>
    %170 = vector.shape_cast %169 : vector<2x1x64xf32> to vector<2x64xf32>
    %c15 = arith.constant 15 : index
    %c0_141 = arith.constant 0 : index
    %c0_142 = arith.constant 0 : index
    %171 = vector.load %arg6[%c15, %c0_141, %c0_142] : memref<16x64x64xf32, #tpu.memory_space<vmem>>, vector<1x64x64xf32>
    %172 = vector.shape_cast %171 : vector<1x64x64xf32> to vector<64x64xf32>
    %cst_143 = arith.constant dense<0.000000e+00> : vector<2x64xf32>
    %173 = tpu.matmul %170, %172, %cst_143 {dimension_numbers = #tpu.dot_dimension_numbers<[1], [0], [0], [1], [0, 0, 1, 1], [], []>} : vector<2x64xf32>, vector<64x64xf32>, vector<2x64xf32> -> vector<2x64xf32>
    %174 = arith.addf %168, %173 : vector<2x64xf32>
    %c0_144 = arith.constant 0 : index
    %c0_145 = arith.constant 0 : index
    %175 = vector.load %arg7[%c0_144, %c0_145] : memref<1x64xf32, #tpu.memory_space<vmem>>, vector<1x64xf32>
    %176 = vector.broadcast %175 : vector<1x64xf32> to vector<2x64xf32>
    %177 = arith.addf %174, %176 : vector<2x64xf32>
    %cst_146 = arith.constant 0.000000e+00 : f32
    %178 = vector.broadcast %cst_146 : f32 to vector<2x64xf32>
    %179 = arith.maximumf %177, %178 : vector<2x64xf32>
    %c0_147 = arith.constant 0 : index
    %c0_148 = arith.constant 0 : index
    %180 = vector.load %arg8[%c0_147, %c0_148] : memref<64x10xf32, #tpu.memory_space<vmem>>, vector<64x10xf32>
    %cst_149 = arith.constant dense<0.000000e+00> : vector<2x10xf32>
    %181 = tpu.matmul %179, %180, %cst_149 {dimension_numbers = #tpu.dot_dimension_numbers<[1], [0], [0], [1], [0, 0, 1, 1], [], []>} : vector<2x64xf32>, vector<64x10xf32>, vector<2x10xf32> -> vector<2x10xf32>
    %c0_150 = arith.constant 0 : index
    %c0_151 = arith.constant 0 : index
    %182 = vector.load %arg9[%c0_150, %c0_151] : memref<1x10xf32, #tpu.memory_space<vmem>>, vector<1x10xf32>
    %183 = vector.broadcast %182 : vector<1x10xf32> to vector<2x10xf32>
    %184 = arith.addf %181, %183 : vector<2x10xf32>
    %cst_152 = arith.constant dense<0xFF800000> : vector<2xf32>
    %185 = vector.multi_reduction <maximumf>, %184, %cst_152 [1] : vector<2x10xf32> to vector<2xf32>
    %186 = vector.shape_cast %185 : vector<2xf32> to vector<2x1xf32>
    %187 = vector.broadcast %186 : vector<2x1xf32> to vector<2x10xf32>
    %188 = arith.subf %184, %187 : vector<2x10xf32>
    %189 = math.exp %188 : vector<2x10xf32>
    %cst_153 = arith.constant dense<0.000000e+00> : vector<2xf32>
    %190 = vector.multi_reduction <add>, %189, %cst_153 [1] : vector<2x10xf32> to vector<2xf32>
    %191 = vector.shape_cast %190 : vector<2xf32> to vector<2x1xf32>
    %192 = math.log %191 : vector<2x1xf32>
    %193 = arith.addf %192, %186 : vector<2x1xf32>
    %194 = vector.broadcast %193 : vector<2x1xf32> to vector<2x10xf32>
    %195 = arith.subf %184, %194 : vector<2x10xf32>
    %c0_154 = arith.constant 0 : index
    %c0_155 = arith.constant 0 : index
    %196 = vector.load %arg10[%c0_154, %c0_155] : memref<2x10xf32, #tpu.memory_space<vmem>>, vector<2x10xf32>
    tpu.vector_store %arg10[%c0_154, %c0_155], %195 {strides = array<i32>} : memref<2x10xf32, #tpu.memory_space<vmem>>, vector<2x10xf32>,
    return
  }
  func.func @transform_0(%arg0: i32) -> (i32, i32, i32) {
    %c0_i32 = arith.constant 0 : i32
    %c0_i32_0 = arith.constant 0 : i32
    %c0_i32_1 = arith.constant 0 : i32
    return %arg0, %c0_i32, %c0_i32_0 : i32, i32, i32
  }
  func.func @transform_1(%arg0: i32) -> (i32, i32) {
    %c0_i32 = arith.constant 0 : i32
    %c0_i32_0 = arith.constant 0 : i32
    %c0_i32_1 = arith.constant 0 : i32
    return %c0_i32, %c0_i32_0 : i32, i32
  }
  func.func @transform_2(%arg0: i32) -> (i32, i32) {
    %c0_i32 = arith.constant 0 : i32
    %c0_i32_0 = arith.constant 0 : i32
    %c0_i32_1 = arith.constant 0 : i32
    return %c0_i32, %c0_i32_0 : i32, i32
  }
  func.func @transform_3(%arg0: i32) -> (i32, i32, i32) {
    %c0_i32 = arith.constant 0 : i32
    %c0_i32_0 = arith.constant 0 : i32
    %c0_i32_1 = arith.constant 0 : i32
    %c0_i32_2 = arith.constant 0 : i32
    return %c0_i32, %c0_i32_0, %c0_i32_1 : i32, i32, i32
  }
  func.func @transform_4(%arg0: i32) -> (i32, i32) {
    %c0_i32 = arith.constant 0 : i32
    %c0_i32_0 = arith.constant 0 : i32
    %c0_i32_1 = arith.constant 0 : i32
    return %c0_i32, %c0_i32_0 : i32, i32
  }
  func.func @transform_5(%arg0: i32) -> (i32, i32, i32) {
    %c0_i32 = arith.constant 0 : i32
    %c0_i32_0 = arith.constant 0 : i32
    %c0_i32_1 = arith.constant 0 : i32
    %c0_i32_2 = arith.constant 0 : i32
    return %c0_i32, %c0_i32_0, %c0_i32_1 : i32, i32, i32
  }
  func.func @transform_6(%arg0: i32) -> (i32, i32) {
    %c0_i32 = arith.constant 0 : i32
    %c0_i32_0 = arith.constant 0 : i32
    %c0_i32_1 = arith.constant 0 : i32
    return %c0_i32, %c0_i32_0 : i32, i32
  }
  func.func @transform_7(%arg0: i32) -> (i32, i32) {
    %c0_i32 = arith.constant 0 : i32
    %c0_i32_0 = arith.constant 0 : i32
    %c0_i32_1 = arith.constant 0 : i32
    return %c0_i32, %c0_i32_0 : i32, i32
  }
  func.func @transform_8(%arg0: i32) -> (i32, i32) {
    %c0_i32 = arith.constant 0 : i32
    %c0_i32_0 = arith.constant 0 : i32
    %c0_i32_1 = arith.constant 0 : i32
    return %c0_i32, %c0_i32_0 : i32, i32
  }
  func.func @transform_9(%arg0: i32) -> (i32, i32) {
    %c0_i32 = arith.constant 0 : i32
    %c0_i32_0 = arith.constant 0 : i32
    return %arg0, %c0_i32 : i32, i32
  }
}

</mosaic_0001>

<llo_original>
// kernel: cnn_forward.1
$region0: #{cnn_forward.1}
  #allocation0 [shape = 'u32[]', space=smem, size = 0x4, offset = 0x4, fixed_abs, tag = 'smem constant byte address 0x4 - core index']
  #allocation1 [shape = 'u32[144,128]{1,0:T(1,128)}', space=vmem, size = 0x12000, scoped, tag = 'internal scratch']
  #allocation2 [shape = 'f32[2,10,10,64]{3,2,1,0:T(8,128)}', space=vmem, size = 0x28000, scoped, tag = 'scratch operand']
  %s0 = inlined_call_operand.vmem [shape: f32[2,256,36], index: 0, kind: input, shape index: {}]
  %s1 = inlined_call_operand.vmem [shape: f32[36,64], index: 1, kind: input, shape index: {}]
  %s2 = inlined_call_operand.vmem [shape: f32[1,64], index: 2, kind: input, shape index: {}]
  %s3 = inlined_call_operand.vmem [shape: f32[9,64,64], index: 3, kind: input, shape index: {}]
  %s4 = inlined_call_operand.vmem [shape: f32[1,64], index: 4, kind: input, shape index: {}]
  %s5 = inlined_call_operand.vmem [shape: f32[16,64,64], index: 5, kind: input, shape index: {}]
  %s6 = inlined_call_operand.vmem [shape: f32[1,64], index: 6, kind: input, shape index: {}]
  %s7 = inlined_call_operand.vmem [shape: f32[64,10], index: 7, kind: input, shape index: {}]
  %s8 = inlined_call_operand.vmem [shape: f32[1,10], index: 8, kind: input, shape index: {}]
  %s9 = inlined_call_operand.hbm [shape: f32[2,10], index: 9, kind: output, shape index: {}]
  %s10 = sld [smem:[#allocation0]]
  $region46: #{cnn_forward.1} parent=0
    _
  %s12 = ssub.s32 1, %s10
  %s13 = scalar_select 0, %s12, %s10
  $region1: #{cnn_forward.1} parent=0
    #allocation3 [shape = 'u8[1024]{0}', space=vmem, size = 0x400, scoped, tag = 'output window, operand 0, single buffered']
    #allocation4 [shape = 's32[1]{0}', space=sflag, size = 0x4, scoped, tag = 'scoped memory for cnn_forward.1']
    %14 = vsyncpa [#allocation4], 0
    // Predicated region
    $region2: #{cnn_forward.1} parent=1 // pred_check
      _
    $region3: #{cnn_forward.1} parent=1 // pred_check_branch
      %16 = sbr.rel (0) target = $region5
    $region4: #{cnn_forward.1} parent=1 // pred_region
      _
    $region5: #{cnn_forward.1} parent=1 // pred_fallthru
      _
    // Predicated region
    $region6: #{cnn_forward.1} parent=1 // pred_check
      _
    $region7: #{cnn_forward.1} parent=1 // pred_check_branch
      %18 = sbr.rel (0) target = $region9
    $region8: #{cnn_forward.1} parent=1 // pred_region
      _
    $region9: #{cnn_forward.1} parent=1 // pred_fallthru
      _
    // Predicated region
    $region10: #{cnn_forward.1} parent=1 // pred_check
      _
    $region11: #{cnn_forward.1} parent=1 // pred_check_branch
      %20 = sbr.rel (0) target = $region13
    $region12: #{cnn_forward.1} parent=1 // pred_region
      _
    $region13: #{cnn_forward.1} parent=1 // pred_fallthru
      _
    // Predicated region
    $region14: #{cnn_forward.1} parent=1 // pred_check
      _
    $region15: #{cnn_forward.1} parent=1 // pred_check_branch
      %22 = sbr.rel (0) target = $region17
    $region16: #{cnn_forward.1} parent=1 // pred_region
      _
    $region17: #{cnn_forward.1} parent=1 // pred_fallthru
      _
    // Predicated region
    $region18: #{cnn_forward.1} parent=1 // pred_check
      _
    $region19: #{cnn_forward.1} parent=1 // pred_check_branch
      %24 = sbr.rel (0) target = $region21
    $region20: #{cnn_forward.1} parent=1 // pred_region
      _
    $region21: #{cnn_forward.1} parent=1 // pred_fallthru
      _
    // Predicated region
    $region22: #{cnn_forward.1} parent=1 // pred_check
      _
    $region23: #{cnn_forward.1} parent=1 // pred_check_branch
      %26 = sbr.rel (0) target = $region25
    $region24: #{cnn_forward.1} parent=1 // pred_region
      _
    $region25: #{cnn_forward.1} parent=1 // pred_fallthru
      _
    // Predicated region
    $region26: #{cnn_forward.1} parent=1 // pred_check
      _
    $region27: #{cnn_forward.1} parent=1 // pred_check_branch
      %28 = sbr.rel (0) target = $region29
    $region28: #{cnn_forward.1} parent=1 // pred_region
      _
    $region29: #{cnn_forward.1} parent=1 // pred_fallthru
      _
    // Predicated region
    $region30: #{cnn_forward.1} parent=1 // pred_check
      _
    $region31: #{cnn_forward.1} parent=1 // pred_check_branch
      %30 = sbr.rel (0) target = $region33
    $region32: #{cnn_forward.1} parent=1 // pred_region
      _
    $region33: #{cnn_forward.1} parent=1 // pred_fallthru
      _
    // Predicated region
    $region34: #{cnn_forward.1} parent=1 // pred_check
      _
    $region35: #{cnn_forward.1} parent=1 // pred_check_branch
      %32 = sbr.rel (0) target = $region37
    $region36: #{cnn_forward.1} parent=1 // pred_region
      _
    $region37: #{cnn_forward.1} parent=1 // pred_fallthru
      _
    %v33 = vld [vmem:[%s0] sm:$0xff]
    %v34 = vld [vmem:[%s0 + $0x8] sm:$0xff]
    %v35 = vld [vmem:[%s0 + $0x10] sm:$0xff]
    %v36 = vld [vmem:[%s0 + $0x18] sm:$0xff]
    %v37 = vld [vmem:[%s0 + $0x20] sm:$0xff]
    %v38 = vld [vmem:[%s0 + $0x28] sm:$0xff]
    %v39 = vld [vmem:[%s0 + $0x30] sm:$0xff]
    %v40 = vld [vmem:[%s0 + $0x38] sm:$0xff]
    %v41 = vld [vmem:[%s0 + $0x40] sm:$0xff]
    %v42 = vld [vmem:[%s0 + $0x48] sm:$0xff]
    %v43 = vld [vmem:[%s0 + $0x50] sm:$0xff]
    %v44 = vld [vmem:[%s0 + $0x58] sm:$0xff]
    %v45 = vld [vmem:[%s0 + $0x60] sm:$0xff]
    %v46 = vld [vmem:[%s0 + $0x68] sm:$0xff]
    %v47 = vld [vmem:[%s0 + $0x70] sm:$0xff]
    %v48 = vld [vmem:[%s0 + $0x78] sm:$0xff]
    %v49 = vld [vmem:[%s0 + $0x80] sm:$0xff]
    %v50 = vld [vmem:[%s0 + $0x88] sm:$0xff]
    %v51 = vld [vmem:[%s0 + $0x90] sm:$0xff]
    %v52 = vld [vmem:[%s0 + $0x98] sm:$0xff]
    %v53 = vld [vmem:[%s0 + $0xa0] sm:$0xff]
    %v54 = vld [vmem:[%s0 + $0xa8] sm:$0xff]
    %v55 = vld [vmem:[%s0 + $0xb0] sm:$0xff]
    %v56 = vld [vmem:[%s0 + $0xb8] sm:$0xff]
    %v57 = vld [vmem:[%s0 + $0xc0] sm:$0xff]
    %v58 = vld [vmem:[%s0 + $0xc8] sm:$0xff]
    %v59 = vld [vmem:[%s0 + $0xd0] sm:$0xff]
    %v60 = vld [vmem:[%s0 + $0xd8] sm:$0xff]
    %v61 = vld [vmem:[%s0 + $0xe0] sm:$0xff]
    %v62 = vld [vmem:[%s0 + $0xe8] sm:$0xff]
    %v63 = vld [vmem:[%s0 + $0xf0] sm:$0xff]
    %v64 = vld [vmem:[%s0 + $0xf8] sm:$0xff]
    %v65 = vld [vmem:[%s0 + $0x100] sm:$0xff]
    %v66 = vld [vmem:[%s0 + $0x108] sm:$0xff]
    %v67 = vld [vmem:[%s0 + $0x110] sm:$0xff]
    %v68 = vld [vmem:[%s0 + $0x118] sm:$0xff]
    %v69 = vld [vmem:[%s0 + $0x120] sm:$0xff]
    %v70 = vld [vmem:[%s0 + $0x128] sm:$0xff]
    %v71 = vld [vmem:[%s0 + $0x130] sm:$0xff]
    %v72 = vld [vmem:[%s0 + $0x138] sm:$0xff]
    %v73 = vld [vmem:[%s0 + $0x140] sm:$0xff]
    %v74 = vld [vmem:[%s0 + $0x148] sm:$0xff]
    %v75 = vld [vmem:[%s0 + $0x150] sm:$0xff]
    %v76 = vld [vmem:[%s0 + $0x158] sm:$0xff]
    %v77 = vld [vmem:[%s0 + $0x160] sm:$0xff]
    %v78 = vld [vmem:[%s0 + $0x168] sm:$0xff]
    %v79 = vld [vmem:[%s0 + $0x170] sm:$0xff]
    %v80 = vld [vmem:[%s0 + $0x178] sm:$0xff]
    %v81 = vld [vmem:[%s0 + $0x180] sm:$0xff]
    %v82 = vld [vmem:[%s0 + $0x188] sm:$0xff]
    %v83 = vld [vmem:[%s0 + $0x190] sm:$0xff]
    %v84 = vld [vmem:[%s0 + $0x198] sm:$0xff]
    %v85 = vld [vmem:[%s0 + $0x1a0] sm:$0xff]
    %v86 = vld [vmem:[%s0 + $0x1a8] sm:$0xff]
    %v87 = vld [vmem:[%s0 + $0x1b0] sm:$0xff]
    %v88 = vld [vmem:[%s0 + $0x1b8] sm:$0xff]
    %v89 = vld [vmem:[%s0 + $0x1c0] sm:$0xff]
    %v90 = vld [vmem:[%s0 + $0x1c8] sm:$0xff]
    %v91 = vld [vmem:[%s0 + $0x1d0] sm:$0xff]
    %v92 = vld [vmem:[%s0 + $0x1d8] sm:$0xff]
    %v93 = vld [vmem:[%s0 + $0x1e0] sm:$0xff]
    %v94 = vld [vmem:[%s0 + $0x1e8] sm:$0xff]
    %v95 = vld [vmem:[%s0 + $0x1f0] sm:$0xff]
    %v96 = vld [vmem:[%s0 + $0x1f8] sm:$0xff]
    %v97 = vld [vmem:[%s1] sm:$0xff]
    %v98 = vld [vmem:[%s1 + $0x8] sm:$0xff]
    %v99 = vld [vmem:[%s1 + $0x10] sm:$0xff]
    %v100 = vld [vmem:[%s1 + $0x18] sm:$0xff]
    %v101 = vld [vmem:[%s1 + $0x20] sm:$0xf]
    %v102 = vld [vmem:[%s2] sm:$0x1]
    %v104 = vlaneseq
    %v105 = vshrl.u32 %v104, 7
    %v106 = vsub.s32 0, %v105
    %v107 = vrot.slane %v102, %v106
    %vm109 = vcmask 293888
    %v111 = vsel %vm109, %v33, 0
    %v114 = vsel %vm109, %v34, 0
    %v117 = vsel %vm109, %v35, 0
    %v120 = vsel %vm109, %v36, 0
    %v123 = vsel %vm109, %v37, 0
    %v126 = vsel %vm109, %v38, 0
    %v129 = vsel %vm109, %v39, 0
    %v132 = vsel %vm109, %v40, 0
    %v135 = vsel %vm109, %v41, 0
    %v138 = vsel %vm109, %v42, 0
    %v141 = vsel %vm109, %v43, 0
    %v144 = vsel %vm109, %v44, 0
    %v147 = vsel %vm109, %v45, 0
    %v150 = vsel %vm109, %v46, 0
    %v153 = vsel %vm109, %v47, 0
    %v156 = vsel %vm109, %v48, 0
    %v159 = vsel %vm109, %v49, 0
    %v162 = vsel %vm109, %v50, 0
    %v165 = vsel %vm109, %v51, 0
    %v168 = vsel %vm109, %v52, 0
    %v171 = vsel %vm109, %v53, 0
    %v174 = vsel %vm109, %v54, 0
    %v177 = vsel %vm109, %v55, 0
    %v180 = vsel %vm109, %v56, 0
    %v183 = vsel %vm109, %v57, 0
    %v186 = vsel %vm109, %v58, 0
    %v189 = vsel %vm109, %v59, 0
    %v192 = vsel %vm109, %v60, 0
    %v195 = vsel %vm109, %v61, 0
    %v198 = vsel %vm109, %v62, 0
    %v201 = vsel %vm109, %v63, 0
    %v204 = vsel %vm109, %v64, 0
    %v207 = vsel %vm109, %v65, 0
    %v210 = vsel %vm109, %v66, 0
    %v213 = vsel %vm109, %v67, 0
    %v216 = vsel %vm109, %v68, 0
    %v219 = vsel %vm109, %v69, 0
    %v222 = vsel %vm109, %v70, 0
    %v225 = vsel %vm109, %v71, 0
    %v228 = vsel %vm109, %v72, 0
    %v231 = vsel %vm109, %v73, 0
    %v234 = vsel %vm109, %v74, 0
    %v237 = vsel %vm109, %v75, 0
    %v240 = vsel %vm109, %v76, 0
    %v243 = vsel %vm109, %v77, 0
    %v246 = vsel %vm109, %v78, 0
    %v249 = vsel %vm109, %v79, 0
    %v252 = vsel %vm109, %v80, 0
    %v255 = vsel %vm109, %v81, 0
    %v258 = vsel %vm109, %v82, 0
    %v261 = vsel %vm109, %v83, 0
    %v264 = vsel %vm109, %v84, 0
    %v267 = vsel %vm109, %v85, 0
    %v270 = vsel %vm109, %v86, 0
    %v273 = vsel %vm109, %v87, 0
    %v276 = vsel %vm109, %v88, 0
    %v279 = vsel %vm109, %v89, 0
    %v282 = vsel %vm109, %v90, 0
    %v285 = vsel %vm109, %v91, 0
    %v288 = vsel %vm109, %v92, 0
    %v291 = vsel %vm109, %v93, 0
    %v294 = vsel %vm109, %v94, 0
    %v297 = vsel %vm109, %v95, 0
    %v300 = vsel %vm109, %v96, 0
    %vm302 = vcmask 1043456
    %v304 = vsel %vm302, %v101, 0
    %306 = vmatprep.subr.mxu0 0.0
    %307 = vmatpush1.msra.mxu0 %v97
    %308 = vmatprep.subr.mxu0 0.0
    %309 = vmatpush1.msra.mxu0 %v98
    %310 = vmatprep.subr.mxu0 0.0
    %311 = vmatpush1.msra.mxu0 %v99
    %312 = vmatprep.subr.mxu0 0.0
    %313 = vmatpush1.msra.mxu0 %v100
    %314 = vmatprep.subr.mxu0 0.0
    %315 = vmatpush1.msra.mxu0 %v304
    %316 = vmatprep.subr.mxu0 0.0
    %317 = vmatpush1.msra.mxu0 0.0
    %318 = vmatprep.subr.mxu0 0.0
    %319 = vmatpush1.msra.mxu0 0.0
    %320 = vmatprep.subr.mxu0 0.0
    %321 = vmatpush1.msra.mxu0 0.0
    %322 = vmatprep.subr.mxu0 0.0
    %323 = vmatpush1.msra.mxu0 0.0
    %324 = vmatprep.subr.mxu0 0.0
    %325 = vmatpush1.msra.mxu0 0.0
    %326 = vmatprep.subr.mxu0 0.0
    %327 = vmatpush1.msra.mxu0 0.0
    %328 = vmatprep.subr.mxu0 0.0
    %329 = vmatpush1.msra.mxu0 0.0
    %330 = vmatprep.subr.mxu0 0.0
    %331 = vmatpush1.msra.mxu0 0.0
    %332 = vmatprep.subr.mxu0 0.0
    %333 = vmatpush1.msra.mxu0 0.0
    %334 = vmatprep.subr.mxu0 0.0
    %335 = vmatpush1.msra.mxu0 0.0
    %336 = vmatprep.subr.mxu0 0.0
    %337 = vmatpush1.msra.mxu0 0.0
    %338 = vmatprep.subr.mxu0 0.0
    %339 = vmatpush1.msra.mxu0 0.0
    %340 = vmatprep.subr.mxu0 0.0
    %341 = vmatpush1.msra.mxu0 0.0
    %342 = vmatprep.subr.mxu0 0.0
    %343 = vmatpush1.msra.mxu0 0.0
    %344 = vmatprep.subr.mxu0 0.0
    %345 = vmatpush1.msra.mxu0 0.0
    %346 = vmatprep.subr.mxu0 0.0
    %347 = vmatpush1.msra.mxu0 0.0
    %348 = vmatprep.subr.mxu0 0.0
    %349 = vmatpush1.msra.mxu0 0.0
    %350 = vmatprep.subr.mxu0 0.0
    %351 = vmatpush1.msra.mxu0 0.0
    %352 = vmatprep.subr.mxu0 0.0
    %353 = vmatpush1.msra.mxu0 0.0
    %354 = vmatprep.subr.mxu0 0.0
    %355 = vmatpush1.msra.mxu0 0.0
    %356 = vmatprep.subr.mxu0 0.0
    %357 = vmatpush1.msra.mxu0 0.0
    %358 = vmatprep.subr.mxu0 0.0
    %359 = vmatpush1.msra.mxu0 0.0
    %360 = vmatprep.subr.mxu0 0.0
    %361 = vmatpush1.msra.mxu0 0.0
    %362 = vmatprep.subr.mxu0 0.0
    %363 = vmatpush1.msra.mxu0 0.0
    %364 = vmatprep.subr.mxu0 0.0
    %365 = vmatpush1.msra.mxu0 0.0
    %366 = vmatprep.subr.mxu0 0.0
    %367 = vmatpush1.msra.mxu0 0.0
    %368 = vmatprep.subr.mxu0 0.0
    %369 = vmatpush1.msra.mxu0 0.0
    %370 = vmatprep.mubr.f32.mxu0 0.0
    %371 = vmatmul.mubr.f32.gmra.mrb[0].mxu0 %v111
    %v372 = vpop.f32.mrb[0].mxu0
    %v373 = vadd.f32 %v107, %v372
    %v374 = vpop.f32.mrb[0].mxu0
    %375 = vmatprep.mubr.f32.mxu0 0.0
    %376 = vmatmul.mubr.f32.gmra.mrb[0].mxu0 %v114
    %v377 = vpop.f32.mrb[0].mxu0
    %v378 = vadd.f32 %v107, %v377
    %v379 = vpop.f32.mrb[0].mxu0
    %380 = vmatprep.mubr.f32.mxu0 0.0
    %381 = vmatmul.mubr.f32.gmra.mrb[0].mxu0 %v117
    %v382 = vpop.f32.mrb[0].mxu0
    %v383 = vadd.f32 %v107, %v382
    %v384 = vpop.f32.mrb[0].mxu0
    %385 = vmatprep.mubr.f32.mxu0 0.0
    %386 = vmatmul.mubr.f32.gmra.mrb[0].mxu0 %v120
    %v387 = vpop.f32.mrb[0].mxu0
    %v388 = vadd.f32 %v107, %v387
    %v389 = vpop.f32.mrb[0].mxu0
    %390 = vmatprep.mubr.f32.mxu0 0.0
    %391 = vmatmul.mubr.f32.gmra.mrb[0].mxu0 %v123
    %v392 = vpop.f32.mrb[0].mxu0
    %v393 = vadd.f32 %v107, %v392
    %v394 = vpop.f32.mrb[0].mxu0
    %395 = vmatprep.mubr.f32.mxu0 0.0
    %396 = vmatmul.mubr.f32.gmra.mrb[0].mxu0 %v126
    %v397 = vpop.f32.mrb[0].mxu0
    %v398 = vadd.f32 %v107, %v397
    %v399 = vpop.f32.mrb[0].mxu0
    %400 = vmatprep.mubr.f32.mxu0 0.0
    %401 = vmatmul.mubr.f32.gmra.mrb[0].mxu0 %v129
    %v402 = vpop.f32.mrb[0].mxu0
    %v403 = vadd.f32 %v107, %v402
    %v404 = vpop.f32.mrb[0].mxu0
    %405 = vmatprep.mubr.f32.mxu0 0.0
    %406 = vmatmul.mubr.f32.gmra.mrb[0].mxu0 %v132
    %v407 = vpop.f32.mrb[0].mxu0
    %v408 = vadd.f32 %v107, %v407
    %v409 = vpop.f32.mrb[0].mxu0
    %410 = vmatprep.mubr.f32.mxu0 0.0
    %411 = vmatmul.mubr.f32.gmra.mrb[0].mxu0 %v135
    %v412 = vpop.f32.mrb[0].mxu0
    %v413 = vadd.f32 %v107, %v412
    %v414 = vpop.f32.mrb[0].mxu0
    %415 = vmatprep.mubr.f32.mxu0 0.0
    %416 = vmatmul.mubr.f32.gmra.mrb[0].mxu0 %v138
    %v417 = vpop.f32.mrb[0].mxu0
    %v418 = vadd.f32 %v107, %v417
    %v419 = vpop.f32.mrb[0].mxu0
    %420 = vmatprep.mubr.f32.mxu0 0.0
    %421 = vmatmul.mubr.f32.gmra.mrb[0].mxu0 %v141
    %v422 = vpop.f32.mrb[0].mxu0
    %v423 = vadd.f32 %v107, %v422
    %v424 = vpop.f32.mrb[0].mxu0
    %425 = vmatprep.mubr.f32.mxu0 0.0
    %426 = vmatmul.mubr.f32.gmra.mrb[0].mxu0 %v144
    %v427 = vpop.f32.mrb[0].mxu0
    %v428 = vadd.f32 %v107, %v427
    %v429 = vpop.f32.mrb[0].mxu0
    %430 = vmatprep.mubr.f32.mxu0 0.0
    %431 = vmatmul.mubr.f32.gmra.mrb[0].mxu0 %v147
    %v432 = vpop.f32.mrb[0].mxu0
    %v433 = vadd.f32 %v107, %v432
    %v434 = vpop.f32.mrb[0].mxu0
    %435 = vmatprep.mubr.f32.mxu0 0.0
    %436 = vmatmul.mubr.f32.gmra.mrb[0].mxu0 %v150
    %v437 = vpop.f32.mrb[0].mxu0
    %v438 = vadd.f32 %v107, %v437
    %v439 = vpop.f32.mrb[0].mxu0
    %440 = vmatprep.mubr.f32.mxu0 0.0
    %441 = vmatmul.mubr.f32.gmra.mrb[0].mxu0 %v153
    %v442 = vpop.f32.mrb[0].mxu0
    %v443 = vadd.f32 %v107, %v442
    %v444 = vpop.f32.mrb[0].mxu0
    %445 = vmatprep.mubr.f32.mxu0 0.0
    %446 = vmatmul.mubr.f32.gmra.mrb[0].mxu0 %v156
    %v447 = vpop.f32.mrb[0].mxu0
    %v448 = vadd.f32 %v107, %v447
    %v449 = vpop.f32.mrb[0].mxu0
    %450 = vmatprep.mubr.f32.mxu0 0.0
    %451 = vmatmul.mubr.f32.gmra.mrb[0].mxu0 %v159
    %v452 = vpop.f32.mrb[0].mxu0
    %v453 = vadd.f32 %v107, %v452
    %v454 = vpop.f32.mrb[0].mxu0
    %455 = vmatprep.mubr.f32.mxu0 0.0
    %456 = vmatmul.mubr.f32.gmra.mrb[0].mxu0 %v162
    %v457 = vpop.f32.mrb[0].mxu0
    %v458 = vadd.f32 %v107, %v457
    %v459 = vpop.f32.mrb[0].mxu0
    %460 = vmatprep.mubr.f32.mxu0 0.0
    %461 = vmatmul.mubr.f32.gmra.mrb[0].mxu0 %v165
    %v462 = vpop.f32.mrb[0].mxu0
    %v463 = vadd.f32 %v107, %v462
    %v464 = vpop.f32.mrb[0].mxu0
    %465 = vmatprep.mubr.f32.mxu0 0.0
    %466 = vmatmul.mubr.f32.gmra.mrb[0].mxu0 %v168
    %v467 = vpop.f32.mrb[0].mxu0
    %v468 = vadd.f32 %v107, %v467
    %v469 = vpop.f32.mrb[0].mxu0
    %470 = vmatprep.mubr.f32.mxu0 0.0
    %471 = vmatmul.mubr.f32.gmra.mrb[0].mxu0 %v171
    %v472 = vpop.f32.mrb[0].mxu0
    %v473 = vadd.f32 %v107, %v472
    %v474 = vpop.f32.mrb[0].mxu0
    %475 = vmatprep.mubr.f32.mxu0 0.0
    %476 = vmatmul.mubr.f32.gmra.mrb[0].mxu0 %v174
    %v477 = vpop.f32.mrb[0].mxu0
    %v478 = vadd.f32 %v107, %v477
    %v479 = vpop.f32.mrb[0].mxu0
    %480 = vmatprep.mubr.f32.mxu0 0.0
    %481 = vmatmul.mubr.f32.gmra.mrb[0].mxu0 %v177
    %v482 = vpop.f32.mrb[0].mxu0
    %v483 = vadd.f32 %v107, %v482
    %v484 = vpop.f32.mrb[0].mxu0
    %485 = vmatprep.mubr.f32.mxu0 0.0
    %486 = vmatmul.mubr.f32.gmra.mrb[0].mxu0 %v180
    %v487 = vpop.f32.mrb[0].mxu0
    %v488 = vadd.f32 %v107, %v487
    %v489 = vpop.f32.mrb[0].mxu0
    %490 = vmatprep.mubr.f32.mxu0 0.0
    %491 = vmatmul.mubr.f32.gmra.mrb[0].mxu0 %v183
    %v492 = vpop.f32.mrb[0].mxu0
    %v493 = vadd.f32 %v107, %v492
    %v494 = vpop.f32.mrb[0].mxu0
    %495 = vmatprep.mubr.f32.mxu0 0.0
    %496 = vmatmul.mubr.f32.gmra.mrb[0].mxu0 %v186
    %v497 = vpop.f32.mrb[0].mxu0
    %v498 = vadd.f32 %v107, %v497
    %v499 = vpop.f32.mrb[0].mxu0
    %500 = vmatprep.mubr.f32.mxu0 0.0
    %501 = vmatmul.mubr.f32.gmra.mrb[0].mxu0 %v189
    %v502 = vpop.f32.mrb[0].mxu0
    %v503 = vadd.f32 %v107, %v502
    %v504 = vpop.f32.mrb[0].mxu0
    %505 = vmatprep.mubr.f32.mxu0 0.0
    %506 = vmatmul.mubr.f32.gmra.mrb[0].mxu0 %v192
    %v507 = vpop.f32.mrb[0].mxu0
    %v508 = vadd.f32 %v107, %v507
    %v509 = vpop.f32.mrb[0].mxu0
    %510 = vmatprep.mubr.f32.mxu0 0.0
    %511 = vmatmul.mubr.f32.gmra.mrb[0].mxu0 %v195
    %v512 = vpop.f32.mrb[0].mxu0
    %v513 = vadd.f32 %v107, %v512
    %v514 = vpop.f32.mrb[0].mxu0
    %515 = vmatprep.mubr.f32.mxu0 0.0
    %516 = vmatmul.mubr.f32.gmra.mrb[0].mxu0 %v198
    %v517 = vpop.f32.mrb[0].mxu0
    %v518 = vadd.f32 %v107, %v517
    %v519 = vpop.f32.mrb[0].mxu0
    %520 = vmatprep.mubr.f32.mxu0 0.0
    %521 = vmatmul.mubr.f32.gmra.mrb[0].mxu0 %v201
    %v522 = vpop.f32.mrb[0].mxu0
    %v523 = vadd.f32 %v107, %v522
    %v524 = vpop.f32.mrb[0].mxu0
    %525 = vmatprep.mubr.f32.mxu0 0.0
    %526 = vmatmul.mubr.f32.gmra.mrb[0].mxu0 %v204
    %v527 = vpop.f32.mrb[0].mxu0
    %v528 = vadd.f32 %v107, %v527
    %v529 = vpop.f32.mrb[0].mxu0
    %530 = vmatprep.mubr.f32.mxu0 0.0
    %531 = vmatmul.mubr.f32.gmra.mrb[0].mxu0 %v207
    %v532 = vpop.f32.mrb[0].mxu0
    %v533 = vadd.f32 %v107, %v532
    %v534 = vpop.f32.mrb[0].mxu0
    %535 = vmatprep.mubr.f32.mxu0 0.0
    %536 = vmatmul.mubr.f32.gmra.mrb[0].mxu0 %v210
    %v537 = vpop.f32.mrb[0].mxu0
    %v538 = vadd.f32 %v107, %v537
    %v539 = vpop.f32.mrb[0].mxu0
    %540 = vmatprep.mubr.f32.mxu0 0.0
    %541 = vmatmul.mubr.f32.gmra.mrb[0].mxu0 %v213
    %v542 = vpop.f32.mrb[0].mxu0
    %v543 = vadd.f32 %v107, %v542
    %v544 = vpop.f32.mrb[0].mxu0
    %545 = vmatprep.mubr.f32.mxu0 0.0
    %546 = vmatmul.mubr.f32.gmra.mrb[0].mxu0 %v216
    %v547 = vpop.f32.mrb[0].mxu0
    %v548 = vadd.f32 %v107, %v547
    %v549 = vpop.f32.mrb[0].mxu0
    %550 = vmatprep.mubr.f32.mxu0 0.0
    %551 = vmatmul.mubr.f32.gmra.mrb[0].mxu0 %v219
    %v552 = vpop.f32.mrb[0].mxu0
    %v553 = vadd.f32 %v107, %v552
    %v554 = vpop.f32.mrb[0].mxu0
    %555 = vmatprep.mubr.f32.mxu0 0.0
    %556 = vmatmul.mubr.f32.gmra.mrb[0].mxu0 %v222
    %v557 = vpop.f32.mrb[0].mxu0
    %v558 = vadd.f32 %v107, %v557
    %v559 = vpop.f32.mrb[0].mxu0
    %560 = vmatprep.mubr.f32.mxu0 0.0
    %561 = vmatmul.mubr.f32.gmra.mrb[0].mxu0 %v225
    %v562 = vpop.f32.mrb[0].mxu0
    %v563 = vadd.f32 %v107, %v562
    %v564 = vpop.f32.mrb[0].mxu0
    %565 = vmatprep.mubr.f32.mxu0 0.0
    %566 = vmatmul.mubr.f32.gmra.mrb[0].mxu0 %v228
    %v567 = vpop.f32.mrb[0].mxu0
    %v568 = vadd.f32 %v107, %v567
    %v569 = vpop.f32.mrb[0].mxu0
    %570 = vmatprep.mubr.f32.mxu0 0.0
    %571 = vmatmul.mubr.f32.gmra.mrb[0].mxu0 %v231
    %v572 = vpop.f32.mrb[0].mxu0
    %v573 = vadd.f32 %v107, %v572
    %v574 = vpop.f32.mrb[0].mxu0
    %575 = vmatprep.mubr.f32.mxu0 0.0
    %576 = vmatmul.mubr.f32.gmra.mrb[0].mxu0 %v234
    %v577 = vpop.f32.mrb[0].mxu0
    %v578 = vadd.f32 %v107, %v577
    %v579 = vpop.f32.mrb[0].mxu0
    %580 = vmatprep.mubr.f32.mxu0 0.0
    %581 = vmatmul.mubr.f32.gmra.mrb[0].mxu0 %v237
    %v582 = vpop.f32.mrb[0].mxu0
    %v583 = vadd.f32 %v107, %v582
    %v584 = vpop.f32.mrb[0].mxu0
    %585 = vmatprep.mubr.f32.mxu0 0.0
    %586 = vmatmul.mubr.f32.gmra.mrb[0].mxu0 %v240
    %v587 = vpop.f32.mrb[0].mxu0
    %v588 = vadd.f32 %v107, %v587
    %v589 = vpop.f32.mrb[0].mxu0
    %590 = vmatprep.mubr.f32.mxu0 0.0
    %591 = vmatmul.mubr.f32.gmra.mrb[0].mxu0 %v243
    %v592 = vpop.f32.mrb[0].mxu0
    %v593 = vadd.f32 %v107, %v592
    %v594 = vpop.f32.mrb[0].mxu0
    %595 = vmatprep.mubr.f32.mxu0 0.0
    %596 = vmatmul.mubr.f32.gmra.mrb[0].mxu0 %v246
    %v597 = vpop.f32.mrb[0].mxu0
    %v598 = vadd.f32 %v107, %v597
    %v599 = vpop.f32.mrb[0].mxu0
    %600 = vmatprep.mubr.f32.mxu0 0.0
    %601 = vmatmul.mubr.f32.gmra.mrb[0].mxu0 %v249
    %v602 = vpop.f32.mrb[0].mxu0
    %v603 = vadd.f32 %v107, %v602
    %v604 = vpop.f32.mrb[0].mxu0
    %605 = vmatprep.mubr.f32.mxu0 0.0
    %606 = vmatmul.mubr.f32.gmra.mrb[0].mxu0 %v252
    %v607 = vpop.f32.mrb[0].mxu0
    %v608 = vadd.f32 %v107, %v607
    %v609 = vpop.f32.mrb[0].mxu0
    %610 = vmatprep.mubr.f32.mxu0 0.0
    %611 = vmatmul.mubr.f32.gmra.mrb[0].mxu0 %v255
    %v612 = vpop.f32.mrb[0].mxu0
    %v613 = vadd.f32 %v107, %v612
    %v614 = vpop.f32.mrb[0].mxu0
    %615 = vmatprep.mubr.f32.mxu0 0.0
    %616 = vmatmul.mubr.f32.gmra.mrb[0].mxu0 %v258
    %v617 = vpop.f32.mrb[0].mxu0
    %v618 = vadd.f32 %v107, %v617
    %v619 = vpop.f32.mrb[0].mxu0
    %620 = vmatprep.mubr.f32.mxu0 0.0
    %621 = vmatmul.mubr.f32.gmra.mrb[0].mxu0 %v261
    %v622 = vpop.f32.mrb[0].mxu0
    %v623 = vadd.f32 %v107, %v622
    %v624 = vpop.f32.mrb[0].mxu0
    %625 = vmatprep.mubr.f32.mxu0 0.0
    %626 = vmatmul.mubr.f32.gmra.mrb[0].mxu0 %v264
    %v627 = vpop.f32.mrb[0].mxu0
    %v628 = vadd.f32 %v107, %v627
    %v629 = vpop.f32.mrb[0].mxu0
    %630 = vmatprep.mubr.f32.mxu0 0.0
    %631 = vmatmul.mubr.f32.gmra.mrb[0].mxu0 %v267
    %v632 = vpop.f32.mrb[0].mxu0
    %v633 = vadd.f32 %v107, %v632
    %v634 = vpop.f32.mrb[0].mxu0
    %635 = vmatprep.mubr.f32.mxu0 0.0
    %636 = vmatmul.mubr.f32.gmra.mrb[0].mxu0 %v270
    %v637 = vpop.f32.mrb[0].mxu0
    %v638 = vadd.f32 %v107, %v637
    %v639 = vpop.f32.mrb[0].mxu0
    %640 = vmatprep.mubr.f32.mxu0 0.0
    %641 = vmatmul.mubr.f32.gmra.mrb[0].mxu0 %v273
    %v642 = vpop.f32.mrb[0].mxu0
    %v643 = vadd.f32 %v107, %v642
    %v644 = vpop.f32.mrb[0].mxu0
    %645 = vmatprep.mubr.f32.mxu0 0.0
    %646 = vmatmul.mubr.f32.gmra.mrb[0].mxu0 %v276
    %v647 = vpop.f32.mrb[0].mxu0
    %v648 = vadd.f32 %v107, %v647
    %v649 = vpop.f32.mrb[0].mxu0
    %650 = vmatprep.mubr.f32.mxu0 0.0
    %651 = vmatmul.mubr.f32.gmra.mrb[0].mxu0 %v279
    %v652 = vpop.f32.mrb[0].mxu0
    %v653 = vadd.f32 %v107, %v652
    %v654 = vpop.f32.mrb[0].mxu0
    %655 = vmatprep.mubr.f32.mxu0 0.0
    %656 = vmatmul.mubr.f32.gmra.mrb[0].mxu0 %v282
    %v657 = vpop.f32.mrb[0].mxu0
    %v658 = vadd.f32 %v107, %v657
    %v659 = vpop.f32.mrb[0].mxu0
    %660 = vmatprep.mubr.f32.mxu0 0.0
    %661 = vmatmul.mubr.f32.gmra.mrb[0].mxu0 %v285
    %v662 = vpop.f32.mrb[0].mxu0
    %v663 = vadd.f32 %v107, %v662
    %v664 = vpop.f32.mrb[0].mxu0
    %665 = vmatprep.mubr.f32.mxu0 0.0
    %666 = vmatmul.mubr.f32.gmra.mrb[0].mxu0 %v288
    %v667 = vpop.f32.mrb[0].mxu0
    %v668 = vadd.f32 %v107, %v667
    %v669 = vpop.f32.mrb[0].mxu0
    %670 = vmatprep.mubr.f32.mxu0 0.0
    %671 = vmatmul.mubr.f32.gmra.mrb[0].mxu0 %v291
    %v672 = vpop.f32.mrb[0].mxu0
    %v673 = vadd.f32 %v107, %v672
    %v674 = vpop.f32.mrb[0].mxu0
    %675 = vmatprep.mubr.f32.mxu0 0.0
    %676 = vmatmul.mubr.f32.gmra.mrb[0].mxu0 %v294
    %v677 = vpop.f32.mrb[0].mxu0
    %v678 = vadd.f32 %v107, %v677
    %v679 = vpop.f32.mrb[0].mxu0
    %680 = vmatprep.mubr.f32.mxu0 0.0
    %681 = vmatmul.mubr.f32.gmra.mrb[0].mxu0 %v297
    %v682 = vpop.f32.mrb[0].mxu0
    %v683 = vadd.f32 %v107, %v682
    %v684 = vpop.f32.mrb[0].mxu0
    %685 = vmatprep.mubr.f32.mxu0 0.0
    %686 = vmatmul.mubr.f32.gmra.mrb[0].mxu0 %v300
    %v687 = vpop.f32.mrb[0].mxu0
    %v688 = vadd.f32 %v107, %v687
    %v689 = vpop.f32.mrb[0].mxu0
    %690 = vdwg.mxu0
    %v755 = vcombine.high %v373, %v373
    %v757 = vunpack.c.l.s4 1983009808
    %v758 = vunpack.c.0.s8 %v757
    %v759 = vlaneseq
    %v760 = vshrl.u32 %v759, 7
    %v761 = vsub.s32 %v758, %v760
    %v762 = vrot.slane %v373, %v761
    %v764 = vunpack.c.l.s4 1983009808
    %v765 = vunpack.c.0.s8 %v764
    %v766 = vlaneseq
    %v767 = vshrl.u32 %v766, 7
    %v768 = vsub.s32 %v765, %v767
    %v769 = vrot.slane %v755, %v768
    %v770 = vcombine.high %v762, %v762
    %v771 = vcombine.high %v769, %v769
    %v772 = vcombine.high %v378, %v378
    %v774 = vunpack.c.l.s4 1983009808
    %v775 = vunpack.c.0.s8 %v774
    %v776 = vlaneseq
    %v777 = vshrl.u32 %v776, 7
    %v778 = vsub.s32 %v775, %v777
    %v779 = vrot.slane %v378, %v778
    %v781 = vunpack.c.l.s4 1983009808
    %v782 = vunpack.c.0.s8 %v781
    %v783 = vlaneseq
    %v784 = vshrl.u32 %v783, 7
    %v785 = vsub.s32 %v782, %v784
    %v786 = vrot.slane %v772, %v785
    %v787 = vcombine.high %v779, %v779
    %v788 = vcombine.high %v786, %v786
    %v789 = vcombine.high %v383, %v383
    %v791 = vunpack.c.l.s4 1983009808
    %v792 = vunpack.c.0.s8 %v791
    %v793 = vlaneseq
    %v794 = vshrl.u32 %v793, 7
    %v795 = vsub.s32 %v792, %v794
    %v796 = vrot.slane %v383, %v795
    %v798 = vunpack.c.l.s4 1983009808
    %v799 = vunpack.c.0.s8 %v798
    %v800 = vlaneseq
    %v801 = vshrl.u32 %v800, 7
    %v802 = vsub.s32 %v799, %v801
    %v803 = vrot.slane %v789, %v802
    %v804 = vcombine.high %v796, %v796
    %v805 = vcombine.high %v803, %v803
    %v806 = vcombine.high %v388, %v388
    %v808 = vunpack.c.l.s4 1983009808
    %v809 = vunpack.c.0.s8 %v808
    %v810 = vlaneseq
    %v811 = vshrl.u32 %v810, 7
    %v812 = vsub.s32 %v809, %v811
    %v813 = vrot.slane %v388, %v812
    %v815 = vunpack.c.l.s4 1983009808
    %v816 = vunpack.c.0.s8 %v815
    %v817 = vlaneseq
    %v818 = vshrl.u32 %v817, 7
    %v819 = vsub.s32 %v816, %v818
    %v820 = vrot.slane %v806, %v819
    %v821 = vcombine.high %v813, %v813
    %v822 = vcombine.high %v820, %v820
    %v823 = vcombine.high %v393, %v393
    %v825 = vunpack.c.l.s4 1983009808
    %v826 = vunpack.c.0.s8 %v825
    %v827 = vlaneseq
    %v828 = vshrl.u32 %v827, 7
    %v829 = vsub.s32 %v826, %v828
    %v830 = vrot.slane %v393, %v829
    %v832 = vunpack.c.l.s4 1983009808
    %v833 = vunpack.c.0.s8 %v832
    %v834 = vlaneseq
    %v835 = vshrl.u32 %v834, 7
    %v836 = vsub.s32 %v833, %v835
    %v837 = vrot.slane %v823, %v836
    %v838 = vcombine.high %v830, %v830
    %v839 = vcombine.high %v837, %v837
    %v840 = vcombine.high %v398, %v398
    %v842 = vunpack.c.l.s4 1983009808
    %v843 = vunpack.c.0.s8 %v842
    %v844 = vlaneseq
    %v845 = vshrl.u32 %v844, 7
    %v846 = vsub.s32 %v843, %v845
    %v847 = vrot.slane %v398, %v846
    %v849 = vunpack.c.l.s4 1983009808
    %v850 = vunpack.c.0.s8 %v849
    %v851 = vlaneseq
    %v852 = vshrl.u32 %v851, 7
    %v853 = vsub.s32 %v850, %v852
    %v854 = vrot.slane %v840, %v853
    %v855 = vcombine.high %v847, %v847
    %v856 = vcombine.high %v854, %v854
    %v857 = vcombine.high %v403, %v403
    %v859 = vunpack.c.l.s4 1983009808
    %v860 = vunpack.c.0.s8 %v859
    %v861 = vlaneseq
    %v862 = vshrl.u32 %v861, 7
    %v863 = vsub.s32 %v860, %v862
    %v864 = vrot.slane %v403, %v863
    %v866 = vunpack.c.l.s4 1983009808
    %v867 = vunpack.c.0.s8 %v866
    %v868 = vlaneseq
    %v869 = vshrl.u32 %v868, 7
    %v870 = vsub.s32 %v867, %v869
    %v871 = vrot.slane %v857, %v870
    %v872 = vcombine.high %v864, %v864
    %v873 = vcombine.high %v871, %v871
    %v874 = vcombine.high %v408, %v408
    %v876 = vunpack.c.l.s4 1983009808
    %v877 = vunpack.c.0.s8 %v876
    %v878 = vlaneseq
    %v879 = vshrl.u32 %v878, 7
    %v880 = vsub.s32 %v877, %v879
    %v881 = vrot.slane %v408, %v880
    %v883 = vunpack.c.l.s4 1983009808
    %v884 = vunpack.c.0.s8 %v883
    %v885 = vlaneseq
    %v886 = vshrl.u32 %v885, 7
    %v887 = vsub.s32 %v884, %v886
    %v888 = vrot.slane %v874, %v887
    %v889 = vcombine.high %v881, %v881
    %v890 = vcombine.high %v888, %v888
    %v891 = vcombine.high %v413, %v413
    %v893 = vunpack.c.l.s4 1983009808
    %v894 = vunpack.c.0.s8 %v893
    %v895 = vlaneseq
    %v896 = vshrl.u32 %v895, 7
    %v897 = vsub.s32 %v894, %v896
    %v898 = vrot.slane %v413, %v897
    %v900 = vunpack.c.l.s4 1983009808
    %v901 = vunpack.c.0.s8 %v900
    %v902 = vlaneseq
    %v903 = vshrl.u32 %v902, 7
    %v904 = vsub.s32 %v901, %v903
    %v905 = vrot.slane %v891, %v904
    %v906 = vcombine.high %v898, %v898
    %v907 = vcombine.high %v905, %v905
    %v908 = vcombine.high %v418, %v418
    %v910 = vunpack.c.l.s4 1983009808
    %v911 = vunpack.c.0.s8 %v910
    %v912 = vlaneseq
    %v913 = vshrl.u32 %v912, 7
    %v914 = vsub.s32 %v911, %v913
    %v915 = vrot.slane %v418, %v914
    %v917 = vunpack.c.l.s4 1983009808
    %v918 = vunpack.c.0.s8 %v917
    %v919 = vlaneseq
    %v920 = vshrl.u32 %v919, 7
    %v921 = vsub.s32 %v918, %v920
    %v922 = vrot.slane %v908, %v921
    %v923 = vcombine.high %v915, %v915
    %v924 = vcombine.high %v922, %v922
    %v925 = vcombine.high %v423, %v423
    %v927 = vunpack.c.l.s4 1983009808
    %v928 = vunpack.c.0.s8 %v927
    %v929 = vlaneseq
    %v930 = vshrl.u32 %v929, 7
    %v931 = vsub.s32 %v928, %v930
    %v932 = vrot.slane %v423, %v931
    %v934 = vunpack.c.l.s4 1983009808
    %v935 = vunpack.c.0.s8 %v934
    %v936 = vlaneseq
    %v937 = vshrl.u32 %v936, 7
    %v938 = vsub.s32 %v935, %v937
    %v939 = vrot.slane %v925, %v938
    %v940 = vcombine.high %v932, %v932
    %v941 = vcombine.high %v939, %v939
    %v942 = vcombine.high %v428, %v428
    %v944 = vunpack.c.l.s4 1983009808
    %v945 = vunpack.c.0.s8 %v944
    %v946 = vlaneseq
    %v947 = vshrl.u32 %v946, 7
    %v948 = vsub.s32 %v945, %v947
    %v949 = vrot.slane %v428, %v948
    %v951 = vunpack.c.l.s4 1983009808
    %v952 = vunpack.c.0.s8 %v951
    %v953 = vlaneseq
    %v954 = vshrl.u32 %v953, 7
    %v955 = vsub.s32 %v952, %v954
    %v956 = vrot.slane %v942, %v955
    %v957 = vcombine.high %v949, %v949
    %v958 = vcombine.high %v956, %v956
    %v959 = vcombine.high %v433, %v433
    %v961 = vunpack.c.l.s4 1983009808
    %v962 = vunpack.c.0.s8 %v961
    %v963 = vlaneseq
    %v964 = vshrl.u32 %v963, 7
    %v965 = vsub.s32 %v962, %v964
    %v966 = vrot.slane %v433, %v965
    %v968 = vunpack.c.l.s4 1983009808
    %v969 = vunpack.c.0.s8 %v968
    %v970 = vlaneseq
    %v971 = vshrl.u32 %v970, 7
    %v972 = vsub.s32 %v969, %v971
    %v973 = vrot.slane %v959, %v972
    %v974 = vcombine.high %v966, %v966
    %v975 = vcombine.high %v973, %v973
    %v976 = vcombine.high %v438, %v438
    %v978 = vunpack.c.l.s4 1983009808
    %v979 = vunpack.c.0.s8 %v978
    %v980 = vlaneseq
    %v981 = vshrl.u32 %v980, 7
    %v982 = vsub.s32 %v979, %v981
    %v983 = vrot.slane %v438, %v982
    %v985 = vunpack.c.l.s4 1983009808
    %v986 = vunpack.c.0.s8 %v985
    %v987 = vlaneseq
    %v988 = vshrl.u32 %v987, 7
    %v989 = vsub.s32 %v986, %v988
    %v990 = vrot.slane %v976, %v989
    %v991 = vcombine.high %v983, %v983
    %v992 = vcombine.high %v990, %v990
    %v993 = vcombine.high %v443, %v443
    %v995 = vunpack.c.l.s4 1983009808
    %v996 = vunpack.c.0.s8 %v995
    %v997 = vlaneseq
    %v998 = vshrl.u32 %v997, 7
    %v999 = vsub.s32 %v996, %v998
    %v1000 = vrot.slane %v443, %v999
    %v1002 = vunpack.c.l.s4 1983009808
    %v1003 = vunpack.c.0.s8 %v1002
    %v1004 = vlaneseq
    %v1005 = vshrl.u32 %v1004, 7
    %v1006 = vsub.s32 %v1003, %v1005
    %v1007 = vrot.slane %v993, %v1006
    %v1008 = vcombine.high %v1000, %v1000
    %v1009 = vcombine.high %v1007, %v1007
    %v1010 = vcombine.high %v448, %v448
    %v1012 = vunpack.c.l.s4 1983009808
    %v1013 = vunpack.c.0.s8 %v1012
    %v1014 = vlaneseq
    %v1015 = vshrl.u32 %v1014, 7
    %v1016 = vsub.s32 %v1013, %v1015
    %v1017 = vrot.slane %v448, %v1016
    %v1019 = vunpack.c.l.s4 1983009808
    %v1020 = vunpack.c.0.s8 %v1019
    %v1021 = vlaneseq
    %v1022 = vshrl.u32 %v1021, 7
    %v1023 = vsub.s32 %v1020, %v1022
    %v1024 = vrot.slane %v1010, %v1023
    %v1025 = vcombine.high %v1017, %v1017
    %v1026 = vcombine.high %v1024, %v1024
    %v1027 = vcombine.high %v453, %v453
    %v1029 = vunpack.c.l.s4 1983009808
    %v1030 = vunpack.c.0.s8 %v1029
    %v1031 = vlaneseq
    %v1032 = vshrl.u32 %v1031, 7
    %v1033 = vsub.s32 %v1030, %v1032
    %v1034 = vrot.slane %v453, %v1033
    %v1036 = vunpack.c.l.s4 1983009808
    %v1037 = vunpack.c.0.s8 %v1036
    %v1038 = vlaneseq
    %v1039 = vshrl.u32 %v1038, 7
    %v1040 = vsub.s32 %v1037, %v1039
    %v1041 = vrot.slane %v1027, %v1040
    %v1042 = vcombine.high %v1034, %v1034
    %v1043 = vcombine.high %v1041, %v1041
    %v1044 = vcombine.high %v458, %v458
    %v1046 = vunpack.c.l.s4 1983009808
    %v1047 = vunpack.c.0.s8 %v1046
    %v1048 = vlaneseq
    %v1049 = vshrl.u32 %v1048, 7
    %v1050 = vsub.s32 %v1047, %v1049
    %v1051 = vrot.slane %v458, %v1050
    %v1053 = vunpack.c.l.s4 1983009808
    %v1054 = vunpack.c.0.s8 %v1053
    %v1055 = vlaneseq
    %v1056 = vshrl.u32 %v1055, 7
    %v1057 = vsub.s32 %v1054, %v1056
    %v1058 = vrot.slane %v1044, %v1057
    %v1059 = vcombine.high %v1051, %v1051
    %v1060 = vcombine.high %v1058, %v1058
    %v1061 = vcombine.high %v463, %v463
    %v1063 = vunpack.c.l.s4 1983009808
    %v1064 = vunpack.c.0.s8 %v1063
    %v1065 = vlaneseq
    %v1066 = vshrl.u32 %v1065, 7
    %v1067 = vsub.s32 %v1064, %v1066
    %v1068 = vrot.slane %v463, %v1067
    %v1070 = vunpack.c.l.s4 1983009808
    %v1071 = vunpack.c.0.s8 %v1070
    %v1072 = vlaneseq
    %v1073 = vshrl.u32 %v1072, 7
    %v1074 = vsub.s32 %v1071, %v1073
    %v1075 = vrot.slane %v1061, %v1074
    %v1076 = vcombine.high %v1068, %v1068
    %v1077 = vcombine.high %v1075, %v1075
    %v1078 = vcombine.high %v468, %v468
    %v1080 = vunpack.c.l.s4 1983009808
    %v1081 = vunpack.c.0.s8 %v1080
    %v1082 = vlaneseq
    %v1083 = vshrl.u32 %v1082, 7
    %v1084 = vsub.s32 %v1081, %v1083
    %v1085 = vrot.slane %v468, %v1084
    %v1087 = vunpack.c.l.s4 1983009808
    %v1088 = vunpack.c.0.s8 %v1087
    %v1089 = vlaneseq
    %v1090 = vshrl.u32 %v1089, 7
    %v1091 = vsub.s32 %v1088, %v1090
    %v1092 = vrot.slane %v1078, %v1091
    %v1093 = vcombine.high %v1085, %v1085
    %v1094 = vcombine.high %v1092, %v1092
    %v1095 = vcombine.high %v473, %v473
    %v1097 = vunpack.c.l.s4 1983009808
    %v1098 = vunpack.c.0.s8 %v1097
    %v1099 = vlaneseq
    %v1100 = vshrl.u32 %v1099, 7
    %v1101 = vsub.s32 %v1098, %v1100
    %v1102 = vrot.slane %v473, %v1101
    %v1104 = vunpack.c.l.s4 1983009808
    %v1105 = vunpack.c.0.s8 %v1104
    %v1106 = vlaneseq
    %v1107 = vshrl.u32 %v1106, 7
    %v1108 = vsub.s32 %v1105, %v1107
    %v1109 = vrot.slane %v1095, %v1108
    %v1110 = vcombine.high %v1102, %v1102
    %v1111 = vcombine.high %v1109, %v1109
    %v1112 = vcombine.high %v478, %v478
    %v1114 = vunpack.c.l.s4 1983009808
    %v1115 = vunpack.c.0.s8 %v1114
    %v1116 = vlaneseq
    %v1117 = vshrl.u32 %v1116, 7
    %v1118 = vsub.s32 %v1115, %v1117
    %v1119 = vrot.slane %v478, %v1118
    %v1121 = vunpack.c.l.s4 1983009808
    %v1122 = vunpack.c.0.s8 %v1121
    %v1123 = vlaneseq
    %v1124 = vshrl.u32 %v1123, 7
    %v1125 = vsub.s32 %v1122, %v1124
    %v1126 = vrot.slane %v1112, %v1125
    %v1127 = vcombine.high %v1119, %v1119
    %v1128 = vcombine.high %v1126, %v1126
    %v1129 = vcombine.high %v483, %v483
    %v1131 = vunpack.c.l.s4 1983009808
    %v1132 = vunpack.c.0.s8 %v1131
    %v1133 = vlaneseq
    %v1134 = vshrl.u32 %v1133, 7
    %v1135 = vsub.s32 %v1132, %v1134
    %v1136 = vrot.slane %v483, %v1135
    %v1138 = vunpack.c.l.s4 1983009808
    %v1139 = vunpack.c.0.s8 %v1138
    %v1140 = vlaneseq
    %v1141 = vshrl.u32 %v1140, 7
    %v1142 = vsub.s32 %v1139, %v1141
    %v1143 = vrot.slane %v1129, %v1142
    %v1144 = vcombine.high %v1136, %v1136
    %v1145 = vcombine.high %v1143, %v1143
    %v1146 = vcombine.high %v488, %v488
    %v1148 = vunpack.c.l.s4 1983009808
    %v1149 = vunpack.c.0.s8 %v1148
    %v1150 = vlaneseq
    %v1151 = vshrl.u32 %v1150, 7
    %v1152 = vsub.s32 %v1149, %v1151
    %v1153 = vrot.slane %v488, %v1152
    %v1155 = vunpack.c.l.s4 1983009808
    %v1156 = vunpack.c.0.s8 %v1155
    %v1157 = vlaneseq
    %v1158 = vshrl.u32 %v1157, 7
    %v1159 = vsub.s32 %v1156, %v1158
    %v1160 = vrot.slane %v1146, %v1159
    %v1161 = vcombine.high %v1153, %v1153
    %v1162 = vcombine.high %v1160, %v1160
    %v1163 = vcombine.high %v493, %v493
    %v1165 = vunpack.c.l.s4 1983009808
    %v1166 = vunpack.c.0.s8 %v1165
    %v1167 = vlaneseq
    %v1168 = vshrl.u32 %v1167, 7
    %v1169 = vsub.s32 %v1166, %v1168
    %v1170 = vrot.slane %v493, %v1169
    %v1172 = vunpack.c.l.s4 1983009808
    %v1173 = vunpack.c.0.s8 %v1172
    %v1174 = vlaneseq
    %v1175 = vshrl.u32 %v1174, 7
    %v1176 = vsub.s32 %v1173, %v1175
    %v1177 = vrot.slane %v1163, %v1176
    %v1178 = vcombine.high %v1170, %v1170
    %v1179 = vcombine.high %v1177, %v1177
    %v1180 = vcombine.high %v498, %v498
    %v1182 = vunpack.c.l.s4 1983009808
    %v1183 = vunpack.c.0.s8 %v1182
    %v1184 = vlaneseq
    %v1185 = vshrl.u32 %v1184, 7
    %v1186 = vsub.s32 %v1183, %v1185
    %v1187 = vrot.slane %v498, %v1186
    %v1189 = vunpack.c.l.s4 1983009808
    %v1190 = vunpack.c.0.s8 %v1189
    %v1191 = vlaneseq
    %v1192 = vshrl.u32 %v1191, 7
    %v1193 = vsub.s32 %v1190, %v1192
    %v1194 = vrot.slane %v1180, %v1193
    %v1195 = vcombine.high %v1187, %v1187
    %v1196 = vcombine.high %v1194, %v1194
    %v1197 = vcombine.high %v503, %v503
    %v1199 = vunpack.c.l.s4 1983009808
    %v1200 = vunpack.c.0.s8 %v1199
    %v1201 = vlaneseq
    %v1202 = vshrl.u32 %v1201, 7
    %v1203 = vsub.s32 %v1200, %v1202
    %v1204 = vrot.slane %v503, %v1203
    %v1206 = vunpack.c.l.s4 1983009808
    %v1207 = vunpack.c.0.s8 %v1206
    %v1208 = vlaneseq
    %v1209 = vshrl.u32 %v1208, 7
    %v1210 = vsub.s32 %v1207, %v1209
    %v1211 = vrot.slane %v1197, %v1210
    %v1212 = vcombine.high %v1204, %v1204
    %v1213 = vcombine.high %v1211, %v1211
    %v1214 = vcombine.high %v508, %v508
    %v1216 = vunpack.c.l.s4 1983009808
    %v1217 = vunpack.c.0.s8 %v1216
    %v1218 = vlaneseq
    %v1219 = vshrl.u32 %v1218, 7
    %v1220 = vsub.s32 %v1217, %v1219
    %v1221 = vrot.slane %v508, %v1220
    %v1223 = vunpack.c.l.s4 1983009808
    %v1224 = vunpack.c.0.s8 %v1223
    %v1225 = vlaneseq
    %v1226 = vshrl.u32 %v1225, 7
    %v1227 = vsub.s32 %v1224, %v1226
    %v1228 = vrot.slane %v1214, %v1227
    %v1229 = vcombine.high %v1221, %v1221
    %v1230 = vcombine.high %v1228, %v1228
    %v1231 = vcombine.high %v513, %v513
    %v1233 = vunpack.c.l.s4 1983009808
    %v1234 = vunpack.c.0.s8 %v1233
    %v1235 = vlaneseq
    %v1236 = vshrl.u32 %v1235, 7
    %v1237 = vsub.s32 %v1234, %v1236
    %v1238 = vrot.slane %v513, %v1237
    %v1240 = vunpack.c.l.s4 1983009808
    %v1241 = vunpack.c.0.s8 %v1240
    %v1242 = vlaneseq
    %v1243 = vshrl.u32 %v1242, 7
    %v1244 = vsub.s32 %v1241, %v1243
    %v1245 = vrot.slane %v1231, %v1244
    %v1246 = vcombine.high %v1238, %v1238
    %v1247 = vcombine.high %v1245, %v1245
    %v1248 = vcombine.high %v518, %v518
    %v1250 = vunpack.c.l.s4 1983009808
    %v1251 = vunpack.c.0.s8 %v1250
    %v1252 = vlaneseq
    %v1253 = vshrl.u32 %v1252, 7
    %v1254 = vsub.s32 %v1251, %v1253
    %v1255 = vrot.slane %v518, %v1254
    %v1257 = vunpack.c.l.s4 1983009808
    %v1258 = vunpack.c.0.s8 %v1257
    %v1259 = vlaneseq
    %v1260 = vshrl.u32 %v1259, 7
    %v1261 = vsub.s32 %v1258, %v1260
    %v1262 = vrot.slane %v1248, %v1261
    %v1263 = vcombine.high %v1255, %v1255
    %v1264 = vcombine.high %v1262, %v1262
    %v1265 = vcombine.high %v523, %v523
    %v1267 = vunpack.c.l.s4 1983009808
    %v1268 = vunpack.c.0.s8 %v1267
    %v1269 = vlaneseq
    %v1270 = vshrl.u32 %v1269, 7
    %v1271 = vsub.s32 %v1268, %v1270
    %v1272 = vrot.slane %v523, %v1271
    %v1274 = vunpack.c.l.s4 1983009808
    %v1275 = vunpack.c.0.s8 %v1274
    %v1276 = vlaneseq
    %v1277 = vshrl.u32 %v1276, 7
    %v1278 = vsub.s32 %v1275, %v1277
    %v1279 = vrot.slane %v1265, %v1278
    %v1280 = vcombine.high %v1272, %v1272
    %v1281 = vcombine.high %v1279, %v1279
    %v1282 = vcombine.high %v528, %v528
    %v1284 = vunpack.c.l.s4 1983009808
    %v1285 = vunpack.c.0.s8 %v1284
    %v1286 = vlaneseq
    %v1287 = vshrl.u32 %v1286, 7
    %v1288 = vsub.s32 %v1285, %v1287
    %v1289 = vrot.slane %v528, %v1288
    %v1291 = vunpack.c.l.s4 1983009808
    %v1292 = vunpack.c.0.s8 %v1291
    %v1293 = vlaneseq
    %v1294 = vshrl.u32 %v1293, 7
    %v1295 = vsub.s32 %v1292, %v1294
    %v1296 = vrot.slane %v1282, %v1295
    %v1297 = vcombine.high %v1289, %v1289
    %v1298 = vcombine.high %v1296, %v1296
    %v1299 = vcombine.high %v533, %v533
    %v1301 = vunpack.c.l.s4 1983009808
    %v1302 = vunpack.c.0.s8 %v1301
    %v1303 = vlaneseq
    %v1304 = vshrl.u32 %v1303, 7
    %v1305 = vsub.s32 %v1302, %v1304
    %v1306 = vrot.slane %v533, %v1305
    %v1308 = vunpack.c.l.s4 1983009808
    %v1309 = vunpack.c.0.s8 %v1308
    %v1310 = vlaneseq
    %v1311 = vshrl.u32 %v1310, 7
    %v1312 = vsub.s32 %v1309, %v1311
    %v1313 = vrot.slane %v1299, %v1312
    %v1314 = vcombine.high %v1306, %v1306
    %v1315 = vcombine.high %v1313, %v1313
    %v1316 = vcombine.high %v538, %v538
    %v1318 = vunpack.c.l.s4 1983009808
    %v1319 = vunpack.c.0.s8 %v1318
    %v1320 = vlaneseq
    %v1321 = vshrl.u32 %v1320, 7
    %v1322 = vsub.s32 %v1319, %v1321
    %v1323 = vrot.slane %v538, %v1322
    %v1325 = vunpack.c.l.s4 1983009808
    %v1326 = vunpack.c.0.s8 %v1325
    %v1327 = vlaneseq
    %v1328 = vshrl.u32 %v1327, 7
    %v1329 = vsub.s32 %v1326, %v1328
    %v1330 = vrot.slane %v1316, %v1329
    %v1331 = vcombine.high %v1323, %v1323
    %v1332 = vcombine.high %v1330, %v1330
    %v1333 = vcombine.high %v543, %v543
    %v1335 = vunpack.c.l.s4 1983009808
    %v1336 = vunpack.c.0.s8 %v1335
    %v1337 = vlaneseq
    %v1338 = vshrl.u32 %v1337, 7
    %v1339 = vsub.s32 %v1336, %v1338
    %v1340 = vrot.slane %v543, %v1339
    %v1342 = vunpack.c.l.s4 1983009808
    %v1343 = vunpack.c.0.s8 %v1342
    %v1344 = vlaneseq
    %v1345 = vshrl.u32 %v1344, 7
    %v1346 = vsub.s32 %v1343, %v1345
    %v1347 = vrot.slane %v1333, %v1346
    %v1348 = vcombine.high %v1340, %v1340
    %v1349 = vcombine.high %v1347, %v1347
    %v1350 = vcombine.high %v548, %v548
    %v1352 = vunpack.c.l.s4 1983009808
    %v1353 = vunpack.c.0.s8 %v1352
    %v1354 = vlaneseq
    %v1355 = vshrl.u32 %v1354, 7
    %v1356 = vsub.s32 %v1353, %v1355
    %v1357 = vrot.slane %v548, %v1356
    %v1359 = vunpack.c.l.s4 1983009808
    %v1360 = vunpack.c.0.s8 %v1359
    %v1361 = vlaneseq
    %v1362 = vshrl.u32 %v1361, 7
    %v1363 = vsub.s32 %v1360, %v1362
    %v1364 = vrot.slane %v1350, %v1363
    %v1365 = vcombine.high %v1357, %v1357
    %v1366 = vcombine.high %v1364, %v1364
    %v1367 = vcombine.high %v553, %v553
    %v1369 = vunpack.c.l.s4 1983009808
    %v1370 = vunpack.c.0.s8 %v1369
    %v1371 = vlaneseq
    %v1372 = vshrl.u32 %v1371, 7
    %v1373 = vsub.s32 %v1370, %v1372
    %v1374 = vrot.slane %v553, %v1373
    %v1376 = vunpack.c.l.s4 1983009808
    %v1377 = vunpack.c.0.s8 %v1376
    %v1378 = vlaneseq
    %v1379 = vshrl.u32 %v1378, 7
    %v1380 = vsub.s32 %v1377, %v1379
    %v1381 = vrot.slane %v1367, %v1380
    %v1382 = vcombine.high %v1374, %v1374
    %v1383 = vcombine.high %v1381, %v1381
    %v1384 = vcombine.high %v558, %v558
    %v1386 = vunpack.c.l.s4 1983009808
    %v1387 = vunpack.c.0.s8 %v1386
    %v1388 = vlaneseq
    %v1389 = vshrl.u32 %v1388, 7
    %v1390 = vsub.s32 %v1387, %v1389
    %v1391 = vrot.slane %v558, %v1390
    %v1393 = vunpack.c.l.s4 1983009808
    %v1394 = vunpack.c.0.s8 %v1393
    %v1395 = vlaneseq
    %v1396 = vshrl.u32 %v1395, 7
    %v1397 = vsub.s32 %v1394, %v1396
    %v1398 = vrot.slane %v1384, %v1397
    %v1399 = vcombine.high %v1391, %v1391
    %v1400 = vcombine.high %v1398, %v1398
    %v1401 = vcombine.high %v563, %v563
    %v1403 = vunpack.c.l.s4 1983009808
    %v1404 = vunpack.c.0.s8 %v1403
    %v1405 = vlaneseq
    %v1406 = vshrl.u32 %v1405, 7
    %v1407 = vsub.s32 %v1404, %v1406
    %v1408 = vrot.slane %v563, %v1407
    %v1410 = vunpack.c.l.s4 1983009808
    %v1411 = vunpack.c.0.s8 %v1410
    %v1412 = vlaneseq
    %v1413 = vshrl.u32 %v1412, 7
    %v1414 = vsub.s32 %v1411, %v1413
    %v1415 = vrot.slane %v1401, %v1414
    %v1416 = vcombine.high %v1408, %v1408
    %v1417 = vcombine.high %v1415, %v1415
    %v1418 = vcombine.high %v568, %v568
    %v1420 = vunpack.c.l.s4 1983009808
    %v1421 = vunpack.c.0.s8 %v1420
    %v1422 = vlaneseq
    %v1423 = vshrl.u32 %v1422, 7
    %v1424 = vsub.s32 %v1421, %v1423
    %v1425 = vrot.slane %v568, %v1424
    %v1427 = vunpack.c.l.s4 1983009808
    %v1428 = vunpack.c.0.s8 %v1427
    %v1429 = vlaneseq
    %v1430 = vshrl.u32 %v1429, 7
    %v1431 = vsub.s32 %v1428, %v1430
    %v1432 = vrot.slane %v1418, %v1431
    %v1433 = vcombine.high %v1425, %v1425
    %v1434 = vcombine.high %v1432, %v1432
    %v1435 = vcombine.high %v573, %v573
    %v1437 = vunpack.c.l.s4 1983009808
    %v1438 = vunpack.c.0.s8 %v1437
    %v1439 = vlaneseq
    %v1440 = vshrl.u32 %v1439, 7
    %v1441 = vsub.s32 %v1438, %v1440
    %v1442 = vrot.slane %v573, %v1441
    %v1444 = vunpack.c.l.s4 1983009808
    %v1445 = vunpack.c.0.s8 %v1444
    %v1446 = vlaneseq
    %v1447 = vshrl.u32 %v1446, 7
    %v1448 = vsub.s32 %v1445, %v1447
    %v1449 = vrot.slane %v1435, %v1448
    %v1450 = vcombine.high %v1442, %v1442
    %v1451 = vcombine.high %v1449, %v1449
    %v1452 = vcombine.high %v578, %v578
    %v1454 = vunpack.c.l.s4 1983009808
    %v1455 = vunpack.c.0.s8 %v1454
    %v1456 = vlaneseq
    %v1457 = vshrl.u32 %v1456, 7
    %v1458 = vsub.s32 %v1455, %v1457
    %v1459 = vrot.slane %v578, %v1458
    %v1461 = vunpack.c.l.s4 1983009808
    %v1462 = vunpack.c.0.s8 %v1461
    %v1463 = vlaneseq
    %v1464 = vshrl.u32 %v1463, 7
    %v1465 = vsub.s32 %v1462, %v1464
    %v1466 = vrot.slane %v1452, %v1465
    %v1467 = vcombine.high %v1459, %v1459
    %v1468 = vcombine.high %v1466, %v1466
    %v1469 = vcombine.high %v583, %v583
    %v1471 = vunpack.c.l.s4 1983009808
    %v1472 = vunpack.c.0.s8 %v1471
    %v1473 = vlaneseq
    %v1474 = vshrl.u32 %v1473, 7
    %v1475 = vsub.s32 %v1472, %v1474
    %v1476 = vrot.slane %v583, %v1475
    %v1478 = vunpack.c.l.s4 1983009808
    %v1479 = vunpack.c.0.s8 %v1478
    %v1480 = vlaneseq
    %v1481 = vshrl.u32 %v1480, 7
    %v1482 = vsub.s32 %v1479, %v1481
    %v1483 = vrot.slane %v1469, %v1482
    %v1484 = vcombine.high %v1476, %v1476
    %v1485 = vcombine.high %v1483, %v1483
    %v1486 = vcombine.high %v588, %v588
    %v1488 = vunpack.c.l.s4 1983009808
    %v1489 = vunpack.c.0.s8 %v1488
    %v1490 = vlaneseq
    %v1491 = vshrl.u32 %v1490, 7
    %v1492 = vsub.s32 %v1489, %v1491
    %v1493 = vrot.slane %v588, %v1492
    %v1495 = vunpack.c.l.s4 1983009808
    %v1496 = vunpack.c.0.s8 %v1495
    %v1497 = vlaneseq
    %v1498 = vshrl.u32 %v1497, 7
    %v1499 = vsub.s32 %v1496, %v1498
    %v1500 = vrot.slane %v1486, %v1499
    %v1501 = vcombine.high %v1493, %v1493
    %v1502 = vcombine.high %v1500, %v1500
    %v1503 = vcombine.high %v593, %v593
    %v1505 = vunpack.c.l.s4 1983009808
    %v1506 = vunpack.c.0.s8 %v1505
    %v1507 = vlaneseq
    %v1508 = vshrl.u32 %v1507, 7
    %v1509 = vsub.s32 %v1506, %v1508
    %v1510 = vrot.slane %v593, %v1509
    %v1512 = vunpack.c.l.s4 1983009808
    %v1513 = vunpack.c.0.s8 %v1512
    %v1514 = vlaneseq
    %v1515 = vshrl.u32 %v1514, 7
    %v1516 = vsub.s32 %v1513, %v1515
    %v1517 = vrot.slane %v1503, %v1516
    %v1518 = vcombine.high %v1510, %v1510
    %v1519 = vcombine.high %v1517, %v1517
    %v1520 = vcombine.high %v598, %v598
    %v1522 = vunpack.c.l.s4 1983009808
    %v1523 = vunpack.c.0.s8 %v1522
    %v1524 = vlaneseq
    %v1525 = vshrl.u32 %v1524, 7
    %v1526 = vsub.s32 %v1523, %v1525
    %v1527 = vrot.slane %v598, %v1526
    %v1529 = vunpack.c.l.s4 1983009808
    %v1530 = vunpack.c.0.s8 %v1529
    %v1531 = vlaneseq
    %v1532 = vshrl.u32 %v1531, 7
    %v1533 = vsub.s32 %v1530, %v1532
    %v1534 = vrot.slane %v1520, %v1533
    %v1535 = vcombine.high %v1527, %v1527
    %v1536 = vcombine.high %v1534, %v1534
    %v1537 = vcombine.high %v603, %v603
    %v1539 = vunpack.c.l.s4 1983009808
    %v1540 = vunpack.c.0.s8 %v1539
    %v1541 = vlaneseq
    %v1542 = vshrl.u32 %v1541, 7
    %v1543 = vsub.s32 %v1540, %v1542
    %v1544 = vrot.slane %v603, %v1543
    %v1546 = vunpack.c.l.s4 1983009808
    %v1547 = vunpack.c.0.s8 %v1546
    %v1548 = vlaneseq
    %v1549 = vshrl.u32 %v1548, 7
    %v1550 = vsub.s32 %v1547, %v1549
    %v1551 = vrot.slane %v1537, %v1550
    %v1552 = vcombine.high %v1544, %v1544
    %v1553 = vcombine.high %v1551, %v1551
    %v1554 = vcombine.high %v608, %v608
    %v1556 = vunpack.c.l.s4 1983009808
    %v1557 = vunpack.c.0.s8 %v1556
    %v1558 = vlaneseq
    %v1559 = vshrl.u32 %v1558, 7
    %v1560 = vsub.s32 %v1557, %v1559
    %v1561 = vrot.slane %v608, %v1560
    %v1563 = vunpack.c.l.s4 1983009808
    %v1564 = vunpack.c.0.s8 %v1563
    %v1565 = vlaneseq
    %v1566 = vshrl.u32 %v1565, 7
    %v1567 = vsub.s32 %v1564, %v1566
    %v1568 = vrot.slane %v1554, %v1567
    %v1569 = vcombine.high %v1561, %v1561
    %v1570 = vcombine.high %v1568, %v1568
    %v1571 = vcombine.high %v613, %v613
    %v1573 = vunpack.c.l.s4 1983009808
    %v1574 = vunpack.c.0.s8 %v1573
    %v1575 = vlaneseq
    %v1576 = vshrl.u32 %v1575, 7
    %v1577 = vsub.s32 %v1574, %v1576
    %v1578 = vrot.slane %v613, %v1577
    %v1580 = vunpack.c.l.s4 1983009808
    %v1581 = vunpack.c.0.s8 %v1580
    %v1582 = vlaneseq
    %v1583 = vshrl.u32 %v1582, 7
    %v1584 = vsub.s32 %v1581, %v1583
    %v1585 = vrot.slane %v1571, %v1584
    %v1586 = vcombine.high %v1578, %v1578
    %v1587 = vcombine.high %v1585, %v1585
    %v1588 = vcombine.high %v618, %v618
    %v1590 = vunpack.c.l.s4 1983009808
    %v1591 = vunpack.c.0.s8 %v1590
    %v1592 = vlaneseq
    %v1593 = vshrl.u32 %v1592, 7
    %v1594 = vsub.s32 %v1591, %v1593
    %v1595 = vrot.slane %v618, %v1594
    %v1597 = vunpack.c.l.s4 1983009808
    %v1598 = vunpack.c.0.s8 %v1597
    %v1599 = vlaneseq
    %v1600 = vshrl.u32 %v1599, 7
    %v1601 = vsub.s32 %v1598, %v1600
    %v1602 = vrot.slane %v1588, %v1601
    %v1603 = vcombine.high %v1595, %v1595
    %v1604 = vcombine.high %v1602, %v1602
    %v1605 = vcombine.high %v623, %v623
    %v1607 = vunpack.c.l.s4 1983009808
    %v1608 = vunpack.c.0.s8 %v1607
    %v1609 = vlaneseq
    %v1610 = vshrl.u32 %v1609, 7
    %v1611 = vsub.s32 %v1608, %v1610
    %v1612 = vrot.slane %v623, %v1611
    %v1614 = vunpack.c.l.s4 1983009808
    %v1615 = vunpack.c.0.s8 %v1614
    %v1616 = vlaneseq
    %v1617 = vshrl.u32 %v1616, 7
    %v1618 = vsub.s32 %v1615, %v1617
    %v1619 = vrot.slane %v1605, %v1618
    %v1620 = vcombine.high %v1612, %v1612
    %v1621 = vcombine.high %v1619, %v1619
    %v1622 = vcombine.high %v628, %v628
    %v1624 = vunpack.c.l.s4 1983009808
    %v1625 = vunpack.c.0.s8 %v1624
    %v1626 = vlaneseq
    %v1627 = vshrl.u32 %v1626, 7
    %v1628 = vsub.s32 %v1625, %v1627
    %v1629 = vrot.slane %v628, %v1628
    %v1631 = vunpack.c.l.s4 1983009808
    %v1632 = vunpack.c.0.s8 %v1631
    %v1633 = vlaneseq
    %v1634 = vshrl.u32 %v1633, 7
    %v1635 = vsub.s32 %v1632, %v1634
    %v1636 = vrot.slane %v1622, %v1635
    %v1637 = vcombine.high %v1629, %v1629
    %v1638 = vcombine.high %v1636, %v1636
    %v1639 = vcombine.high %v633, %v633
    %v1641 = vunpack.c.l.s4 1983009808
    %v1642 = vunpack.c.0.s8 %v1641
    %v1643 = vlaneseq
    %v1644 = vshrl.u32 %v1643, 7
    %v1645 = vsub.s32 %v1642, %v1644
    %v1646 = vrot.slane %v633, %v1645
    %v1648 = vunpack.c.l.s4 1983009808
    %v1649 = vunpack.c.0.s8 %v1648
    %v1650 = vlaneseq
    %v1651 = vshrl.u32 %v1650, 7
    %v1652 = vsub.s32 %v1649, %v1651
    %v1653 = vrot.slane %v1639, %v1652
    %v1654 = vcombine.high %v1646, %v1646
    %v1655 = vcombine.high %v1653, %v1653
    %v1656 = vcombine.high %v638, %v638
    %v1658 = vunpack.c.l.s4 1983009808
    %v1659 = vunpack.c.0.s8 %v1658
    %v1660 = vlaneseq
    %v1661 = vshrl.u32 %v1660, 7
    %v1662 = vsub.s32 %v1659, %v1661
    %v1663 = vrot.slane %v638, %v1662
    %v1665 = vunpack.c.l.s4 1983009808
    %v1666 = vunpack.c.0.s8 %v1665
    %v1667 = vlaneseq
    %v1668 = vshrl.u32 %v1667, 7
    %v1669 = vsub.s32 %v1666, %v1668
    %v1670 = vrot.slane %v1656, %v1669
    %v1671 = vcombine.high %v1663, %v1663
    %v1672 = vcombine.high %v1670, %v1670
    %v1673 = vcombine.high %v643, %v643
    %v1675 = vunpack.c.l.s4 1983009808
    %v1676 = vunpack.c.0.s8 %v1675
    %v1677 = vlaneseq
    %v1678 = vshrl.u32 %v1677, 7
    %v1679 = vsub.s32 %v1676, %v1678
    %v1680 = vrot.slane %v643, %v1679
    %v1682 = vunpack.c.l.s4 1983009808
    %v1683 = vunpack.c.0.s8 %v1682
    %v1684 = vlaneseq
    %v1685 = vshrl.u32 %v1684, 7
    %v1686 = vsub.s32 %v1683, %v1685
    %v1687 = vrot.slane %v1673, %v1686
    %v1688 = vcombine.high %v1680, %v1680
    %v1689 = vcombine.high %v1687, %v1687
    %v1690 = vcombine.high %v648, %v648
    %v1692 = vunpack.c.l.s4 1983009808
    %v1693 = vunpack.c.0.s8 %v1692
    %v1694 = vlaneseq
    %v1695 = vshrl.u32 %v1694, 7
    %v1696 = vsub.s32 %v1693, %v1695
    %v1697 = vrot.slane %v648, %v1696
    %v1699 = vunpack.c.l.s4 1983009808
    %v1700 = vunpack.c.0.s8 %v1699
    %v1701 = vlaneseq
    %v1702 = vshrl.u32 %v1701, 7
    %v1703 = vsub.s32 %v1700, %v1702
    %v1704 = vrot.slane %v1690, %v1703
    %v1705 = vcombine.high %v1697, %v1697
    %v1706 = vcombine.high %v1704, %v1704
    %v1707 = vcombine.high %v653, %v653
    %v1709 = vunpack.c.l.s4 1983009808
    %v1710 = vunpack.c.0.s8 %v1709
    %v1711 = vlaneseq
    %v1712 = vshrl.u32 %v1711, 7
    %v1713 = vsub.s32 %v1710, %v1712
    %v1714 = vrot.slane %v653, %v1713
    %v1716 = vunpack.c.l.s4 1983009808
    %v1717 = vunpack.c.0.s8 %v1716
    %v1718 = vlaneseq
    %v1719 = vshrl.u32 %v1718, 7
    %v1720 = vsub.s32 %v1717, %v1719
    %v1721 = vrot.slane %v1707, %v1720
    %v1722 = vcombine.high %v1714, %v1714
    %v1723 = vcombine.high %v1721, %v1721
    %v1724 = vcombine.high %v658, %v658
    %v1726 = vunpack.c.l.s4 1983009808
    %v1727 = vunpack.c.0.s8 %v1726
    %v1728 = vlaneseq
    %v1729 = vshrl.u32 %v1728, 7
    %v1730 = vsub.s32 %v1727, %v1729
    %v1731 = vrot.slane %v658, %v1730
    %v1733 = vunpack.c.l.s4 1983009808
    %v1734 = vunpack.c.0.s8 %v1733
    %v1735 = vlaneseq
    %v1736 = vshrl.u32 %v1735, 7
    %v1737 = vsub.s32 %v1734, %v1736
    %v1738 = vrot.slane %v1724, %v1737
    %v1739 = vcombine.high %v1731, %v1731
    %v1740 = vcombine.high %v1738, %v1738
    %v1741 = vcombine.high %v663, %v663
    %v1743 = vunpack.c.l.s4 1983009808
    %v1744 = vunpack.c.0.s8 %v1743
    %v1745 = vlaneseq
    %v1746 = vshrl.u32 %v1745, 7
    %v1747 = vsub.s32 %v1744, %v1746
    %v1748 = vrot.slane %v663, %v1747
    %v1750 = vunpack.c.l.s4 1983009808
    %v1751 = vunpack.c.0.s8 %v1750
    %v1752 = vlaneseq
    %v1753 = vshrl.u32 %v1752, 7
    %v1754 = vsub.s32 %v1751, %v1753
    %v1755 = vrot.slane %v1741, %v1754
    %v1756 = vcombine.high %v1748, %v1748
    %v1757 = vcombine.high %v1755, %v1755
    %v1758 = vcombine.high %v668, %v668
    %v1760 = vunpack.c.l.s4 1983009808
    %v1761 = vunpack.c.0.s8 %v1760
    %v1762 = vlaneseq
    %v1763 = vshrl.u32 %v1762, 7
    %v1764 = vsub.s32 %v1761, %v1763
    %v1765 = vrot.slane %v668, %v1764
    %v1767 = vunpack.c.l.s4 1983009808
    %v1768 = vunpack.c.0.s8 %v1767
    %v1769 = vlaneseq
    %v1770 = vshrl.u32 %v1769, 7
    %v1771 = vsub.s32 %v1768, %v1770
    %v1772 = vrot.slane %v1758, %v1771
    %v1773 = vcombine.high %v1765, %v1765
    %v1774 = vcombine.high %v1772, %v1772
    %v1775 = vcombine.high %v673, %v673
    %v1777 = vunpack.c.l.s4 1983009808
    %v1778 = vunpack.c.0.s8 %v1777
    %v1779 = vlaneseq
    %v1780 = vshrl.u32 %v1779, 7
    %v1781 = vsub.s32 %v1778, %v1780
    %v1782 = vrot.slane %v673, %v1781
    %v1784 = vunpack.c.l.s4 1983009808
    %v1785 = vunpack.c.0.s8 %v1784
    %v1786 = vlaneseq
    %v1787 = vshrl.u32 %v1786, 7
    %v1788 = vsub.s32 %v1785, %v1787
    %v1789 = vrot.slane %v1775, %v1788
    %v1790 = vcombine.high %v1782, %v1782
    %v1791 = vcombine.high %v1789, %v1789
    %v1792 = vcombine.high %v678, %v678
    %v1794 = vunpack.c.l.s4 1983009808
    %v1795 = vunpack.c.0.s8 %v1794
    %v1796 = vlaneseq
    %v1797 = vshrl.u32 %v1796, 7
    %v1798 = vsub.s32 %v1795, %v1797
    %v1799 = vrot.slane %v678, %v1798
    %v1801 = vunpack.c.l.s4 1983009808
    %v1802 = vunpack.c.0.s8 %v1801
    %v1803 = vlaneseq
    %v1804 = vshrl.u32 %v1803, 7
    %v1805 = vsub.s32 %v1802, %v1804
    %v1806 = vrot.slane %v1792, %v1805
    %v1807 = vcombine.high %v1799, %v1799
    %v1808 = vcombine.high %v1806, %v1806
    %v1809 = vcombine.high %v683, %v683
    %v1811 = vunpack.c.l.s4 1983009808
    %v1812 = vunpack.c.0.s8 %v1811
    %v1813 = vlaneseq
    %v1814 = vshrl.u32 %v1813, 7
    %v1815 = vsub.s32 %v1812, %v1814
    %v1816 = vrot.slane %v683, %v1815
    %v1818 = vunpack.c.l.s4 1983009808
    %v1819 = vunpack.c.0.s8 %v1818
    %v1820 = vlaneseq
    %v1821 = vshrl.u32 %v1820, 7
    %v1822 = vsub.s32 %v1819, %v1821
    %v1823 = vrot.slane %v1809, %v1822
    %v1824 = vcombine.high %v1816, %v1816
    %v1825 = vcombine.high %v1823, %v1823
    %v1826 = vcombine.high %v688, %v688
    %v1828 = vunpack.c.l.s4 1983009808
    %v1829 = vunpack.c.0.s8 %v1828
    %v1830 = vlaneseq
    %v1831 = vshrl.u32 %v1830, 7
    %v1832 = vsub.s32 %v1829, %v1831
    %v1833 = vrot.slane %v688, %v1832
    %v1835 = vunpack.c.l.s4 1983009808
    %v1836 = vunpack.c.0.s8 %v1835
    %v1837 = vlaneseq
    %v1838 = vshrl.u32 %v1837, 7
    %v1839 = vsub.s32 %v1836, %v1838
    %v1840 = vrot.slane %v1826, %v1839
    %v1841 = vcombine.high %v1833, %v1833
    %v1842 = vcombine.high %v1840, %v1840
    %vm2099 = vcmask 517120
    %v2100 = vsel %vm2099, %v762, -inf
    %v2101 = vrot.slane %v2100, 4
    %v2102 = vmax.f32 %v2100, %v2101
    %v2103 = vrot.slane %v2102, 2
    %v2104 = vmax.f32 %v2102, %v2103
    %v2105 = vrot.slane %v2104, 1
    %v2106 = vmax.f32 %v2104, %v2105
    %v2107 = vsel %vm2099, %v770, -inf
    %v2108 = vrot.slane %v2107, 4
    %v2109 = vmax.f32 %v2107, %v2108
    %v2110 = vrot.slane %v2109, 2
    %v2111 = vmax.f32 %v2109, %v2110
    %v2112 = vrot.slane %v2111, 1
    %v2113 = vmax.f32 %v2111, %v2112
    %v2114 = vsel %vm2099, %v769, -inf
    %v2115 = vrot.slane %v2114, 4
    %v2116 = vmax.f32 %v2114, %v2115
    %v2117 = vrot.slane %v2116, 2
    %v2118 = vmax.f32 %v2116, %v2117
    %v2119 = vrot.slane %v2118, 1
    %v2120 = vmax.f32 %v2118, %v2119
    %v2121 = vsel %vm2099, %v771, -inf
    %v2122 = vrot.slane %v2121, 4
    %v2123 = vmax.f32 %v2121, %v2122
    %v2124 = vrot.slane %v2123, 2
    %v2125 = vmax.f32 %v2123, %v2124
    %v2126 = vrot.slane %v2125, 1
    %v2127 = vmax.f32 %v2125, %v2126
    %v2128 = vsel %vm2099, %v779, -inf
    %v2129 = vrot.slane %v2128, 4
    %v2130 = vmax.f32 %v2128, %v2129
    %v2131 = vrot.slane %v2130, 2
    %v2132 = vmax.f32 %v2130, %v2131
    %v2133 = vrot.slane %v2132, 1
    %v2134 = vmax.f32 %v2132, %v2133
    %v2135 = vsel %vm2099, %v787, -inf
    %v2136 = vrot.slane %v2135, 4
    %v2137 = vmax.f32 %v2135, %v2136
    %v2138 = vrot.slane %v2137, 2
    %v2139 = vmax.f32 %v2137, %v2138
    %v2140 = vrot.slane %v2139, 1
    %v2141 = vmax.f32 %v2139, %v2140
    %v2142 = vsel %vm2099, %v786, -inf
    %v2143 = vrot.slane %v2142, 4
    %v2144 = vmax.f32 %v2142, %v2143
    %v2145 = vrot.slane %v2144, 2
    %v2146 = vmax.f32 %v2144, %v2145
    %v2147 = vrot.slane %v2146, 1
    %v2148 = vmax.f32 %v2146, %v2147
    %v2149 = vsel %vm2099, %v788, -inf
    %v2150 = vrot.slane %v2149, 4
    %v2151 = vmax.f32 %v2149, %v2150
    %v2152 = vrot.slane %v2151, 2
    %v2153 = vmax.f32 %v2151, %v2152
    %v2154 = vrot.slane %v2153, 1
    %v2155 = vmax.f32 %v2153, %v2154
    %v2156 = vsel %vm2099, %v796, -inf
    %v2157 = vrot.slane %v2156, 4
    %v2158 = vmax.f32 %v2156, %v2157
    %v2159 = vrot.slane %v2158, 2
    %v2160 = vmax.f32 %v2158, %v2159
    %v2161 = vrot.slane %v2160, 1
    %v2162 = vmax.f32 %v2160, %v2161
    %v2163 = vsel %vm2099, %v804, -inf
    %v2164 = vrot.slane %v2163, 4
    %v2165 = vmax.f32 %v2163, %v2164
    %v2166 = vrot.slane %v2165, 2
    %v2167 = vmax.f32 %v2165, %v2166
    %v2168 = vrot.slane %v2167, 1
    %v2169 = vmax.f32 %v2167, %v2168
    %v2170 = vsel %vm2099, %v803, -inf
    %v2171 = vrot.slane %v2170, 4
    %v2172 = vmax.f32 %v2170, %v2171
    %v2173 = vrot.slane %v2172, 2
    %v2174 = vmax.f32 %v2172, %v2173
    %v2175 = vrot.slane %v2174, 1
    %v2176 = vmax.f32 %v2174, %v2175
    %v2177 = vsel %vm2099, %v805, -inf
    %v2178 = vrot.slane %v2177, 4
    %v2179 = vmax.f32 %v2177, %v2178
    %v2180 = vrot.slane %v2179, 2
    %v2181 = vmax.f32 %v2179, %v2180
    %v2182 = vrot.slane %v2181, 1
    %v2183 = vmax.f32 %v2181, %v2182
    %v2184 = vsel %vm2099, %v813, -inf
    %v2185 = vrot.slane %v2184, 4
    %v2186 = vmax.f32 %v2184, %v2185
    %v2187 = vrot.slane %v2186, 2
    %v2188 = vmax.f32 %v2186, %v2187
    %v2189 = vrot.slane %v2188, 1
    %v2190 = vmax.f32 %v2188, %v2189
    %v2191 = vsel %vm2099, %v821, -inf
    %v2192 = vrot.slane %v2191, 4
    %v2193 = vmax.f32 %v2191, %v2192
    %v2194 = vrot.slane %v2193, 2
    %v2195 = vmax.f32 %v2193, %v2194
    %v2196 = vrot.slane %v2195, 1
    %v2197 = vmax.f32 %v2195, %v2196
    %v2198 = vsel %vm2099, %v820, -inf
    %v2199 = vrot.slane %v2198, 4
    %v2200 = vmax.f32 %v2198, %v2199
    %v2201 = vrot.slane %v2200, 2
    %v2202 = vmax.f32 %v2200, %v2201
    %v2203 = vrot.slane %v2202, 1
    %v2204 = vmax.f32 %v2202, %v2203
    %v2205 = vsel %vm2099, %v822, -inf
    %v2206 = vrot.slane %v2205, 4
    %v2207 = vmax.f32 %v2205, %v2206
    %v2208 = vrot.slane %v2207, 2
    %v2209 = vmax.f32 %v2207, %v2208
    %v2210 = vrot.slane %v2209, 1
    %v2211 = vmax.f32 %v2209, %v2210
    %v2212 = vsel %vm2099, %v830, -inf
    %v2213 = vrot.slane %v2212, 4
    %v2214 = vmax.f32 %v2212, %v2213
    %v2215 = vrot.slane %v2214, 2
    %v2216 = vmax.f32 %v2214, %v2215
    %v2217 = vrot.slane %v2216, 1
    %v2218 = vmax.f32 %v2216, %v2217
    %v2219 = vsel %vm2099, %v838, -inf
    %v2220 = vrot.slane %v2219, 4
    %v2221 = vmax.f32 %v2219, %v2220
    %v2222 = vrot.slane %v2221, 2
    %v2223 = vmax.f32 %v2221, %v2222
    %v2224 = vrot.slane %v2223, 1
    %v2225 = vmax.f32 %v2223, %v2224
    %v2226 = vsel %vm2099, %v837, -inf
    %v2227 = vrot.slane %v2226, 4
    %v2228 = vmax.f32 %v2226, %v2227
    %v2229 = vrot.slane %v2228, 2
    %v2230 = vmax.f32 %v2228, %v2229
    %v2231 = vrot.slane %v2230, 1
    %v2232 = vmax.f32 %v2230, %v2231
    %v2233 = vsel %vm2099, %v839, -inf
    %v2234 = vrot.slane %v2233, 4
    %v2235 = vmax.f32 %v2233, %v2234
    %v2236 = vrot.slane %v2235, 2
    %v2237 = vmax.f32 %v2235, %v2236
    %v2238 = vrot.slane %v2237, 1
    %v2239 = vmax.f32 %v2237, %v2238
    %v2240 = vsel %vm2099, %v847, -inf
    %v2241 = vrot.slane %v2240, 4
    %v2242 = vmax.f32 %v2240, %v2241
    %v2243 = vrot.slane %v2242, 2
    %v2244 = vmax.f32 %v2242, %v2243
    %v2245 = vrot.slane %v2244, 1
    %v2246 = vmax.f32 %v2244, %v2245
    %v2247 = vsel %vm2099, %v855, -inf
    %v2248 = vrot.slane %v2247, 4
    %v2249 = vmax.f32 %v2247, %v2248
    %v2250 = vrot.slane %v2249, 2
    %v2251 = vmax.f32 %v2249, %v2250
    %v2252 = vrot.slane %v2251, 1
    %v2253 = vmax.f32 %v2251, %v2252
    %v2254 = vsel %vm2099, %v854, -inf
    %v2255 = vrot.slane %v2254, 4
    %v2256 = vmax.f32 %v2254, %v2255
    %v2257 = vrot.slane %v2256, 2
    %v2258 = vmax.f32 %v2256, %v2257
    %v2259 = vrot.slane %v2258, 1
    %v2260 = vmax.f32 %v2258, %v2259
    %v2261 = vsel %vm2099, %v856, -inf
    %v2262 = vrot.slane %v2261, 4
    %v2263 = vmax.f32 %v2261, %v2262
    %v2264 = vrot.slane %v2263, 2
    %v2265 = vmax.f32 %v2263, %v2264
    %v2266 = vrot.slane %v2265, 1
    %v2267 = vmax.f32 %v2265, %v2266
    %v2268 = vsel %vm2099, %v864, -inf
    %v2269 = vrot.slane %v2268, 4
    %v2270 = vmax.f32 %v2268, %v2269
    %v2271 = vrot.slane %v2270, 2
    %v2272 = vmax.f32 %v2270, %v2271
    %v2273 = vrot.slane %v2272, 1
    %v2274 = vmax.f32 %v2272, %v2273
    %v2275 = vsel %vm2099, %v872, -inf
    %v2276 = vrot.slane %v2275, 4
    %v2277 = vmax.f32 %v2275, %v2276
    %v2278 = vrot.slane %v2277, 2
    %v2279 = vmax.f32 %v2277, %v2278
    %v2280 = vrot.slane %v2279, 1
    %v2281 = vmax.f32 %v2279, %v2280
    %v2282 = vsel %vm2099, %v871, -inf
    %v2283 = vrot.slane %v2282, 4
    %v2284 = vmax.f32 %v2282, %v2283
    %v2285 = vrot.slane %v2284, 2
    %v2286 = vmax.f32 %v2284, %v2285
    %v2287 = vrot.slane %v2286, 1
    %v2288 = vmax.f32 %v2286, %v2287
    %v2289 = vsel %vm2099, %v873, -inf
    %v2290 = vrot.slane %v2289, 4
    %v2291 = vmax.f32 %v2289, %v2290
    %v2292 = vrot.slane %v2291, 2
    %v2293 = vmax.f32 %v2291, %v2292
    %v2294 = vrot.slane %v2293, 1
    %v2295 = vmax.f32 %v2293, %v2294
    %v2296 = vsel %vm2099, %v881, -inf
    %v2297 = vrot.slane %v2296, 4
    %v2298 = vmax.f32 %v2296, %v2297
    %v2299 = vrot.slane %v2298, 2
    %v2300 = vmax.f32 %v2298, %v2299
    %v2301 = vrot.slane %v2300, 1
    %v2302 = vmax.f32 %v2300, %v2301
    %v2303 = vsel %vm2099, %v889, -inf
    %v2304 = vrot.slane %v2303, 4
    %v2305 = vmax.f32 %v2303, %v2304
    %v2306 = vrot.slane %v2305, 2
    %v2307 = vmax.f32 %v2305, %v2306
    %v2308 = vrot.slane %v2307, 1
    %v2309 = vmax.f32 %v2307, %v2308
    %v2310 = vsel %vm2099, %v888, -inf
    %v2311 = vrot.slane %v2310, 4
    %v2312 = vmax.f32 %v2310, %v2311
    %v2313 = vrot.slane %v2312, 2
    %v2314 = vmax.f32 %v2312, %v2313
    %v2315 = vrot.slane %v2314, 1
    %v2316 = vmax.f32 %v2314, %v2315
    %v2317 = vsel %vm2099, %v890, -inf
    %v2318 = vrot.slane %v2317, 4
    %v2319 = vmax.f32 %v2317, %v2318
    %v2320 = vrot.slane %v2319, 2
    %v2321 = vmax.f32 %v2319, %v2320
    %v2322 = vrot.slane %v2321, 1
    %v2323 = vmax.f32 %v2321, %v2322
    %v2324 = vsel %vm2099, %v898, -inf
    %v2325 = vrot.slane %v2324, 4
    %v2326 = vmax.f32 %v2324, %v2325
    %v2327 = vrot.slane %v2326, 2
    %v2328 = vmax.f32 %v2326, %v2327
    %v2329 = vrot.slane %v2328, 1
    %v2330 = vmax.f32 %v2328, %v2329
    %v2331 = vsel %vm2099, %v906, -inf
    %v2332 = vrot.slane %v2331, 4
    %v2333 = vmax.f32 %v2331, %v2332
    %v2334 = vrot.slane %v2333, 2
    %v2335 = vmax.f32 %v2333, %v2334
    %v2336 = vrot.slane %v2335, 1
    %v2337 = vmax.f32 %v2335, %v2336
    %v2338 = vsel %vm2099, %v905, -inf
    %v2339 = vrot.slane %v2338, 4
    %v2340 = vmax.f32 %v2338, %v2339
    %v2341 = vrot.slane %v2340, 2
    %v2342 = vmax.f32 %v2340, %v2341
    %v2343 = vrot.slane %v2342, 1
    %v2344 = vmax.f32 %v2342, %v2343
    %v2345 = vsel %vm2099, %v907, -inf
    %v2346 = vrot.slane %v2345, 4
    %v2347 = vmax.f32 %v2345, %v2346
    %v2348 = vrot.slane %v2347, 2
    %v2349 = vmax.f32 %v2347, %v2348
    %v2350 = vrot.slane %v2349, 1
    %v2351 = vmax.f32 %v2349, %v2350
    %v2352 = vsel %vm2099, %v915, -inf
    %v2353 = vrot.slane %v2352, 4
    %v2354 = vmax.f32 %v2352, %v2353
    %v2355 = vrot.slane %v2354, 2
    %v2356 = vmax.f32 %v2354, %v2355
    %v2357 = vrot.slane %v2356, 1
    %v2358 = vmax.f32 %v2356, %v2357
    %v2359 = vsel %vm2099, %v923, -inf
    %v2360 = vrot.slane %v2359, 4
    %v2361 = vmax.f32 %v2359, %v2360
    %v2362 = vrot.slane %v2361, 2
    %v2363 = vmax.f32 %v2361, %v2362
    %v2364 = vrot.slane %v2363, 1
    %v2365 = vmax.f32 %v2363, %v2364
    %v2366 = vsel %vm2099, %v922, -inf
    %v2367 = vrot.slane %v2366, 4
    %v2368 = vmax.f32 %v2366, %v2367
    %v2369 = vrot.slane %v2368, 2
    %v2370 = vmax.f32 %v2368, %v2369
    %v2371 = vrot.slane %v2370, 1
    %v2372 = vmax.f32 %v2370, %v2371
    %v2373 = vsel %vm2099, %v924, -inf
    %v2374 = vrot.slane %v2373, 4
    %v2375 = vmax.f32 %v2373, %v2374
    %v2376 = vrot.slane %v2375, 2
    %v2377 = vmax.f32 %v2375, %v2376
    %v2378 = vrot.slane %v2377, 1
    %v2379 = vmax.f32 %v2377, %v2378
    %v2380 = vsel %vm2099, %v932, -inf
    %v2381 = vrot.slane %v2380, 4
    %v2382 = vmax.f32 %v2380, %v2381
    %v2383 = vrot.slane %v2382, 2
    %v2384 = vmax.f32 %v2382, %v2383
    %v2385 = vrot.slane %v2384, 1
    %v2386 = vmax.f32 %v2384, %v2385
    %v2387 = vsel %vm2099, %v940, -inf
    %v2388 = vrot.slane %v2387, 4
    %v2389 = vmax.f32 %v2387, %v2388
    %v2390 = vrot.slane %v2389, 2
    %v2391 = vmax.f32 %v2389, %v2390
    %v2392 = vrot.slane %v2391, 1
    %v2393 = vmax.f32 %v2391, %v2392
    %v2394 = vsel %vm2099, %v939, -inf
    %v2395 = vrot.slane %v2394, 4
    %v2396 = vmax.f32 %v2394, %v2395
    %v2397 = vrot.slane %v2396, 2
    %v2398 = vmax.f32 %v2396, %v2397
    %v2399 = vrot.slane %v2398, 1
    %v2400 = vmax.f32 %v2398, %v2399
    %v2401 = vsel %vm2099, %v941, -inf
    %v2402 = vrot.slane %v2401, 4
    %v2403 = vmax.f32 %v2401, %v2402
    %v2404 = vrot.slane %v2403, 2
    %v2405 = vmax.f32 %v2403, %v2404
    %v2406 = vrot.slane %v2405, 1
    %v2407 = vmax.f32 %v2405, %v2406
    %v2408 = vsel %vm2099, %v949, -inf
    %v2409 = vrot.slane %v2408, 4
    %v2410 = vmax.f32 %v2408, %v2409
    %v2411 = vrot.slane %v2410, 2
    %v2412 = vmax.f32 %v2410, %v2411
    %v2413 = vrot.slane %v2412, 1
    %v2414 = vmax.f32 %v2412, %v2413
    %v2415 = vsel %vm2099, %v957, -inf
    %v2416 = vrot.slane %v2415, 4
    %v2417 = vmax.f32 %v2415, %v2416
    %v2418 = vrot.slane %v2417, 2
    %v2419 = vmax.f32 %v2417, %v2418
    %v2420 = vrot.slane %v2419, 1
    %v2421 = vmax.f32 %v2419, %v2420
    %v2422 = vsel %vm2099, %v956, -inf
    %v2423 = vrot.slane %v2422, 4
    %v2424 = vmax.f32 %v2422, %v2423
    %v2425 = vrot.slane %v2424, 2
    %v2426 = vmax.f32 %v2424, %v2425
    %v2427 = vrot.slane %v2426, 1
    %v2428 = vmax.f32 %v2426, %v2427
    %v2429 = vsel %vm2099, %v958, -inf
    %v2430 = vrot.slane %v2429, 4
    %v2431 = vmax.f32 %v2429, %v2430
    %v2432 = vrot.slane %v2431, 2
    %v2433 = vmax.f32 %v2431, %v2432
    %v2434 = vrot.slane %v2433, 1
    %v2435 = vmax.f32 %v2433, %v2434
    %v2436 = vsel %vm2099, %v966, -inf
    %v2437 = vrot.slane %v2436, 4
    %v2438 = vmax.f32 %v2436, %v2437
    %v2439 = vrot.slane %v2438, 2
    %v2440 = vmax.f32 %v2438, %v2439
    %v2441 = vrot.slane %v2440, 1
    %v2442 = vmax.f32 %v2440, %v2441
    %v2443 = vsel %vm2099, %v974, -inf
    %v2444 = vrot.slane %v2443, 4
    %v2445 = vmax.f32 %v2443, %v2444
    %v2446 = vrot.slane %v2445, 2
    %v2447 = vmax.f32 %v2445, %v2446
    %v2448 = vrot.slane %v2447, 1
    %v2449 = vmax.f32 %v2447, %v2448
    %v2450 = vsel %vm2099, %v973, -inf
    %v2451 = vrot.slane %v2450, 4
    %v2452 = vmax.f32 %v2450, %v2451
    %v2453 = vrot.slane %v2452, 2
    %v2454 = vmax.f32 %v2452, %v2453
    %v2455 = vrot.slane %v2454, 1
    %v2456 = vmax.f32 %v2454, %v2455
    %v2457 = vsel %vm2099, %v975, -inf
    %v2458 = vrot.slane %v2457, 4
    %v2459 = vmax.f32 %v2457, %v2458
    %v2460 = vrot.slane %v2459, 2
    %v2461 = vmax.f32 %v2459, %v2460
    %v2462 = vrot.slane %v2461, 1
    %v2463 = vmax.f32 %v2461, %v2462
    %v2464 = vsel %vm2099, %v983, -inf
    %v2465 = vrot.slane %v2464, 4
    %v2466 = vmax.f32 %v2464, %v2465
    %v2467 = vrot.slane %v2466, 2
    %v2468 = vmax.f32 %v2466, %v2467
    %v2469 = vrot.slane %v2468, 1
    %v2470 = vmax.f32 %v2468, %v2469
    %v2471 = vsel %vm2099, %v991, -inf
    %v2472 = vrot.slane %v2471, 4
    %v2473 = vmax.f32 %v2471, %v2472
    %v2474 = vrot.slane %v2473, 2
    %v2475 = vmax.f32 %v2473, %v2474
    %v2476 = vrot.slane %v2475, 1
    %v2477 = vmax.f32 %v2475, %v2476
    %v2478 = vsel %vm2099, %v990, -inf
    %v2479 = vrot.slane %v2478, 4
    %v2480 = vmax.f32 %v2478, %v2479
    %v2481 = vrot.slane %v2480, 2
    %v2482 = vmax.f32 %v2480, %v2481
    %v2483 = vrot.slane %v2482, 1
    %v2484 = vmax.f32 %v2482, %v2483
    %v2485 = vsel %vm2099, %v992, -inf
    %v2486 = vrot.slane %v2485, 4
    %v2487 = vmax.f32 %v2485, %v2486
    %v2488 = vrot.slane %v2487, 2
    %v2489 = vmax.f32 %v2487, %v2488
    %v2490 = vrot.slane %v2489, 1
    %v2491 = vmax.f32 %v2489, %v2490
    %v2492 = vsel %vm2099, %v1000, -inf
    %v2493 = vrot.slane %v2492, 4
    %v2494 = vmax.f32 %v2492, %v2493
    %v2495 = vrot.slane %v2494, 2
    %v2496 = vmax.f32 %v2494, %v2495
    %v2497 = vrot.slane %v2496, 1
    %v2498 = vmax.f32 %v2496, %v2497
    %v2499 = vsel %vm2099, %v1008, -inf
    %v2500 = vrot.slane %v2499, 4
    %v2501 = vmax.f32 %v2499, %v2500
    %v2502 = vrot.slane %v2501, 2
    %v2503 = vmax.f32 %v2501, %v2502
    %v2504 = vrot.slane %v2503, 1
    %v2505 = vmax.f32 %v2503, %v2504
    %v2506 = vsel %vm2099, %v1007, -inf
    %v2507 = vrot.slane %v2506, 4
    %v2508 = vmax.f32 %v2506, %v2507
    %v2509 = vrot.slane %v2508, 2
    %v2510 = vmax.f32 %v2508, %v2509
    %v2511 = vrot.slane %v2510, 1
    %v2512 = vmax.f32 %v2510, %v2511
    %v2513 = vsel %vm2099, %v1009, -inf
    %v2514 = vrot.slane %v2513, 4
    %v2515 = vmax.f32 %v2513, %v2514
    %v2516 = vrot.slane %v2515, 2
    %v2517 = vmax.f32 %v2515, %v2516
    %v2518 = vrot.slane %v2517, 1
    %v2519 = vmax.f32 %v2517, %v2518
    %v2520 = vsel %vm2099, %v1017, -inf
    %v2521 = vrot.slane %v2520, 4
    %v2522 = vmax.f32 %v2520, %v2521
    %v2523 = vrot.slane %v2522, 2
    %v2524 = vmax.f32 %v2522, %v2523
    %v2525 = vrot.slane %v2524, 1
    %v2526 = vmax.f32 %v2524, %v2525
    %v2527 = vsel %vm2099, %v1025, -inf
    %v2528 = vrot.slane %v2527, 4
    %v2529 = vmax.f32 %v2527, %v2528
    %v2530 = vrot.slane %v2529, 2
    %v2531 = vmax.f32 %v2529, %v2530
    %v2532 = vrot.slane %v2531, 1
    %v2533 = vmax.f32 %v2531, %v2532
    %v2534 = vsel %vm2099, %v1024, -inf
    %v2535 = vrot.slane %v2534, 4
    %v2536 = vmax.f32 %v2534, %v2535
    %v2537 = vrot.slane %v2536, 2
    %v2538 = vmax.f32 %v2536, %v2537
    %v2539 = vrot.slane %v2538, 1
    %v2540 = vmax.f32 %v2538, %v2539
    %v2541 = vsel %vm2099, %v1026, -inf
    %v2542 = vrot.slane %v2541, 4
    %v2543 = vmax.f32 %v2541, %v2542
    %v2544 = vrot.slane %v2543, 2
    %v2545 = vmax.f32 %v2543, %v2544
    %v2546 = vrot.slane %v2545, 1
    %v2547 = vmax.f32 %v2545, %v2546
    %v2548 = vsel %vm2099, %v1034, -inf
    %v2549 = vrot.slane %v2548, 4
    %v2550 = vmax.f32 %v2548, %v2549
    %v2551 = vrot.slane %v2550, 2
    %v2552 = vmax.f32 %v2550, %v2551
    %v2553 = vrot.slane %v2552, 1
    %v2554 = vmax.f32 %v2552, %v2553
    %v2555 = vsel %vm2099, %v1042, -inf
    %v2556 = vrot.slane %v2555, 4
    %v2557 = vmax.f32 %v2555, %v2556
    %v2558 = vrot.slane %v2557, 2
    %v2559 = vmax.f32 %v2557, %v2558
    %v2560 = vrot.slane %v2559, 1
    %v2561 = vmax.f32 %v2559, %v2560
    %v2562 = vsel %vm2099, %v1041, -inf
    %v2563 = vrot.slane %v2562, 4
    %v2564 = vmax.f32 %v2562, %v2563
    %v2565 = vrot.slane %v2564, 2
    %v2566 = vmax.f32 %v2564, %v2565
    %v2567 = vrot.slane %v2566, 1
    %v2568 = vmax.f32 %v2566, %v2567
    %v2569 = vsel %vm2099, %v1043, -inf
    %v2570 = vrot.slane %v2569, 4
    %v2571 = vmax.f32 %v2569, %v2570
    %v2572 = vrot.slane %v2571, 2
    %v2573 = vmax.f32 %v2571, %v2572
    %v2574 = vrot.slane %v2573, 1
    %v2575 = vmax.f32 %v2573, %v2574
    %v2576 = vsel %vm2099, %v1051, -inf
    %v2577 = vrot.slane %v2576, 4
    %v2578 = vmax.f32 %v2576, %v2577
    %v2579 = vrot.slane %v2578, 2
    %v2580 = vmax.f32 %v2578, %v2579
    %v2581 = vrot.slane %v2580, 1
    %v2582 = vmax.f32 %v2580, %v2581
    %v2583 = vsel %vm2099, %v1059, -inf
    %v2584 = vrot.slane %v2583, 4
    %v2585 = vmax.f32 %v2583, %v2584
    %v2586 = vrot.slane %v2585, 2
    %v2587 = vmax.f32 %v2585, %v2586
    %v2588 = vrot.slane %v2587, 1
    %v2589 = vmax.f32 %v2587, %v2588
    %v2590 = vsel %vm2099, %v1058, -inf
    %v2591 = vrot.slane %v2590, 4
    %v2592 = vmax.f32 %v2590, %v2591
    %v2593 = vrot.slane %v2592, 2
    %v2594 = vmax.f32 %v2592, %v2593
    %v2595 = vrot.slane %v2594, 1
    %v2596 = vmax.f32 %v2594, %v2595
    %v2597 = vsel %vm2099, %v1060, -inf
    %v2598 = vrot.slane %v2597, 4
    %v2599 = vmax.f32 %v2597, %v2598
    %v2600 = vrot.slane %v2599, 2
    %v2601 = vmax.f32 %v2599, %v2600
    %v2602 = vrot.slane %v2601, 1
    %v2603 = vmax.f32 %v2601, %v2602
    %v2604 = vsel %vm2099, %v1068, -inf
    %v2605 = vrot.slane %v2604, 4
    %v2606 = vmax.f32 %v2604, %v2605
    %v2607 = vrot.slane %v2606, 2
    %v2608 = vmax.f32 %v2606, %v2607
    %v2609 = vrot.slane %v2608, 1
    %v2610 = vmax.f32 %v2608, %v2609
    %v2611 = vsel %vm2099, %v1076, -inf
    %v2612 = vrot.slane %v2611, 4
    %v2613 = vmax.f32 %v2611, %v2612
    %v2614 = vrot.slane %v2613, 2
    %v2615 = vmax.f32 %v2613, %v2614
    %v2616 = vrot.slane %v2615, 1
    %v2617 = vmax.f32 %v2615, %v2616
    %v2618 = vsel %vm2099, %v1075, -inf
    %v2619 = vrot.slane %v2618, 4
    %v2620 = vmax.f32 %v2618, %v2619
    %v2621 = vrot.slane %v2620, 2
    %v2622 = vmax.f32 %v2620, %v2621
    %v2623 = vrot.slane %v2622, 1
    %v2624 = vmax.f32 %v2622, %v2623
    %v2625 = vsel %vm2099, %v1077, -inf
    %v2626 = vrot.slane %v2625, 4
    %v2627 = vmax.f32 %v2625, %v2626
    %v2628 = vrot.slane %v2627, 2
    %v2629 = vmax.f32 %v2627, %v2628
    %v2630 = vrot.slane %v2629, 1
    %v2631 = vmax.f32 %v2629, %v2630
    %v2632 = vsel %vm2099, %v1085, -inf
    %v2633 = vrot.slane %v2632, 4
    %v2634 = vmax.f32 %v2632, %v2633
    %v2635 = vrot.slane %v2634, 2
    %v2636 = vmax.f32 %v2634, %v2635
    %v2637 = vrot.slane %v2636, 1
    %v2638 = vmax.f32 %v2636, %v2637
    %v2639 = vsel %vm2099, %v1093, -inf
    %v2640 = vrot.slane %v2639, 4
    %v2641 = vmax.f32 %v2639, %v2640
    %v2642 = vrot.slane %v2641, 2
    %v2643 = vmax.f32 %v2641, %v2642
    %v2644 = vrot.slane %v2643, 1
    %v2645 = vmax.f32 %v2643, %v2644
    %v2646 = vsel %vm2099, %v1092, -inf
    %v2647 = vrot.slane %v2646, 4
    %v2648 = vmax.f32 %v2646, %v2647
    %v2649 = vrot.slane %v2648, 2
    %v2650 = vmax.f32 %v2648, %v2649
    %v2651 = vrot.slane %v2650, 1
    %v2652 = vmax.f32 %v2650, %v2651
    %v2653 = vsel %vm2099, %v1094, -inf
    %v2654 = vrot.slane %v2653, 4
    %v2655 = vmax.f32 %v2653, %v2654
    %v2656 = vrot.slane %v2655, 2
    %v2657 = vmax.f32 %v2655, %v2656
    %v2658 = vrot.slane %v2657, 1
    %v2659 = vmax.f32 %v2657, %v2658
    %v2660 = vsel %vm2099, %v1102, -inf
    %v2661 = vrot.slane %v2660, 4
    %v2662 = vmax.f32 %v2660, %v2661
    %v2663 = vrot.slane %v2662, 2
    %v2664 = vmax.f32 %v2662, %v2663
    %v2665 = vrot.slane %v2664, 1
    %v2666 = vmax.f32 %v2664, %v2665
    %v2667 = vsel %vm2099, %v1110, -inf
    %v2668 = vrot.slane %v2667, 4
    %v2669 = vmax.f32 %v2667, %v2668
    %v2670 = vrot.slane %v2669, 2
    %v2671 = vmax.f32 %v2669, %v2670
    %v2672 = vrot.slane %v2671, 1
    %v2673 = vmax.f32 %v2671, %v2672
    %v2674 = vsel %vm2099, %v1109, -inf
    %v2675 = vrot.slane %v2674, 4
    %v2676 = vmax.f32 %v2674, %v2675
    %v2677 = vrot.slane %v2676, 2
    %v2678 = vmax.f32 %v2676, %v2677
    %v2679 = vrot.slane %v2678, 1
    %v2680 = vmax.f32 %v2678, %v2679
    %v2681 = vsel %vm2099, %v1111, -inf
    %v2682 = vrot.slane %v2681, 4
    %v2683 = vmax.f32 %v2681, %v2682
    %v2684 = vrot.slane %v2683, 2
    %v2685 = vmax.f32 %v2683, %v2684
    %v2686 = vrot.slane %v2685, 1
    %v2687 = vmax.f32 %v2685, %v2686
    %v2688 = vsel %vm2099, %v1119, -inf
    %v2689 = vrot.slane %v2688, 4
    %v2690 = vmax.f32 %v2688, %v2689
    %v2691 = vrot.slane %v2690, 2
    %v2692 = vmax.f32 %v2690, %v2691
    %v2693 = vrot.slane %v2692, 1
    %v2694 = vmax.f32 %v2692, %v2693
    %v2695 = vsel %vm2099, %v1127, -inf
    %v2696 = vrot.slane %v2695, 4
    %v2697 = vmax.f32 %v2695, %v2696
    %v2698 = vrot.slane %v2697, 2
    %v2699 = vmax.f32 %v2697, %v2698
    %v2700 = vrot.slane %v2699, 1
    %v2701 = vmax.f32 %v2699, %v2700
    %v2702 = vsel %vm2099, %v1126, -inf
    %v2703 = vrot.slane %v2702, 4
    %v2704 = vmax.f32 %v2702, %v2703
    %v2705 = vrot.slane %v2704, 2
    %v2706 = vmax.f32 %v2704, %v2705
    %v2707 = vrot.slane %v2706, 1
    %v2708 = vmax.f32 %v2706, %v2707
    %v2709 = vsel %vm2099, %v1128, -inf
    %v2710 = vrot.slane %v2709, 4
    %v2711 = vmax.f32 %v2709, %v2710
    %v2712 = vrot.slane %v2711, 2
    %v2713 = vmax.f32 %v2711, %v2712
    %v2714 = vrot.slane %v2713, 1
    %v2715 = vmax.f32 %v2713, %v2714
    %v2716 = vsel %vm2099, %v1136, -inf
    %v2717 = vrot.slane %v2716, 4
    %v2718 = vmax.f32 %v2716, %v2717
    %v2719 = vrot.slane %v2718, 2
    %v2720 = vmax.f32 %v2718, %v2719
    %v2721 = vrot.slane %v2720, 1
    %v2722 = vmax.f32 %v2720, %v2721
    %v2723 = vsel %vm2099, %v1144, -inf
    %v2724 = vrot.slane %v2723, 4
    %v2725 = vmax.f32 %v2723, %v2724
    %v2726 = vrot.slane %v2725, 2
    %v2727 = vmax.f32 %v2725, %v2726
    %v2728 = vrot.slane %v2727, 1
    %v2729 = vmax.f32 %v2727, %v2728
    %v2730 = vsel %vm2099, %v1143, -inf
    %v2731 = vrot.slane %v2730, 4
    %v2732 = vmax.f32 %v2730, %v2731
    %v2733 = vrot.slane %v2732, 2
    %v2734 = vmax.f32 %v2732, %v2733
    %v2735 = vrot.slane %v2734, 1
    %v2736 = vmax.f32 %v2734, %v2735
    %v2737 = vsel %vm2099, %v1145, -inf
    %v2738 = vrot.slane %v2737, 4
    %v2739 = vmax.f32 %v2737, %v2738
    %v2740 = vrot.slane %v2739, 2
    %v2741 = vmax.f32 %v2739, %v2740
    %v2742 = vrot.slane %v2741, 1
    %v2743 = vmax.f32 %v2741, %v2742
    %v2744 = vsel %vm2099, %v1153, -inf
    %v2745 = vrot.slane %v2744, 4
    %v2746 = vmax.f32 %v2744, %v2745
    %v2747 = vrot.slane %v2746, 2
    %v2748 = vmax.f32 %v2746, %v2747
    %v2749 = vrot.slane %v2748, 1
    %v2750 = vmax.f32 %v2748, %v2749
    %v2751 = vsel %vm2099, %v1161, -inf
    %v2752 = vrot.slane %v2751, 4
    %v2753 = vmax.f32 %v2751, %v2752
    %v2754 = vrot.slane %v2753, 2
    %v2755 = vmax.f32 %v2753, %v2754
    %v2756 = vrot.slane %v2755, 1
    %v2757 = vmax.f32 %v2755, %v2756
    %v2758 = vsel %vm2099, %v1160, -inf
    %v2759 = vrot.slane %v2758, 4
    %v2760 = vmax.f32 %v2758, %v2759
    %v2761 = vrot.slane %v2760, 2
    %v2762 = vmax.f32 %v2760, %v2761
    %v2763 = vrot.slane %v2762, 1
    %v2764 = vmax.f32 %v2762, %v2763
    %v2765 = vsel %vm2099, %v1162, -inf
    %v2766 = vrot.slane %v2765, 4
    %v2767 = vmax.f32 %v2765, %v2766
    %v2768 = vrot.slane %v2767, 2
    %v2769 = vmax.f32 %v2767, %v2768
    %v2770 = vrot.slane %v2769, 1
    %v2771 = vmax.f32 %v2769, %v2770
    %v2772 = vsel %vm2099, %v1170, -inf
    %v2773 = vrot.slane %v2772, 4
    %v2774 = vmax.f32 %v2772, %v2773
    %v2775 = vrot.slane %v2774, 2
    %v2776 = vmax.f32 %v2774, %v2775
    %v2777 = vrot.slane %v2776, 1
    %v2778 = vmax.f32 %v2776, %v2777
    %v2779 = vsel %vm2099, %v1178, -inf
    %v2780 = vrot.slane %v2779, 4
    %v2781 = vmax.f32 %v2779, %v2780
    %v2782 = vrot.slane %v2781, 2
    %v2783 = vmax.f32 %v2781, %v2782
    %v2784 = vrot.slane %v2783, 1
    %v2785 = vmax.f32 %v2783, %v2784
    %v2786 = vsel %vm2099, %v1177, -inf
    %v2787 = vrot.slane %v2786, 4
    %v2788 = vmax.f32 %v2786, %v2787
    %v2789 = vrot.slane %v2788, 2
    %v2790 = vmax.f32 %v2788, %v2789
    %v2791 = vrot.slane %v2790, 1
    %v2792 = vmax.f32 %v2790, %v2791
    %v2793 = vsel %vm2099, %v1179, -inf
    %v2794 = vrot.slane %v2793, 4
    %v2795 = vmax.f32 %v2793, %v2794
    %v2796 = vrot.slane %v2795, 2
    %v2797 = vmax.f32 %v2795, %v2796
    %v2798 = vrot.slane %v2797, 1
    %v2799 = vmax.f32 %v2797, %v2798
    %v2800 = vsel %vm2099, %v1187, -inf
    %v2801 = vrot.slane %v2800, 4
    %v2802 = vmax.f32 %v2800, %v2801
    %v2803 = vrot.slane %v2802, 2
    %v2804 = vmax.f32 %v2802, %v2803
    %v2805 = vrot.slane %v2804, 1
    %v2806 = vmax.f32 %v2804, %v2805
    %v2807 = vsel %vm2099, %v1195, -inf
    %v2808 = vrot.slane %v2807, 4
    %v2809 = vmax.f32 %v2807, %v2808
    %v2810 = vrot.slane %v2809, 2
    %v2811 = vmax.f32 %v2809, %v2810
    %v2812 = vrot.slane %v2811, 1
    %v2813 = vmax.f32 %v2811, %v2812
    %v2814 = vsel %vm2099, %v1194, -inf
    %v2815 = vrot.slane %v2814, 4
    %v2816 = vmax.f32 %v2814, %v2815
    %v2817 = vrot.slane %v2816, 2
    %v2818 = vmax.f32 %v2816, %v2817
    %v2819 = vrot.slane %v2818, 1
    %v2820 = vmax.f32 %v2818, %v2819
    %v2821 = vsel %vm2099, %v1196, -inf
    %v2822 = vrot.slane %v2821, 4
    %v2823 = vmax.f32 %v2821, %v2822
    %v2824 = vrot.slane %v2823, 2
    %v2825 = vmax.f32 %v2823, %v2824
    %v2826 = vrot.slane %v2825, 1
    %v2827 = vmax.f32 %v2825, %v2826
    %v2828 = vsel %vm2099, %v1204, -inf
    %v2829 = vrot.slane %v2828, 4
    %v2830 = vmax.f32 %v2828, %v2829
    %v2831 = vrot.slane %v2830, 2
    %v2832 = vmax.f32 %v2830, %v2831
    %v2833 = vrot.slane %v2832, 1
    %v2834 = vmax.f32 %v2832, %v2833
    %v2835 = vsel %vm2099, %v1212, -inf
    %v2836 = vrot.slane %v2835, 4
    %v2837 = vmax.f32 %v2835, %v2836
    %v2838 = vrot.slane %v2837, 2
    %v2839 = vmax.f32 %v2837, %v2838
    %v2840 = vrot.slane %v2839, 1
    %v2841 = vmax.f32 %v2839, %v2840
    %v2842 = vsel %vm2099, %v1211, -inf
    %v2843 = vrot.slane %v2842, 4
    %v2844 = vmax.f32 %v2842, %v2843
    %v2845 = vrot.slane %v2844, 2
    %v2846 = vmax.f32 %v2844, %v2845
    %v2847 = vrot.slane %v2846, 1
    %v2848 = vmax.f32 %v2846, %v2847
    %v2849 = vsel %vm2099, %v1213, -inf
    %v2850 = vrot.slane %v2849, 4
    %v2851 = vmax.f32 %v2849, %v2850
    %v2852 = vrot.slane %v2851, 2
    %v2853 = vmax.f32 %v2851, %v2852
    %v2854 = vrot.slane %v2853, 1
    %v2855 = vmax.f32 %v2853, %v2854
    %v2856 = vsel %vm2099, %v1221, -inf
    %v2857 = vrot.slane %v2856, 4
    %v2858 = vmax.f32 %v2856, %v2857
    %v2859 = vrot.slane %v2858, 2
    %v2860 = vmax.f32 %v2858, %v2859
    %v2861 = vrot.slane %v2860, 1
    %v2862 = vmax.f32 %v2860, %v2861
    %v2863 = vsel %vm2099, %v1229, -inf
    %v2864 = vrot.slane %v2863, 4
    %v2865 = vmax.f32 %v2863, %v2864
    %v2866 = vrot.slane %v2865, 2
    %v2867 = vmax.f32 %v2865, %v2866
    %v2868 = vrot.slane %v2867, 1
    %v2869 = vmax.f32 %v2867, %v2868
    %v2870 = vsel %vm2099, %v1228, -inf
    %v2871 = vrot.slane %v2870, 4
    %v2872 = vmax.f32 %v2870, %v2871
    %v2873 = vrot.slane %v2872, 2
    %v2874 = vmax.f32 %v2872, %v2873
    %v2875 = vrot.slane %v2874, 1
    %v2876 = vmax.f32 %v2874, %v2875
    %v2877 = vsel %vm2099, %v1230, -inf
    %v2878 = vrot.slane %v2877, 4
    %v2879 = vmax.f32 %v2877, %v2878
    %v2880 = vrot.slane %v2879, 2
    %v2881 = vmax.f32 %v2879, %v2880
    %v2882 = vrot.slane %v2881, 1
    %v2883 = vmax.f32 %v2881, %v2882
    %v2884 = vsel %vm2099, %v1238, -inf
    %v2885 = vrot.slane %v2884, 4
    %v2886 = vmax.f32 %v2884, %v2885
    %v2887 = vrot.slane %v2886, 2
    %v2888 = vmax.f32 %v2886, %v2887
    %v2889 = vrot.slane %v2888, 1
    %v2890 = vmax.f32 %v2888, %v2889
    %v2891 = vsel %vm2099, %v1246, -inf
    %v2892 = vrot.slane %v2891, 4
    %v2893 = vmax.f32 %v2891, %v2892
    %v2894 = vrot.slane %v2893, 2
    %v2895 = vmax.f32 %v2893, %v2894
    %v2896 = vrot.slane %v2895, 1
    %v2897 = vmax.f32 %v2895, %v2896
    %v2898 = vsel %vm2099, %v1245, -inf
    %v2899 = vrot.slane %v2898, 4
    %v2900 = vmax.f32 %v2898, %v2899
    %v2901 = vrot.slane %v2900, 2
    %v2902 = vmax.f32 %v2900, %v2901
    %v2903 = vrot.slane %v2902, 1
    %v2904 = vmax.f32 %v2902, %v2903
    %v2905 = vsel %vm2099, %v1247, -inf
    %v2906 = vrot.slane %v2905, 4
    %v2907 = vmax.f32 %v2905, %v2906
    %v2908 = vrot.slane %v2907, 2
    %v2909 = vmax.f32 %v2907, %v2908
    %v2910 = vrot.slane %v2909, 1
    %v2911 = vmax.f32 %v2909, %v2910
    %v2912 = vsel %vm2099, %v1255, -inf
    %v2913 = vrot.slane %v2912, 4
    %v2914 = vmax.f32 %v2912, %v2913
    %v2915 = vrot.slane %v2914, 2
    %v2916 = vmax.f32 %v2914, %v2915
    %v2917 = vrot.slane %v2916, 1
    %v2918 = vmax.f32 %v2916, %v2917
    %v2919 = vsel %vm2099, %v1263, -inf
    %v2920 = vrot.slane %v2919, 4
    %v2921 = vmax.f32 %v2919, %v2920
    %v2922 = vrot.slane %v2921, 2
    %v2923 = vmax.f32 %v2921, %v2922
    %v2924 = vrot.slane %v2923, 1
    %v2925 = vmax.f32 %v2923, %v2924
    %v2926 = vsel %vm2099, %v1262, -inf
    %v2927 = vrot.slane %v2926, 4
    %v2928 = vmax.f32 %v2926, %v2927
    %v2929 = vrot.slane %v2928, 2
    %v2930 = vmax.f32 %v2928, %v2929
    %v2931 = vrot.slane %v2930, 1
    %v2932 = vmax.f32 %v2930, %v2931
    %v2933 = vsel %vm2099, %v1264, -inf
    %v2934 = vrot.slane %v2933, 4
    %v2935 = vmax.f32 %v2933, %v2934
    %v2936 = vrot.slane %v2935, 2
    %v2937 = vmax.f32 %v2935, %v2936
    %v2938 = vrot.slane %v2937, 1
    %v2939 = vmax.f32 %v2937, %v2938
    %v2940 = vsel %vm2099, %v1272, -inf
    %v2941 = vrot.slane %v2940, 4
    %v2942 = vmax.f32 %v2940, %v2941
    %v2943 = vrot.slane %v2942, 2
    %v2944 = vmax.f32 %v2942, %v2943
    %v2945 = vrot.slane %v2944, 1
    %v2946 = vmax.f32 %v2944, %v2945
    %v2947 = vsel %vm2099, %v1280, -inf
    %v2948 = vrot.slane %v2947, 4
    %v2949 = vmax.f32 %v2947, %v2948
    %v2950 = vrot.slane %v2949, 2
    %v2951 = vmax.f32 %v2949, %v2950
    %v2952 = vrot.slane %v2951, 1
    %v2953 = vmax.f32 %v2951, %v2952
    %v2954 = vsel %vm2099, %v1279, -inf
    %v2955 = vrot.slane %v2954, 4
    %v2956 = vmax.f32 %v2954, %v2955
    %v2957 = vrot.slane %v2956, 2
    %v2958 = vmax.f32 %v2956, %v2957
    %v2959 = vrot.slane %v2958, 1
    %v2960 = vmax.f32 %v2958, %v2959
    %v2961 = vsel %vm2099, %v1281, -inf
    %v2962 = vrot.slane %v2961, 4
    %v2963 = vmax.f32 %v2961, %v2962
    %v2964 = vrot.slane %v2963, 2
    %v2965 = vmax.f32 %v2963, %v2964
    %v2966 = vrot.slane %v2965, 1
    %v2967 = vmax.f32 %v2965, %v2966
    %v2968 = vsel %vm2099, %v1289, -inf
    %v2969 = vrot.slane %v2968, 4
    %v2970 = vmax.f32 %v2968, %v2969
    %v2971 = vrot.slane %v2970, 2
    %v2972 = vmax.f32 %v2970, %v2971
    %v2973 = vrot.slane %v2972, 1
    %v2974 = vmax.f32 %v2972, %v2973
    %v2975 = vsel %vm2099, %v1297, -inf
    %v2976 = vrot.slane %v2975, 4
    %v2977 = vmax.f32 %v2975, %v2976
    %v2978 = vrot.slane %v2977, 2
    %v2979 = vmax.f32 %v2977, %v2978
    %v2980 = vrot.slane %v2979, 1
    %v2981 = vmax.f32 %v2979, %v2980
    %v2982 = vsel %vm2099, %v1296, -inf
    %v2983 = vrot.slane %v2982, 4
    %v2984 = vmax.f32 %v2982, %v2983
    %v2985 = vrot.slane %v2984, 2
    %v2986 = vmax.f32 %v2984, %v2985
    %v2987 = vrot.slane %v2986, 1
    %v2988 = vmax.f32 %v2986, %v2987
    %v2989 = vsel %vm2099, %v1298, -inf
    %v2990 = vrot.slane %v2989, 4
    %v2991 = vmax.f32 %v2989, %v2990
    %v2992 = vrot.slane %v2991, 2
    %v2993 = vmax.f32 %v2991, %v2992
    %v2994 = vrot.slane %v2993, 1
    %v2995 = vmax.f32 %v2993, %v2994
    %v2996 = vsel %vm2099, %v1306, -inf
    %v2997 = vrot.slane %v2996, 4
    %v2998 = vmax.f32 %v2996, %v2997
    %v2999 = vrot.slane %v2998, 2
    %v3000 = vmax.f32 %v2998, %v2999
    %v3001 = vrot.slane %v3000, 1
    %v3002 = vmax.f32 %v3000, %v3001
    %v3003 = vsel %vm2099, %v1314, -inf
    %v3004 = vrot.slane %v3003, 4
    %v3005 = vmax.f32 %v3003, %v3004
    %v3006 = vrot.slane %v3005, 2
    %v3007 = vmax.f32 %v3005, %v3006
    %v3008 = vrot.slane %v3007, 1
    %v3009 = vmax.f32 %v3007, %v3008
    %v3010 = vsel %vm2099, %v1313, -inf
    %v3011 = vrot.slane %v3010, 4
    %v3012 = vmax.f32 %v3010, %v3011
    %v3013 = vrot.slane %v3012, 2
    %v3014 = vmax.f32 %v3012, %v3013
    %v3015 = vrot.slane %v3014, 1
    %v3016 = vmax.f32 %v3014, %v3015
    %v3017 = vsel %vm2099, %v1315, -inf
    %v3018 = vrot.slane %v3017, 4
    %v3019 = vmax.f32 %v3017, %v3018
    %v3020 = vrot.slane %v3019, 2
    %v3021 = vmax.f32 %v3019, %v3020
    %v3022 = vrot.slane %v3021, 1
    %v3023 = vmax.f32 %v3021, %v3022
    %v3024 = vsel %vm2099, %v1323, -inf
    %v3025 = vrot.slane %v3024, 4
    %v3026 = vmax.f32 %v3024, %v3025
    %v3027 = vrot.slane %v3026, 2
    %v3028 = vmax.f32 %v3026, %v3027
    %v3029 = vrot.slane %v3028, 1
    %v3030 = vmax.f32 %v3028, %v3029
    %v3031 = vsel %vm2099, %v1331, -inf
    %v3032 = vrot.slane %v3031, 4
    %v3033 = vmax.f32 %v3031, %v3032
    %v3034 = vrot.slane %v3033, 2
    %v3035 = vmax.f32 %v3033, %v3034
    %v3036 = vrot.slane %v3035, 1
    %v3037 = vmax.f32 %v3035, %v3036
    %v3038 = vsel %vm2099, %v1330, -inf
    %v3039 = vrot.slane %v3038, 4
    %v3040 = vmax.f32 %v3038, %v3039
    %v3041 = vrot.slane %v3040, 2
    %v3042 = vmax.f32 %v3040, %v3041
    %v3043 = vrot.slane %v3042, 1
    %v3044 = vmax.f32 %v3042, %v3043
    %v3045 = vsel %vm2099, %v1332, -inf
    %v3046 = vrot.slane %v3045, 4
    %v3047 = vmax.f32 %v3045, %v3046
    %v3048 = vrot.slane %v3047, 2
    %v3049 = vmax.f32 %v3047, %v3048
    %v3050 = vrot.slane %v3049, 1
    %v3051 = vmax.f32 %v3049, %v3050
    %v3052 = vsel %vm2099, %v1340, -inf
    %v3053 = vrot.slane %v3052, 4
    %v3054 = vmax.f32 %v3052, %v3053
    %v3055 = vrot.slane %v3054, 2
    %v3056 = vmax.f32 %v3054, %v3055
    %v3057 = vrot.slane %v3056, 1
    %v3058 = vmax.f32 %v3056, %v3057
    %v3059 = vsel %vm2099, %v1348, -inf
    %v3060 = vrot.slane %v3059, 4
    %v3061 = vmax.f32 %v3059, %v3060
    %v3062 = vrot.slane %v3061, 2
    %v3063 = vmax.f32 %v3061, %v3062
    %v3064 = vrot.slane %v3063, 1
    %v3065 = vmax.f32 %v3063, %v3064
    %v3066 = vsel %vm2099, %v1347, -inf
    %v3067 = vrot.slane %v3066, 4
    %v3068 = vmax.f32 %v3066, %v3067
    %v3069 = vrot.slane %v3068, 2
    %v3070 = vmax.f32 %v3068, %v3069
    %v3071 = vrot.slane %v3070, 1
    %v3072 = vmax.f32 %v3070, %v3071
    %v3073 = vsel %vm2099, %v1349, -inf
    %v3074 = vrot.slane %v3073, 4
    %v3075 = vmax.f32 %v3073, %v3074
    %v3076 = vrot.slane %v3075, 2
    %v3077 = vmax.f32 %v3075, %v3076
    %v3078 = vrot.slane %v3077, 1
    %v3079 = vmax.f32 %v3077, %v3078
    %v3080 = vsel %vm2099, %v1357, -inf
    %v3081 = vrot.slane %v3080, 4
    %v3082 = vmax.f32 %v3080, %v3081
    %v3083 = vrot.slane %v3082, 2
    %v3084 = vmax.f32 %v3082, %v3083
    %v3085 = vrot.slane %v3084, 1
    %v3086 = vmax.f32 %v3084, %v3085
    %v3087 = vsel %vm2099, %v1365, -inf
    %v3088 = vrot.slane %v3087, 4
    %v3089 = vmax.f32 %v3087, %v3088
    %v3090 = vrot.slane %v3089, 2
    %v3091 = vmax.f32 %v3089, %v3090
    %v3092 = vrot.slane %v3091, 1
    %v3093 = vmax.f32 %v3091, %v3092
    %v3094 = vsel %vm2099, %v1364, -inf
    %v3095 = vrot.slane %v3094, 4
    %v3096 = vmax.f32 %v3094, %v3095
    %v3097 = vrot.slane %v3096, 2
    %v3098 = vmax.f32 %v3096, %v3097
    %v3099 = vrot.slane %v3098, 1
    %v3100 = vmax.f32 %v3098, %v3099
    %v3101 = vsel %vm2099, %v1366, -inf
    %v3102 = vrot.slane %v3101, 4
    %v3103 = vmax.f32 %v3101, %v3102
    %v3104 = vrot.slane %v3103, 2
    %v3105 = vmax.f32 %v3103, %v3104
    %v3106 = vrot.slane %v3105, 1
    %v3107 = vmax.f32 %v3105, %v3106
    %v3108 = vsel %vm2099, %v1374, -inf
    %v3109 = vrot.slane %v3108, 4
    %v3110 = vmax.f32 %v3108, %v3109
    %v3111 = vrot.slane %v3110, 2
    %v3112 = vmax.f32 %v3110, %v3111
    %v3113 = vrot.slane %v3112, 1
    %v3114 = vmax.f32 %v3112, %v3113
    %v3115 = vsel %vm2099, %v1382, -inf
    %v3116 = vrot.slane %v3115, 4
    %v3117 = vmax.f32 %v3115, %v3116
    %v3118 = vrot.slane %v3117, 2
    %v3119 = vmax.f32 %v3117, %v3118
    %v3120 = vrot.slane %v3119, 1
    %v3121 = vmax.f32 %v3119, %v3120
    %v3122 = vsel %vm2099, %v1381, -inf
    %v3123 = vrot.slane %v3122, 4
    %v3124 = vmax.f32 %v3122, %v3123
    %v3125 = vrot.slane %v3124, 2
    %v3126 = vmax.f32 %v3124, %v3125
    %v3127 = vrot.slane %v3126, 1
    %v3128 = vmax.f32 %v3126, %v3127
    %v3129 = vsel %vm2099, %v1383, -inf
    %v3130 = vrot.slane %v3129, 4
    %v3131 = vmax.f32 %v3129, %v3130
    %v3132 = vrot.slane %v3131, 2
    %v3133 = vmax.f32 %v3131, %v3132
    %v3134 = vrot.slane %v3133, 1
    %v3135 = vmax.f32 %v3133, %v3134
    %v3136 = vsel %vm2099, %v1391, -inf
    %v3137 = vrot.slane %v3136, 4
    %v3138 = vmax.f32 %v3136, %v3137
    %v3139 = vrot.slane %v3138, 2
    %v3140 = vmax.f32 %v3138, %v3139
    %v3141 = vrot.slane %v3140, 1
    %v3142 = vmax.f32 %v3140, %v3141
    %v3143 = vsel %vm2099, %v1399, -inf
    %v3144 = vrot.slane %v3143, 4
    %v3145 = vmax.f32 %v3143, %v3144
    %v3146 = vrot.slane %v3145, 2
    %v3147 = vmax.f32 %v3145, %v3146
    %v3148 = vrot.slane %v3147, 1
    %v3149 = vmax.f32 %v3147, %v3148
    %v3150 = vsel %vm2099, %v1398, -inf
    %v3151 = vrot.slane %v3150, 4
    %v3152 = vmax.f32 %v3150, %v3151
    %v3153 = vrot.slane %v3152, 2
    %v3154 = vmax.f32 %v3152, %v3153
    %v3155 = vrot.slane %v3154, 1
    %v3156 = vmax.f32 %v3154, %v3155
    %v3157 = vsel %vm2099, %v1400, -inf
    %v3158 = vrot.slane %v3157, 4
    %v3159 = vmax.f32 %v3157, %v3158
    %v3160 = vrot.slane %v3159, 2
    %v3161 = vmax.f32 %v3159, %v3160
    %v3162 = vrot.slane %v3161, 1
    %v3163 = vmax.f32 %v3161, %v3162
    %v3164 = vsel %vm2099, %v1408, -inf
    %v3165 = vrot.slane %v3164, 4
    %v3166 = vmax.f32 %v3164, %v3165
    %v3167 = vrot.slane %v3166, 2
    %v3168 = vmax.f32 %v3166, %v3167
    %v3169 = vrot.slane %v3168, 1
    %v3170 = vmax.f32 %v3168, %v3169
    %v3171 = vsel %vm2099, %v1416, -inf
    %v3172 = vrot.slane %v3171, 4
    %v3173 = vmax.f32 %v3171, %v3172
    %v3174 = vrot.slane %v3173, 2
    %v3175 = vmax.f32 %v3173, %v3174
    %v3176 = vrot.slane %v3175, 1
    %v3177 = vmax.f32 %v3175, %v3176
    %v3178 = vsel %vm2099, %v1415, -inf
    %v3179 = vrot.slane %v3178, 4
    %v3180 = vmax.f32 %v3178, %v3179
    %v3181 = vrot.slane %v3180, 2
    %v3182 = vmax.f32 %v3180, %v3181
    %v3183 = vrot.slane %v3182, 1
    %v3184 = vmax.f32 %v3182, %v3183
    %v3185 = vsel %vm2099, %v1417, -inf
    %v3186 = vrot.slane %v3185, 4
    %v3187 = vmax.f32 %v3185, %v3186
    %v3188 = vrot.slane %v3187, 2
    %v3189 = vmax.f32 %v3187, %v3188
    %v3190 = vrot.slane %v3189, 1
    %v3191 = vmax.f32 %v3189, %v3190
    %v3192 = vsel %vm2099, %v1425, -inf
    %v3193 = vrot.slane %v3192, 4
    %v3194 = vmax.f32 %v3192, %v3193
    %v3195 = vrot.slane %v3194, 2
    %v3196 = vmax.f32 %v3194, %v3195
    %v3197 = vrot.slane %v3196, 1
    %v3198 = vmax.f32 %v3196, %v3197
    %v3199 = vsel %vm2099, %v1433, -inf
    %v3200 = vrot.slane %v3199, 4
    %v3201 = vmax.f32 %v3199, %v3200
    %v3202 = vrot.slane %v3201, 2
    %v3203 = vmax.f32 %v3201, %v3202
    %v3204 = vrot.slane %v3203, 1
    %v3205 = vmax.f32 %v3203, %v3204
    %v3206 = vsel %vm2099, %v1432, -inf
    %v3207 = vrot.slane %v3206, 4
    %v3208 = vmax.f32 %v3206, %v3207
    %v3209 = vrot.slane %v3208, 2
    %v3210 = vmax.f32 %v3208, %v3209
    %v3211 = vrot.slane %v3210, 1
    %v3212 = vmax.f32 %v3210, %v3211
    %v3213 = vsel %vm2099, %v1434, -inf
    %v3214 = vrot.slane %v3213, 4
    %v3215 = vmax.f32 %v3213, %v3214
    %v3216 = vrot.slane %v3215, 2
    %v3217 = vmax.f32 %v3215, %v3216
    %v3218 = vrot.slane %v3217, 1
    %v3219 = vmax.f32 %v3217, %v3218
    %v3220 = vsel %vm2099, %v1442, -inf
    %v3221 = vrot.slane %v3220, 4
    %v3222 = vmax.f32 %v3220, %v3221
    %v3223 = vrot.slane %v3222, 2
    %v3224 = vmax.f32 %v3222, %v3223
    %v3225 = vrot.slane %v3224, 1
    %v3226 = vmax.f32 %v3224, %v3225
    %v3227 = vsel %vm2099, %v1450, -inf
    %v3228 = vrot.slane %v3227, 4
    %v3229 = vmax.f32 %v3227, %v3228
    %v3230 = vrot.slane %v3229, 2
    %v3231 = vmax.f32 %v3229, %v3230
    %v3232 = vrot.slane %v3231, 1
    %v3233 = vmax.f32 %v3231, %v3232
    %v3234 = vsel %vm2099, %v1449, -inf
    %v3235 = vrot.slane %v3234, 4
    %v3236 = vmax.f32 %v3234, %v3235
    %v3237 = vrot.slane %v3236, 2
    %v3238 = vmax.f32 %v3236, %v3237
    %v3239 = vrot.slane %v3238, 1
    %v3240 = vmax.f32 %v3238, %v3239
    %v3241 = vsel %vm2099, %v1451, -inf
    %v3242 = vrot.slane %v3241, 4
    %v3243 = vmax.f32 %v3241, %v3242
    %v3244 = vrot.slane %v3243, 2
    %v3245 = vmax.f32 %v3243, %v3244
    %v3246 = vrot.slane %v3245, 1
    %v3247 = vmax.f32 %v3245, %v3246
    %v3248 = vsel %vm2099, %v1459, -inf
    %v3249 = vrot.slane %v3248, 4
    %v3250 = vmax.f32 %v3248, %v3249
    %v3251 = vrot.slane %v3250, 2
    %v3252 = vmax.f32 %v3250, %v3251
    %v3253 = vrot.slane %v3252, 1
    %v3254 = vmax.f32 %v3252, %v3253
    %v3255 = vsel %vm2099, %v1467, -inf
    %v3256 = vrot.slane %v3255, 4
    %v3257 = vmax.f32 %v3255, %v3256
    %v3258 = vrot.slane %v3257, 2
    %v3259 = vmax.f32 %v3257, %v3258
    %v3260 = vrot.slane %v3259, 1
    %v3261 = vmax.f32 %v3259, %v3260
    %v3262 = vsel %vm2099, %v1466, -inf
    %v3263 = vrot.slane %v3262, 4
    %v3264 = vmax.f32 %v3262, %v3263
    %v3265 = vrot.slane %v3264, 2
    %v3266 = vmax.f32 %v3264, %v3265
    %v3267 = vrot.slane %v3266, 1
    %v3268 = vmax.f32 %v3266, %v3267
    %v3269 = vsel %vm2099, %v1468, -inf
    %v3270 = vrot.slane %v3269, 4
    %v3271 = vmax.f32 %v3269, %v3270
    %v3272 = vrot.slane %v3271, 2
    %v3273 = vmax.f32 %v3271, %v3272
    %v3274 = vrot.slane %v3273, 1
    %v3275 = vmax.f32 %v3273, %v3274
    %v3276 = vsel %vm2099, %v1476, -inf
    %v3277 = vrot.slane %v3276, 4
    %v3278 = vmax.f32 %v3276, %v3277
    %v3279 = vrot.slane %v3278, 2
    %v3280 = vmax.f32 %v3278, %v3279
    %v3281 = vrot.slane %v3280, 1
    %v3282 = vmax.f32 %v3280, %v3281
    %v3283 = vsel %vm2099, %v1484, -inf
    %v3284 = vrot.slane %v3283, 4
    %v3285 = vmax.f32 %v3283, %v3284
    %v3286 = vrot.slane %v3285, 2
    %v3287 = vmax.f32 %v3285, %v3286
    %v3288 = vrot.slane %v3287, 1
    %v3289 = vmax.f32 %v3287, %v3288
    %v3290 = vsel %vm2099, %v1483, -inf
    %v3291 = vrot.slane %v3290, 4
    %v3292 = vmax.f32 %v3290, %v3291
    %v3293 = vrot.slane %v3292, 2
    %v3294 = vmax.f32 %v3292, %v3293
    %v3295 = vrot.slane %v3294, 1
    %v3296 = vmax.f32 %v3294, %v3295
    %v3297 = vsel %vm2099, %v1485, -inf
    %v3298 = vrot.slane %v3297, 4
    %v3299 = vmax.f32 %v3297, %v3298
    %v3300 = vrot.slane %v3299, 2
    %v3301 = vmax.f32 %v3299, %v3300
    %v3302 = vrot.slane %v3301, 1
    %v3303 = vmax.f32 %v3301, %v3302
    %v3304 = vsel %vm2099, %v1493, -inf
    %v3305 = vrot.slane %v3304, 4
    %v3306 = vmax.f32 %v3304, %v3305
    %v3307 = vrot.slane %v3306, 2
    %v3308 = vmax.f32 %v3306, %v3307
    %v3309 = vrot.slane %v3308, 1
    %v3310 = vmax.f32 %v3308, %v3309
    %v3311 = vsel %vm2099, %v1501, -inf
    %v3312 = vrot.slane %v3311, 4
    %v3313 = vmax.f32 %v3311, %v3312
    %v3314 = vrot.slane %v3313, 2
    %v3315 = vmax.f32 %v3313, %v3314
    %v3316 = vrot.slane %v3315, 1
    %v3317 = vmax.f32 %v3315, %v3316
    %v3318 = vsel %vm2099, %v1500, -inf
    %v3319 = vrot.slane %v3318, 4
    %v3320 = vmax.f32 %v3318, %v3319
    %v3321 = vrot.slane %v3320, 2
    %v3322 = vmax.f32 %v3320, %v3321
    %v3323 = vrot.slane %v3322, 1
    %v3324 = vmax.f32 %v3322, %v3323
    %v3325 = vsel %vm2099, %v1502, -inf
    %v3326 = vrot.slane %v3325, 4
    %v3327 = vmax.f32 %v3325, %v3326
    %v3328 = vrot.slane %v3327, 2
    %v3329 = vmax.f32 %v3327, %v3328
    %v3330 = vrot.slane %v3329, 1
    %v3331 = vmax.f32 %v3329, %v3330
    %v3332 = vsel %vm2099, %v1510, -inf
    %v3333 = vrot.slane %v3332, 4
    %v3334 = vmax.f32 %v3332, %v3333
    %v3335 = vrot.slane %v3334, 2
    %v3336 = vmax.f32 %v3334, %v3335
    %v3337 = vrot.slane %v3336, 1
    %v3338 = vmax.f32 %v3336, %v3337
    %v3339 = vsel %vm2099, %v1518, -inf
    %v3340 = vrot.slane %v3339, 4
    %v3341 = vmax.f32 %v3339, %v3340
    %v3342 = vrot.slane %v3341, 2
    %v3343 = vmax.f32 %v3341, %v3342
    %v3344 = vrot.slane %v3343, 1
    %v3345 = vmax.f32 %v3343, %v3344
    %v3346 = vsel %vm2099, %v1517, -inf
    %v3347 = vrot.slane %v3346, 4
    %v3348 = vmax.f32 %v3346, %v3347
    %v3349 = vrot.slane %v3348, 2
    %v3350 = vmax.f32 %v3348, %v3349
    %v3351 = vrot.slane %v3350, 1
    %v3352 = vmax.f32 %v3350, %v3351
    %v3353 = vsel %vm2099, %v1519, -inf
    %v3354 = vrot.slane %v3353, 4
    %v3355 = vmax.f32 %v3353, %v3354
    %v3356 = vrot.slane %v3355, 2
    %v3357 = vmax.f32 %v3355, %v3356
    %v3358 = vrot.slane %v3357, 1
    %v3359 = vmax.f32 %v3357, %v3358
    %v3360 = vsel %vm2099, %v1527, -inf
    %v3361 = vrot.slane %v3360, 4
    %v3362 = vmax.f32 %v3360, %v3361
    %v3363 = vrot.slane %v3362, 2
    %v3364 = vmax.f32 %v3362, %v3363
    %v3365 = vrot.slane %v3364, 1
    %v3366 = vmax.f32 %v3364, %v3365
    %v3367 = vsel %vm2099, %v1535, -inf
    %v3368 = vrot.slane %v3367, 4
    %v3369 = vmax.f32 %v3367, %v3368
    %v3370 = vrot.slane %v3369, 2
    %v3371 = vmax.f32 %v3369, %v3370
    %v3372 = vrot.slane %v3371, 1
    %v3373 = vmax.f32 %v3371, %v3372
    %v3374 = vsel %vm2099, %v1534, -inf
    %v3375 = vrot.slane %v3374, 4
    %v3376 = vmax.f32 %v3374, %v3375
    %v3377 = vrot.slane %v3376, 2
    %v3378 = vmax.f32 %v3376, %v3377
    %v3379 = vrot.slane %v3378, 1
    %v3380 = vmax.f32 %v3378, %v3379
    %v3381 = vsel %vm2099, %v1536, -inf
    %v3382 = vrot.slane %v3381, 4
    %v3383 = vmax.f32 %v3381, %v3382
    %v3384 = vrot.slane %v3383, 2
    %v3385 = vmax.f32 %v3383, %v3384
    %v3386 = vrot.slane %v3385, 1
    %v3387 = vmax.f32 %v3385, %v3386
    %v3388 = vsel %vm2099, %v1544, -inf
    %v3389 = vrot.slane %v3388, 4
    %v3390 = vmax.f32 %v3388, %v3389
    %v3391 = vrot.slane %v3390, 2
    %v3392 = vmax.f32 %v3390, %v3391
    %v3393 = vrot.slane %v3392, 1
    %v3394 = vmax.f32 %v3392, %v3393
    %v3395 = vsel %vm2099, %v1552, -inf
    %v3396 = vrot.slane %v3395, 4
    %v3397 = vmax.f32 %v3395, %v3396
    %v3398 = vrot.slane %v3397, 2
    %v3399 = vmax.f32 %v3397, %v3398
    %v3400 = vrot.slane %v3399, 1
    %v3401 = vmax.f32 %v3399, %v3400
    %v3402 = vsel %vm2099, %v1551, -inf
    %v3403 = vrot.slane %v3402, 4
    %v3404 = vmax.f32 %v3402, %v3403
    %v3405 = vrot.slane %v3404, 2
    %v3406 = vmax.f32 %v3404, %v3405
    %v3407 = vrot.slane %v3406, 1
    %v3408 = vmax.f32 %v3406, %v3407
    %v3409 = vsel %vm2099, %v1553, -inf
    %v3410 = vrot.slane %v3409, 4
    %v3411 = vmax.f32 %v3409, %v3410
    %v3412 = vrot.slane %v3411, 2
    %v3413 = vmax.f32 %v3411, %v3412
    %v3414 = vrot.slane %v3413, 1
    %v3415 = vmax.f32 %v3413, %v3414
    %v3416 = vsel %vm2099, %v1561, -inf
    %v3417 = vrot.slane %v3416, 4
    %v3418 = vmax.f32 %v3416, %v3417
    %v3419 = vrot.slane %v3418, 2
    %v3420 = vmax.f32 %v3418, %v3419
    %v3421 = vrot.slane %v3420, 1
    %v3422 = vmax.f32 %v3420, %v3421
    %v3423 = vsel %vm2099, %v1569, -inf
    %v3424 = vrot.slane %v3423, 4
    %v3425 = vmax.f32 %v3423, %v3424
    %v3426 = vrot.slane %v3425, 2
    %v3427 = vmax.f32 %v3425, %v3426
    %v3428 = vrot.slane %v3427, 1
    %v3429 = vmax.f32 %v3427, %v3428
    %v3430 = vsel %vm2099, %v1568, -inf
    %v3431 = vrot.slane %v3430, 4
    %v3432 = vmax.f32 %v3430, %v3431
    %v3433 = vrot.slane %v3432, 2
    %v3434 = vmax.f32 %v3432, %v3433
    %v3435 = vrot.slane %v3434, 1
    %v3436 = vmax.f32 %v3434, %v3435
    %v3437 = vsel %vm2099, %v1570, -inf
    %v3438 = vrot.slane %v3437, 4
    %v3439 = vmax.f32 %v3437, %v3438
    %v3440 = vrot.slane %v3439, 2
    %v3441 = vmax.f32 %v3439, %v3440
    %v3442 = vrot.slane %v3441, 1
    %v3443 = vmax.f32 %v3441, %v3442
    %v3444 = vsel %vm2099, %v1578, -inf
    %v3445 = vrot.slane %v3444, 4
    %v3446 = vmax.f32 %v3444, %v3445
    %v3447 = vrot.slane %v3446, 2
    %v3448 = vmax.f32 %v3446, %v3447
    %v3449 = vrot.slane %v3448, 1
    %v3450 = vmax.f32 %v3448, %v3449
    %v3451 = vsel %vm2099, %v1586, -inf
    %v3452 = vrot.slane %v3451, 4
    %v3453 = vmax.f32 %v3451, %v3452
    %v3454 = vrot.slane %v3453, 2
    %v3455 = vmax.f32 %v3453, %v3454
    %v3456 = vrot.slane %v3455, 1
    %v3457 = vmax.f32 %v3455, %v3456
    %v3458 = vsel %vm2099, %v1585, -inf
    %v3459 = vrot.slane %v3458, 4
    %v3460 = vmax.f32 %v3458, %v3459
    %v3461 = vrot.slane %v3460, 2
    %v3462 = vmax.f32 %v3460, %v3461
    %v3463 = vrot.slane %v3462, 1
    %v3464 = vmax.f32 %v3462, %v3463
    %v3465 = vsel %vm2099, %v1587, -inf
    %v3466 = vrot.slane %v3465, 4
    %v3467 = vmax.f32 %v3465, %v3466
    %v3468 = vrot.slane %v3467, 2
    %v3469 = vmax.f32 %v3467, %v3468
    %v3470 = vrot.slane %v3469, 1
    %v3471 = vmax.f32 %v3469, %v3470
    %v3472 = vsel %vm2099, %v1595, -inf
    %v3473 = vrot.slane %v3472, 4
    %v3474 = vmax.f32 %v3472, %v3473
    %v3475 = vrot.slane %v3474, 2
    %v3476 = vmax.f32 %v3474, %v3475
    %v3477 = vrot.slane %v3476, 1
    %v3478 = vmax.f32 %v3476, %v3477
    %v3479 = vsel %vm2099, %v1603, -inf
    %v3480 = vrot.slane %v3479, 4
    %v3481 = vmax.f32 %v3479, %v3480
    %v3482 = vrot.slane %v3481, 2
    %v3483 = vmax.f32 %v3481, %v3482
    %v3484 = vrot.slane %v3483, 1
    %v3485 = vmax.f32 %v3483, %v3484
    %v3486 = vsel %vm2099, %v1602, -inf
    %v3487 = vrot.slane %v3486, 4
    %v3488 = vmax.f32 %v3486, %v3487
    %v3489 = vrot.slane %v3488, 2
    %v3490 = vmax.f32 %v3488, %v3489
    %v3491 = vrot.slane %v3490, 1
    %v3492 = vmax.f32 %v3490, %v3491
    %v3493 = vsel %vm2099, %v1604, -inf
    %v3494 = vrot.slane %v3493, 4
    %v3495 = vmax.f32 %v3493, %v3494
    %v3496 = vrot.slane %v3495, 2
    %v3497 = vmax.f32 %v3495, %v3496
    %v3498 = vrot.slane %v3497, 1
    %v3499 = vmax.f32 %v3497, %v3498
    %v3500 = vsel %vm2099, %v1612, -inf
    %v3501 = vrot.slane %v3500, 4
    %v3502 = vmax.f32 %v3500, %v3501
    %v3503 = vrot.slane %v3502, 2
    %v3504 = vmax.f32 %v3502, %v3503
    %v3505 = vrot.slane %v3504, 1
    %v3506 = vmax.f32 %v3504, %v3505
    %v3507 = vsel %vm2099, %v1620, -inf
    %v3508 = vrot.slane %v3507, 4
    %v3509 = vmax.f32 %v3507, %v3508
    %v3510 = vrot.slane %v3509, 2
    %v3511 = vmax.f32 %v3509, %v3510
    %v3512 = vrot.slane %v3511, 1
    %v3513 = vmax.f32 %v3511, %v3512
    %v3514 = vsel %vm2099, %v1619, -inf
    %v3515 = vrot.slane %v3514, 4
    %v3516 = vmax.f32 %v3514, %v3515
    %v3517 = vrot.slane %v3516, 2
    %v3518 = vmax.f32 %v3516, %v3517
    %v3519 = vrot.slane %v3518, 1
    %v3520 = vmax.f32 %v3518, %v3519
    %v3521 = vsel %vm2099, %v1621, -inf
    %v3522 = vrot.slane %v3521, 4
    %v3523 = vmax.f32 %v3521, %v3522
    %v3524 = vrot.slane %v3523, 2
    %v3525 = vmax.f32 %v3523, %v3524
    %v3526 = vrot.slane %v3525, 1
    %v3527 = vmax.f32 %v3525, %v3526
    %v3528 = vsel %vm2099, %v1629, -inf
    %v3529 = vrot.slane %v3528, 4
    %v3530 = vmax.f32 %v3528, %v3529
    %v3531 = vrot.slane %v3530, 2
    %v3532 = vmax.f32 %v3530, %v3531
    %v3533 = vrot.slane %v3532, 1
    %v3534 = vmax.f32 %v3532, %v3533
    %v3535 = vsel %vm2099, %v1637, -inf
    %v3536 = vrot.slane %v3535, 4
    %v3537 = vmax.f32 %v3535, %v3536
    %v3538 = vrot.slane %v3537, 2
    %v3539 = vmax.f32 %v3537, %v3538
    %v3540 = vrot.slane %v3539, 1
    %v3541 = vmax.f32 %v3539, %v3540
    %v3542 = vsel %vm2099, %v1636, -inf
    %v3543 = vrot.slane %v3542, 4
    %v3544 = vmax.f32 %v3542, %v3543
    %v3545 = vrot.slane %v3544, 2
    %v3546 = vmax.f32 %v3544, %v3545
    %v3547 = vrot.slane %v3546, 1
    %v3548 = vmax.f32 %v3546, %v3547
    %v3549 = vsel %vm2099, %v1638, -inf
    %v3550 = vrot.slane %v3549, 4
    %v3551 = vmax.f32 %v3549, %v3550
    %v3552 = vrot.slane %v3551, 2
    %v3553 = vmax.f32 %v3551, %v3552
    %v3554 = vrot.slane %v3553, 1
    %v3555 = vmax.f32 %v3553, %v3554
    %v3556 = vsel %vm2099, %v1646, -inf
    %v3557 = vrot.slane %v3556, 4
    %v3558 = vmax.f32 %v3556, %v3557
    %v3559 = vrot.slane %v3558, 2
    %v3560 = vmax.f32 %v3558, %v3559
    %v3561 = vrot.slane %v3560, 1
    %v3562 = vmax.f32 %v3560, %v3561
    %v3563 = vsel %vm2099, %v1654, -inf
    %v3564 = vrot.slane %v3563, 4
    %v3565 = vmax.f32 %v3563, %v3564
    %v3566 = vrot.slane %v3565, 2
    %v3567 = vmax.f32 %v3565, %v3566
    %v3568 = vrot.slane %v3567, 1
    %v3569 = vmax.f32 %v3567, %v3568
    %v3570 = vsel %vm2099, %v1653, -inf
    %v3571 = vrot.slane %v3570, 4
    %v3572 = vmax.f32 %v3570, %v3571
    %v3573 = vrot.slane %v3572, 2
    %v3574 = vmax.f32 %v3572, %v3573
    %v3575 = vrot.slane %v3574, 1
    %v3576 = vmax.f32 %v3574, %v3575
    %v3577 = vsel %vm2099, %v1655, -inf
    %v3578 = vrot.slane %v3577, 4
    %v3579 = vmax.f32 %v3577, %v3578
    %v3580 = vrot.slane %v3579, 2
    %v3581 = vmax.f32 %v3579, %v3580
    %v3582 = vrot.slane %v3581, 1
    %v3583 = vmax.f32 %v3581, %v3582
    %v3584 = vsel %vm2099, %v1663, -inf
    %v3585 = vrot.slane %v3584, 4
    %v3586 = vmax.f32 %v3584, %v3585
    %v3587 = vrot.slane %v3586, 2
    %v3588 = vmax.f32 %v3586, %v3587
    %v3589 = vrot.slane %v3588, 1
    %v3590 = vmax.f32 %v3588, %v3589
    %v3591 = vsel %vm2099, %v1671, -inf
    %v3592 = vrot.slane %v3591, 4
    %v3593 = vmax.f32 %v3591, %v3592
    %v3594 = vrot.slane %v3593, 2
    %v3595 = vmax.f32 %v3593, %v3594
    %v3596 = vrot.slane %v3595, 1
    %v3597 = vmax.f32 %v3595, %v3596
    %v3598 = vsel %vm2099, %v1670, -inf
    %v3599 = vrot.slane %v3598, 4
    %v3600 = vmax.f32 %v3598, %v3599
    %v3601 = vrot.slane %v3600, 2
    %v3602 = vmax.f32 %v3600, %v3601
    %v3603 = vrot.slane %v3602, 1
    %v3604 = vmax.f32 %v3602, %v3603
    %v3605 = vsel %vm2099, %v1672, -inf
    %v3606 = vrot.slane %v3605, 4
    %v3607 = vmax.f32 %v3605, %v3606
    %v3608 = vrot.slane %v3607, 2
    %v3609 = vmax.f32 %v3607, %v3608
    %v3610 = vrot.slane %v3609, 1
    %v3611 = vmax.f32 %v3609, %v3610
    %v3612 = vsel %vm2099, %v1680, -inf
    %v3613 = vrot.slane %v3612, 4
    %v3614 = vmax.f32 %v3612, %v3613
    %v3615 = vrot.slane %v3614, 2
    %v3616 = vmax.f32 %v3614, %v3615
    %v3617 = vrot.slane %v3616, 1
    %v3618 = vmax.f32 %v3616, %v3617
    %v3619 = vsel %vm2099, %v1688, -inf
    %v3620 = vrot.slane %v3619, 4
    %v3621 = vmax.f32 %v3619, %v3620
    %v3622 = vrot.slane %v3621, 2
    %v3623 = vmax.f32 %v3621, %v3622
    %v3624 = vrot.slane %v3623, 1
    %v3625 = vmax.f32 %v3623, %v3624
    %v3626 = vsel %vm2099, %v1687, -inf
    %v3627 = vrot.slane %v3626, 4
    %v3628 = vmax.f32 %v3626, %v3627
    %v3629 = vrot.slane %v3628, 2
    %v3630 = vmax.f32 %v3628, %v3629
    %v3631 = vrot.slane %v3630, 1
    %v3632 = vmax.f32 %v3630, %v3631
    %v3633 = vsel %vm2099, %v1689, -inf
    %v3634 = vrot.slane %v3633, 4
    %v3635 = vmax.f32 %v3633, %v3634
    %v3636 = vrot.slane %v3635, 2
    %v3637 = vmax.f32 %v3635, %v3636
    %v3638 = vrot.slane %v3637, 1
    %v3639 = vmax.f32 %v3637, %v3638
    %v3640 = vsel %vm2099, %v1697, -inf
    %v3641 = vrot.slane %v3640, 4
    %v3642 = vmax.f32 %v3640, %v3641
    %v3643 = vrot.slane %v3642, 2
    %v3644 = vmax.f32 %v3642, %v3643
    %v3645 = vrot.slane %v3644, 1
    %v3646 = vmax.f32 %v3644, %v3645
    %v3647 = vsel %vm2099, %v1705, -inf
    %v3648 = vrot.slane %v3647, 4
    %v3649 = vmax.f32 %v3647, %v3648
    %v3650 = vrot.slane %v3649, 2
    %v3651 = vmax.f32 %v3649, %v3650
    %v3652 = vrot.slane %v3651, 1
    %v3653 = vmax.f32 %v3651, %v3652
    %v3654 = vsel %vm2099, %v1704, -inf
    %v3655 = vrot.slane %v3654, 4
    %v3656 = vmax.f32 %v3654, %v3655
    %v3657 = vrot.slane %v3656, 2
    %v3658 = vmax.f32 %v3656, %v3657
    %v3659 = vrot.slane %v3658, 1
    %v3660 = vmax.f32 %v3658, %v3659
    %v3661 = vsel %vm2099, %v1706, -inf
    %v3662 = vrot.slane %v3661, 4
    %v3663 = vmax.f32 %v3661, %v3662
    %v3664 = vrot.slane %v3663, 2
    %v3665 = vmax.f32 %v3663, %v3664
    %v3666 = vrot.slane %v3665, 1
    %v3667 = vmax.f32 %v3665, %v3666
    %v3668 = vsel %vm2099, %v1714, -inf
    %v3669 = vrot.slane %v3668, 4
    %v3670 = vmax.f32 %v3668, %v3669
    %v3671 = vrot.slane %v3670, 2
    %v3672 = vmax.f32 %v3670, %v3671
    %v3673 = vrot.slane %v3672, 1
    %v3674 = vmax.f32 %v3672, %v3673
    %v3675 = vsel %vm2099, %v1722, -inf
    %v3676 = vrot.slane %v3675, 4
    %v3677 = vmax.f32 %v3675, %v3676
    %v3678 = vrot.slane %v3677, 2
    %v3679 = vmax.f32 %v3677, %v3678
    %v3680 = vrot.slane %v3679, 1
    %v3681 = vmax.f32 %v3679, %v3680
    %v3682 = vsel %vm2099, %v1721, -inf
    %v3683 = vrot.slane %v3682, 4
    %v3684 = vmax.f32 %v3682, %v3683
    %v3685 = vrot.slane %v3684, 2
    %v3686 = vmax.f32 %v3684, %v3685
    %v3687 = vrot.slane %v3686, 1
    %v3688 = vmax.f32 %v3686, %v3687
    %v3689 = vsel %vm2099, %v1723, -inf
    %v3690 = vrot.slane %v3689, 4
    %v3691 = vmax.f32 %v3689, %v3690
    %v3692 = vrot.slane %v3691, 2
    %v3693 = vmax.f32 %v3691, %v3692
    %v3694 = vrot.slane %v3693, 1
    %v3695 = vmax.f32 %v3693, %v3694
    %v3696 = vsel %vm2099, %v1731, -inf
    %v3697 = vrot.slane %v3696, 4
    %v3698 = vmax.f32 %v3696, %v3697
    %v3699 = vrot.slane %v3698, 2
    %v3700 = vmax.f32 %v3698, %v3699
    %v3701 = vrot.slane %v3700, 1
    %v3702 = vmax.f32 %v3700, %v3701
    %v3703 = vsel %vm2099, %v1739, -inf
    %v3704 = vrot.slane %v3703, 4
    %v3705 = vmax.f32 %v3703, %v3704
    %v3706 = vrot.slane %v3705, 2
    %v3707 = vmax.f32 %v3705, %v3706
    %v3708 = vrot.slane %v3707, 1
    %v3709 = vmax.f32 %v3707, %v3708
    %v3710 = vsel %vm2099, %v1738, -inf
    %v3711 = vrot.slane %v3710, 4
    %v3712 = vmax.f32 %v3710, %v3711
    %v3713 = vrot.slane %v3712, 2
    %v3714 = vmax.f32 %v3712, %v3713
    %v3715 = vrot.slane %v3714, 1
    %v3716 = vmax.f32 %v3714, %v3715
    %v3717 = vsel %vm2099, %v1740, -inf
    %v3718 = vrot.slane %v3717, 4
    %v3719 = vmax.f32 %v3717, %v3718
    %v3720 = vrot.slane %v3719, 2
    %v3721 = vmax.f32 %v3719, %v3720
    %v3722 = vrot.slane %v3721, 1
    %v3723 = vmax.f32 %v3721, %v3722
    %v3724 = vsel %vm2099, %v1748, -inf
    %v3725 = vrot.slane %v3724, 4
    %v3726 = vmax.f32 %v3724, %v3725
    %v3727 = vrot.slane %v3726, 2
    %v3728 = vmax.f32 %v3726, %v3727
    %v3729 = vrot.slane %v3728, 1
    %v3730 = vmax.f32 %v3728, %v3729
    %v3731 = vsel %vm2099, %v1756, -inf
    %v3732 = vrot.slane %v3731, 4
    %v3733 = vmax.f32 %v3731, %v3732
    %v3734 = vrot.slane %v3733, 2
    %v3735 = vmax.f32 %v3733, %v3734
    %v3736 = vrot.slane %v3735, 1
    %v3737 = vmax.f32 %v3735, %v3736
    %v3738 = vsel %vm2099, %v1755, -inf
    %v3739 = vrot.slane %v3738, 4
    %v3740 = vmax.f32 %v3738, %v3739
    %v3741 = vrot.slane %v3740, 2
    %v3742 = vmax.f32 %v3740, %v3741
    %v3743 = vrot.slane %v3742, 1
    %v3744 = vmax.f32 %v3742, %v3743
    %v3745 = vsel %vm2099, %v1757, -inf
    %v3746 = vrot.slane %v3745, 4
    %v3747 = vmax.f32 %v3745, %v3746
    %v3748 = vrot.slane %v3747, 2
    %v3749 = vmax.f32 %v3747, %v3748
    %v3750 = vrot.slane %v3749, 1
    %v3751 = vmax.f32 %v3749, %v3750
    %v3752 = vsel %vm2099, %v1765, -inf
    %v3753 = vrot.slane %v3752, 4
    %v3754 = vmax.f32 %v3752, %v3753
    %v3755 = vrot.slane %v3754, 2
    %v3756 = vmax.f32 %v3754, %v3755
    %v3757 = vrot.slane %v3756, 1
    %v3758 = vmax.f32 %v3756, %v3757
    %v3759 = vsel %vm2099, %v1773, -inf
    %v3760 = vrot.slane %v3759, 4
    %v3761 = vmax.f32 %v3759, %v3760
    %v3762 = vrot.slane %v3761, 2
    %v3763 = vmax.f32 %v3761, %v3762
    %v3764 = vrot.slane %v3763, 1
    %v3765 = vmax.f32 %v3763, %v3764
    %v3766 = vsel %vm2099, %v1772, -inf
    %v3767 = vrot.slane %v3766, 4
    %v3768 = vmax.f32 %v3766, %v3767
    %v3769 = vrot.slane %v3768, 2
    %v3770 = vmax.f32 %v3768, %v3769
    %v3771 = vrot.slane %v3770, 1
    %v3772 = vmax.f32 %v3770, %v3771
    %v3773 = vsel %vm2099, %v1774, -inf
    %v3774 = vrot.slane %v3773, 4
    %v3775 = vmax.f32 %v3773, %v3774
    %v3776 = vrot.slane %v3775, 2
    %v3777 = vmax.f32 %v3775, %v3776
    %v3778 = vrot.slane %v3777, 1
    %v3779 = vmax.f32 %v3777, %v3778
    %v3780 = vsel %vm2099, %v1782, -inf
    %v3781 = vrot.slane %v3780, 4
    %v3782 = vmax.f32 %v3780, %v3781
    %v3783 = vrot.slane %v3782, 2
    %v3784 = vmax.f32 %v3782, %v3783
    %v3785 = vrot.slane %v3784, 1
    %v3786 = vmax.f32 %v3784, %v3785
    %v3787 = vsel %vm2099, %v1790, -inf
    %v3788 = vrot.slane %v3787, 4
    %v3789 = vmax.f32 %v3787, %v3788
    %v3790 = vrot.slane %v3789, 2
    %v3791 = vmax.f32 %v3789, %v3790
    %v3792 = vrot.slane %v3791, 1
    %v3793 = vmax.f32 %v3791, %v3792
    %v3794 = vsel %vm2099, %v1789, -inf
    %v3795 = vrot.slane %v3794, 4
    %v3796 = vmax.f32 %v3794, %v3795
    %v3797 = vrot.slane %v3796, 2
    %v3798 = vmax.f32 %v3796, %v3797
    %v3799 = vrot.slane %v3798, 1
    %v3800 = vmax.f32 %v3798, %v3799
    %v3801 = vsel %vm2099, %v1791, -inf
    %v3802 = vrot.slane %v3801, 4
    %v3803 = vmax.f32 %v3801, %v3802
    %v3804 = vrot.slane %v3803, 2
    %v3805 = vmax.f32 %v3803, %v3804
    %v3806 = vrot.slane %v3805, 1
    %v3807 = vmax.f32 %v3805, %v3806
    %v3808 = vsel %vm2099, %v1799, -inf
    %v3809 = vrot.slane %v3808, 4
    %v3810 = vmax.f32 %v3808, %v3809
    %v3811 = vrot.slane %v3810, 2
    %v3812 = vmax.f32 %v3810, %v3811
    %v3813 = vrot.slane %v3812, 1
    %v3814 = vmax.f32 %v3812, %v3813
    %v3815 = vsel %vm2099, %v1807, -inf
    %v3816 = vrot.slane %v3815, 4
    %v3817 = vmax.f32 %v3815, %v3816
    %v3818 = vrot.slane %v3817, 2
    %v3819 = vmax.f32 %v3817, %v3818
    %v3820 = vrot.slane %v3819, 1
    %v3821 = vmax.f32 %v3819, %v3820
    %v3822 = vsel %vm2099, %v1806, -inf
    %v3823 = vrot.slane %v3822, 4
    %v3824 = vmax.f32 %v3822, %v3823
    %v3825 = vrot.slane %v3824, 2
    %v3826 = vmax.f32 %v3824, %v3825
    %v3827 = vrot.slane %v3826, 1
    %v3828 = vmax.f32 %v3826, %v3827
    %v3829 = vsel %vm2099, %v1808, -inf
    %v3830 = vrot.slane %v3829, 4
    %v3831 = vmax.f32 %v3829, %v3830
    %v3832 = vrot.slane %v3831, 2
    %v3833 = vmax.f32 %v3831, %v3832
    %v3834 = vrot.slane %v3833, 1
    %v3835 = vmax.f32 %v3833, %v3834
    %v3836 = vsel %vm2099, %v1816, -inf
    %v3837 = vrot.slane %v3836, 4
    %v3838 = vmax.f32 %v3836, %v3837
    %v3839 = vrot.slane %v3838, 2
    %v3840 = vmax.f32 %v3838, %v3839
    %v3841 = vrot.slane %v3840, 1
    %v3842 = vmax.f32 %v3840, %v3841
    %v3843 = vsel %vm2099, %v1824, -inf
    %v3844 = vrot.slane %v3843, 4
    %v3845 = vmax.f32 %v3843, %v3844
    %v3846 = vrot.slane %v3845, 2
    %v3847 = vmax.f32 %v3845, %v3846
    %v3848 = vrot.slane %v3847, 1
    %v3849 = vmax.f32 %v3847, %v3848
    %v3850 = vsel %vm2099, %v1823, -inf
    %v3851 = vrot.slane %v3850, 4
    %v3852 = vmax.f32 %v3850, %v3851
    %v3853 = vrot.slane %v3852, 2
    %v3854 = vmax.f32 %v3852, %v3853
    %v3855 = vrot.slane %v3854, 1
    %v3856 = vmax.f32 %v3854, %v3855
    %v3857 = vsel %vm2099, %v1825, -inf
    %v3858 = vrot.slane %v3857, 4
    %v3859 = vmax.f32 %v3857, %v3858
    %v3860 = vrot.slane %v3859, 2
    %v3861 = vmax.f32 %v3859, %v3860
    %v3862 = vrot.slane %v3861, 1
    %v3863 = vmax.f32 %v3861, %v3862
    %v3864 = vsel %vm2099, %v1833, -inf
    %v3865 = vrot.slane %v3864, 4
    %v3866 = vmax.f32 %v3864, %v3865
    %v3867 = vrot.slane %v3866, 2
    %v3868 = vmax.f32 %v3866, %v3867
    %v3869 = vrot.slane %v3868, 1
    %v3870 = vmax.f32 %v3868, %v3869
    %v3871 = vsel %vm2099, %v1841, -inf
    %v3872 = vrot.slane %v3871, 4
    %v3873 = vmax.f32 %v3871, %v3872
    %v3874 = vrot.slane %v3873, 2
    %v3875 = vmax.f32 %v3873, %v3874
    %v3876 = vrot.slane %v3875, 1
    %v3877 = vmax.f32 %v3875, %v3876
    %v3878 = vsel %vm2099, %v1840, -inf
    %v3879 = vrot.slane %v3878, 4
    %v3880 = vmax.f32 %v3878, %v3879
    %v3881 = vrot.slane %v3880, 2
    %v3882 = vmax.f32 %v3880, %v3881
    %v3883 = vrot.slane %v3882, 1
    %v3884 = vmax.f32 %v3882, %v3883
    %v3885 = vsel %vm2099, %v1842, -inf
    %v3886 = vrot.slane %v3885, 4
    %v3887 = vmax.f32 %v3885, %v3886
    %v3888 = vrot.slane %v3887, 2
    %v3889 = vmax.f32 %v3887, %v3888
    %v3890 = vrot.slane %v3889, 1
    %v3891 = vmax.f32 %v3889, %v3890
    %vm3892 = vcmask 523264
    %v3893 = vsel %vm3892, %v2106, -inf
    %v3894 = vsel %vm3892, %v2162, -inf
    %v3895 = vmax.f32 %v3893, %v3894
    %v3896 = vsel %vm3892, %v2113, -inf
    %v3897 = vsel %vm3892, %v2169, -inf
    %v3898 = vmax.f32 %v3896, %v3897
    %v3899 = vsel %vm3892, %v2120, -inf
    %v3900 = vsel %vm3892, %v2176, -inf
    %v3901 = vmax.f32 %v3899, %v3900
    %v3902 = vsel %vm3892, %v2127, -inf
    %v3903 = vsel %vm3892, %v2183, -inf
    %v3904 = vmax.f32 %v3902, %v3903
    %v3905 = vsel %vm3892, %v2134, -inf
    %v3906 = vsel %vm3892, %v2190, -inf
    %v3907 = vmax.f32 %v3905, %v3906
    %v3908 = vsel %vm3892, %v2141, -inf
    %v3909 = vsel %vm3892, %v2197, -inf
    %v3910 = vmax.f32 %v3908, %v3909
    %v3911 = vsel %vm3892, %v2148, -inf
    %v3912 = vsel %vm3892, %v2204, -inf
    %v3913 = vmax.f32 %v3911, %v3912
    %v3914 = vsel %vm3892, %v2155, -inf
    %v3915 = vsel %vm3892, %v2211, -inf
    %v3916 = vmax.f32 %v3914, %v3915
    %v3917 = vsel %vm3892, %v2218, -inf
    %v3918 = vsel %vm3892, %v2274, -inf
    %v3919 = vmax.f32 %v3917, %v3918
    %v3920 = vsel %vm3892, %v2225, -inf
    %v3921 = vsel %vm3892, %v2281, -inf
    %v3922 = vmax.f32 %v3920, %v3921
    %v3923 = vsel %vm3892, %v2232, -inf
    %v3924 = vsel %vm3892, %v2288, -inf
    %v3925 = vmax.f32 %v3923, %v3924
    %v3926 = vsel %vm3892, %v2239, -inf
    %v3927 = vsel %vm3892, %v2295, -inf
    %v3928 = vmax.f32 %v3926, %v3927
    %v3929 = vsel %vm3892, %v2246, -inf
    %v3930 = vsel %vm3892, %v2302, -inf
    %v3931 = vmax.f32 %v3929, %v3930
    %v3932 = vsel %vm3892, %v2253, -inf
    %v3933 = vsel %vm3892, %v2309, -inf
    %v3934 = vmax.f32 %v3932, %v3933
    %v3935 = vsel %vm3892, %v2260, -inf
    %v3936 = vsel %vm3892, %v2316, -inf
    %v3937 = vmax.f32 %v3935, %v3936
    %v3938 = vsel %vm3892, %v2267, -inf
    %v3939 = vsel %vm3892, %v2323, -inf
    %v3940 = vmax.f32 %v3938, %v3939
    %v3941 = vsel %vm3892, %v2330, -inf
    %v3942 = vsel %vm3892, %v2386, -inf
    %v3943 = vmax.f32 %v3941, %v3942
    %v3944 = vsel %vm3892, %v2337, -inf
    %v3945 = vsel %vm3892, %v2393, -inf
    %v3946 = vmax.f32 %v3944, %v3945
    %v3947 = vsel %vm3892, %v2344, -inf
    %v3948 = vsel %vm3892, %v2400, -inf
    %v3949 = vmax.f32 %v3947, %v3948
    %v3950 = vsel %vm3892, %v2351, -inf
    %v3951 = vsel %vm3892, %v2407, -inf
    %v3952 = vmax.f32 %v3950, %v3951
    %v3953 = vsel %vm3892, %v2358, -inf
    %v3954 = vsel %vm3892, %v2414, -inf
    %v3955 = vmax.f32 %v3953, %v3954
    %v3956 = vsel %vm3892, %v2365, -inf
    %v3957 = vsel %vm3892, %v2421, -inf
    %v3958 = vmax.f32 %v3956, %v3957
    %v3959 = vsel %vm3892, %v2372, -inf
    %v3960 = vsel %vm3892, %v2428, -inf
    %v3961 = vmax.f32 %v3959, %v3960
    %v3962 = vsel %vm3892, %v2379, -inf
    %v3963 = vsel %vm3892, %v2435, -inf
    %v3964 = vmax.f32 %v3962, %v3963
    %v3965 = vsel %vm3892, %v2442, -inf
    %v3966 = vsel %vm3892, %v2498, -inf
    %v3967 = vmax.f32 %v3965, %v3966
    %v3968 = vsel %vm3892, %v2449, -inf
    %v3969 = vsel %vm3892, %v2505, -inf
    %v3970 = vmax.f32 %v3968, %v3969
    %v3971 = vsel %vm3892, %v2456, -inf
    %v3972 = vsel %vm3892, %v2512, -inf
    %v3973 = vmax.f32 %v3971, %v3972
    %v3974 = vsel %vm3892, %v2463, -inf
    %v3975 = vsel %vm3892, %v2519, -inf
    %v3976 = vmax.f32 %v3974, %v3975
    %v3977 = vsel %vm3892, %v2470, -inf
    %v3978 = vsel %vm3892, %v2526, -inf
    %v3979 = vmax.f32 %v3977, %v3978
    %v3980 = vsel %vm3892, %v2477, -inf
    %v3981 = vsel %vm3892, %v2533, -inf
    %v3982 = vmax.f32 %v3980, %v3981
    %v3983 = vsel %vm3892, %v2484, -inf
    %v3984 = vsel %vm3892, %v2540, -inf
    %v3985 = vmax.f32 %v3983, %v3984
    %v3986 = vsel %vm3892, %v2491, -inf
    %v3987 = vsel %vm3892, %v2547, -inf
    %v3988 = vmax.f32 %v3986, %v3987
    %v3989 = vsel %vm3892, %v2554, -inf
    %v3990 = vsel %vm3892, %v2610, -inf
    %v3991 = vmax.f32 %v3989, %v3990
    %v3992 = vsel %vm3892, %v2561, -inf
    %v3993 = vsel %vm3892, %v2617, -inf
    %v3994 = vmax.f32 %v3992, %v3993
    %v3995 = vsel %vm3892, %v2568, -inf
    %v3996 = vsel %vm3892, %v2624, -inf
    %v3997 = vmax.f32 %v3995, %v3996
    %v3998 = vsel %vm3892, %v2575, -inf
    %v3999 = vsel %vm3892, %v2631, -inf
    %v4000 = vmax.f32 %v3998, %v3999
    %v4001 = vsel %vm3892, %v2582, -inf
    %v4002 = vsel %vm3892, %v2638, -inf
    %v4003 = vmax.f32 %v4001, %v4002
    %v4004 = vsel %vm3892, %v2589, -inf
    %v4005 = vsel %vm3892, %v2645, -inf
    %v4006 = vmax.f32 %v4004, %v4005
    %v4007 = vsel %vm3892, %v2596, -inf
    %v4008 = vsel %vm3892, %v2652, -inf
    %v4009 = vmax.f32 %v4007, %v4008
    %v4010 = vsel %vm3892, %v2603, -inf
    %v4011 = vsel %vm3892, %v2659, -inf
    %v4012 = vmax.f32 %v4010, %v4011
    %v4013 = vsel %vm3892, %v2666, -inf
    %v4014 = vsel %vm3892, %v2722, -inf
    %v4015 = vmax.f32 %v4013, %v4014
    %v4016 = vsel %vm3892, %v2673, -inf
    %v4017 = vsel %vm3892, %v2729, -inf
    %v4018 = vmax.f32 %v4016, %v4017
    %v4019 = vsel %vm3892, %v2680, -inf
    %v4020 = vsel %vm3892, %v2736, -inf
    %v4021 = vmax.f32 %v4019, %v4020
    %v4022 = vsel %vm3892, %v2687, -inf
    %v4023 = vsel %vm3892, %v2743, -inf
    %v4024 = vmax.f32 %v4022, %v4023
    %v4025 = vsel %vm3892, %v2694, -inf
    %v4026 = vsel %vm3892, %v2750, -inf
    %v4027 = vmax.f32 %v4025, %v4026
    %v4028 = vsel %vm3892, %v2701, -inf
    %v4029 = vsel %vm3892, %v2757, -inf
    %v4030 = vmax.f32 %v4028, %v4029
    %v4031 = vsel %vm3892, %v2708, -inf
    %v4032 = vsel %vm3892, %v2764, -inf
    %v4033 = vmax.f32 %v4031, %v4032
    %v4034 = vsel %vm3892, %v2715, -inf
    %v4035 = vsel %vm3892, %v2771, -inf
    %v4036 = vmax.f32 %v4034, %v4035
    %v4037 = vsel %vm3892, %v2778, -inf
    %v4038 = vsel %vm3892, %v2834, -inf
    %v4039 = vmax.f32 %v4037, %v4038
    %v4040 = vsel %vm3892, %v2785, -inf
    %v4041 = vsel %vm3892, %v2841, -inf
    %v4042 = vmax.f32 %v4040, %v4041
    %v4043 = vsel %vm3892, %v2792, -inf
    %v4044 = vsel %vm3892, %v2848, -inf
    %v4045 = vmax.f32 %v4043, %v4044
    %v4046 = vsel %vm3892, %v2799, -inf
    %v4047 = vsel %vm3892, %v2855, -inf
    %v4048 = vmax.f32 %v4046, %v4047
    %v4049 = vsel %vm3892, %v2806, -inf
    %v4050 = vsel %vm3892, %v2862, -inf
    %v4051 = vmax.f32 %v4049, %v4050
    %v4052 = vsel %vm3892, %v2813, -inf
    %v4053 = vsel %vm3892, %v2869, -inf
    %v4054 = vmax.f32 %v4052, %v4053
    %v4055 = vsel %vm3892, %v2820, -inf
    %v4056 = vsel %vm3892, %v2876, -inf
    %v4057 = vmax.f32 %v4055, %v4056
    %v4058 = vsel %vm3892, %v2827, -inf
    %v4059 = vsel %vm3892, %v2883, -inf
    %v4060 = vmax.f32 %v4058, %v4059
    %v4061 = vsel %vm3892, %v2890, -inf
    %v4062 = vsel %vm3892, %v2946, -inf
    %v4063 = vmax.f32 %v4061, %v4062
    %v4064 = vsel %vm3892, %v2897, -inf
    %v4065 = vsel %vm3892, %v2953, -inf
    %v4066 = vmax.f32 %v4064, %v4065
    %v4067 = vsel %vm3892, %v2904, -inf
    %v4068 = vsel %vm3892, %v2960, -inf
    %v4069 = vmax.f32 %v4067, %v4068
    %v4070 = vsel %vm3892, %v2911, -inf
    %v4071 = vsel %vm3892, %v2967, -inf
    %v4072 = vmax.f32 %v4070, %v4071
    %v4073 = vsel %vm3892, %v2918, -inf
    %v4074 = vsel %vm3892, %v2974, -inf
    %v4075 = vmax.f32 %v4073, %v4074
    %v4076 = vsel %vm3892, %v2925, -inf
    %v4077 = vsel %vm3892, %v2981, -inf
    %v4078 = vmax.f32 %v4076, %v4077
    %v4079 = vsel %vm3892, %v2932, -inf
    %v4080 = vsel %vm3892, %v2988, -inf
    %v4081 = vmax.f32 %v4079, %v4080
    %v4082 = vsel %vm3892, %v2939, -inf
    %v4083 = vsel %vm3892, %v2995, -inf
    %v4084 = vmax.f32 %v4082, %v4083
    %v4085 = vsel %vm3892, %v3002, -inf
    %v4086 = vsel %vm3892, %v3058, -inf
    %v4087 = vmax.f32 %v4085, %v4086
    %v4088 = vsel %vm3892, %v3009, -inf
    %v4089 = vsel %vm3892, %v3065, -inf
    %v4090 = vmax.f32 %v4088, %v4089
    %v4091 = vsel %vm3892, %v3016, -inf
    %v4092 = vsel %vm3892, %v3072, -inf
    %v4093 = vmax.f32 %v4091, %v4092
    %v4094 = vsel %vm3892, %v3023, -inf
    %v4095 = vsel %vm3892, %v3079, -inf
    %v4096 = vmax.f32 %v4094, %v4095
    %v4097 = vsel %vm3892, %v3030, -inf
    %v4098 = vsel %vm3892, %v3086, -inf
    %v4099 = vmax.f32 %v4097, %v4098
    %v4100 = vsel %vm3892, %v3037, -inf
    %v4101 = vsel %vm3892, %v3093, -inf
    %v4102 = vmax.f32 %v4100, %v4101
    %v4103 = vsel %vm3892, %v3044, -inf
    %v4104 = vsel %vm3892, %v3100, -inf
    %v4105 = vmax.f32 %v4103, %v4104
    %v4106 = vsel %vm3892, %v3051, -inf
    %v4107 = vsel %vm3892, %v3107, -inf
    %v4108 = vmax.f32 %v4106, %v4107
    %v4109 = vsel %vm3892, %v3114, -inf
    %v4110 = vsel %vm3892, %v3170, -inf
    %v4111 = vmax.f32 %v4109, %v4110
    %v4112 = vsel %vm3892, %v3121, -inf
    %v4113 = vsel %vm3892, %v3177, -inf
    %v4114 = vmax.f32 %v4112, %v4113
    %v4115 = vsel %vm3892, %v3128, -inf
    %v4116 = vsel %vm3892, %v3184, -inf
    %v4117 = vmax.f32 %v4115, %v4116
    %v4118 = vsel %vm3892, %v3135, -inf
    %v4119 = vsel %vm3892, %v3191, -inf
    %v4120 = vmax.f32 %v4118, %v4119
    %v4121 = vsel %vm3892, %v3142, -inf
    %v4122 = vsel %vm3892, %v3198, -inf
    %v4123 = vmax.f32 %v4121, %v4122
    %v4124 = vsel %vm3892, %v3149, -inf
    %v4125 = vsel %vm3892, %v3205, -inf
    %v4126 = vmax.f32 %v4124, %v4125
    %v4127 = vsel %vm3892, %v3156, -inf
    %v4128 = vsel %vm3892, %v3212, -inf
    %v4129 = vmax.f32 %v4127, %v4128
    %v4130 = vsel %vm3892, %v3163, -inf
    %v4131 = vsel %vm3892, %v3219, -inf
    %v4132 = vmax.f32 %v4130, %v4131
    %v4133 = vsel %vm3892, %v3226, -inf
    %v4134 = vsel %vm3892, %v3282, -inf
    %v4135 = vmax.f32 %v4133, %v4134
    %v4136 = vsel %vm3892, %v3233, -inf
    %v4137 = vsel %vm3892, %v3289, -inf
    %v4138 = vmax.f32 %v4136, %v4137
    %v4139 = vsel %vm3892, %v3240, -inf
    %v4140 = vsel %vm3892, %v3296, -inf
    %v4141 = vmax.f32 %v4139, %v4140
    %v4142 = vsel %vm3892, %v3247, -inf
    %v4143 = vsel %vm3892, %v3303, -inf
    %v4144 = vmax.f32 %v4142, %v4143
    %v4145 = vsel %vm3892, %v3254, -inf
    %v4146 = vsel %vm3892, %v3310, -inf
    %v4147 = vmax.f32 %v4145, %v4146
    %v4148 = vsel %vm3892, %v3261, -inf
    %v4149 = vsel %vm3892, %v3317, -inf
    %v4150 = vmax.f32 %v4148, %v4149
    %v4151 = vsel %vm3892, %v3268, -inf
    %v4152 = vsel %vm3892, %v3324, -inf
    %v4153 = vmax.f32 %v4151, %v4152
    %v4154 = vsel %vm3892, %v3275, -inf
    %v4155 = vsel %vm3892, %v3331, -inf
    %v4156 = vmax.f32 %v4154, %v4155
    %v4157 = vsel %vm3892, %v3338, -inf
    %v4158 = vsel %vm3892, %v3394, -inf
    %v4159 = vmax.f32 %v4157, %v4158
    %v4160 = vsel %vm3892, %v3345, -inf
    %v4161 = vsel %vm3892, %v3401, -inf
    %v4162 = vmax.f32 %v4160, %v4161
    %v4163 = vsel %vm3892, %v3352, -inf
    %v4164 = vsel %vm3892, %v3408, -inf
    %v4165 = vmax.f32 %v4163, %v4164
    %v4166 = vsel %vm3892, %v3359, -inf
    %v4167 = vsel %vm3892, %v3415, -inf
    %v4168 = vmax.f32 %v4166, %v4167
    %v4169 = vsel %vm3892, %v3366, -inf
    %v4170 = vsel %vm3892, %v3422, -inf
    %v4171 = vmax.f32 %v4169, %v4170
    %v4172 = vsel %vm3892, %v3373, -inf
    %v4173 = vsel %vm3892, %v3429, -inf
    %v4174 = vmax.f32 %v4172, %v4173
    %v4175 = vsel %vm3892, %v3380, -inf
    %v4176 = vsel %vm3892, %v3436, -inf
    %v4177 = vmax.f32 %v4175, %v4176
    %v4178 = vsel %vm3892, %v3387, -inf
    %v4179 = vsel %vm3892, %v3443, -inf
    %v4180 = vmax.f32 %v4178, %v4179
    %v4181 = vsel %vm3892, %v3450, -inf
    %v4182 = vsel %vm3892, %v3506, -inf
    %v4183 = vmax.f32 %v4181, %v4182
    %v4184 = vsel %vm3892, %v3457, -inf
    %v4185 = vsel %vm3892, %v3513, -inf
    %v4186 = vmax.f32 %v4184, %v4185
    %v4187 = vsel %vm3892, %v3464, -inf
    %v4188 = vsel %vm3892, %v3520, -inf
    %v4189 = vmax.f32 %v4187, %v4188
    %v4190 = vsel %vm3892, %v3471, -inf
    %v4191 = vsel %vm3892, %v3527, -inf
    %v4192 = vmax.f32 %v4190, %v4191
    %v4193 = vsel %vm3892, %v3478, -inf
    %v4194 = vsel %vm3892, %v3534, -inf
    %v4195 = vmax.f32 %v4193, %v4194
    %v4196 = vsel %vm3892, %v3485, -inf
    %v4197 = vsel %vm3892, %v3541, -inf
    %v4198 = vmax.f32 %v4196, %v4197
    %v4199 = vsel %vm3892, %v3492, -inf
    %v4200 = vsel %vm3892, %v3548, -inf
    %v4201 = vmax.f32 %v4199, %v4200
    %v4202 = vsel %vm3892, %v3499, -inf
    %v4203 = vsel %vm3892, %v3555, -inf
    %v4204 = vmax.f32 %v4202, %v4203
    %v4205 = vsel %vm3892, %v3562, -inf
    %v4206 = vsel %vm3892, %v3618, -inf
    %v4207 = vmax.f32 %v4205, %v4206
    %v4208 = vsel %vm3892, %v3569, -inf
    %v4209 = vsel %vm3892, %v3625, -inf
    %v4210 = vmax.f32 %v4208, %v4209
    %v4211 = vsel %vm3892, %v3576, -inf
    %v4212 = vsel %vm3892, %v3632, -inf
    %v4213 = vmax.f32 %v4211, %v4212
    %v4214 = vsel %vm3892, %v3583, -inf
    %v4215 = vsel %vm3892, %v3639, -inf
    %v4216 = vmax.f32 %v4214, %v4215
    %v4217 = vsel %vm3892, %v3590, -inf
    %v4218 = vsel %vm3892, %v3646, -inf
    %v4219 = vmax.f32 %v4217, %v4218
    %v4220 = vsel %vm3892, %v3597, -inf
    %v4221 = vsel %vm3892, %v3653, -inf
    %v4222 = vmax.f32 %v4220, %v4221
    %v4223 = vsel %vm3892, %v3604, -inf
    %v4224 = vsel %vm3892, %v3660, -inf
    %v4225 = vmax.f32 %v4223, %v4224
    %v4226 = vsel %vm3892, %v3611, -inf
    %v4227 = vsel %vm3892, %v3667, -inf
    %v4228 = vmax.f32 %v4226, %v4227
    %v4229 = vsel %vm3892, %v3674, -inf
    %v4230 = vsel %vm3892, %v3730, -inf
    %v4231 = vmax.f32 %v4229, %v4230
    %v4232 = vsel %vm3892, %v3681, -inf
    %v4233 = vsel %vm3892, %v3737, -inf
    %v4234 = vmax.f32 %v4232, %v4233
    %v4235 = vsel %vm3892, %v3688, -inf
    %v4236 = vsel %vm3892, %v3744, -inf
    %v4237 = vmax.f32 %v4235, %v4236
    %v4238 = vsel %vm3892, %v3695, -inf
    %v4239 = vsel %vm3892, %v3751, -inf
    %v4240 = vmax.f32 %v4238, %v4239
    %v4241 = vsel %vm3892, %v3702, -inf
    %v4242 = vsel %vm3892, %v3758, -inf
    %v4243 = vmax.f32 %v4241, %v4242
    %v4244 = vsel %vm3892, %v3709, -inf
    %v4245 = vsel %vm3892, %v3765, -inf
    %v4246 = vmax.f32 %v4244, %v4245
    %v4247 = vsel %vm3892, %v3716, -inf
    %v4248 = vsel %vm3892, %v3772, -inf
    %v4249 = vmax.f32 %v4247, %v4248
    %v4250 = vsel %vm3892, %v3723, -inf
    %v4251 = vsel %vm3892, %v3779, -inf
    %v4252 = vmax.f32 %v4250, %v4251
    %v4253 = vsel %vm3892, %v3786, -inf
    %v4254 = vsel %vm3892, %v3842, -inf
    %v4255 = vmax.f32 %v4253, %v4254
    %v4256 = vsel %vm3892, %v3793, -inf
    %v4257 = vsel %vm3892, %v3849, -inf
    %v4258 = vmax.f32 %v4256, %v4257
    %v4259 = vsel %vm3892, %v3800, -inf
    %v4260 = vsel %vm3892, %v3856, -inf
    %v4261 = vmax.f32 %v4259, %v4260
    %v4262 = vsel %vm3892, %v3807, -inf
    %v4263 = vsel %vm3892, %v3863, -inf
    %v4264 = vmax.f32 %v4262, %v4263
    %v4265 = vsel %vm3892, %v3814, -inf
    %v4266 = vsel %vm3892, %v3870, -inf
    %v4267 = vmax.f32 %v4265, %v4266
    %v4268 = vsel %vm3892, %v3821, -inf
    %v4269 = vsel %vm3892, %v3877, -inf
    %v4270 = vmax.f32 %v4268, %v4269
    %v4271 = vsel %vm3892, %v3828, -inf
    %v4272 = vsel %vm3892, %v3884, -inf
    %v4273 = vmax.f32 %v4271, %v4272
    %v4274 = vsel %vm3892, %v3835, -inf
    %v4275 = vsel %vm3892, %v3891, -inf
    %v4276 = vmax.f32 %v4274, %v4275
    %v4277 = vmax.f32 %v3895, 0.0
    %v4278 = vmax.f32 %v3898, 0.0
    %v4279 = vmax.f32 %v3901, 0.0
    %v4280 = vmax.f32 %v3904, 0.0
    %v4281 = vmax.f32 %v3907, 0.0
    %v4282 = vmax.f32 %v3910, 0.0
    %v4283 = vmax.f32 %v3913, 0.0
    %v4284 = vmax.f32 %v3916, 0.0
    %v4285 = vmax.f32 %v3919, 0.0
    %v4286 = vmax.f32 %v3922, 0.0
    %v4287 = vmax.f32 %v3925, 0.0
    %v4288 = vmax.f32 %v3928, 0.0
    %v4289 = vmax.f32 %v3931, 0.0
    %v4290 = vmax.f32 %v3934, 0.0
    %v4291 = vmax.f32 %v3937, 0.0
    %v4292 = vmax.f32 %v3940, 0.0
    %v4293 = vmax.f32 %v3943, 0.0
    %v4294 = vmax.f32 %v3946, 0.0
    %v4295 = vmax.f32 %v3949, 0.0
    %v4296 = vmax.f32 %v3952, 0.0
    %v4297 = vmax.f32 %v3955, 0.0
    %v4298 = vmax.f32 %v3958, 0.0
    %v4299 = vmax.f32 %v3961, 0.0
    %v4300 = vmax.f32 %v3964, 0.0
    %v4301 = vmax.f32 %v3967, 0.0
    %v4302 = vmax.f32 %v3970, 0.0
    %v4303 = vmax.f32 %v3973, 0.0
    %v4304 = vmax.f32 %v3976, 0.0
    %v4305 = vmax.f32 %v3979, 0.0
    %v4306 = vmax.f32 %v3982, 0.0
    %v4307 = vmax.f32 %v3985, 0.0
    %v4308 = vmax.f32 %v3988, 0.0
    %v4309 = vmax.f32 %v3991, 0.0
    %v4310 = vmax.f32 %v3994, 0.0
    %v4311 = vmax.f32 %v3997, 0.0
    %v4312 = vmax.f32 %v4000, 0.0
    %v4313 = vmax.f32 %v4003, 0.0
    %v4314 = vmax.f32 %v4006, 0.0
    %v4315 = vmax.f32 %v4009, 0.0
    %v4316 = vmax.f32 %v4012, 0.0
    %v4317 = vmax.f32 %v4015, 0.0
    %v4318 = vmax.f32 %v4018, 0.0
    %v4319 = vmax.f32 %v4021, 0.0
    %v4320 = vmax.f32 %v4024, 0.0
    %v4321 = vmax.f32 %v4027, 0.0
    %v4322 = vmax.f32 %v4030, 0.0
    %v4323 = vmax.f32 %v4033, 0.0
    %v4324 = vmax.f32 %v4036, 0.0
    %v4325 = vmax.f32 %v4039, 0.0
    %v4326 = vmax.f32 %v4042, 0.0
    %v4327 = vmax.f32 %v4045, 0.0
    %v4328 = vmax.f32 %v4048, 0.0
    %v4329 = vmax.f32 %v4051, 0.0
    %v4330 = vmax.f32 %v4054, 0.0
    %v4331 = vmax.f32 %v4057, 0.0
    %v4332 = vmax.f32 %v4060, 0.0
    %v4333 = vmax.f32 %v4063, 0.0
    %v4334 = vmax.f32 %v4066, 0.0
    %v4335 = vmax.f32 %v4069, 0.0
    %v4336 = vmax.f32 %v4072, 0.0
    %v4337 = vmax.f32 %v4075, 0.0
    %v4338 = vmax.f32 %v4078, 0.0
    %v4339 = vmax.f32 %v4081, 0.0
    %v4340 = vmax.f32 %v4084, 0.0
    %v4341 = vmax.f32 %v4087, 0.0
    %v4342 = vmax.f32 %v4090, 0.0
    %v4343 = vmax.f32 %v4093, 0.0
    %v4344 = vmax.f32 %v4096, 0.0
    %v4345 = vmax.f32 %v4099, 0.0
    %v4346 = vmax.f32 %v4102, 0.0
    %v4347 = vmax.f32 %v4105, 0.0
    %v4348 = vmax.f32 %v4108, 0.0
    %v4349 = vmax.f32 %v4111, 0.0
    %v4350 = vmax.f32 %v4114, 0.0
    %v4351 = vmax.f32 %v4117, 0.0
    %v4352 = vmax.f32 %v4120, 0.0
    %v4353 = vmax.f32 %v4123, 0.0
    %v4354 = vmax.f32 %v4126, 0.0
    %v4355 = vmax.f32 %v4129, 0.0
    %v4356 = vmax.f32 %v4132, 0.0
    %v4357 = vmax.f32 %v4135, 0.0
    %v4358 = vmax.f32 %v4138, 0.0
    %v4359 = vmax.f32 %v4141, 0.0
    %v4360 = vmax.f32 %v4144, 0.0
    %v4361 = vmax.f32 %v4147, 0.0
    %v4362 = vmax.f32 %v4150, 0.0
    %v4363 = vmax.f32 %v4153, 0.0
    %v4364 = vmax.f32 %v4156, 0.0
    %v4365 = vmax.f32 %v4159, 0.0
    %v4366 = vmax.f32 %v4162, 0.0
    %v4367 = vmax.f32 %v4165, 0.0
    %v4368 = vmax.f32 %v4168, 0.0
    %v4369 = vmax.f32 %v4171, 0.0
    %v4370 = vmax.f32 %v4174, 0.0
    %v4371 = vmax.f32 %v4177, 0.0
    %v4372 = vmax.f32 %v4180, 0.0
    %v4373 = vmax.f32 %v4183, 0.0
    %v4374 = vmax.f32 %v4186, 0.0
    %v4375 = vmax.f32 %v4189, 0.0
    %v4376 = vmax.f32 %v4192, 0.0
    %v4377 = vmax.f32 %v4195, 0.0
    %v4378 = vmax.f32 %v4198, 0.0
    %v4379 = vmax.f32 %v4201, 0.0
    %v4380 = vmax.f32 %v4204, 0.0
    %v4381 = vmax.f32 %v4207, 0.0
    %v4382 = vmax.f32 %v4210, 0.0
    %v4383 = vmax.f32 %v4213, 0.0
    %v4384 = vmax.f32 %v4216, 0.0
    %v4385 = vmax.f32 %v4219, 0.0
    %v4386 = vmax.f32 %v4222, 0.0
    %v4387 = vmax.f32 %v4225, 0.0
    %v4388 = vmax.f32 %v4228, 0.0
    %v4389 = vmax.f32 %v4231, 0.0
    %v4390 = vmax.f32 %v4234, 0.0
    %v4391 = vmax.f32 %v4237, 0.0
    %v4392 = vmax.f32 %v4240, 0.0
    %v4393 = vmax.f32 %v4243, 0.0
    %v4394 = vmax.f32 %v4246, 0.0
    %v4395 = vmax.f32 %v4249, 0.0
    %v4396 = vmax.f32 %v4252, 0.0
    %v4397 = vmax.f32 %v4255, 0.0
    %v4398 = vmax.f32 %v4258, 0.0
    %v4399 = vmax.f32 %v4261, 0.0
    %v4400 = vmax.f32 %v4264, 0.0
    %v4401 = vmax.f32 %v4267, 0.0
    %v4402 = vmax.f32 %v4270, 0.0
    %v4403 = vmax.f32 %v4273, 0.0
    %v4404 = vmax.f32 %v4276, 0.0
    %4405 = vst.msk [vmem:[#allocation2] sm:$0xff] %vm3892, 0.0
    %4406 = vst.msk [vmem:[#allocation2 + $0x8] sm:$0x3] %vm2099, 0.0
    %4407 = vst.msk [vmem:[#allocation2 + $0x10] sm:$0xff] %vm3892, 0.0
    %4408 = vst.msk [vmem:[#allocation2 + $0x18] sm:$0x3] %vm2099, 0.0
    %4409 = vst.msk [vmem:[#allocation2 + $0x20] sm:$0xff] %vm3892, 0.0
    %4410 = vst.msk [vmem:[#allocation2 + $0x28] sm:$0x3] %vm2099, 0.0
    %4411 = vst.msk [vmem:[#allocation2 + $0x30] sm:$0xff] %vm3892, 0.0
    %4412 = vst.msk [vmem:[#allocation2 + $0x38] sm:$0x3] %vm2099, 0.0
    %4413 = vst.msk [vmem:[#allocation2 + $0x40] sm:$0xff] %vm3892, 0.0
    %4414 = vst.msk [vmem:[#allocation2 + $0x48] sm:$0x3] %vm2099, 0.0
    %4415 = vst.msk [vmem:[#allocation2 + $0x50] sm:$0xff] %vm3892, 0.0
    %4416 = vst.msk [vmem:[#allocation2 + $0x58] sm:$0x3] %vm2099, 0.0
    %4417 = vst.msk [vmem:[#allocation2 + $0x60] sm:$0xff] %vm3892, 0.0
    %4418 = vst.msk [vmem:[#allocation2 + $0x68] sm:$0x3] %vm2099, 0.0
    %4419 = vst.msk [vmem:[#allocation2 + $0x70] sm:$0xff] %vm3892, 0.0
    %4420 = vst.msk [vmem:[#allocation2 + $0x78] sm:$0x3] %vm2099, 0.0
    %4421 = vst.msk [vmem:[#allocation2 + $0x80] sm:$0xff] %vm3892, 0.0
    %4422 = vst.msk [vmem:[#allocation2 + $0x88] sm:$0x3] %vm2099, 0.0
    %4423 = vst.msk [vmem:[#allocation2 + $0x90] sm:$0xff] %vm3892, 0.0
    %4424 = vst.msk [vmem:[#allocation2 + $0x98] sm:$0x3] %vm2099, 0.0
    %4425 = vst.msk [vmem:[#allocation2 + $0xa0] sm:$0xff] %vm3892, 0.0
    %4426 = vst.msk [vmem:[#allocation2 + $0xa8] sm:$0x3] %vm2099, 0.0
    %4427 = vst.msk [vmem:[#allocation2 + $0xb0] sm:$0xff] %vm3892, 0.0
    %4428 = vst.msk [vmem:[#allocation2 + $0xb8] sm:$0x3] %vm2099, 0.0
    %4429 = vst.msk [vmem:[#allocation2 + $0xc0] sm:$0xff] %vm3892, 0.0
    %4430 = vst.msk [vmem:[#allocation2 + $0xc8] sm:$0x3] %vm2099, 0.0
    %4431 = vst.msk [vmem:[#allocation2 + $0xd0] sm:$0xff] %vm3892, 0.0
    %4432 = vst.msk [vmem:[#allocation2 + $0xd8] sm:$0x3] %vm2099, 0.0
    %4433 = vst.msk [vmem:[#allocation2 + $0xe0] sm:$0xff] %vm3892, 0.0
    %4434 = vst.msk [vmem:[#allocation2 + $0xe8] sm:$0x3] %vm2099, 0.0
    %4435 = vst.msk [vmem:[#allocation2 + $0xf0] sm:$0xff] %vm3892, 0.0
    %4436 = vst.msk [vmem:[#allocation2 + $0xf8] sm:$0x3] %vm2099, 0.0
    %4437 = vst.msk [vmem:[#allocation2 + $0x100] sm:$0xff] %vm3892, 0.0
    %4438 = vst.msk [vmem:[#allocation2 + $0x108] sm:$0x3] %vm2099, 0.0
    %4439 = vst.msk [vmem:[#allocation2 + $0x110] sm:$0xff] %vm3892, 0.0
    %4440 = vst.msk [vmem:[#allocation2 + $0x118] sm:$0x3] %vm2099, 0.0
    %4441 = vst.msk [vmem:[#allocation2 + $0x120] sm:$0xff] %vm3892, 0.0
    %4442 = vst.msk [vmem:[#allocation2 + $0x128] sm:$0x3] %vm2099, 0.0
    %4443 = vst.msk [vmem:[#allocation2 + $0x130] sm:$0xff] %vm3892, 0.0
    %4444 = vst.msk [vmem:[#allocation2 + $0x138] sm:$0x3] %vm2099, 0.0
    %vm4573 = vcmask 1041409
    %v4574 = vsel %vm4573, %v4278, %v4277
    %vm4575 = vcmask 1042434
    %v4576 = vsel %vm4575, %v4279, %v4574
    %vm4577 = vcmask 1043459
    %v4578 = vsel %vm4577, %v4280, %v4576
    %vm4579 = vcmask 1044484
    %v4580 = vsel %vm4579, %v4281, %v4578
    %vm4581 = vcmask 1045509
    %v4582 = vsel %vm4581, %v4282, %v4580
    %vm4583 = vcmask 1046534
    %v4584 = vsel %vm4583, %v4283, %v4582
    %vm4585 = vcmask 1047559
    %v4586 = vsel %vm4585, %v4284, %v4584
    %v4587 = vsel %vm4573, %v4286, %v4285
    %v4588 = vsel %vm4575, %v4287, %v4587
    %v4589 = vsel %vm4577, %v4288, %v4588
    %v4590 = vsel %vm4579, %v4289, %v4589
    %v4591 = vsel %vm4581, %v4290, %v4590
    %v4592 = vsel %vm4583, %v4291, %v4591
    %v4593 = vsel %vm4585, %v4292, %v4592
    %v4594 = vsel %vm4573, %v4294, %v4293
    %v4595 = vsel %vm4575, %v4295, %v4594
    %v4596 = vsel %vm4577, %v4296, %v4595
    %v4597 = vsel %vm4579, %v4297, %v4596
    %v4598 = vsel %vm4581, %v4298, %v4597
    %v4599 = vsel %vm4583, %v4299, %v4598
    %v4600 = vsel %vm4585, %v4300, %v4599
    %v4601 = vsel %vm4573, %v4302, %v4301
    %v4602 = vsel %vm4575, %v4303, %v4601
    %v4603 = vsel %vm4577, %v4304, %v4602
    %v4604 = vsel %vm4579, %v4305, %v4603
    %v4605 = vsel %vm4581, %v4306, %v4604
    %v4606 = vsel %vm4583, %v4307, %v4605
    %v4607 = vsel %vm4585, %v4308, %v4606
    %v4608 = vsel %vm4573, %v4310, %v4309
    %v4609 = vsel %vm4575, %v4311, %v4608
    %v4610 = vsel %vm4577, %v4312, %v4609
    %v4611 = vsel %vm4579, %v4313, %v4610
    %v4612 = vsel %vm4581, %v4314, %v4611
    %v4613 = vsel %vm4583, %v4315, %v4612
    %v4614 = vsel %vm4585, %v4316, %v4613
    %v4615 = vsel %vm4573, %v4318, %v4317
    %v4616 = vsel %vm4575, %v4319, %v4615
    %v4617 = vsel %vm4577, %v4320, %v4616
    %v4618 = vsel %vm4579, %v4321, %v4617
    %v4619 = vsel %vm4581, %v4322, %v4618
    %v4620 = vsel %vm4583, %v4323, %v4619
    %v4621 = vsel %vm4585, %v4324, %v4620
    %v4622 = vsel %vm4573, %v4326, %v4325
    %v4623 = vsel %vm4575, %v4327, %v4622
    %v4624 = vsel %vm4577, %v4328, %v4623
    %v4625 = vsel %vm4579, %v4329, %v4624
    %v4626 = vsel %vm4581, %v4330, %v4625
    %v4627 = vsel %vm4583, %v4331, %v4626
    %v4628 = vsel %vm4585, %v4332, %v4627
    %v4629 = vsel %vm4573, %v4334, %v4333
    %v4630 = vsel %vm4575, %v4335, %v4629
    %v4631 = vsel %vm4577, %v4336, %v4630
    %v4632 = vsel %vm4579, %v4337, %v4631
    %v4633 = vsel %vm4581, %v4338, %v4632
    %v4634 = vsel %vm4583, %v4339, %v4633
    %v4635 = vsel %vm4585, %v4340, %v4634
    %v4636 = vsel %vm4573, %v4342, %v4341
    %v4637 = vsel %vm4575, %v4343, %v4636
    %v4638 = vsel %vm4577, %v4344, %v4637
    %v4639 = vsel %vm4579, %v4345, %v4638
    %v4640 = vsel %vm4581, %v4346, %v4639
    %v4641 = vsel %vm4583, %v4347, %v4640
    %v4642 = vsel %vm4585, %v4348, %v4641
    %v4643 = vsel %vm4573, %v4350, %v4349
    %v4644 = vsel %vm4575, %v4351, %v4643
    %v4645 = vsel %vm4577, %v4352, %v4644
    %v4646 = vsel %vm4579, %v4353, %v4645
    %v4647 = vsel %vm4581, %v4354, %v4646
    %v4648 = vsel %vm4583, %v4355, %v4647
    %v4649 = vsel %vm4585, %v4356, %v4648
    %v4650 = vsel %vm4573, %v4358, %v4357
    %v4651 = vsel %vm4575, %v4359, %v4650
    %v4652 = vsel %vm4577, %v4360, %v4651
    %v4653 = vsel %vm4579, %v4361, %v4652
    %v4654 = vsel %vm4581, %v4362, %v4653
    %v4655 = vsel %vm4583, %v4363, %v4654
    %v4656 = vsel %vm4585, %v4364, %v4655
    %v4657 = vsel %vm4573, %v4366, %v4365
    %v4658 = vsel %vm4575, %v4367, %v4657
    %v4659 = vsel %vm4577, %v4368, %v4658
    %v4660 = vsel %vm4579, %v4369, %v4659
    %v4661 = vsel %vm4581, %v4370, %v4660
    %v4662 = vsel %vm4583, %v4371, %v4661
    %v4663 = vsel %vm4585, %v4372, %v4662
    %v4664 = vsel %vm4573, %v4374, %v4373
    %v4665 = vsel %vm4575, %v4375, %v4664
    %v4666 = vsel %vm4577, %v4376, %v4665
    %v4667 = vsel %vm4579, %v4377, %v4666
    %v4668 = vsel %vm4581, %v4378, %v4667
    %v4669 = vsel %vm4583, %v4379, %v4668
    %v4670 = vsel %vm4585, %v4380, %v4669
    %v4671 = vsel %vm4573, %v4382, %v4381
    %v4672 = vsel %vm4575, %v4383, %v4671
    %v4673 = vsel %vm4577, %v4384, %v4672
    %v4674 = vsel %vm4579, %v4385, %v4673
    %v4675 = vsel %vm4581, %v4386, %v4674
    %v4676 = vsel %vm4583, %v4387, %v4675
    %v4677 = vsel %vm4585, %v4388, %v4676
    %v4678 = vsel %vm4573, %v4390, %v4389
    %v4679 = vsel %vm4575, %v4391, %v4678
    %v4680 = vsel %vm4577, %v4392, %v4679
    %v4681 = vsel %vm4579, %v4393, %v4680
    %v4682 = vsel %vm4581, %v4394, %v4681
    %v4683 = vsel %vm4583, %v4395, %v4682
    %v4684 = vsel %vm4585, %v4396, %v4683
    %v4685 = vsel %vm4573, %v4398, %v4397
    %v4686 = vsel %vm4575, %v4399, %v4685
    %v4687 = vsel %vm4577, %v4400, %v4686
    %v4688 = vsel %vm4579, %v4401, %v4687
    %v4689 = vsel %vm4581, %v4402, %v4688
    %v4690 = vsel %vm4583, %v4403, %v4689
    %v4691 = vsel %vm4585, %v4404, %v4690
    %s4708 = scalar_lea.vmem [#allocation2], 16
    %4709 = vst.msk [vmem:[%s4708 + $0x1] sm:$0xff] %vm3892, %v4586
    %4710 = vst.msk [vmem:[%s4708 + $0x11] sm:$0xff] %vm3892, %v4593
    %4711 = vst.msk [vmem:[%s4708 + $0x21] sm:$0xff] %vm3892, %v4600
    %4712 = vst.msk [vmem:[%s4708 + $0x31] sm:$0xff] %vm3892, %v4607
    %4713 = vst.msk [vmem:[%s4708 + $0x41] sm:$0xff] %vm3892, %v4614
    %4714 = vst.msk [vmem:[%s4708 + $0x51] sm:$0xff] %vm3892, %v4621
    %4715 = vst.msk [vmem:[%s4708 + $0x61] sm:$0xff] %vm3892, %v4628
    %4716 = vst.msk [vmem:[%s4708 + $0x71] sm:$0xff] %vm3892, %v4635
    %4717 = vst.msk [vmem:[%s4708 + $0xa1] sm:$0xff] %vm3892, %v4642
    %4718 = vst.msk [vmem:[%s4708 + $0xb1] sm:$0xff] %vm3892, %v4649
    %4719 = vst.msk [vmem:[%s4708 + $0xc1] sm:$0xff] %vm3892, %v4656
    %4720 = vst.msk [vmem:[%s4708 + $0xd1] sm:$0xff] %vm3892, %v4663
    %4721 = vst.msk [vmem:[%s4708 + $0xe1] sm:$0xff] %vm3892, %v4670
    %4722 = vst.msk [vmem:[%s4708 + $0xf1] sm:$0xff] %vm3892, %v4677
    %4723 = vst.msk [vmem:[%s4708 + $0x101] sm:$0xff] %vm3892, %v4684
    %4724 = vst.msk [vmem:[%s4708 + $0x111] sm:$0xff] %vm3892, %v4691
    %v4725 = vld [vmem:[#allocation2] sm:$0xff]
    %v4726 = vld [vmem:[#allocation2 + $0x10] sm:$0xff]
    %v4727 = vld [vmem:[#allocation2 + $0x20] sm:$0xff]
    %v4728 = vld [vmem:[#allocation2 + $0x30] sm:$0xff]
    %v4729 = vld [vmem:[#allocation2 + $0x40] sm:$0xff]
    %v4730 = vld [vmem:[#allocation2 + $0x50] sm:$0xff]
    %v4731 = vld [vmem:[#allocation2 + $0x60] sm:$0xff]
    %v4732 = vld [vmem:[#allocation2 + $0x70] sm:$0xff]
    %v4733 = vld [vmem:[#allocation2 + $0xa0] sm:$0xff]
    %v4734 = vld [vmem:[#allocation2 + $0xb0] sm:$0xff]
    %v4735 = vld [vmem:[#allocation2 + $0xc0] sm:$0xff]
    %v4736 = vld [vmem:[#allocation2 + $0xd0] sm:$0xff]
    %v4737 = vld [vmem:[#allocation2 + $0xe0] sm:$0xff]
    %v4738 = vld [vmem:[#allocation2 + $0xf0] sm:$0xff]
    %v4739 = vld [vmem:[#allocation2 + $0x100] sm:$0xff]
    %v4740 = vld [vmem:[#allocation2 + $0x110] sm:$0xff]
    %v4741 = vld [vmem:[%s3] sm:$0xff]
    %v4742 = vld [vmem:[%s3 + $0x8] sm:$0xff]
    %v4743 = vld [vmem:[%s3 + $0x10] sm:$0xff]
    %v4744 = vld [vmem:[%s3 + $0x18] sm:$0xff]
    %v4745 = vld [vmem:[%s3 + $0x20] sm:$0xff]
    %v4746 = vld [vmem:[%s3 + $0x28] sm:$0xff]
    %v4747 = vld [vmem:[%s3 + $0x30] sm:$0xff]
    %v4748 = vld [vmem:[%s3 + $0x38] sm:$0xff]
    %v4749 = vld [vmem:[#allocation2 + $0x1] sm:$0xff]
    %v4750 = vld [vmem:[#allocation2 + $0x11] sm:$0xff]
    %v4751 = vld [vmem:[#allocation2 + $0x21] sm:$0xff]
    %v4752 = vld [vmem:[#allocation2 + $0x31] sm:$0xff]
    %v4753 = vld [vmem:[#allocation2 + $0x41] sm:$0xff]
    %v4754 = vld [vmem:[#allocation2 + $0x51] sm:$0xff]
    %v4755 = vld [vmem:[#allocation2 + $0x61] sm:$0xff]
    %v4756 = vld [vmem:[#allocation2 + $0x71] sm:$0xff]
    %v4757 = vld [vmem:[#allocation2 + $0xa1] sm:$0xff]
    %v4758 = vld [vmem:[#allocation2 + $0xb1] sm:$0xff]
    %v4759 = vld [vmem:[#allocation2 + $0xc1] sm:$0xff]
    %v4760 = vld [vmem:[#allocation2 + $0xd1] sm:$0xff]
    %v4761 = vld [vmem:[#allocation2 + $0xe1] sm:$0xff]
    %v4762 = vld [vmem:[#allocation2 + $0xf1] sm:$0xff]
    %v4763 = vld [vmem:[#allocation2 + $0x101] sm:$0xff]
    %v4764 = vld [vmem:[#allocation2 + $0x111] sm:$0xff]
    %s4765 = scalar_lea.vmem %s3, 64
    %v4766 = vld [vmem:[%s4765] sm:$0xff]
    %v4767 = vld [vmem:[%s4765 + $0x8] sm:$0xff]
    %v4768 = vld [vmem:[%s4765 + $0x10] sm:$0xff]
    %v4769 = vld [vmem:[%s4765 + $0x18] sm:$0xff]
    %v4770 = vld [vmem:[%s4765 + $0x20] sm:$0xff]
    %v4771 = vld [vmem:[%s4765 + $0x28] sm:$0xff]
    %v4772 = vld [vmem:[%s4765 + $0x30] sm:$0xff]
    %v4773 = vld [vmem:[%s4765 + $0x38] sm:$0xff]
    %v4775 = vsel %vm3892, %v4749, 0
    %v4778 = vsel %vm3892, %v4750, 0
    %v4781 = vsel %vm3892, %v4751, 0
    %v4784 = vsel %vm3892, %v4752, 0
    %v4787 = vsel %vm3892, %v4753, 0
    %v4790 = vsel %vm3892, %v4754, 0
    %v4793 = vsel %vm3892, %v4755, 0
    %v4796 = vsel %vm3892, %v4756, 0
    %v4799 = vsel %vm3892, %v4757, 0
    %v4802 = vsel %vm3892, %v4758, 0
    %v4805 = vsel %vm3892, %v4759, 0
    %v4808 = vsel %vm3892, %v4760, 0
    %v4811 = vsel %vm3892, %v4761, 0
    %v4814 = vsel %vm3892, %v4762, 0
    %v4817 = vsel %vm3892, %v4763, 0
    %v4820 = vsel %vm3892, %v4764, 0
    %4822 = vmatprep.subr.mxu0 0.0
    %4823 = vmatpush1.msra.mxu0 %v4766
    %4824 = vmatprep.subr.mxu0 0.0
    %4825 = vmatpush1.msra.mxu0 %v4767
    %4826 = vmatprep.subr.mxu0 0.0
    %4827 = vmatpush1.msra.mxu0 %v4768
    %4828 = vmatprep.subr.mxu0 0.0
    %4829 = vmatpush1.msra.mxu0 %v4769
    %4830 = vmatprep.subr.mxu0 0.0
    %4831 = vmatpush1.msra.mxu0 %v4770
    %4832 = vmatprep.subr.mxu0 0.0
    %4833 = vmatpush1.msra.mxu0 %v4771
    %4834 = vmatprep.subr.mxu0 0.0
    %4835 = vmatpush1.msra.mxu0 %v4772
    %4836 = vmatprep.subr.mxu0 0.0
    %4837 = vmatpush1.msra.mxu0 %v4773
    %4838 = vmatprep.subr.mxu0 0.0
    %4839 = vmatpush1.msra.mxu0 0.0
    %4840 = vmatprep.subr.mxu0 0.0
    %4841 = vmatpush1.msra.mxu0 0.0
    %4842 = vmatprep.subr.mxu0 0.0
    %4843 = vmatpush1.msra.mxu0 0.0
    %4844 = vmatprep.subr.mxu0 0.0
    %4845 = vmatpush1.msra.mxu0 0.0
    %4846 = vmatprep.subr.mxu0 0.0
    %4847 = vmatpush1.msra.mxu0 0.0
    %4848 = vmatprep.subr.mxu0 0.0
    %4849 = vmatpush1.msra.mxu0 0.0
    %4850 = vmatprep.subr.mxu0 0.0
    %4851 = vmatpush1.msra.mxu0 0.0
    %4852 = vmatprep.subr.mxu0 0.0
    %4853 = vmatpush1.msra.mxu0 0.0
    %4854 = vmatprep.subr.mxu0 0.0
    %4855 = vmatpush1.msra.mxu0 0.0
    %4856 = vmatprep.subr.mxu0 0.0
    %4857 = vmatpush1.msra.mxu0 0.0
    %4858 = vmatprep.subr.mxu0 0.0
    %4859 = vmatpush1.msra.mxu0 0.0
    %4860 = vmatprep.subr.mxu0 0.0
    %4861 = vmatpush1.msra.mxu0 0.0
    %4862 = vmatprep.subr.mxu0 0.0
    %4863 = vmatpush1.msra.mxu0 0.0
    %4864 = vmatprep.subr.mxu0 0.0
    %4865 = vmatpush1.msra.mxu0 0.0
    %4866 = vmatprep.subr.mxu0 0.0
    %4867 = vmatpush1.msra.mxu0 0.0
    %4868 = vmatprep.subr.mxu0 0.0
    %4869 = vmatpush1.msra.mxu0 0.0
    %4870 = vmatprep.subr.mxu0 0.0
    %4871 = vmatpush1.msra.mxu0 0.0
    %4872 = vmatprep.subr.mxu0 0.0
    %4873 = vmatpush1.msra.mxu0 0.0
    %4874 = vmatprep.subr.mxu0 0.0
    %4875 = vmatpush1.msra.mxu0 0.0
    %4876 = vmatprep.subr.mxu0 0.0
    %4877 = vmatpush1.msra.mxu0 0.0
    %4878 = vmatprep.subr.mxu0 0.0
    %4879 = vmatpush1.msra.mxu0 0.0
    %4880 = vmatprep.subr.mxu0 0.0
    %4881 = vmatpush1.msra.mxu0 0.0
    %4882 = vmatprep.subr.mxu0 0.0
    %4883 = vmatpush1.msra.mxu0 0.0
    %4884 = vmatprep.subr.mxu0 0.0
    %4885 = vmatpush1.msra.mxu0 0.0
    %4886 = vmatprep.mubr.f32.mxu0 0.0
    %4887 = vmatmul.mubr.f32.gmra.mrb[0].mxu0 %v4775
    %v4888 = vpop.f32.mrb[0].mxu0
    %v4889 = vadd.f32 0.0, %v4888
    %v4890 = vpop.f32.mrb[0].mxu0
    %4891 = vmatprep.mubr.f32.mxu0 0.0
    %4892 = vmatmul.mubr.f32.gmra.mrb[0].mxu0 %v4778
    %v4893 = vpop.f32.mrb[0].mxu0
    %v4894 = vadd.f32 0.0, %v4893
    %v4895 = vpop.f32.mrb[0].mxu0
    %4896 = vmatprep.mubr.f32.mxu0 0.0
    %4897 = vmatmul.mubr.f32.gmra.mrb[0].mxu0 %v4781
    %v4898 = vpop.f32.mrb[0].mxu0
    %v4899 = vadd.f32 0.0, %v4898
    %v4900 = vpop.f32.mrb[0].mxu0
    %4901 = vmatprep.mubr.f32.mxu0 0.0
    %4902 = vmatmul.mubr.f32.gmra.mrb[0].mxu0 %v4784
    %v4903 = vpop.f32.mrb[0].mxu0
    %v4904 = vadd.f32 0.0, %v4903
    %v4905 = vpop.f32.mrb[0].mxu0
    %4906 = vmatprep.mubr.f32.mxu0 0.0
    %4907 = vmatmul.mubr.f32.gmra.mrb[0].mxu0 %v4787
    %v4908 = vpop.f32.mrb[0].mxu0
    %v4909 = vadd.f32 0.0, %v4908
    %v4910 = vpop.f32.mrb[0].mxu0
    %4911 = vmatprep.mubr.f32.mxu0 0.0
    %4912 = vmatmul.mubr.f32.gmra.mrb[0].mxu0 %v4790
    %v4913 = vpop.f32.mrb[0].mxu0
    %v4914 = vadd.f32 0.0, %v4913
    %v4915 = vpop.f32.mrb[0].mxu0
    %4916 = vmatprep.mubr.f32.mxu0 0.0
    %4917 = vmatmul.mubr.f32.gmra.mrb[0].mxu0 %v4793
    %v4918 = vpop.f32.mrb[0].mxu0
    %v4919 = vadd.f32 0.0, %v4918
    %v4920 = vpop.f32.mrb[0].mxu0
    %4921 = vmatprep.mubr.f32.mxu0 0.0
    %4922 = vmatmul.mubr.f32.gmra.mrb[0].mxu0 %v4796
    %v4923 = vpop.f32.mrb[0].mxu0
    %v4924 = vadd.f32 0.0, %v4923
    %v4925 = vpop.f32.mrb[0].mxu0
    %4926 = vmatprep.mubr.f32.mxu0 0.0
    %4927 = vmatmul.mubr.f32.gmra.mrb[0].mxu0 %v4799
    %v4928 = vpop.f32.mrb[0].mxu0
    %v4929 = vadd.f32 0.0, %v4928
    %v4930 = vpop.f32.mrb[0].mxu0
    %4931 = vmatprep.mubr.f32.mxu0 0.0
    %4932 = vmatmul.mubr.f32.gmra.mrb[0].mxu0 %v4802
    %v4933 = vpop.f32.mrb[0].mxu0
    %v4934 = vadd.f32 0.0, %v4933
    %v4935 = vpop.f32.mrb[0].mxu0
    %4936 = vmatprep.mubr.f32.mxu0 0.0
    %4937 = vmatmul.mubr.f32.gmra.mrb[0].mxu0 %v4805
    %v4938 = vpop.f32.mrb[0].mxu0
    %v4939 = vadd.f32 0.0, %v4938
    %v4940 = vpop.f32.mrb[0].mxu0
    %4941 = vmatprep.mubr.f32.mxu0 0.0
    %4942 = vmatmul.mubr.f32.gmra.mrb[0].mxu0 %v4808
    %v4943 = vpop.f32.mrb[0].mxu0
    %v4944 = vadd.f32 0.0, %v4943
    %v4945 = vpop.f32.mrb[0].mxu0
    %4946 = vmatprep.mubr.f32.mxu0 0.0
    %4947 = vmatmul.mubr.f32.gmra.mrb[0].mxu0 %v4811
    %v4948 = vpop.f32.mrb[0].mxu0
    %v4949 = vadd.f32 0.0, %v4948
    %v4950 = vpop.f32.mrb[0].mxu0
    %4951 = vmatprep.mubr.f32.mxu0 0.0
    %4952 = vmatmul.mubr.f32.gmra.mrb[0].mxu0 %v4814
    %v4953 = vpop.f32.mrb[0].mxu0
    %v4954 = vadd.f32 0.0, %v4953
    %v4955 = vpop.f32.mrb[0].mxu0
    %4956 = vmatprep.mubr.f32.mxu0 0.0
    %4957 = vmatmul.mubr.f32.gmra.mrb[0].mxu0 %v4817
    %v4958 = vpop.f32.mrb[0].mxu0
    %v4959 = vadd.f32 0.0, %v4958
    %v4960 = vpop.f32.mrb[0].mxu0
    %4961 = vmatprep.mubr.f32.mxu0 0.0
    %4962 = vmatmul.mubr.f32.gmra.mrb[0].mxu0 %v4820
    %v4963 = vpop.f32.mrb[0].mxu0
    %v4964 = vadd.f32 0.0, %v4963
    %v4965 = vpop.f32.mrb[0].mxu0
    %4966 = vdwg.mxu0
    %v4968 = vsel %vm3892, %v4725, 0
    %v4971 = vsel %vm3892, %v4726, 0
    %v4974 = vsel %vm3892, %v4727, 0
    %v4977 = vsel %vm3892, %v4728, 0
    %v4980 = vsel %vm3892, %v4729, 0
    %v4983 = vsel %vm3892, %v4730, 0
    %v4986 = vsel %vm3892, %v4731, 0
    %v4989 = vsel %vm3892, %v4732, 0
    %v4992 = vsel %vm3892, %v4733, 0
    %v4995 = vsel %vm3892, %v4734, 0
    %v4998 = vsel %vm3892, %v4735, 0
    %v5001 = vsel %vm3892, %v4736, 0
    %v5004 = vsel %vm3892, %v4737, 0
    %v5007 = vsel %vm3892, %v4738, 0
    %v5010 = vsel %vm3892, %v4739, 0
    %v5013 = vsel %vm3892, %v4740, 0
    %5015 = vmatprep.subr.mxu0 0.0
    %5016 = vmatpush1.msra.mxu0 %v4741
    %5017 = vmatprep.subr.mxu0 0.0
    %5018 = vmatpush1.msra.mxu0 %v4742
    %5019 = vmatprep.subr.mxu0 0.0
    %5020 = vmatpush1.msra.mxu0 %v4743
    %5021 = vmatprep.subr.mxu0 0.0
    %5022 = vmatpush1.msra.mxu0 %v4744
    %5023 = vmatprep.subr.mxu0 0.0
    %5024 = vmatpush1.msra.mxu0 %v4745
    %5025 = vmatprep.subr.mxu0 0.0
    %5026 = vmatpush1.msra.mxu0 %v4746
    %5027 = vmatprep.subr.mxu0 0.0
    %5028 = vmatpush1.msra.mxu0 %v4747
    %5029 = vmatprep.subr.mxu0 0.0
    %5030 = vmatpush1.msra.mxu0 %v4748
    %5031 = vmatprep.subr.mxu0 0.0
    %5032 = vmatpush1.msra.mxu0 0.0
    %5033 = vmatprep.subr.mxu0 0.0
    %5034 = vmatpush1.msra.mxu0 0.0
    %5035 = vmatprep.subr.mxu0 0.0
    %5036 = vmatpush1.msra.mxu0 0.0
    %5037 = vmatprep.subr.mxu0 0.0
    %5038 = vmatpush1.msra.mxu0 0.0
    %5039 = vmatprep.subr.mxu0 0.0
    %5040 = vmatpush1.msra.mxu0 0.0
    %5041 = vmatprep.subr.mxu0 0.0
    %5042 = vmatpush1.msra.mxu0 0.0
    %5043 = vmatprep.subr.mxu0 0.0
    %5044 = vmatpush1.msra.mxu0 0.0
    %5045 = vmatprep.subr.mxu0 0.0
    %5046 = vmatpush1.msra.mxu0 0.0
    %5047 = vmatprep.subr.mxu0 0.0
    %5048 = vmatpush1.msra.mxu0 0.0
    %5049 = vmatprep.subr.mxu0 0.0
    %5050 = vmatpush1.msra.mxu0 0.0
    %5051 = vmatprep.subr.mxu0 0.0
    %5052 = vmatpush1.msra.mxu0 0.0
    %5053 = vmatprep.subr.mxu0 0.0
    %5054 = vmatpush1.msra.mxu0 0.0
    %5055 = vmatprep.subr.mxu0 0.0
    %5056 = vmatpush1.msra.mxu0 0.0
    %5057 = vmatprep.subr.mxu0 0.0
    %5058 = vmatpush1.msra.mxu0 0.0
    %5059 = vmatprep.subr.mxu0 0.0
    %5060 = vmatpush1.msra.mxu0 0.0
    %5061 = vmatprep.subr.mxu0 0.0
    %5062 = vmatpush1.msra.mxu0 0.0
    %5063 = vmatprep.subr.mxu0 0.0
    %5064 = vmatpush1.msra.mxu0 0.0
    %5065 = vmatprep.subr.mxu0 0.0
    %5066 = vmatpush1.msra.mxu0 0.0
    %5067 = vmatprep.subr.mxu0 0.0
    %5068 = vmatpush1.msra.mxu0 0.0
    %5069 = vmatprep.subr.mxu0 0.0
    %5070 = vmatpush1.msra.mxu0 0.0
    %5071 = vmatprep.subr.mxu0 0.0
    %5072 = vmatpush1.msra.mxu0 0.0
    %5073 = vmatprep.subr.mxu0 0.0
    %5074 = vmatpush1.msra.mxu0 0.0
    %5075 = vmatprep.subr.mxu0 0.0
    %5076 = vmatpush1.msra.mxu0 0.0
    %5077 = vmatprep.subr.mxu0 0.0
    %5078 = vmatpush1.msra.mxu0 0.0
    %5079 = vmatprep.mubr.f32.mxu0 0.0
    %5080 = vmatmul.mubr.f32.gmra.mrb[0].mxu0 %v4968
    %v5081 = vpop.f32.mrb[0].mxu0
    %v5082 = vadd.f32 %v4889, %v5081
    %v5083 = vpop.f32.mrb[0].mxu0
    %5084 = vmatprep.mubr.f32.mxu0 0.0
    %5085 = vmatmul.mubr.f32.gmra.mrb[0].mxu0 %v4971
    %v5086 = vpop.f32.mrb[0].mxu0
    %v5087 = vadd.f32 %v4894, %v5086
    %v5088 = vpop.f32.mrb[0].mxu0
    %5089 = vmatprep.mubr.f32.mxu0 0.0
    %5090 = vmatmul.mubr.f32.gmra.mrb[0].mxu0 %v4974
    %v5091 = vpop.f32.mrb[0].mxu0
    %v5092 = vadd.f32 %v4899, %v5091
    %v5093 = vpop.f32.mrb[0].mxu0
    %5094 = vmatprep.mubr.f32.mxu0 0.0
    %5095 = vmatmul.mubr.f32.gmra.mrb[0].mxu0 %v4977
    %v5096 = vpop.f32.mrb[0].mxu0
    %v5097 = vadd.f32 %v4904, %v5096
    %v5098 = vpop.f32.mrb[0].mxu0
    %5099 = vmatprep.mubr.f32.mxu0 0.0
    %5100 = vmatmul.mubr.f32.gmra.mrb[0].mxu0 %v4980
    %v5101 = vpop.f32.mrb[0].mxu0
    %v5102 = vadd.f32 %v4909, %v5101
    %v5103 = vpop.f32.mrb[0].mxu0
    %5104 = vmatprep.mubr.f32.mxu0 0.0
    %5105 = vmatmul.mubr.f32.gmra.mrb[0].mxu0 %v4983
    %v5106 = vpop.f32.mrb[0].mxu0
    %v5107 = vadd.f32 %v4914, %v5106
    %v5108 = vpop.f32.mrb[0].mxu0
    %5109 = vmatprep.mubr.f32.mxu0 0.0
    %5110 = vmatmul.mubr.f32.gmra.mrb[0].mxu0 %v4986
    %v5111 = vpop.f32.mrb[0].mxu0
    %v5112 = vadd.f32 %v4919, %v5111
    %v5113 = vpop.f32.mrb[0].mxu0
    %5114 = vmatprep.mubr.f32.mxu0 0.0
    %5115 = vmatmul.mubr.f32.gmra.mrb[0].mxu0 %v4989
    %v5116 = vpop.f32.mrb[0].mxu0
    %v5117 = vadd.f32 %v4924, %v5116
    %v5118 = vpop.f32.mrb[0].mxu0
    %5119 = vmatprep.mubr.f32.mxu0 0.0
    %5120 = vmatmul.mubr.f32.gmra.mrb[0].mxu0 %v4992
    %v5121 = vpop.f32.mrb[0].mxu0
    %v5122 = vadd.f32 %v4929, %v5121
    %v5123 = vpop.f32.mrb[0].mxu0
    %5124 = vmatprep.mubr.f32.mxu0 0.0
    %5125 = vmatmul.mubr.f32.gmra.mrb[0].mxu0 %v4995
    %v5126 = vpop.f32.mrb[0].mxu0
    %v5127 = vadd.f32 %v4934, %v5126
    %v5128 = vpop.f32.mrb[0].mxu0
    %5129 = vmatprep.mubr.f32.mxu0 0.0
    %5130 = vmatmul.mubr.f32.gmra.mrb[0].mxu0 %v4998
    %v5131 = vpop.f32.mrb[0].mxu0
    %v5132 = vadd.f32 %v4939, %v5131
    %v5133 = vpop.f32.mrb[0].mxu0
    %5134 = vmatprep.mubr.f32.mxu0 0.0
    %5135 = vmatmul.mubr.f32.gmra.mrb[0].mxu0 %v5001
    %v5136 = vpop.f32.mrb[0].mxu0
    %v5137 = vadd.f32 %v4944, %v5136
    %v5138 = vpop.f32.mrb[0].mxu0
    %5139 = vmatprep.mubr.f32.mxu0 0.0
    %5140 = vmatmul.mubr.f32.gmra.mrb[0].mxu0 %v5004
    %v5141 = vpop.f32.mrb[0].mxu0
    %v5142 = vadd.f32 %v4949, %v5141
    %v5143 = vpop.f32.mrb[0].mxu0
    %5144 = vmatprep.mubr.f32.mxu0 0.0
    %5145 = vmatmul.mubr.f32.gmra.mrb[0].mxu0 %v5007
    %v5146 = vpop.f32.mrb[0].mxu0
    %v5147 = vadd.f32 %v4954, %v5146
    %v5148 = vpop.f32.mrb[0].mxu0
    %5149 = vmatprep.mubr.f32.mxu0 0.0
    %5150 = vmatmul.mubr.f32.gmra.mrb[0].mxu0 %v5010
    %v5151 = vpop.f32.mrb[0].mxu0
    %v5152 = vadd.f32 %v4959, %v5151
    %v5153 = vpop.f32.mrb[0].mxu0
    %5154 = vmatprep.mubr.f32.mxu0 0.0
    %5155 = vmatmul.mubr.f32.gmra.mrb[0].mxu0 %v5013
    %v5156 = vpop.f32.mrb[0].mxu0
    %v5157 = vadd.f32 %v4964, %v5156
    %v5158 = vpop.f32.mrb[0].mxu0
    %5159 = vdwg.mxu0
    %v5160 = vld [vmem:[#allocation2 + $0x2] sm:$0xff]
    %v5161 = vld [vmem:[#allocation2 + $0x12] sm:$0xff]
    %v5162 = vld [vmem:[#allocation2 + $0x22] sm:$0xff]
    %v5163 = vld [vmem:[#allocation2 + $0x32] sm:$0xff]
    %v5164 = vld [vmem:[#allocation2 + $0x42] sm:$0xff]
    %v5165 = vld [vmem:[#allocation2 + $0x52] sm:$0xff]
    %v5166 = vld [vmem:[#allocation2 + $0x62] sm:$0xff]
    %v5167 = vld [vmem:[#allocation2 + $0x72] sm:$0xff]
    %v5168 = vld [vmem:[#allocation2 + $0xa2] sm:$0xff]
    %v5169 = vld [vmem:[#allocation2 + $0xb2] sm:$0xff]
    %v5170 = vld [vmem:[#allocation2 + $0xc2] sm:$0xff]
    %v5171 = vld [vmem:[#allocation2 + $0xd2] sm:$0xff]
    %v5172 = vld [vmem:[#allocation2 + $0xe2] sm:$0xff]
    %v5173 = vld [vmem:[#allocation2 + $0xf2] sm:$0xff]
    %v5174 = vld [vmem:[#allocation2 + $0x102] sm:$0xff]
    %v5175 = vld [vmem:[#allocation2 + $0x112] sm:$0xff]
    %s5176 = scalar_lea.vmem %s3, 128
    %v5177 = vld [vmem:[%s5176] sm:$0xff]
    %v5178 = vld [vmem:[%s5176 + $0x8] sm:$0xff]
    %v5179 = vld [vmem:[%s5176 + $0x10] sm:$0xff]
    %v5180 = vld [vmem:[%s5176 + $0x18] sm:$0xff]
    %v5181 = vld [vmem:[%s5176 + $0x20] sm:$0xff]
    %v5182 = vld [vmem:[%s5176 + $0x28] sm:$0xff]
    %v5183 = vld [vmem:[%s5176 + $0x30] sm:$0xff]
    %v5184 = vld [vmem:[%s5176 + $0x38] sm:$0xff]
    %v5186 = vsel %vm3892, %v5160, 0
    %v5189 = vsel %vm3892, %v5161, 0
    %v5192 = vsel %vm3892, %v5162, 0
    %v5195 = vsel %vm3892, %v5163, 0
    %v5198 = vsel %vm3892, %v5164, 0
    %v5201 = vsel %vm3892, %v5165, 0
    %v5204 = vsel %vm3892, %v5166, 0
    %v5207 = vsel %vm3892, %v5167, 0
    %v5210 = vsel %vm3892, %v5168, 0
    %v5213 = vsel %vm3892, %v5169, 0
    %v5216 = vsel %vm3892, %v5170, 0
    %v5219 = vsel %vm3892, %v5171, 0
    %v5222 = vsel %vm3892, %v5172, 0
    %v5225 = vsel %vm3892, %v5173, 0
    %v5228 = vsel %vm3892, %v5174, 0
    %v5231 = vsel %vm3892, %v5175, 0
    %5233 = vmatprep.subr.mxu0 0.0
    %5234 = vmatpush1.msra.mxu0 %v5177
    %5235 = vmatprep.subr.mxu0 0.0
    %5236 = vmatpush1.msra.mxu0 %v5178
    %5237 = vmatprep.subr.mxu0 0.0
    %5238 = vmatpush1.msra.mxu0 %v5179
    %5239 = vmatprep.subr.mxu0 0.0
    %5240 = vmatpush1.msra.mxu0 %v5180
    %5241 = vmatprep.subr.mxu0 0.0
    %5242 = vmatpush1.msra.mxu0 %v5181
    %5243 = vmatprep.subr.mxu0 0.0
    %5244 = vmatpush1.msra.mxu0 %v5182
    %5245 = vmatprep.subr.mxu0 0.0
    %5246 = vmatpush1.msra.mxu0 %v5183
    %5247 = vmatprep.subr.mxu0 0.0
    %5248 = vmatpush1.msra.mxu0 %v5184
    %5249 = vmatprep.subr.mxu0 0.0
    %5250 = vmatpush1.msra.mxu0 0.0
    %5251 = vmatprep.subr.mxu0 0.0
    %5252 = vmatpush1.msra.mxu0 0.0
    %5253 = vmatprep.subr.mxu0 0.0
    %5254 = vmatpush1.msra.mxu0 0.0
    %5255 = vmatprep.subr.mxu0 0.0
    %5256 = vmatpush1.msra.mxu0 0.0
    %5257 = vmatprep.subr.mxu0 0.0
    %5258 = vmatpush1.msra.mxu0 0.0
    %5259 = vmatprep.subr.mxu0 0.0
    %5260 = vmatpush1.msra.mxu0 0.0
    %5261 = vmatprep.subr.mxu0 0.0
    %5262 = vmatpush1.msra.mxu0 0.0
    %5263 = vmatprep.subr.mxu0 0.0
    %5264 = vmatpush1.msra.mxu0 0.0
    %5265 = vmatprep.subr.mxu0 0.0
    %5266 = vmatpush1.msra.mxu0 0.0
    %5267 = vmatprep.subr.mxu0 0.0
    %5268 = vmatpush1.msra.mxu0 0.0
    %5269 = vmatprep.subr.mxu0 0.0
    %5270 = vmatpush1.msra.mxu0 0.0
    %5271 = vmatprep.subr.mxu0 0.0
    %5272 = vmatpush1.msra.mxu0 0.0
    %5273 = vmatprep.subr.mxu0 0.0
    %5274 = vmatpush1.msra.mxu0 0.0
    %5275 = vmatprep.subr.mxu0 0.0
    %5276 = vmatpush1.msra.mxu0 0.0
    %5277 = vmatprep.subr.mxu0 0.0
    %5278 = vmatpush1.msra.mxu0 0.0
    %5279 = vmatprep.subr.mxu0 0.0
    %5280 = vmatpush1.msra.mxu0 0.0
    %5281 = vmatprep.subr.mxu0 0.0
    %5282 = vmatpush1.msra.mxu0 0.0
    %5283 = vmatprep.subr.mxu0 0.0
    %5284 = vmatpush1.msra.mxu0 0.0
    %5285 = vmatprep.subr.mxu0 0.0
    %5286 = vmatpush1.msra.mxu0 0.0
    %5287 = vmatprep.subr.mxu0 0.0
    %5288 = vmatpush1.msra.mxu0 0.0
    %5289 = vmatprep.subr.mxu0 0.0
    %5290 = vmatpush1.msra.mxu0 0.0
    %5291 = vmatprep.subr.mxu0 0.0
    %5292 = vmatpush1.msra.mxu0 0.0
    %5293 = vmatprep.subr.mxu0 0.0
    %5294 = vmatpush1.msra.mxu0 0.0
    %5295 = vmatprep.subr.mxu0 0.0
    %5296 = vmatpush1.msra.mxu0 0.0
    %5297 = vmatprep.mubr.f32.mxu0 0.0
    %5298 = vmatmul.mubr.f32.gmra.mrb[0].mxu0 %v5186
    %v5299 = vpop.f32.mrb[0].mxu0
    %v5300 = vadd.f32 0.0, %v5299
    %v5301 = vpop.f32.mrb[0].mxu0
    %5302 = vmatprep.mubr.f32.mxu0 0.0
    %5303 = vmatmul.mubr.f32.gmra.mrb[0].mxu0 %v5189
    %v5304 = vpop.f32.mrb[0].mxu0
    %v5305 = vadd.f32 0.0, %v5304
    %v5306 = vpop.f32.mrb[0].mxu0
    %5307 = vmatprep.mubr.f32.mxu0 0.0
    %5308 = vmatmul.mubr.f32.gmra.mrb[0].mxu0 %v5192
    %v5309 = vpop.f32.mrb[0].mxu0
    %v5310 = vadd.f32 0.0, %v5309
    %v5311 = vpop.f32.mrb[0].mxu0
    %5312 = vmatprep.mubr.f32.mxu0 0.0
    %5313 = vmatmul.mubr.f32.gmra.mrb[0].mxu0 %v5195
    %v5314 = vpop.f32.mrb[0].mxu0
    %v5315 = vadd.f32 0.0, %v5314
    %v5316 = vpop.f32.mrb[0].mxu0
    %5317 = vmatprep.mubr.f32.mxu0 0.0
    %5318 = vmatmul.mubr.f32.gmra.mrb[0].mxu0 %v5198
    %v5319 = vpop.f32.mrb[0].mxu0
    %v5320 = vadd.f32 0.0, %v5319
    %v5321 = vpop.f32.mrb[0].mxu0
    %5322 = vmatprep.mubr.f32.mxu0 0.0
    %5323 = vmatmul.mubr.f32.gmra.mrb[0].mxu0 %v5201
    %v5324 = vpop.f32.mrb[0].mxu0
    %v5325 = vadd.f32 0.0, %v5324
    %v5326 = vpop.f32.mrb[0].mxu0
    %5327 = vmatprep.mubr.f32.mxu0 0.0
    %5328 = vmatmul.mubr.f32.gmra.mrb[0].mxu0 %v5204
    %v5329 = vpop.f32.mrb[0].mxu0
    %v5330 = vadd.f32 0.0, %v5329
    %v5331 = vpop.f32.mrb[0].mxu0
    %5332 = vmatprep.mubr.f32.mxu0 0.0
    %5333 = vmatmul.mubr.f32.gmra.mrb[0].mxu0 %v5207
    %v5334 = vpop.f32.mrb[0].mxu0
    %v5335 = vadd.f32 0.0, %v5334
    %v5336 = vpop.f32.mrb[0].mxu0
    %5337 = vmatprep.mubr.f32.mxu0 0.0
    %5338 = vmatmul.mubr.f32.gmra.mrb[0].mxu0 %v5210
    %v5339 = vpop.f32.mrb[0].mxu0
    %v5340 = vadd.f32 0.0, %v5339
    %v5341 = vpop.f32.mrb[0].mxu0
    %5342 = vmatprep.mubr.f32.mxu0 0.0
    %5343 = vmatmul.mubr.f32.gmra.mrb[0].mxu0 %v5213
    %v5344 = vpop.f32.mrb[0].mxu0
    %v5345 = vadd.f32 0.0, %v5344
    %v5346 = vpop.f32.mrb[0].mxu0
    %5347 = vmatprep.mubr.f32.mxu0 0.0
    %5348 = vmatmul.mubr.f32.gmra.mrb[0].mxu0 %v5216
    %v5349 = vpop.f32.mrb[0].mxu0
    %v5350 = vadd.f32 0.0, %v5349
    %v5351 = vpop.f32.mrb[0].mxu0
    %5352 = vmatprep.mubr.f32.mxu0 0.0
    %5353 = vmatmul.mubr.f32.gmra.mrb[0].mxu0 %v5219
    %v5354 = vpop.f32.mrb[0].mxu0
    %v5355 = vadd.f32 0.0, %v5354
    %v5356 = vpop.f32.mrb[0].mxu0
    %5357 = vmatprep.mubr.f32.mxu0 0.0
    %5358 = vmatmul.mubr.f32.gmra.mrb[0].mxu0 %v5222
    %v5359 = vpop.f32.mrb[0].mxu0
    %v5360 = vadd.f32 0.0, %v5359
    %v5361 = vpop.f32.mrb[0].mxu0
    %5362 = vmatprep.mubr.f32.mxu0 0.0
    %5363 = vmatmul.mubr.f32.gmra.mrb[0].mxu0 %v5225
    %v5364 = vpop.f32.mrb[0].mxu0
    %v5365 = vadd.f32 0.0, %v5364
    %v5366 = vpop.f32.mrb[0].mxu0
    %5367 = vmatprep.mubr.f32.mxu0 0.0
    %5368 = vmatmul.mubr.f32.gmra.mrb[0].mxu0 %v5228
    %v5369 = vpop.f32.mrb[0].mxu0
    %v5370 = vadd.f32 0.0, %v5369
    %v5371 = vpop.f32.mrb[0].mxu0
    %5372 = vmatprep.mubr.f32.mxu0 0.0
    %5373 = vmatmul.mubr.f32.gmra.mrb[0].mxu0 %v5231
    %v5374 = vpop.f32.mrb[0].mxu0
    %v5375 = vadd.f32 0.0, %v5374
    %v5376 = vpop.f32.mrb[0].mxu0
    %5377 = vdwg.mxu0
    %v5378 = vadd.f32 %v5082, %v5300
    %v5379 = vadd.f32 %v5087, %v5305
    %v5380 = vadd.f32 %v5092, %v5310
    %v5381 = vadd.f32 %v5097, %v5315
    %v5382 = vadd.f32 %v5102, %v5320
    %v5383 = vadd.f32 %v5107, %v5325
    %v5384 = vadd.f32 %v5112, %v5330
    %v5385 = vadd.f32 %v5117, %v5335
    %v5386 = vadd.f32 %v5122, %v5340
    %v5387 = vadd.f32 %v5127, %v5345
    %v5388 = vadd.f32 %v5132, %v5350
    %v5389 = vadd.f32 %v5137, %v5355
    %v5390 = vadd.f32 %v5142, %v5360
    %v5391 = vadd.f32 %v5147, %v5365
    %v5392 = vadd.f32 %v5152, %v5370
    %v5393 = vadd.f32 %v5157, %v5375
    %v5394 = vld [vmem:[%s4708] sm:$0xff]
    %v5395 = vld [vmem:[%s4708 + $0x10] sm:$0xff]
    %v5396 = vld [vmem:[%s4708 + $0x20] sm:$0xff]
    %v5397 = vld [vmem:[%s4708 + $0x30] sm:$0xff]
    %v5398 = vld [vmem:[%s4708 + $0x40] sm:$0xff]
    %v5399 = vld [vmem:[%s4708 + $0x50] sm:$0xff]
    %v5400 = vld [vmem:[%s4708 + $0x60] sm:$0xff]
    %v5401 = vld [vmem:[%s4708 + $0x70] sm:$0xff]
    %v5402 = vld [vmem:[%s4708 + $0xa0] sm:$0xff]
    %v5403 = vld [vmem:[%s4708 + $0xb0] sm:$0xff]
    %v5404 = vld [vmem:[%s4708 + $0xc0] sm:$0xff]
    %v5405 = vld [vmem:[%s4708 + $0xd0] sm:$0xff]
    %v5406 = vld [vmem:[%s4708 + $0xe0] sm:$0xff]
    %v5407 = vld [vmem:[%s4708 + $0xf0] sm:$0xff]
    %v5408 = vld [vmem:[%s4708 + $0x100] sm:$0xff]
    %v5409 = vld [vmem:[%s4708 + $0x110] sm:$0xff]
    %s5410 = scalar_lea.vmem %s3, 192
    %v5411 = vld [vmem:[%s5410] sm:$0xff]
    %v5412 = vld [vmem:[%s5410 + $0x8] sm:$0xff]
    %v5413 = vld [vmem:[%s5410 + $0x10] sm:$0xff]
    %v5414 = vld [vmem:[%s5410 + $0x18] sm:$0xff]
    %v5415 = vld [vmem:[%s5410 + $0x20] sm:$0xff]
    %v5416 = vld [vmem:[%s5410 + $0x28] sm:$0xff]
    %v5417 = vld [vmem:[%s5410 + $0x30] sm:$0xff]
    %v5418 = vld [vmem:[%s5410 + $0x38] sm:$0xff]
    %v5420 = vsel %vm3892, %v5394, 0
    %v5423 = vsel %vm3892, %v5395, 0
    %v5426 = vsel %vm3892, %v5396, 0
    %v5429 = vsel %vm3892, %v5397, 0
    %v5432 = vsel %vm3892, %v5398, 0
    %v5435 = vsel %vm3892, %v5399, 0
    %v5438 = vsel %vm3892, %v5400, 0
    %v5441 = vsel %vm3892, %v5401, 0
    %v5444 = vsel %vm3892, %v5402, 0
    %v5447 = vsel %vm3892, %v5403, 0
    %v5450 = vsel %vm3892, %v5404, 0
    %v5453 = vsel %vm3892, %v5405, 0
    %v5456 = vsel %vm3892, %v5406, 0
    %v5459 = vsel %vm3892, %v5407, 0
    %v5462 = vsel %vm3892, %v5408, 0
    %v5465 = vsel %vm3892, %v5409, 0
    %5467 = vmatprep.subr.mxu0 0.0
    %5468 = vmatpush1.msra.mxu0 %v5411
    %5469 = vmatprep.subr.mxu0 0.0
    %5470 = vmatpush1.msra.mxu0 %v5412
    %5471 = vmatprep.subr.mxu0 0.0
    %5472 = vmatpush1.msra.mxu0 %v5413
    %5473 = vmatprep.subr.mxu0 0.0
    %5474 = vmatpush1.msra.mxu0 %v5414
    %5475 = vmatprep.subr.mxu0 0.0
    %5476 = vmatpush1.msra.mxu0 %v5415
    %5477 = vmatprep.subr.mxu0 0.0
    %5478 = vmatpush1.msra.mxu0 %v5416
    %5479 = vmatprep.subr.mxu0 0.0
    %5480 = vmatpush1.msra.mxu0 %v5417
    %5481 = vmatprep.subr.mxu0 0.0
    %5482 = vmatpush1.msra.mxu0 %v5418
    %5483 = vmatprep.subr.mxu0 0.0
    %5484 = vmatpush1.msra.mxu0 0.0
    %5485 = vmatprep.subr.mxu0 0.0
    %5486 = vmatpush1.msra.mxu0 0.0
    %5487 = vmatprep.subr.mxu0 0.0
    %5488 = vmatpush1.msra.mxu0 0.0
    %5489 = vmatprep.subr.mxu0 0.0
    %5490 = vmatpush1.msra.mxu0 0.0
    %5491 = vmatprep.subr.mxu0 0.0
    %5492 = vmatpush1.msra.mxu0 0.0
    %5493 = vmatprep.subr.mxu0 0.0
    %5494 = vmatpush1.msra.mxu0 0.0
    %5495 = vmatprep.subr.mxu0 0.0
    %5496 = vmatpush1.msra.mxu0 0.0
    %5497 = vmatprep.subr.mxu0 0.0
    %5498 = vmatpush1.msra.mxu0 0.0
    %5499 = vmatprep.subr.mxu0 0.0
    %5500 = vmatpush1.msra.mxu0 0.0
    %5501 = vmatprep.subr.mxu0 0.0
    %5502 = vmatpush1.msra.mxu0 0.0
    %5503 = vmatprep.subr.mxu0 0.0
    %5504 = vmatpush1.msra.mxu0 0.0
    %5505 = vmatprep.subr.mxu0 0.0
    %5506 = vmatpush1.msra.mxu0 0.0
    %5507 = vmatprep.subr.mxu0 0.0
    %5508 = vmatpush1.msra.mxu0 0.0
    %5509 = vmatprep.subr.mxu0 0.0
    %5510 = vmatpush1.msra.mxu0 0.0
    %5511 = vmatprep.subr.mxu0 0.0
    %5512 = vmatpush1.msra.mxu0 0.0
    %5513 = vmatprep.subr.mxu0 0.0
    %5514 = vmatpush1.msra.mxu0 0.0
    %5515 = vmatprep.subr.mxu0 0.0
    %5516 = vmatpush1.msra.mxu0 0.0
    %5517 = vmatprep.subr.mxu0 0.0
    %5518 = vmatpush1.msra.mxu0 0.0
    %5519 = vmatprep.subr.mxu0 0.0
    %5520 = vmatpush1.msra.mxu0 0.0
    %5521 = vmatprep.subr.mxu0 0.0
    %5522 = vmatpush1.msra.mxu0 0.0
    %5523 = vmatprep.subr.mxu0 0.0
    %5524 = vmatpush1.msra.mxu0 0.0
    %5525 = vmatprep.subr.mxu0 0.0
    %5526 = vmatpush1.msra.mxu0 0.0
    %5527 = vmatprep.subr.mxu0 0.0
    %5528 = vmatpush1.msra.mxu0 0.0
    %5529 = vmatprep.subr.mxu0 0.0
    %5530 = vmatpush1.msra.mxu0 0.0
    %5531 = vmatprep.mubr.f32.mxu0 0.0
    %5532 = vmatmul.mubr.f32.gmra.mrb[0].mxu0 %v5420
    %v5533 = vpop.f32.mrb[0].mxu0
    %v5534 = vadd.f32 0.0, %v5533
    %v5535 = vpop.f32.mrb[0].mxu0
    %5536 = vmatprep.mubr.f32.mxu0 0.0
    %5537 = vmatmul.mubr.f32.gmra.mrb[0].mxu0 %v5423
    %v5538 = vpop.f32.mrb[0].mxu0
    %v5539 = vadd.f32 0.0, %v5538
    %v5540 = vpop.f32.mrb[0].mxu0
    %5541 = vmatprep.mubr.f32.mxu0 0.0
    %5542 = vmatmul.mubr.f32.gmra.mrb[0].mxu0 %v5426
    %v5543 = vpop.f32.mrb[0].mxu0
    %v5544 = vadd.f32 0.0, %v5543
    %v5545 = vpop.f32.mrb[0].mxu0
    %5546 = vmatprep.mubr.f32.mxu0 0.0
    %5547 = vmatmul.mubr.f32.gmra.mrb[0].mxu0 %v5429
    %v5548 = vpop.f32.mrb[0].mxu0
    %v5549 = vadd.f32 0.0, %v5548
    %v5550 = vpop.f32.mrb[0].mxu0
    %5551 = vmatprep.mubr.f32.mxu0 0.0
    %5552 = vmatmul.mubr.f32.gmra.mrb[0].mxu0 %v5432
    %v5553 = vpop.f32.mrb[0].mxu0
    %v5554 = vadd.f32 0.0, %v5553
    %v5555 = vpop.f32.mrb[0].mxu0
    %5556 = vmatprep.mubr.f32.mxu0 0.0
    %5557 = vmatmul.mubr.f32.gmra.mrb[0].mxu0 %v5435
    %v5558 = vpop.f32.mrb[0].mxu0
    %v5559 = vadd.f32 0.0, %v5558
    %v5560 = vpop.f32.mrb[0].mxu0
    %5561 = vmatprep.mubr.f32.mxu0 0.0
    %5562 = vmatmul.mubr.f32.gmra.mrb[0].mxu0 %v5438
    %v5563 = vpop.f32.mrb[0].mxu0
    %v5564 = vadd.f32 0.0, %v5563
    %v5565 = vpop.f32.mrb[0].mxu0
    %5566 = vmatprep.mubr.f32.mxu0 0.0
    %5567 = vmatmul.mubr.f32.gmra.mrb[0].mxu0 %v5441
    %v5568 = vpop.f32.mrb[0].mxu0
    %v5569 = vadd.f32 0.0, %v5568
    %v5570 = vpop.f32.mrb[0].mxu0
    %5571 = vmatprep.mubr.f32.mxu0 0.0
    %5572 = vmatmul.mubr.f32.gmra.mrb[0].mxu0 %v5444
    %v5573 = vpop.f32.mrb[0].mxu0
    %v5574 = vadd.f32 0.0, %v5573
    %v5575 = vpop.f32.mrb[0].mxu0
    %5576 = vmatprep.mubr.f32.mxu0 0.0
    %5577 = vmatmul.mubr.f32.gmra.mrb[0].mxu0 %v5447
    %v5578 = vpop.f32.mrb[0].mxu0
    %v5579 = vadd.f32 0.0, %v5578
    %v5580 = vpop.f32.mrb[0].mxu0
    %5581 = vmatprep.mubr.f32.mxu0 0.0
    %5582 = vmatmul.mubr.f32.gmra.mrb[0].mxu0 %v5450
    %v5583 = vpop.f32.mrb[0].mxu0
    %v5584 = vadd.f32 0.0, %v5583
    %v5585 = vpop.f32.mrb[0].mxu0
    %5586 = vmatprep.mubr.f32.mxu0 0.0
    %5587 = vmatmul.mubr.f32.gmra.mrb[0].mxu0 %v5453
    %v5588 = vpop.f32.mrb[0].mxu0
    %v5589 = vadd.f32 0.0, %v5588
    %v5590 = vpop.f32.mrb[0].mxu0
    %5591 = vmatprep.mubr.f32.mxu0 0.0
    %5592 = vmatmul.mubr.f32.gmra.mrb[0].mxu0 %v5456
    %v5593 = vpop.f32.mrb[0].mxu0
    %v5594 = vadd.f32 0.0, %v5593
    %v5595 = vpop.f32.mrb[0].mxu0
    %5596 = vmatprep.mubr.f32.mxu0 0.0
    %5597 = vmatmul.mubr.f32.gmra.mrb[0].mxu0 %v5459
    %v5598 = vpop.f32.mrb[0].mxu0
    %v5599 = vadd.f32 0.0, %v5598
    %v5600 = vpop.f32.mrb[0].mxu0
    %5601 = vmatprep.mubr.f32.mxu0 0.0
    %5602 = vmatmul.mubr.f32.gmra.mrb[0].mxu0 %v5462
    %v5603 = vpop.f32.mrb[0].mxu0
    %v5604 = vadd.f32 0.0, %v5603
    %v5605 = vpop.f32.mrb[0].mxu0
    %5606 = vmatprep.mubr.f32.mxu0 0.0
    %5607 = vmatmul.mubr.f32.gmra.mrb[0].mxu0 %v5465
    %v5608 = vpop.f32.mrb[0].mxu0
    %v5609 = vadd.f32 0.0, %v5608
    %v5610 = vpop.f32.mrb[0].mxu0
    %5611 = vdwg.mxu0
    %v5612 = vadd.f32 %v5378, %v5534
    %v5613 = vadd.f32 %v5379, %v5539
    %v5614 = vadd.f32 %v5380, %v5544
    %v5615 = vadd.f32 %v5381, %v5549
    %v5616 = vadd.f32 %v5382, %v5554
    %v5617 = vadd.f32 %v5383, %v5559
    %v5618 = vadd.f32 %v5384, %v5564
    %v5619 = vadd.f32 %v5385, %v5569
    %v5620 = vadd.f32 %v5386, %v5574
    %v5621 = vadd.f32 %v5387, %v5579
    %v5622 = vadd.f32 %v5388, %v5584
    %v5623 = vadd.f32 %v5389, %v5589
    %v5624 = vadd.f32 %v5390, %v5594
    %v5625 = vadd.f32 %v5391, %v5599
    %v5626 = vadd.f32 %v5392, %v5604
    %v5627 = vadd.f32 %v5393, %v5609
    %v5628 = vld [vmem:[%s4708 + $0x1] sm:$0xff]
    %v5629 = vld [vmem:[%s4708 + $0x11] sm:$0xff]
    %v5630 = vld [vmem:[%s4708 + $0x21] sm:$0xff]
    %v5631 = vld [vmem:[%s4708 + $0x31] sm:$0xff]
    %v5632 = vld [vmem:[%s4708 + $0x41] sm:$0xff]
    %v5633 = vld [vmem:[%s4708 + $0x51] sm:$0xff]
    %v5634 = vld [vmem:[%s4708 + $0x61] sm:$0xff]
    %v5635 = vld [vmem:[%s4708 + $0x71] sm:$0xff]
    %v5636 = vld [vmem:[%s4708 + $0xa1] sm:$0xff]
    %v5637 = vld [vmem:[%s4708 + $0xb1] sm:$0xff]
    %v5638 = vld [vmem:[%s4708 + $0xc1] sm:$0xff]
    %v5639 = vld [vmem:[%s4708 + $0xd1] sm:$0xff]
    %v5640 = vld [vmem:[%s4708 + $0xe1] sm:$0xff]
    %v5641 = vld [vmem:[%s4708 + $0xf1] sm:$0xff]
    %v5642 = vld [vmem:[%s4708 + $0x101] sm:$0xff]
    %v5643 = vld [vmem:[%s4708 + $0x111] sm:$0xff]
    %s5644 = scalar_lea.vmem %s3, 256
    %v5645 = vld [vmem:[%s5644] sm:$0xff]
    %v5646 = vld [vmem:[%s5644 + $0x8] sm:$0xff]
    %v5647 = vld [vmem:[%s5644 + $0x10] sm:$0xff]
    %v5648 = vld [vmem:[%s5644 + $0x18] sm:$0xff]
    %v5649 = vld [vmem:[%s5644 + $0x20] sm:$0xff]
    %v5650 = vld [vmem:[%s5644 + $0x28] sm:$0xff]
    %v5651 = vld [vmem:[%s5644 + $0x30] sm:$0xff]
    %v5652 = vld [vmem:[%s5644 + $0x38] sm:$0xff]
    %v5654 = vsel %vm3892, %v5628, 0
    %v5657 = vsel %vm3892, %v5629, 0
    %v5660 = vsel %vm3892, %v5630, 0
    %v5663 = vsel %vm3892, %v5631, 0
    %v5666 = vsel %vm3892, %v5632, 0
    %v5669 = vsel %vm3892, %v5633, 0
    %v5672 = vsel %vm3892, %v5634, 0
    %v5675 = vsel %vm3892, %v5635, 0
    %v5678 = vsel %vm3892, %v5636, 0
    %v5681 = vsel %vm3892, %v5637, 0
    %v5684 = vsel %vm3892, %v5638, 0
    %v5687 = vsel %vm3892, %v5639, 0
    %v5690 = vsel %vm3892, %v5640, 0
    %v5693 = vsel %vm3892, %v5641, 0
    %v5696 = vsel %vm3892, %v5642, 0
    %v5699 = vsel %vm3892, %v5643, 0
    %5701 = vmatprep.subr.mxu0 0.0
    %5702 = vmatpush1.msra.mxu0 %v5645
    %5703 = vmatprep.subr.mxu0 0.0
    %5704 = vmatpush1.msra.mxu0 %v5646
    %5705 = vmatprep.subr.mxu0 0.0
    %5706 = vmatpush1.msra.mxu0 %v5647
    %5707 = vmatprep.subr.mxu0 0.0
    %5708 = vmatpush1.msra.mxu0 %v5648
    %5709 = vmatprep.subr.mxu0 0.0
    %5710 = vmatpush1.msra.mxu0 %v5649
    %5711 = vmatprep.subr.mxu0 0.0
    %5712 = vmatpush1.msra.mxu0 %v5650
    %5713 = vmatprep.subr.mxu0 0.0
    %5714 = vmatpush1.msra.mxu0 %v5651
    %5715 = vmatprep.subr.mxu0 0.0
    %5716 = vmatpush1.msra.mxu0 %v5652
    %5717 = vmatprep.subr.mxu0 0.0
    %5718 = vmatpush1.msra.mxu0 0.0
    %5719 = vmatprep.subr.mxu0 0.0
    %5720 = vmatpush1.msra.mxu0 0.0
    %5721 = vmatprep.subr.mxu0 0.0
    %5722 = vmatpush1.msra.mxu0 0.0
    %5723 = vmatprep.subr.mxu0 0.0
    %5724 = vmatpush1.msra.mxu0 0.0
    %5725 = vmatprep.subr.mxu0 0.0
    %5726 = vmatpush1.msra.mxu0 0.0
    %5727 = vmatprep.subr.mxu0 0.0
    %5728 = vmatpush1.msra.mxu0 0.0
    %5729 = vmatprep.subr.mxu0 0.0
    %5730 = vmatpush1.msra.mxu0 0.0
    %5731 = vmatprep.subr.mxu0 0.0
    %5732 = vmatpush1.msra.mxu0 0.0
    %5733 = vmatprep.subr.mxu0 0.0
    %5734 = vmatpush1.msra.mxu0 0.0
    %5735 = vmatprep.subr.mxu0 0.0
    %5736 = vmatpush1.msra.mxu0 0.0
    %5737 = vmatprep.subr.mxu0 0.0
    %5738 = vmatpush1.msra.mxu0 0.0
    %5739 = vmatprep.subr.mxu0 0.0
    %5740 = vmatpush1.msra.mxu0 0.0
    %5741 = vmatprep.subr.mxu0 0.0
    %5742 = vmatpush1.msra.mxu0 0.0
    %5743 = vmatprep.subr.mxu0 0.0
    %5744 = vmatpush1.msra.mxu0 0.0
    %5745 = vmatprep.subr.mxu0 0.0
    %5746 = vmatpush1.msra.mxu0 0.0
    %5747 = vmatprep.subr.mxu0 0.0
    %5748 = vmatpush1.msra.mxu0 0.0
    %5749 = vmatprep.subr.mxu0 0.0
    %5750 = vmatpush1.msra.mxu0 0.0
    %5751 = vmatprep.subr.mxu0 0.0
    %5752 = vmatpush1.msra.mxu0 0.0
    %5753 = vmatprep.subr.mxu0 0.0
    %5754 = vmatpush1.msra.mxu0 0.0
    %5755 = vmatprep.subr.mxu0 0.0
    %5756 = vmatpush1.msra.mxu0 0.0
    %5757 = vmatprep.subr.mxu0 0.0
    %5758 = vmatpush1.msra.mxu0 0.0
    %5759 = vmatprep.subr.mxu0 0.0
    %5760 = vmatpush1.msra.mxu0 0.0
    %5761 = vmatprep.subr.mxu0 0.0
    %5762 = vmatpush1.msra.mxu0 0.0
    %5763 = vmatprep.subr.mxu0 0.0
    %5764 = vmatpush1.msra.mxu0 0.0
    %5765 = vmatprep.mubr.f32.mxu0 0.0
    %5766 = vmatmul.mubr.f32.gmra.mrb[0].mxu0 %v5654
    %v5767 = vpop.f32.mrb[0].mxu0
    %v5768 = vadd.f32 0.0, %v5767
    %v5769 = vpop.f32.mrb[0].mxu0
    %5770 = vmatprep.mubr.f32.mxu0 0.0
    %5771 = vmatmul.mubr.f32.gmra.mrb[0].mxu0 %v5657
    %v5772 = vpop.f32.mrb[0].mxu0
    %v5773 = vadd.f32 0.0, %v5772
    %v5774 = vpop.f32.mrb[0].mxu0
    %5775 = vmatprep.mubr.f32.mxu0 0.0
    %5776 = vmatmul.mubr.f32.gmra.mrb[0].mxu0 %v5660
    %v5777 = vpop.f32.mrb[0].mxu0
    %v5778 = vadd.f32 0.0, %v5777
    %v5779 = vpop.f32.mrb[0].mxu0
    %5780 = vmatprep.mubr.f32.mxu0 0.0
    %5781 = vmatmul.mubr.f32.gmra.mrb[0].mxu0 %v5663
    %v5782 = vpop.f32.mrb[0].mxu0
    %v5783 = vadd.f32 0.0, %v5782
    %v5784 = vpop.f32.mrb[0].mxu0
    %5785 = vmatprep.mubr.f32.mxu0 0.0
    %5786 = vmatmul.mubr.f32.gmra.mrb[0].mxu0 %v5666
    %v5787 = vpop.f32.mrb[0].mxu0
    %v5788 = vadd.f32 0.0, %v5787
    %v5789 = vpop.f32.mrb[0].mxu0
    %5790 = vmatprep.mubr.f32.mxu0 0.0
    %5791 = vmatmul.mubr.f32.gmra.mrb[0].mxu0 %v5669
    %v5792 = vpop.f32.mrb[0].mxu0
    %v5793 = vadd.f32 0.0, %v5792
    %v5794 = vpop.f32.mrb[0].mxu0
    %5795 = vmatprep.mubr.f32.mxu0 0.0
    %5796 = vmatmul.mubr.f32.gmra.mrb[0].mxu0 %v5672
    %v5797 = vpop.f32.mrb[0].mxu0
    %v5798 = vadd.f32 0.0, %v5797
    %v5799 = vpop.f32.mrb[0].mxu0
    %5800 = vmatprep.mubr.f32.mxu0 0.0
    %5801 = vmatmul.mubr.f32.gmra.mrb[0].mxu0 %v5675
    %v5802 = vpop.f32.mrb[0].mxu0
    %v5803 = vadd.f32 0.0, %v5802
    %v5804 = vpop.f32.mrb[0].mxu0
    %5805 = vmatprep.mubr.f32.mxu0 0.0
    %5806 = vmatmul.mubr.f32.gmra.mrb[0].mxu0 %v5678
    %v5807 = vpop.f32.mrb[0].mxu0
    %v5808 = vadd.f32 0.0, %v5807
    %v5809 = vpop.f32.mrb[0].mxu0
    %5810 = vmatprep.mubr.f32.mxu0 0.0
    %5811 = vmatmul.mubr.f32.gmra.mrb[0].mxu0 %v5681
    %v5812 = vpop.f32.mrb[0].mxu0
    %v5813 = vadd.f32 0.0, %v5812
    %v5814 = vpop.f32.mrb[0].mxu0
    %5815 = vmatprep.mubr.f32.mxu0 0.0
    %5816 = vmatmul.mubr.f32.gmra.mrb[0].mxu0 %v5684
    %v5817 = vpop.f32.mrb[0].mxu0
    %v5818 = vadd.f32 0.0, %v5817
    %v5819 = vpop.f32.mrb[0].mxu0
    %5820 = vmatprep.mubr.f32.mxu0 0.0
    %5821 = vmatmul.mubr.f32.gmra.mrb[0].mxu0 %v5687
    %v5822 = vpop.f32.mrb[0].mxu0
    %v5823 = vadd.f32 0.0, %v5822
    %v5824 = vpop.f32.mrb[0].mxu0
    %5825 = vmatprep.mubr.f32.mxu0 0.0
    %5826 = vmatmul.mubr.f32.gmra.mrb[0].mxu0 %v5690
    %v5827 = vpop.f32.mrb[0].mxu0
    %v5828 = vadd.f32 0.0, %v5827
    %v5829 = vpop.f32.mrb[0].mxu0
    %5830 = vmatprep.mubr.f32.mxu0 0.0
    %5831 = vmatmul.mubr.f32.gmra.mrb[0].mxu0 %v5693
    %v5832 = vpop.f32.mrb[0].mxu0
    %v5833 = vadd.f32 0.0, %v5832
    %v5834 = vpop.f32.mrb[0].mxu0
    %5835 = vmatprep.mubr.f32.mxu0 0.0
    %5836 = vmatmul.mubr.f32.gmra.mrb[0].mxu0 %v5696
    %v5837 = vpop.f32.mrb[0].mxu0
    %v5838 = vadd.f32 0.0, %v5837
    %v5839 = vpop.f32.mrb[0].mxu0
    %5840 = vmatprep.mubr.f32.mxu0 0.0
    %5841 = vmatmul.mubr.f32.gmra.mrb[0].mxu0 %v5699
    %v5842 = vpop.f32.mrb[0].mxu0
    %v5843 = vadd.f32 0.0, %v5842
    %v5844 = vpop.f32.mrb[0].mxu0
    %5845 = vdwg.mxu0
    %v5846 = vadd.f32 %v5612, %v5768
    %v5847 = vadd.f32 %v5613, %v5773
    %v5848 = vadd.f32 %v5614, %v5778
    %v5849 = vadd.f32 %v5615, %v5783
    %v5850 = vadd.f32 %v5616, %v5788
    %v5851 = vadd.f32 %v5617, %v5793
    %v5852 = vadd.f32 %v5618, %v5798
    %v5853 = vadd.f32 %v5619, %v5803
    %v5854 = vadd.f32 %v5620, %v5808
    %v5855 = vadd.f32 %v5621, %v5813
    %v5856 = vadd.f32 %v5622, %v5818
    %v5857 = vadd.f32 %v5623, %v5823
    %v5858 = vadd.f32 %v5624, %v5828
    %v5859 = vadd.f32 %v5625, %v5833
    %v5860 = vadd.f32 %v5626, %v5838
    %v5861 = vadd.f32 %v5627, %v5843
    %v5862 = vld [vmem:[%s4708 + $0x2] sm:$0xff]
    %v5863 = vld [vmem:[%s4708 + $0x12] sm:$0xff]
    %v5864 = vld [vmem:[%s4708 + $0x22] sm:$0xff]
    %v5865 = vld [vmem:[%s4708 + $0x32] sm:$0xff]
    %v5866 = vld [vmem:[%s4708 + $0x42] sm:$0xff]
    %v5867 = vld [vmem:[%s4708 + $0x52] sm:$0xff]
    %v5868 = vld [vmem:[%s4708 + $0x62] sm:$0xff]
    %v5869 = vld [vmem:[%s4708 + $0x72] sm:$0xff]
    %v5870 = vld [vmem:[%s4708 + $0xa2] sm:$0xff]
    %v5871 = vld [vmem:[%s4708 + $0xb2] sm:$0xff]
    %v5872 = vld [vmem:[%s4708 + $0xc2] sm:$0xff]
    %v5873 = vld [vmem:[%s4708 + $0xd2] sm:$0xff]
    %v5874 = vld [vmem:[%s4708 + $0xe2] sm:$0xff]
    %v5875 = vld [vmem:[%s4708 + $0xf2] sm:$0xff]
    %v5876 = vld [vmem:[%s4708 + $0x102] sm:$0xff]
    %v5877 = vld [vmem:[%s4708 + $0x112] sm:$0xff]
    %s5878 = scalar_lea.vmem %s3, 320
    %v5879 = vld [vmem:[%s5878] sm:$0xff]
    %v5880 = vld [vmem:[%s5878 + $0x8] sm:$0xff]
    %v5881 = vld [vmem:[%s5878 + $0x10] sm:$0xff]
    %v5882 = vld [vmem:[%s5878 + $0x18] sm:$0xff]
    %v5883 = vld [vmem:[%s5878 + $0x20] sm:$0xff]
    %v5884 = vld [vmem:[%s5878 + $0x28] sm:$0xff]
    %v5885 = vld [vmem:[%s5878 + $0x30] sm:$0xff]
    %v5886 = vld [vmem:[%s5878 + $0x38] sm:$0xff]
    %v5888 = vsel %vm3892, %v5862, 0
    %v5891 = vsel %vm3892, %v5863, 0
    %v5894 = vsel %vm3892, %v5864, 0
    %v5897 = vsel %vm3892, %v5865, 0
    %v5900 = vsel %vm3892, %v5866, 0
    %v5903 = vsel %vm3892, %v5867, 0
    %v5906 = vsel %vm3892, %v5868, 0
    %v5909 = vsel %vm3892, %v5869, 0
    %v5912 = vsel %vm3892, %v5870, 0
    %v5915 = vsel %vm3892, %v5871, 0
    %v5918 = vsel %vm3892, %v5872, 0
    %v5921 = vsel %vm3892, %v5873, 0
    %v5924 = vsel %vm3892, %v5874, 0
    %v5927 = vsel %vm3892, %v5875, 0
    %v5930 = vsel %vm3892, %v5876, 0
    %v5933 = vsel %vm3892, %v5877, 0
    %5935 = vmatprep.subr.mxu0 0.0
    %5936 = vmatpush1.msra.mxu0 %v5879
    %5937 = vmatprep.subr.mxu0 0.0
    %5938 = vmatpush1.msra.mxu0 %v5880
    %5939 = vmatprep.subr.mxu0 0.0
    %5940 = vmatpush1.msra.mxu0 %v5881
    %5941 = vmatprep.subr.mxu0 0.0
    %5942 = vmatpush1.msra.mxu0 %v5882
    %5943 = vmatprep.subr.mxu0 0.0
    %5944 = vmatpush1.msra.mxu0 %v5883
    %5945 = vmatprep.subr.mxu0 0.0
    %5946 = vmatpush1.msra.mxu0 %v5884
    %5947 = vmatprep.subr.mxu0 0.0
    %5948 = vmatpush1.msra.mxu0 %v5885
    %5949 = vmatprep.subr.mxu0 0.0
    %5950 = vmatpush1.msra.mxu0 %v5886
    %5951 = vmatprep.subr.mxu0 0.0
    %5952 = vmatpush1.msra.mxu0 0.0
    %5953 = vmatprep.subr.mxu0 0.0
    %5954 = vmatpush1.msra.mxu0 0.0
    %5955 = vmatprep.subr.mxu0 0.0
    %5956 = vmatpush1.msra.mxu0 0.0
    %5957 = vmatprep.subr.mxu0 0.0
    %5958 = vmatpush1.msra.mxu0 0.0
    %5959 = vmatprep.subr.mxu0 0.0
    %5960 = vmatpush1.msra.mxu0 0.0
    %5961 = vmatprep.subr.mxu0 0.0
    %5962 = vmatpush1.msra.mxu0 0.0
    %5963 = vmatprep.subr.mxu0 0.0
    %5964 = vmatpush1.msra.mxu0 0.0
    %5965 = vmatprep.subr.mxu0 0.0
    %5966 = vmatpush1.msra.mxu0 0.0
    %5967 = vmatprep.subr.mxu0 0.0
    %5968 = vmatpush1.msra.mxu0 0.0
    %5969 = vmatprep.subr.mxu0 0.0
    %5970 = vmatpush1.msra.mxu0 0.0
    %5971 = vmatprep.subr.mxu0 0.0
    %5972 = vmatpush1.msra.mxu0 0.0
    %5973 = vmatprep.subr.mxu0 0.0
    %5974 = vmatpush1.msra.mxu0 0.0
    %5975 = vmatprep.subr.mxu0 0.0
    %5976 = vmatpush1.msra.mxu0 0.0
    %5977 = vmatprep.subr.mxu0 0.0
    %5978 = vmatpush1.msra.mxu0 0.0
    %5979 = vmatprep.subr.mxu0 0.0
    %5980 = vmatpush1.msra.mxu0 0.0
    %5981 = vmatprep.subr.mxu0 0.0
    %5982 = vmatpush1.msra.mxu0 0.0
    %5983 = vmatprep.subr.mxu0 0.0
    %5984 = vmatpush1.msra.mxu0 0.0
    %5985 = vmatprep.subr.mxu0 0.0
    %5986 = vmatpush1.msra.mxu0 0.0
    %5987 = vmatprep.subr.mxu0 0.0
    %5988 = vmatpush1.msra.mxu0 0.0
    %5989 = vmatprep.subr.mxu0 0.0
    %5990 = vmatpush1.msra.mxu0 0.0
    %5991 = vmatprep.subr.mxu0 0.0
    %5992 = vmatpush1.msra.mxu0 0.0
    %5993 = vmatprep.subr.mxu0 0.0
    %5994 = vmatpush1.msra.mxu0 0.0
    %5995 = vmatprep.subr.mxu0 0.0
    %5996 = vmatpush1.msra.mxu0 0.0
    %5997 = vmatprep.subr.mxu0 0.0
    %5998 = vmatpush1.msra.mxu0 0.0
    %5999 = vmatprep.mubr.f32.mxu0 0.0
    %6000 = vmatmul.mubr.f32.gmra.mrb[0].mxu0 %v5888
    %v6001 = vpop.f32.mrb[0].mxu0
    %v6002 = vadd.f32 0.0, %v6001
    %v6003 = vpop.f32.mrb[0].mxu0
    %6004 = vmatprep.mubr.f32.mxu0 0.0
    %6005 = vmatmul.mubr.f32.gmra.mrb[0].mxu0 %v5891
    %v6006 = vpop.f32.mrb[0].mxu0
    %v6007 = vadd.f32 0.0, %v6006
    %v6008 = vpop.f32.mrb[0].mxu0
    %6009 = vmatprep.mubr.f32.mxu0 0.0
    %6010 = vmatmul.mubr.f32.gmra.mrb[0].mxu0 %v5894
    %v6011 = vpop.f32.mrb[0].mxu0
    %v6012 = vadd.f32 0.0, %v6011
    %v6013 = vpop.f32.mrb[0].mxu0
    %6014 = vmatprep.mubr.f32.mxu0 0.0
    %6015 = vmatmul.mubr.f32.gmra.mrb[0].mxu0 %v5897
    %v6016 = vpop.f32.mrb[0].mxu0
    %v6017 = vadd.f32 0.0, %v6016
    %v6018 = vpop.f32.mrb[0].mxu0
    %6019 = vmatprep.mubr.f32.mxu0 0.0
    %6020 = vmatmul.mubr.f32.gmra.mrb[0].mxu0 %v5900
    %v6021 = vpop.f32.mrb[0].mxu0
    %v6022 = vadd.f32 0.0, %v6021
    %v6023 = vpop.f32.mrb[0].mxu0
    %6024 = vmatprep.mubr.f32.mxu0 0.0
    %6025 = vmatmul.mubr.f32.gmra.mrb[0].mxu0 %v5903
    %v6026 = vpop.f32.mrb[0].mxu0
    %v6027 = vadd.f32 0.0, %v6026
    %v6028 = vpop.f32.mrb[0].mxu0
    %6029 = vmatprep.mubr.f32.mxu0 0.0
    %6030 = vmatmul.mubr.f32.gmra.mrb[0].mxu0 %v5906
    %v6031 = vpop.f32.mrb[0].mxu0
    %v6032 = vadd.f32 0.0, %v6031
    %v6033 = vpop.f32.mrb[0].mxu0
    %6034 = vmatprep.mubr.f32.mxu0 0.0
    %6035 = vmatmul.mubr.f32.gmra.mrb[0].mxu0 %v5909
    %v6036 = vpop.f32.mrb[0].mxu0
    %v6037 = vadd.f32 0.0, %v6036
    %v6038 = vpop.f32.mrb[0].mxu0
    %6039 = vmatprep.mubr.f32.mxu0 0.0
    %6040 = vmatmul.mubr.f32.gmra.mrb[0].mxu0 %v5912
    %v6041 = vpop.f32.mrb[0].mxu0
    %v6042 = vadd.f32 0.0, %v6041
    %v6043 = vpop.f32.mrb[0].mxu0
    %6044 = vmatprep.mubr.f32.mxu0 0.0
    %6045 = vmatmul.mubr.f32.gmra.mrb[0].mxu0 %v5915
    %v6046 = vpop.f32.mrb[0].mxu0
    %v6047 = vadd.f32 0.0, %v6046
    %v6048 = vpop.f32.mrb[0].mxu0
    %6049 = vmatprep.mubr.f32.mxu0 0.0
    %6050 = vmatmul.mubr.f32.gmra.mrb[0].mxu0 %v5918
    %v6051 = vpop.f32.mrb[0].mxu0
    %v6052 = vadd.f32 0.0, %v6051
    %v6053 = vpop.f32.mrb[0].mxu0
    %6054 = vmatprep.mubr.f32.mxu0 0.0
    %6055 = vmatmul.mubr.f32.gmra.mrb[0].mxu0 %v5921
    %v6056 = vpop.f32.mrb[0].mxu0
    %v6057 = vadd.f32 0.0, %v6056
    %v6058 = vpop.f32.mrb[0].mxu0
    %6059 = vmatprep.mubr.f32.mxu0 0.0
    %6060 = vmatmul.mubr.f32.gmra.mrb[0].mxu0 %v5924
    %v6061 = vpop.f32.mrb[0].mxu0
    %v6062 = vadd.f32 0.0, %v6061
    %v6063 = vpop.f32.mrb[0].mxu0
    %6064 = vmatprep.mubr.f32.mxu0 0.0
    %6065 = vmatmul.mubr.f32.gmra.mrb[0].mxu0 %v5927
    %v6066 = vpop.f32.mrb[0].mxu0
    %v6067 = vadd.f32 0.0, %v6066
    %v6068 = vpop.f32.mrb[0].mxu0
    %6069 = vmatprep.mubr.f32.mxu0 0.0
    %6070 = vmatmul.mubr.f32.gmra.mrb[0].mxu0 %v5930
    %v6071 = vpop.f32.mrb[0].mxu0
    %v6072 = vadd.f32 0.0, %v6071
    %v6073 = vpop.f32.mrb[0].mxu0
    %6074 = vmatprep.mubr.f32.mxu0 0.0
    %6075 = vmatmul.mubr.f32.gmra.mrb[0].mxu0 %v5933
    %v6076 = vpop.f32.mrb[0].mxu0
    %v6077 = vadd.f32 0.0, %v6076
    %v6078 = vpop.f32.mrb[0].mxu0
    %6079 = vdwg.mxu0
    %v6080 = vadd.f32 %v5846, %v6002
    %v6081 = vadd.f32 %v5847, %v6007
    %v6082 = vadd.f32 %v5848, %v6012
    %v6083 = vadd.f32 %v5849, %v6017
    %v6084 = vadd.f32 %v5850, %v6022
    %v6085 = vadd.f32 %v5851, %v6027
    %v6086 = vadd.f32 %v5852, %v6032
    %v6087 = vadd.f32 %v5853, %v6037
    %v6088 = vadd.f32 %v5854, %v6042
    %v6089 = vadd.f32 %v5855, %v6047
    %v6090 = vadd.f32 %v5856, %v6052
    %v6091 = vadd.f32 %v5857, %v6057
    %v6092 = vadd.f32 %v5858, %v6062
    %v6093 = vadd.f32 %v5859, %v6067
    %v6094 = vadd.f32 %v5860, %v6072
    %v6095 = vadd.f32 %v5861, %v6077
    %s6096 = scalar_lea.vmem [#allocation2], 32
    %v6097 = vld [vmem:[%s6096] sm:$0xff]
    %v6098 = vld [vmem:[%s6096 + $0x10] sm:$0xff]
    %v6099 = vld [vmem:[%s6096 + $0x20] sm:$0xff]
    %v6100 = vld [vmem:[%s6096 + $0x30] sm:$0xff]
    %v6101 = vld [vmem:[%s6096 + $0x40] sm:$0xff]
    %v6102 = vld [vmem:[%s6096 + $0x50] sm:$0xff]
    %v6103 = vld [vmem:[%s6096 + $0x60] sm:$0xff]
    %v6104 = vld [vmem:[%s6096 + $0x70] sm:$0xff]
    %v6105 = vld [vmem:[%s6096 + $0xa0] sm:$0xff]
    %v6106 = vld [vmem:[%s6096 + $0xb0] sm:$0xff]
    %v6107 = vld [vmem:[%s6096 + $0xc0] sm:$0xff]
    %v6108 = vld [vmem:[%s6096 + $0xd0] sm:$0xff]
    %v6109 = vld [vmem:[%s6096 + $0xe0] sm:$0xff]
    %v6110 = vld [vmem:[%s6096 + $0xf0] sm:$0xff]
    %v6111 = vld [vmem:[%s6096 + $0x100] sm:$0xff]
    %v6112 = vld [vmem:[%s6096 + $0x110] sm:$0xff]
    %s6113 = scalar_lea.vmem %s3, 384
    %v6114 = vld [vmem:[%s6113] sm:$0xff]
    %v6115 = vld [vmem:[%s6113 + $0x8] sm:$0xff]
    %v6116 = vld [vmem:[%s6113 + $0x10] sm:$0xff]
    %v6117 = vld [vmem:[%s6113 + $0x18] sm:$0xff]
    %v6118 = vld [vmem:[%s6113 + $0x20] sm:$0xff]
    %v6119 = vld [vmem:[%s6113 + $0x28] sm:$0xff]
    %v6120 = vld [vmem:[%s6113 + $0x30] sm:$0xff]
    %v6121 = vld [vmem:[%s6113 + $0x38] sm:$0xff]
    %v6123 = vsel %vm3892, %v6097, 0
    %v6126 = vsel %vm3892, %v6098, 0
    %v6129 = vsel %vm3892, %v6099, 0
    %v6132 = vsel %vm3892, %v6100, 0
    %v6135 = vsel %vm3892, %v6101, 0
    %v6138 = vsel %vm3892, %v6102, 0
    %v6141 = vsel %vm3892, %v6103, 0
    %v6144 = vsel %vm3892, %v6104, 0
    %v6147 = vsel %vm3892, %v6105, 0
    %v6150 = vsel %vm3892, %v6106, 0
    %v6153 = vsel %vm3892, %v6107, 0
    %v6156 = vsel %vm3892, %v6108, 0
    %v6159 = vsel %vm3892, %v6109, 0
    %v6162 = vsel %vm3892, %v6110, 0
    %v6165 = vsel %vm3892, %v6111, 0
    %v6168 = vsel %vm3892, %v6112, 0
    %6170 = vmatprep.subr.mxu0 0.0
    %6171 = vmatpush1.msra.mxu0 %v6114
    %6172 = vmatprep.subr.mxu0 0.0
    %6173 = vmatpush1.msra.mxu0 %v6115
    %6174 = vmatprep.subr.mxu0 0.0
    %6175 = vmatpush1.msra.mxu0 %v6116
    %6176 = vmatprep.subr.mxu0 0.0
    %6177 = vmatpush1.msra.mxu0 %v6117
    %6178 = vmatprep.subr.mxu0 0.0
    %6179 = vmatpush1.msra.mxu0 %v6118
    %6180 = vmatprep.subr.mxu0 0.0
    %6181 = vmatpush1.msra.mxu0 %v6119
    %6182 = vmatprep.subr.mxu0 0.0
    %6183 = vmatpush1.msra.mxu0 %v6120
    %6184 = vmatprep.subr.mxu0 0.0
    %6185 = vmatpush1.msra.mxu0 %v6121
    %6186 = vmatprep.subr.mxu0 0.0
    %6187 = vmatpush1.msra.mxu0 0.0
    %6188 = vmatprep.subr.mxu0 0.0
    %6189 = vmatpush1.msra.mxu0 0.0
    %6190 = vmatprep.subr.mxu0 0.0
    %6191 = vmatpush1.msra.mxu0 0.0
    %6192 = vmatprep.subr.mxu0 0.0
    %6193 = vmatpush1.msra.mxu0 0.0
    %6194 = vmatprep.subr.mxu0 0.0
    %6195 = vmatpush1.msra.mxu0 0.0
    %6196 = vmatprep.subr.mxu0 0.0
    %6197 = vmatpush1.msra.mxu0 0.0
    %6198 = vmatprep.subr.mxu0 0.0
    %6199 = vmatpush1.msra.mxu0 0.0
    %6200 = vmatprep.subr.mxu0 0.0
    %6201 = vmatpush1.msra.mxu0 0.0
    %6202 = vmatprep.subr.mxu0 0.0
    %6203 = vmatpush1.msra.mxu0 0.0
    %6204 = vmatprep.subr.mxu0 0.0
    %6205 = vmatpush1.msra.mxu0 0.0
    %6206 = vmatprep.subr.mxu0 0.0
    %6207 = vmatpush1.msra.mxu0 0.0
    %6208 = vmatprep.subr.mxu0 0.0
    %6209 = vmatpush1.msra.mxu0 0.0
    %6210 = vmatprep.subr.mxu0 0.0
    %6211 = vmatpush1.msra.mxu0 0.0
    %6212 = vmatprep.subr.mxu0 0.0
    %6213 = vmatpush1.msra.mxu0 0.0
    %6214 = vmatprep.subr.mxu0 0.0
    %6215 = vmatpush1.msra.mxu0 0.0
    %6216 = vmatprep.subr.mxu0 0.0
    %6217 = vmatpush1.msra.mxu0 0.0
    %6218 = vmatprep.subr.mxu0 0.0
    %6219 = vmatpush1.msra.mxu0 0.0
    %6220 = vmatprep.subr.mxu0 0.0
    %6221 = vmatpush1.msra.mxu0 0.0
    %6222 = vmatprep.subr.mxu0 0.0
    %6223 = vmatpush1.msra.mxu0 0.0
    %6224 = vmatprep.subr.mxu0 0.0
    %6225 = vmatpush1.msra.mxu0 0.0
    %6226 = vmatprep.subr.mxu0 0.0
    %6227 = vmatpush1.msra.mxu0 0.0
    %6228 = vmatprep.subr.mxu0 0.0
    %6229 = vmatpush1.msra.mxu0 0.0
    %6230 = vmatprep.subr.mxu0 0.0
    %6231 = vmatpush1.msra.mxu0 0.0
    %6232 = vmatprep.subr.mxu0 0.0
    %6233 = vmatpush1.msra.mxu0 0.0
    %6234 = vmatprep.mubr.f32.mxu0 0.0
    %6235 = vmatmul.mubr.f32.gmra.mrb[0].mxu0 %v6123
    %v6236 = vpop.f32.mrb[0].mxu0
    %v6237 = vadd.f32 0.0, %v6236
    %v6238 = vpop.f32.mrb[0].mxu0
    %6239 = vmatprep.mubr.f32.mxu0 0.0
    %6240 = vmatmul.mubr.f32.gmra.mrb[0].mxu0 %v6126
    %v6241 = vpop.f32.mrb[0].mxu0
    %v6242 = vadd.f32 0.0, %v6241
    %v6243 = vpop.f32.mrb[0].mxu0
    %6244 = vmatprep.mubr.f32.mxu0 0.0
    %6245 = vmatmul.mubr.f32.gmra.mrb[0].mxu0 %v6129
    %v6246 = vpop.f32.mrb[0].mxu0
    %v6247 = vadd.f32 0.0, %v6246
    %v6248 = vpop.f32.mrb[0].mxu0
    %6249 = vmatprep.mubr.f32.mxu0 0.0
    %6250 = vmatmul.mubr.f32.gmra.mrb[0].mxu0 %v6132
    %v6251 = vpop.f32.mrb[0].mxu0
    %v6252 = vadd.f32 0.0, %v6251
    %v6253 = vpop.f32.mrb[0].mxu0
    %6254 = vmatprep.mubr.f32.mxu0 0.0
    %6255 = vmatmul.mubr.f32.gmra.mrb[0].mxu0 %v6135
    %v6256 = vpop.f32.mrb[0].mxu0
    %v6257 = vadd.f32 0.0, %v6256
    %v6258 = vpop.f32.mrb[0].mxu0
    %6259 = vmatprep.mubr.f32.mxu0 0.0
    %6260 = vmatmul.mubr.f32.gmra.mrb[0].mxu0 %v6138
    %v6261 = vpop.f32.mrb[0].mxu0
    %v6262 = vadd.f32 0.0, %v6261
    %v6263 = vpop.f32.mrb[0].mxu0
    %6264 = vmatprep.mubr.f32.mxu0 0.0
    %6265 = vmatmul.mubr.f32.gmra.mrb[0].mxu0 %v6141
    %v6266 = vpop.f32.mrb[0].mxu0
    %v6267 = vadd.f32 0.0, %v6266
    %v6268 = vpop.f32.mrb[0].mxu0
    %6269 = vmatprep.mubr.f32.mxu0 0.0
    %6270 = vmatmul.mubr.f32.gmra.mrb[0].mxu0 %v6144
    %v6271 = vpop.f32.mrb[0].mxu0
    %v6272 = vadd.f32 0.0, %v6271
    %v6273 = vpop.f32.mrb[0].mxu0
    %6274 = vmatprep.mubr.f32.mxu0 0.0
    %6275 = vmatmul.mubr.f32.gmra.mrb[0].mxu0 %v6147
    %v6276 = vpop.f32.mrb[0].mxu0
    %v6277 = vadd.f32 0.0, %v6276
    %v6278 = vpop.f32.mrb[0].mxu0
    %6279 = vmatprep.mubr.f32.mxu0 0.0
    %6280 = vmatmul.mubr.f32.gmra.mrb[0].mxu0 %v6150
    %v6281 = vpop.f32.mrb[0].mxu0
    %v6282 = vadd.f32 0.0, %v6281
    %v6283 = vpop.f32.mrb[0].mxu0
    %6284 = vmatprep.mubr.f32.mxu0 0.0
    %6285 = vmatmul.mubr.f32.gmra.mrb[0].mxu0 %v6153
    %v6286 = vpop.f32.mrb[0].mxu0
    %v6287 = vadd.f32 0.0, %v6286
    %v6288 = vpop.f32.mrb[0].mxu0
    %6289 = vmatprep.mubr.f32.mxu0 0.0
    %6290 = vmatmul.mubr.f32.gmra.mrb[0].mxu0 %v6156
    %v6291 = vpop.f32.mrb[0].mxu0
    %v6292 = vadd.f32 0.0, %v6291
    %v6293 = vpop.f32.mrb[0].mxu0
    %6294 = vmatprep.mubr.f32.mxu0 0.0
    %6295 = vmatmul.mubr.f32.gmra.mrb[0].mxu0 %v6159
    %v6296 = vpop.f32.mrb[0].mxu0
    %v6297 = vadd.f32 0.0, %v6296
    %v6298 = vpop.f32.mrb[0].mxu0
    %6299 = vmatprep.mubr.f32.mxu0 0.0
    %6300 = vmatmul.mubr.f32.gmra.mrb[0].mxu0 %v6162
    %v6301 = vpop.f32.mrb[0].mxu0
    %v6302 = vadd.f32 0.0, %v6301
    %v6303 = vpop.f32.mrb[0].mxu0
    %6304 = vmatprep.mubr.f32.mxu0 0.0
    %6305 = vmatmul.mubr.f32.gmra.mrb[0].mxu0 %v6165
    %v6306 = vpop.f32.mrb[0].mxu0
    %v6307 = vadd.f32 0.0, %v6306
    %v6308 = vpop.f32.mrb[0].mxu0
    %6309 = vmatprep.mubr.f32.mxu0 0.0
    %6310 = vmatmul.mubr.f32.gmra.mrb[0].mxu0 %v6168
    %v6311 = vpop.f32.mrb[0].mxu0
    %v6312 = vadd.f32 0.0, %v6311
    %v6313 = vpop.f32.mrb[0].mxu0
    %6314 = vdwg.mxu0
    %v6315 = vadd.f32 %v6080, %v6237
    %v6316 = vadd.f32 %v6081, %v6242
    %v6317 = vadd.f32 %v6082, %v6247
    %v6318 = vadd.f32 %v6083, %v6252
    %v6319 = vadd.f32 %v6084, %v6257
    %v6320 = vadd.f32 %v6085, %v6262
    %v6321 = vadd.f32 %v6086, %v6267
    %v6322 = vadd.f32 %v6087, %v6272
    %v6323 = vadd.f32 %v6088, %v6277
    %v6324 = vadd.f32 %v6089, %v6282
    %v6325 = vadd.f32 %v6090, %v6287
    %v6326 = vadd.f32 %v6091, %v6292
    %v6327 = vadd.f32 %v6092, %v6297
    %v6328 = vadd.f32 %v6093, %v6302
    %v6329 = vadd.f32 %v6094, %v6307
    %v6330 = vadd.f32 %v6095, %v6312
    %v6331 = vld [vmem:[%s6096 + $0x1] sm:$0xff]
    %v6332 = vld [vmem:[%s6096 + $0x11] sm:$0xff]
    %v6333 = vld [vmem:[%s6096 + $0x21] sm:$0xff]
    %v6334 = vld [vmem:[%s6096 + $0x31] sm:$0xff]
    %v6335 = vld [vmem:[%s6096 + $0x41] sm:$0xff]
    %v6336 = vld [vmem:[%s6096 + $0x51] sm:$0xff]
    %v6337 = vld [vmem:[%s6096 + $0x61] sm:$0xff]
    %v6338 = vld [vmem:[%s6096 + $0x71] sm:$0xff]
    %v6339 = vld [vmem:[%s6096 + $0xa1] sm:$0xff]
    %v6340 = vld [vmem:[%s6096 + $0xb1] sm:$0xff]
    %v6341 = vld [vmem:[%s6096 + $0xc1] sm:$0xff]
    %v6342 = vld [vmem:[%s6096 + $0xd1] sm:$0xff]
    %v6343 = vld [vmem:[%s6096 + $0xe1] sm:$0xff]
    %v6344 = vld [vmem:[%s6096 + $0xf1] sm:$0xff]
    %v6345 = vld [vmem:[%s6096 + $0x101] sm:$0xff]
    %v6346 = vld [vmem:[%s6096 + $0x111] sm:$0xff]
    %s6347 = scalar_lea.vmem %s3, 448
    %v6348 = vld [vmem:[%s6347] sm:$0xff]
    %v6349 = vld [vmem:[%s6347 + $0x8] sm:$0xff]
    %v6350 = vld [vmem:[%s6347 + $0x10] sm:$0xff]
    %v6351 = vld [vmem:[%s6347 + $0x18] sm:$0xff]
    %v6352 = vld [vmem:[%s6347 + $0x20] sm:$0xff]
    %v6353 = vld [vmem:[%s6347 + $0x28] sm:$0xff]
    %v6354 = vld [vmem:[%s6347 + $0x30] sm:$0xff]
    %v6355 = vld [vmem:[%s6347 + $0x38] sm:$0xff]
    %v6357 = vsel %vm3892, %v6331, 0
    %v6360 = vsel %vm3892, %v6332, 0
    %v6363 = vsel %vm3892, %v6333, 0
    %v6366 = vsel %vm3892, %v6334, 0
    %v6369 = vsel %vm3892, %v6335, 0
    %v6372 = vsel %vm3892, %v6336, 0
    %v6375 = vsel %vm3892, %v6337, 0
    %v6378 = vsel %vm3892, %v6338, 0
    %v6381 = vsel %vm3892, %v6339, 0
    %v6384 = vsel %vm3892, %v6340, 0
    %v6387 = vsel %vm3892, %v6341, 0
    %v6390 = vsel %vm3892, %v6342, 0
    %v6393 = vsel %vm3892, %v6343, 0
    %v6396 = vsel %vm3892, %v6344, 0
    %v6399 = vsel %vm3892, %v6345, 0
    %v6402 = vsel %vm3892, %v6346, 0
    %6404 = vmatprep.subr.mxu0 0.0
    %6405 = vmatpush1.msra.mxu0 %v6348
    %6406 = vmatprep.subr.mxu0 0.0
    %6407 = vmatpush1.msra.mxu0 %v6349
    %6408 = vmatprep.subr.mxu0 0.0
    %6409 = vmatpush1.msra.mxu0 %v6350
    %6410 = vmatprep.subr.mxu0 0.0
    %6411 = vmatpush1.msra.mxu0 %v6351
    %6412 = vmatprep.subr.mxu0 0.0
    %6413 = vmatpush1.msra.mxu0 %v6352
    %6414 = vmatprep.subr.mxu0 0.0
    %6415 = vmatpush1.msra.mxu0 %v6353
    %6416 = vmatprep.subr.mxu0 0.0
    %6417 = vmatpush1.msra.mxu0 %v6354
    %6418 = vmatprep.subr.mxu0 0.0
    %6419 = vmatpush1.msra.mxu0 %v6355
    %6420 = vmatprep.subr.mxu0 0.0
    %6421 = vmatpush1.msra.mxu0 0.0
    %6422 = vmatprep.subr.mxu0 0.0
    %6423 = vmatpush1.msra.mxu0 0.0
    %6424 = vmatprep.subr.mxu0 0.0
    %6425 = vmatpush1.msra.mxu0 0.0
    %6426 = vmatprep.subr.mxu0 0.0
    %6427 = vmatpush1.msra.mxu0 0.0
    %6428 = vmatprep.subr.mxu0 0.0
    %6429 = vmatpush1.msra.mxu0 0.0
    %6430 = vmatprep.subr.mxu0 0.0
    %6431 = vmatpush1.msra.mxu0 0.0
    %6432 = vmatprep.subr.mxu0 0.0
    %6433 = vmatpush1.msra.mxu0 0.0
    %6434 = vmatprep.subr.mxu0 0.0
    %6435 = vmatpush1.msra.mxu0 0.0
    %6436 = vmatprep.subr.mxu0 0.0
    %6437 = vmatpush1.msra.mxu0 0.0
    %6438 = vmatprep.subr.mxu0 0.0
    %6439 = vmatpush1.msra.mxu0 0.0
    %6440 = vmatprep.subr.mxu0 0.0
    %6441 = vmatpush1.msra.mxu0 0.0
    %6442 = vmatprep.subr.mxu0 0.0
    %6443 = vmatpush1.msra.mxu0 0.0
    %6444 = vmatprep.subr.mxu0 0.0
    %6445 = vmatpush1.msra.mxu0 0.0
    %6446 = vmatprep.subr.mxu0 0.0
    %6447 = vmatpush1.msra.mxu0 0.0
    %6448 = vmatprep.subr.mxu0 0.0
    %6449 = vmatpush1.msra.mxu0 0.0
    %6450 = vmatprep.subr.mxu0 0.0
    %6451 = vmatpush1.msra.mxu0 0.0
    %6452 = vmatprep.subr.mxu0 0.0
    %6453 = vmatpush1.msra.mxu0 0.0
    %6454 = vmatprep.subr.mxu0 0.0
    %6455 = vmatpush1.msra.mxu0 0.0
    %6456 = vmatprep.subr.mxu0 0.0
    %6457 = vmatpush1.msra.mxu0 0.0
    %6458 = vmatprep.subr.mxu0 0.0
    %6459 = vmatpush1.msra.mxu0 0.0
    %6460 = vmatprep.subr.mxu0 0.0
    %6461 = vmatpush1.msra.mxu0 0.0
    %6462 = vmatprep.subr.mxu0 0.0
    %6463 = vmatpush1.msra.mxu0 0.0
    %6464 = vmatprep.subr.mxu0 0.0
    %6465 = vmatpush1.msra.mxu0 0.0
    %6466 = vmatprep.subr.mxu0 0.0
    %6467 = vmatpush1.msra.mxu0 0.0
    %6468 = vmatprep.mubr.f32.mxu0 0.0
    %6469 = vmatmul.mubr.f32.gmra.mrb[0].mxu0 %v6357
    %v6470 = vpop.f32.mrb[0].mxu0
    %v6471 = vadd.f32 0.0, %v6470
    %v6472 = vpop.f32.mrb[0].mxu0
    %6473 = vmatprep.mubr.f32.mxu0 0.0
    %6474 = vmatmul.mubr.f32.gmra.mrb[0].mxu0 %v6360
    %v6475 = vpop.f32.mrb[0].mxu0
    %v6476 = vadd.f32 0.0, %v6475
    %v6477 = vpop.f32.mrb[0].mxu0
    %6478 = vmatprep.mubr.f32.mxu0 0.0
    %6479 = vmatmul.mubr.f32.gmra.mrb[0].mxu0 %v6363
    %v6480 = vpop.f32.mrb[0].mxu0
    %v6481 = vadd.f32 0.0, %v6480
    %v6482 = vpop.f32.mrb[0].mxu0
    %6483 = vmatprep.mubr.f32.mxu0 0.0
    %6484 = vmatmul.mubr.f32.gmra.mrb[0].mxu0 %v6366
    %v6485 = vpop.f32.mrb[0].mxu0
    %v6486 = vadd.f32 0.0, %v6485
    %v6487 = vpop.f32.mrb[0].mxu0
    %6488 = vmatprep.mubr.f32.mxu0 0.0
    %6489 = vmatmul.mubr.f32.gmra.mrb[0].mxu0 %v6369
    %v6490 = vpop.f32.mrb[0].mxu0
    %v6491 = vadd.f32 0.0, %v6490
    %v6492 = vpop.f32.mrb[0].mxu0
    %6493 = vmatprep.mubr.f32.mxu0 0.0
    %6494 = vmatmul.mubr.f32.gmra.mrb[0].mxu0 %v6372
    %v6495 = vpop.f32.mrb[0].mxu0
    %v6496 = vadd.f32 0.0, %v6495
    %v6497 = vpop.f32.mrb[0].mxu0
    %6498 = vmatprep.mubr.f32.mxu0 0.0
    %6499 = vmatmul.mubr.f32.gmra.mrb[0].mxu0 %v6375
    %v6500 = vpop.f32.mrb[0].mxu0
    %v6501 = vadd.f32 0.0, %v6500
    %v6502 = vpop.f32.mrb[0].mxu0
    %6503 = vmatprep.mubr.f32.mxu0 0.0
    %6504 = vmatmul.mubr.f32.gmra.mrb[0].mxu0 %v6378
    %v6505 = vpop.f32.mrb[0].mxu0
    %v6506 = vadd.f32 0.0, %v6505
    %v6507 = vpop.f32.mrb[0].mxu0
    %6508 = vmatprep.mubr.f32.mxu0 0.0
    %6509 = vmatmul.mubr.f32.gmra.mrb[0].mxu0 %v6381
    %v6510 = vpop.f32.mrb[0].mxu0
    %v6511 = vadd.f32 0.0, %v6510
    %v6512 = vpop.f32.mrb[0].mxu0
    %6513 = vmatprep.mubr.f32.mxu0 0.0
    %6514 = vmatmul.mubr.f32.gmra.mrb[0].mxu0 %v6384
    %v6515 = vpop.f32.mrb[0].mxu0
    %v6516 = vadd.f32 0.0, %v6515
    %v6517 = vpop.f32.mrb[0].mxu0
    %6518 = vmatprep.mubr.f32.mxu0 0.0
    %6519 = vmatmul.mubr.f32.gmra.mrb[0].mxu0 %v6387
    %v6520 = vpop.f32.mrb[0].mxu0
    %v6521 = vadd.f32 0.0, %v6520
    %v6522 = vpop.f32.mrb[0].mxu0
    %6523 = vmatprep.mubr.f32.mxu0 0.0
    %6524 = vmatmul.mubr.f32.gmra.mrb[0].mxu0 %v6390
    %v6525 = vpop.f32.mrb[0].mxu0
    %v6526 = vadd.f32 0.0, %v6525
    %v6527 = vpop.f32.mrb[0].mxu0
    %6528 = vmatprep.mubr.f32.mxu0 0.0
    %6529 = vmatmul.mubr.f32.gmra.mrb[0].mxu0 %v6393
    %v6530 = vpop.f32.mrb[0].mxu0
    %v6531 = vadd.f32 0.0, %v6530
    %v6532 = vpop.f32.mrb[0].mxu0
    %6533 = vmatprep.mubr.f32.mxu0 0.0
    %6534 = vmatmul.mubr.f32.gmra.mrb[0].mxu0 %v6396
    %v6535 = vpop.f32.mrb[0].mxu0
    %v6536 = vadd.f32 0.0, %v6535
    %v6537 = vpop.f32.mrb[0].mxu0
    %6538 = vmatprep.mubr.f32.mxu0 0.0
    %6539 = vmatmul.mubr.f32.gmra.mrb[0].mxu0 %v6399
    %v6540 = vpop.f32.mrb[0].mxu0
    %v6541 = vadd.f32 0.0, %v6540
    %v6542 = vpop.f32.mrb[0].mxu0
    %6543 = vmatprep.mubr.f32.mxu0 0.0
    %6544 = vmatmul.mubr.f32.gmra.mrb[0].mxu0 %v6402
    %v6545 = vpop.f32.mrb[0].mxu0
    %v6546 = vadd.f32 0.0, %v6545
    %v6547 = vpop.f32.mrb[0].mxu0
    %6548 = vdwg.mxu0
    %v6549 = vadd.f32 %v6315, %v6471
    %v6550 = vadd.f32 %v6316, %v6476
    %v6551 = vadd.f32 %v6317, %v6481
    %v6552 = vadd.f32 %v6318, %v6486
    %v6553 = vadd.f32 %v6319, %v6491
    %v6554 = vadd.f32 %v6320, %v6496
    %v6555 = vadd.f32 %v6321, %v6501
    %v6556 = vadd.f32 %v6322, %v6506
    %v6557 = vadd.f32 %v6323, %v6511
    %v6558 = vadd.f32 %v6324, %v6516
    %v6559 = vadd.f32 %v6325, %v6521
    %v6560 = vadd.f32 %v6326, %v6526
    %v6561 = vadd.f32 %v6327, %v6531
    %v6562 = vadd.f32 %v6328, %v6536
    %v6563 = vadd.f32 %v6329, %v6541
    %v6564 = vadd.f32 %v6330, %v6546
    %v6565 = vld [vmem:[%s6096 + $0x2] sm:$0xff]
    %v6566 = vld [vmem:[%s6096 + $0x12] sm:$0xff]
    %v6567 = vld [vmem:[%s6096 + $0x22] sm:$0xff]
    %v6568 = vld [vmem:[%s6096 + $0x32] sm:$0xff]
    %v6569 = vld [vmem:[%s6096 + $0x42] sm:$0xff]
    %v6570 = vld [vmem:[%s6096 + $0x52] sm:$0xff]
    %v6571 = vld [vmem:[%s6096 + $0x62] sm:$0xff]
    %v6572 = vld [vmem:[%s6096 + $0x72] sm:$0xff]
    %v6573 = vld [vmem:[%s6096 + $0xa2] sm:$0xff]
    %v6574 = vld [vmem:[%s6096 + $0xb2] sm:$0xff]
    %v6575 = vld [vmem:[%s6096 + $0xc2] sm:$0xff]
    %v6576 = vld [vmem:[%s6096 + $0xd2] sm:$0xff]
    %v6577 = vld [vmem:[%s6096 + $0xe2] sm:$0xff]
    %v6578 = vld [vmem:[%s6096 + $0xf2] sm:$0xff]
    %v6579 = vld [vmem:[%s6096 + $0x102] sm:$0xff]
    %v6580 = vld [vmem:[%s6096 + $0x112] sm:$0xff]
    %s6581 = scalar_lea.vmem %s3, 512
    %v6582 = vld [vmem:[%s6581] sm:$0xff]
    %v6583 = vld [vmem:[%s6581 + $0x8] sm:$0xff]
    %v6584 = vld [vmem:[%s6581 + $0x10] sm:$0xff]
    %v6585 = vld [vmem:[%s6581 + $0x18] sm:$0xff]
    %v6586 = vld [vmem:[%s6581 + $0x20] sm:$0xff]
    %v6587 = vld [vmem:[%s6581 + $0x28] sm:$0xff]
    %v6588 = vld [vmem:[%s6581 + $0x30] sm:$0xff]
    %v6589 = vld [vmem:[%s6581 + $0x38] sm:$0xff]
    %v6591 = vsel %vm3892, %v6565, 0
    %v6594 = vsel %vm3892, %v6566, 0
    %v6597 = vsel %vm3892, %v6567, 0
    %v6600 = vsel %vm3892, %v6568, 0
    %v6603 = vsel %vm3892, %v6569, 0
    %v6606 = vsel %vm3892, %v6570, 0
    %v6609 = vsel %vm3892, %v6571, 0
    %v6612 = vsel %vm3892, %v6572, 0
    %v6615 = vsel %vm3892, %v6573, 0
    %v6618 = vsel %vm3892, %v6574, 0
    %v6621 = vsel %vm3892, %v6575, 0
    %v6624 = vsel %vm3892, %v6576, 0
    %v6627 = vsel %vm3892, %v6577, 0
    %v6630 = vsel %vm3892, %v6578, 0
    %v6633 = vsel %vm3892, %v6579, 0
    %v6636 = vsel %vm3892, %v6580, 0
    %6638 = vmatprep.subr.mxu0 0.0
    %6639 = vmatpush1.msra.mxu0 %v6582
    %6640 = vmatprep.subr.mxu0 0.0
    %6641 = vmatpush1.msra.mxu0 %v6583
    %6642 = vmatprep.subr.mxu0 0.0
    %6643 = vmatpush1.msra.mxu0 %v6584
    %6644 = vmatprep.subr.mxu0 0.0
    %6645 = vmatpush1.msra.mxu0 %v6585
    %6646 = vmatprep.subr.mxu0 0.0
    %6647 = vmatpush1.msra.mxu0 %v6586
    %6648 = vmatprep.subr.mxu0 0.0
    %6649 = vmatpush1.msra.mxu0 %v6587
    %6650 = vmatprep.subr.mxu0 0.0
    %6651 = vmatpush1.msra.mxu0 %v6588
    %6652 = vmatprep.subr.mxu0 0.0
    %6653 = vmatpush1.msra.mxu0 %v6589
    %6654 = vmatprep.subr.mxu0 0.0
    %6655 = vmatpush1.msra.mxu0 0.0
    %6656 = vmatprep.subr.mxu0 0.0
    %6657 = vmatpush1.msra.mxu0 0.0
    %6658 = vmatprep.subr.mxu0 0.0
    %6659 = vmatpush1.msra.mxu0 0.0
    %6660 = vmatprep.subr.mxu0 0.0
    %6661 = vmatpush1.msra.mxu0 0.0
    %6662 = vmatprep.subr.mxu0 0.0
    %6663 = vmatpush1.msra.mxu0 0.0
    %6664 = vmatprep.subr.mxu0 0.0
    %6665 = vmatpush1.msra.mxu0 0.0
    %6666 = vmatprep.subr.mxu0 0.0
    %6667 = vmatpush1.msra.mxu0 0.0
    %6668 = vmatprep.subr.mxu0 0.0
    %6669 = vmatpush1.msra.mxu0 0.0
    %6670 = vmatprep.subr.mxu0 0.0
    %6671 = vmatpush1.msra.mxu0 0.0
    %6672 = vmatprep.subr.mxu0 0.0
    %6673 = vmatpush1.msra.mxu0 0.0
    %6674 = vmatprep.subr.mxu0 0.0
    %6675 = vmatpush1.msra.mxu0 0.0
    %6676 = vmatprep.subr.mxu0 0.0
    %6677 = vmatpush1.msra.mxu0 0.0
    %6678 = vmatprep.subr.mxu0 0.0
    %6679 = vmatpush1.msra.mxu0 0.0
    %6680 = vmatprep.subr.mxu0 0.0
    %6681 = vmatpush1.msra.mxu0 0.0
    %6682 = vmatprep.subr.mxu0 0.0
    %6683 = vmatpush1.msra.mxu0 0.0
    %6684 = vmatprep.subr.mxu0 0.0
    %6685 = vmatpush1.msra.mxu0 0.0
    %6686 = vmatprep.subr.mxu0 0.0
    %6687 = vmatpush1.msra.mxu0 0.0
    %6688 = vmatprep.subr.mxu0 0.0
    %6689 = vmatpush1.msra.mxu0 0.0
    %6690 = vmatprep.subr.mxu0 0.0
    %6691 = vmatpush1.msra.mxu0 0.0
    %6692 = vmatprep.subr.mxu0 0.0
    %6693 = vmatpush1.msra.mxu0 0.0
    %6694 = vmatprep.subr.mxu0 0.0
    %6695 = vmatpush1.msra.mxu0 0.0
    %6696 = vmatprep.subr.mxu0 0.0
    %6697 = vmatpush1.msra.mxu0 0.0
    %6698 = vmatprep.subr.mxu0 0.0
    %6699 = vmatpush1.msra.mxu0 0.0
    %6700 = vmatprep.subr.mxu0 0.0
    %6701 = vmatpush1.msra.mxu0 0.0
    %6702 = vmatprep.mubr.f32.mxu0 0.0
    %6703 = vmatmul.mubr.f32.gmra.mrb[0].mxu0 %v6591
    %v6704 = vpop.f32.mrb[0].mxu0
    %v6705 = vadd.f32 0.0, %v6704
    %v6706 = vpop.f32.mrb[0].mxu0
    %6707 = vmatprep.mubr.f32.mxu0 0.0
    %6708 = vmatmul.mubr.f32.gmra.mrb[0].mxu0 %v6594
    %v6709 = vpop.f32.mrb[0].mxu0
    %v6710 = vadd.f32 0.0, %v6709
    %v6711 = vpop.f32.mrb[0].mxu0
    %6712 = vmatprep.mubr.f32.mxu0 0.0
    %6713 = vmatmul.mubr.f32.gmra.mrb[0].mxu0 %v6597
    %v6714 = vpop.f32.mrb[0].mxu0
    %v6715 = vadd.f32 0.0, %v6714
    %v6716 = vpop.f32.mrb[0].mxu0
    %6717 = vmatprep.mubr.f32.mxu0 0.0
    %6718 = vmatmul.mubr.f32.gmra.mrb[0].mxu0 %v6600
    %v6719 = vpop.f32.mrb[0].mxu0
    %v6720 = vadd.f32 0.0, %v6719
    %v6721 = vpop.f32.mrb[0].mxu0
    %6722 = vmatprep.mubr.f32.mxu0 0.0
    %6723 = vmatmul.mubr.f32.gmra.mrb[0].mxu0 %v6603
    %v6724 = vpop.f32.mrb[0].mxu0
    %v6725 = vadd.f32 0.0, %v6724
    %v6726 = vpop.f32.mrb[0].mxu0
    %6727 = vmatprep.mubr.f32.mxu0 0.0
    %6728 = vmatmul.mubr.f32.gmra.mrb[0].mxu0 %v6606
    %v6729 = vpop.f32.mrb[0].mxu0
    %v6730 = vadd.f32 0.0, %v6729
    %v6731 = vpop.f32.mrb[0].mxu0
    %6732 = vmatprep.mubr.f32.mxu0 0.0
    %6733 = vmatmul.mubr.f32.gmra.mrb[0].mxu0 %v6609
    %v6734 = vpop.f32.mrb[0].mxu0
    %v6735 = vadd.f32 0.0, %v6734
    %v6736 = vpop.f32.mrb[0].mxu0
    %6737 = vmatprep.mubr.f32.mxu0 0.0
    %6738 = vmatmul.mubr.f32.gmra.mrb[0].mxu0 %v6612
    %v6739 = vpop.f32.mrb[0].mxu0
    %v6740 = vadd.f32 0.0, %v6739
    %v6741 = vpop.f32.mrb[0].mxu0
    %6742 = vmatprep.mubr.f32.mxu0 0.0
    %6743 = vmatmul.mubr.f32.gmra.mrb[0].mxu0 %v6615
    %v6744 = vpop.f32.mrb[0].mxu0
    %v6745 = vadd.f32 0.0, %v6744
    %v6746 = vpop.f32.mrb[0].mxu0
    %6747 = vmatprep.mubr.f32.mxu0 0.0
    %6748 = vmatmul.mubr.f32.gmra.mrb[0].mxu0 %v6618
    %v6749 = vpop.f32.mrb[0].mxu0
    %v6750 = vadd.f32 0.0, %v6749
    %v6751 = vpop.f32.mrb[0].mxu0
    %6752 = vmatprep.mubr.f32.mxu0 0.0
    %6753 = vmatmul.mubr.f32.gmra.mrb[0].mxu0 %v6621
    %v6754 = vpop.f32.mrb[0].mxu0
    %v6755 = vadd.f32 0.0, %v6754
    %v6756 = vpop.f32.mrb[0].mxu0
    %6757 = vmatprep.mubr.f32.mxu0 0.0
    %6758 = vmatmul.mubr.f32.gmra.mrb[0].mxu0 %v6624
    %v6759 = vpop.f32.mrb[0].mxu0
    %v6760 = vadd.f32 0.0, %v6759
    %v6761 = vpop.f32.mrb[0].mxu0
    %6762 = vmatprep.mubr.f32.mxu0 0.0
    %6763 = vmatmul.mubr.f32.gmra.mrb[0].mxu0 %v6627
    %v6764 = vpop.f32.mrb[0].mxu0
    %v6765 = vadd.f32 0.0, %v6764
    %v6766 = vpop.f32.mrb[0].mxu0
    %6767 = vmatprep.mubr.f32.mxu0 0.0
    %6768 = vmatmul.mubr.f32.gmra.mrb[0].mxu0 %v6630
    %v6769 = vpop.f32.mrb[0].mxu0
    %v6770 = vadd.f32 0.0, %v6769
    %v6771 = vpop.f32.mrb[0].mxu0
    %6772 = vmatprep.mubr.f32.mxu0 0.0
    %6773 = vmatmul.mubr.f32.gmra.mrb[0].mxu0 %v6633
    %v6774 = vpop.f32.mrb[0].mxu0
    %v6775 = vadd.f32 0.0, %v6774
    %v6776 = vpop.f32.mrb[0].mxu0
    %6777 = vmatprep.mubr.f32.mxu0 0.0
    %6778 = vmatmul.mubr.f32.gmra.mrb[0].mxu0 %v6636
    %v6779 = vpop.f32.mrb[0].mxu0
    %v6780 = vadd.f32 0.0, %v6779
    %v6781 = vpop.f32.mrb[0].mxu0
    %6782 = vdwg.mxu0
    %v6783 = vadd.f32 %v6549, %v6705
    %v6784 = vadd.f32 %v6550, %v6710
    %v6785 = vadd.f32 %v6551, %v6715
    %v6786 = vadd.f32 %v6552, %v6720
    %v6787 = vadd.f32 %v6553, %v6725
    %v6788 = vadd.f32 %v6554, %v6730
    %v6789 = vadd.f32 %v6555, %v6735
    %v6790 = vadd.f32 %v6556, %v6740
    %v6791 = vadd.f32 %v6557, %v6745
    %v6792 = vadd.f32 %v6558, %v6750
    %v6793 = vadd.f32 %v6559, %v6755
    %v6794 = vadd.f32 %v6560, %v6760
    %v6795 = vadd.f32 %v6561, %v6765
    %v6796 = vadd.f32 %v6562, %v6770
    %v6797 = vadd.f32 %v6563, %v6775
    %v6798 = vadd.f32 %v6564, %v6780
    %v6799 = vld [vmem:[%s4] sm:$0x1]
    %v6801 = vlaneseq
    %v6802 = vshrl.u32 %v6801, 7
    %v6803 = vsub.s32 0, %v6802
    %v6804 = vrot.slane %v6799, %v6803
    %v6806 = vadd.f32 %v6783, %v6804
    %v6807 = vadd.f32 %v6784, %v6804
    %v6808 = vadd.f32 %v6785, %v6804
    %v6809 = vadd.f32 %v6786, %v6804
    %v6810 = vadd.f32 %v6787, %v6804
    %v6811 = vadd.f32 %v6788, %v6804
    %v6812 = vadd.f32 %v6789, %v6804
    %v6813 = vadd.f32 %v6790, %v6804
    %v6814 = vadd.f32 %v6791, %v6804
    %v6815 = vadd.f32 %v6792, %v6804
    %v6816 = vadd.f32 %v6793, %v6804
    %v6817 = vadd.f32 %v6794, %v6804
    %v6818 = vadd.f32 %v6795, %v6804
    %v6819 = vadd.f32 %v6796, %v6804
    %v6820 = vadd.f32 %v6797, %v6804
    %v6821 = vadd.f32 %v6798, %v6804
    %v6838 = vcombine.high %v6806, %v6806
    %v6840 = vunpack.c.l.s4 1983009808
    %v6841 = vunpack.c.0.s8 %v6840
    %v6842 = vlaneseq
    %v6843 = vshrl.u32 %v6842, 7
    %v6844 = vsub.s32 %v6841, %v6843
    %v6845 = vrot.slane %v6806, %v6844
    %v6847 = vunpack.c.l.s4 1983009808
    %v6848 = vunpack.c.0.s8 %v6847
    %v6849 = vlaneseq
    %v6850 = vshrl.u32 %v6849, 7
    %v6851 = vsub.s32 %v6848, %v6850
    %v6852 = vrot.slane %v6838, %v6851
    %v6853 = vcombine.high %v6845, %v6845
    %v6854 = vcombine.high %v6852, %v6852
    %v6855 = vcombine.high %v6807, %v6807
    %v6857 = vunpack.c.l.s4 1983009808
    %v6858 = vunpack.c.0.s8 %v6857
    %v6859 = vlaneseq
    %v6860 = vshrl.u32 %v6859, 7
    %v6861 = vsub.s32 %v6858, %v6860
    %v6862 = vrot.slane %v6807, %v6861
    %v6864 = vunpack.c.l.s4 1983009808
    %v6865 = vunpack.c.0.s8 %v6864
    %v6866 = vlaneseq
    %v6867 = vshrl.u32 %v6866, 7
    %v6868 = vsub.s32 %v6865, %v6867
    %v6869 = vrot.slane %v6855, %v6868
    %v6870 = vcombine.high %v6862, %v6862
    %v6871 = vcombine.high %v6869, %v6869
    %v6872 = vcombine.high %v6808, %v6808
    %v6874 = vunpack.c.l.s4 1983009808
    %v6875 = vunpack.c.0.s8 %v6874
    %v6876 = vlaneseq
    %v6877 = vshrl.u32 %v6876, 7
    %v6878 = vsub.s32 %v6875, %v6877
    %v6879 = vrot.slane %v6808, %v6878
    %v6881 = vunpack.c.l.s4 1983009808
    %v6882 = vunpack.c.0.s8 %v6881
    %v6883 = vlaneseq
    %v6884 = vshrl.u32 %v6883, 7
    %v6885 = vsub.s32 %v6882, %v6884
    %v6886 = vrot.slane %v6872, %v6885
    %v6887 = vcombine.high %v6879, %v6879
    %v6888 = vcombine.high %v6886, %v6886
    %v6889 = vcombine.high %v6809, %v6809
    %v6891 = vunpack.c.l.s4 1983009808
    %v6892 = vunpack.c.0.s8 %v6891
    %v6893 = vlaneseq
    %v6894 = vshrl.u32 %v6893, 7
    %v6895 = vsub.s32 %v6892, %v6894
    %v6896 = vrot.slane %v6809, %v6895
    %v6898 = vunpack.c.l.s4 1983009808
    %v6899 = vunpack.c.0.s8 %v6898
    %v6900 = vlaneseq
    %v6901 = vshrl.u32 %v6900, 7
    %v6902 = vsub.s32 %v6899, %v6901
    %v6903 = vrot.slane %v6889, %v6902
    %v6904 = vcombine.high %v6896, %v6896
    %v6905 = vcombine.high %v6903, %v6903
    %v6906 = vcombine.high %v6810, %v6810
    %v6908 = vunpack.c.l.s4 1983009808
    %v6909 = vunpack.c.0.s8 %v6908
    %v6910 = vlaneseq
    %v6911 = vshrl.u32 %v6910, 7
    %v6912 = vsub.s32 %v6909, %v6911
    %v6913 = vrot.slane %v6810, %v6912
    %v6915 = vunpack.c.l.s4 1983009808
    %v6916 = vunpack.c.0.s8 %v6915
    %v6917 = vlaneseq
    %v6918 = vshrl.u32 %v6917, 7
    %v6919 = vsub.s32 %v6916, %v6918
    %v6920 = vrot.slane %v6906, %v6919
    %v6921 = vcombine.high %v6913, %v6913
    %v6922 = vcombine.high %v6920, %v6920
    %v6923 = vcombine.high %v6811, %v6811
    %v6925 = vunpack.c.l.s4 1983009808
    %v6926 = vunpack.c.0.s8 %v6925
    %v6927 = vlaneseq
    %v6928 = vshrl.u32 %v6927, 7
    %v6929 = vsub.s32 %v6926, %v6928
    %v6930 = vrot.slane %v6811, %v6929
    %v6932 = vunpack.c.l.s4 1983009808
    %v6933 = vunpack.c.0.s8 %v6932
    %v6934 = vlaneseq
    %v6935 = vshrl.u32 %v6934, 7
    %v6936 = vsub.s32 %v6933, %v6935
    %v6937 = vrot.slane %v6923, %v6936
    %v6938 = vcombine.high %v6930, %v6930
    %v6939 = vcombine.high %v6937, %v6937
    %v6940 = vcombine.high %v6812, %v6812
    %v6942 = vunpack.c.l.s4 1983009808
    %v6943 = vunpack.c.0.s8 %v6942
    %v6944 = vlaneseq
    %v6945 = vshrl.u32 %v6944, 7
    %v6946 = vsub.s32 %v6943, %v6945
    %v6947 = vrot.slane %v6812, %v6946
    %v6949 = vunpack.c.l.s4 1983009808
    %v6950 = vunpack.c.0.s8 %v6949
    %v6951 = vlaneseq
    %v6952 = vshrl.u32 %v6951, 7
    %v6953 = vsub.s32 %v6950, %v6952
    %v6954 = vrot.slane %v6940, %v6953
    %v6955 = vcombine.high %v6947, %v6947
    %v6956 = vcombine.high %v6954, %v6954
    %v6957 = vcombine.high %v6813, %v6813
    %v6959 = vunpack.c.l.s4 1983009808
    %v6960 = vunpack.c.0.s8 %v6959
    %v6961 = vlaneseq
    %v6962 = vshrl.u32 %v6961, 7
    %v6963 = vsub.s32 %v6960, %v6962
    %v6964 = vrot.slane %v6813, %v6963
    %v6966 = vunpack.c.l.s4 1983009808
    %v6967 = vunpack.c.0.s8 %v6966
    %v6968 = vlaneseq
    %v6969 = vshrl.u32 %v6968, 7
    %v6970 = vsub.s32 %v6967, %v6969
    %v6971 = vrot.slane %v6957, %v6970
    %v6972 = vcombine.high %v6964, %v6964
    %v6973 = vcombine.high %v6971, %v6971
    %v6974 = vcombine.high %v6814, %v6814
    %v6976 = vunpack.c.l.s4 1983009808
    %v6977 = vunpack.c.0.s8 %v6976
    %v6978 = vlaneseq
    %v6979 = vshrl.u32 %v6978, 7
    %v6980 = vsub.s32 %v6977, %v6979
    %v6981 = vrot.slane %v6814, %v6980
    %v6983 = vunpack.c.l.s4 1983009808
    %v6984 = vunpack.c.0.s8 %v6983
    %v6985 = vlaneseq
    %v6986 = vshrl.u32 %v6985, 7
    %v6987 = vsub.s32 %v6984, %v6986
    %v6988 = vrot.slane %v6974, %v6987
    %v6989 = vcombine.high %v6981, %v6981
    %v6990 = vcombine.high %v6988, %v6988
    %v6991 = vcombine.high %v6815, %v6815
    %v6993 = vunpack.c.l.s4 1983009808
    %v6994 = vunpack.c.0.s8 %v6993
    %v6995 = vlaneseq
    %v6996 = vshrl.u32 %v6995, 7
    %v6997 = vsub.s32 %v6994, %v6996
    %v6998 = vrot.slane %v6815, %v6997
    %v7000 = vunpack.c.l.s4 1983009808
    %v7001 = vunpack.c.0.s8 %v7000
    %v7002 = vlaneseq
    %v7003 = vshrl.u32 %v7002, 7
    %v7004 = vsub.s32 %v7001, %v7003
    %v7005 = vrot.slane %v6991, %v7004
    %v7006 = vcombine.high %v6998, %v6998
    %v7007 = vcombine.high %v7005, %v7005
    %v7008 = vcombine.high %v6816, %v6816
    %v7010 = vunpack.c.l.s4 1983009808
    %v7011 = vunpack.c.0.s8 %v7010
    %v7012 = vlaneseq
    %v7013 = vshrl.u32 %v7012, 7
    %v7014 = vsub.s32 %v7011, %v7013
    %v7015 = vrot.slane %v6816, %v7014
    %v7017 = vunpack.c.l.s4 1983009808
    %v7018 = vunpack.c.0.s8 %v7017
    %v7019 = vlaneseq
    %v7020 = vshrl.u32 %v7019, 7
    %v7021 = vsub.s32 %v7018, %v7020
    %v7022 = vrot.slane %v7008, %v7021
    %v7023 = vcombine.high %v7015, %v7015
    %v7024 = vcombine.high %v7022, %v7022
    %v7025 = vcombine.high %v6817, %v6817
    %v7027 = vunpack.c.l.s4 1983009808
    %v7028 = vunpack.c.0.s8 %v7027
    %v7029 = vlaneseq
    %v7030 = vshrl.u32 %v7029, 7
    %v7031 = vsub.s32 %v7028, %v7030
    %v7032 = vrot.slane %v6817, %v7031
    %v7034 = vunpack.c.l.s4 1983009808
    %v7035 = vunpack.c.0.s8 %v7034
    %v7036 = vlaneseq
    %v7037 = vshrl.u32 %v7036, 7
    %v7038 = vsub.s32 %v7035, %v7037
    %v7039 = vrot.slane %v7025, %v7038
    %v7040 = vcombine.high %v7032, %v7032
    %v7041 = vcombine.high %v7039, %v7039
    %v7042 = vcombine.high %v6818, %v6818
    %v7044 = vunpack.c.l.s4 1983009808
    %v7045 = vunpack.c.0.s8 %v7044
    %v7046 = vlaneseq
    %v7047 = vshrl.u32 %v7046, 7
    %v7048 = vsub.s32 %v7045, %v7047
    %v7049 = vrot.slane %v6818, %v7048
    %v7051 = vunpack.c.l.s4 1983009808
    %v7052 = vunpack.c.0.s8 %v7051
    %v7053 = vlaneseq
    %v7054 = vshrl.u32 %v7053, 7
    %v7055 = vsub.s32 %v7052, %v7054
    %v7056 = vrot.slane %v7042, %v7055
    %v7057 = vcombine.high %v7049, %v7049
    %v7058 = vcombine.high %v7056, %v7056
    %v7059 = vcombine.high %v6819, %v6819
    %v7061 = vunpack.c.l.s4 1983009808
    %v7062 = vunpack.c.0.s8 %v7061
    %v7063 = vlaneseq
    %v7064 = vshrl.u32 %v7063, 7
    %v7065 = vsub.s32 %v7062, %v7064
    %v7066 = vrot.slane %v6819, %v7065
    %v7068 = vunpack.c.l.s4 1983009808
    %v7069 = vunpack.c.0.s8 %v7068
    %v7070 = vlaneseq
    %v7071 = vshrl.u32 %v7070, 7
    %v7072 = vsub.s32 %v7069, %v7071
    %v7073 = vrot.slane %v7059, %v7072
    %v7074 = vcombine.high %v7066, %v7066
    %v7075 = vcombine.high %v7073, %v7073
    %v7076 = vcombine.high %v6820, %v6820
    %v7078 = vunpack.c.l.s4 1983009808
    %v7079 = vunpack.c.0.s8 %v7078
    %v7080 = vlaneseq
    %v7081 = vshrl.u32 %v7080, 7
    %v7082 = vsub.s32 %v7079, %v7081
    %v7083 = vrot.slane %v6820, %v7082
    %v7085 = vunpack.c.l.s4 1983009808
    %v7086 = vunpack.c.0.s8 %v7085
    %v7087 = vlaneseq
    %v7088 = vshrl.u32 %v7087, 7
    %v7089 = vsub.s32 %v7086, %v7088
    %v7090 = vrot.slane %v7076, %v7089
    %v7091 = vcombine.high %v7083, %v7083
    %v7092 = vcombine.high %v7090, %v7090
    %v7093 = vcombine.high %v6821, %v6821
    %v7095 = vunpack.c.l.s4 1983009808
    %v7096 = vunpack.c.0.s8 %v7095
    %v7097 = vlaneseq
    %v7098 = vshrl.u32 %v7097, 7
    %v7099 = vsub.s32 %v7096, %v7098
    %v7100 = vrot.slane %v6821, %v7099
    %v7102 = vunpack.c.l.s4 1983009808
    %v7103 = vunpack.c.0.s8 %v7102
    %v7104 = vlaneseq
    %v7105 = vshrl.u32 %v7104, 7
    %v7106 = vsub.s32 %v7103, %v7105
    %v7107 = vrot.slane %v7093, %v7106
    %v7108 = vcombine.high %v7100, %v7100
    %v7109 = vcombine.high %v7107, %v7107
    %v7174 = vsel %vm2099, %v6845, -inf
    %v7175 = vrot.slane %v7174, 4
    %v7176 = vmax.f32 %v7174, %v7175
    %v7177 = vrot.slane %v7176, 2
    %v7178 = vmax.f32 %v7176, %v7177
    %v7179 = vrot.slane %v7178, 1
    %v7180 = vmax.f32 %v7178, %v7179
    %v7181 = vsel %vm2099, %v6853, -inf
    %v7182 = vrot.slane %v7181, 4
    %v7183 = vmax.f32 %v7181, %v7182
    %v7184 = vrot.slane %v7183, 2
    %v7185 = vmax.f32 %v7183, %v7184
    %v7186 = vrot.slane %v7185, 1
    %v7187 = vmax.f32 %v7185, %v7186
    %v7188 = vsel %vm2099, %v6852, -inf
    %v7189 = vrot.slane %v7188, 4
    %v7190 = vmax.f32 %v7188, %v7189
    %v7191 = vrot.slane %v7190, 2
    %v7192 = vmax.f32 %v7190, %v7191
    %v7193 = vrot.slane %v7192, 1
    %v7194 = vmax.f32 %v7192, %v7193
    %v7195 = vsel %vm2099, %v6854, -inf
    %v7196 = vrot.slane %v7195, 4
    %v7197 = vmax.f32 %v7195, %v7196
    %v7198 = vrot.slane %v7197, 2
    %v7199 = vmax.f32 %v7197, %v7198
    %v7200 = vrot.slane %v7199, 1
    %v7201 = vmax.f32 %v7199, %v7200
    %v7202 = vsel %vm2099, %v6862, -inf
    %v7203 = vrot.slane %v7202, 4
    %v7204 = vmax.f32 %v7202, %v7203
    %v7205 = vrot.slane %v7204, 2
    %v7206 = vmax.f32 %v7204, %v7205
    %v7207 = vrot.slane %v7206, 1
    %v7208 = vmax.f32 %v7206, %v7207
    %v7209 = vsel %vm2099, %v6870, -inf
    %v7210 = vrot.slane %v7209, 4
    %v7211 = vmax.f32 %v7209, %v7210
    %v7212 = vrot.slane %v7211, 2
    %v7213 = vmax.f32 %v7211, %v7212
    %v7214 = vrot.slane %v7213, 1
    %v7215 = vmax.f32 %v7213, %v7214
    %v7216 = vsel %vm2099, %v6869, -inf
    %v7217 = vrot.slane %v7216, 4
    %v7218 = vmax.f32 %v7216, %v7217
    %v7219 = vrot.slane %v7218, 2
    %v7220 = vmax.f32 %v7218, %v7219
    %v7221 = vrot.slane %v7220, 1
    %v7222 = vmax.f32 %v7220, %v7221
    %v7223 = vsel %vm2099, %v6871, -inf
    %v7224 = vrot.slane %v7223, 4
    %v7225 = vmax.f32 %v7223, %v7224
    %v7226 = vrot.slane %v7225, 2
    %v7227 = vmax.f32 %v7225, %v7226
    %v7228 = vrot.slane %v7227, 1
    %v7229 = vmax.f32 %v7227, %v7228
    %v7230 = vsel %vm2099, %v6879, -inf
    %v7231 = vrot.slane %v7230, 4
    %v7232 = vmax.f32 %v7230, %v7231
    %v7233 = vrot.slane %v7232, 2
    %v7234 = vmax.f32 %v7232, %v7233
    %v7235 = vrot.slane %v7234, 1
    %v7236 = vmax.f32 %v7234, %v7235
    %v7237 = vsel %vm2099, %v6887, -inf
    %v7238 = vrot.slane %v7237, 4
    %v7239 = vmax.f32 %v7237, %v7238
    %v7240 = vrot.slane %v7239, 2
    %v7241 = vmax.f32 %v7239, %v7240
    %v7242 = vrot.slane %v7241, 1
    %v7243 = vmax.f32 %v7241, %v7242
    %v7244 = vsel %vm2099, %v6886, -inf
    %v7245 = vrot.slane %v7244, 4
    %v7246 = vmax.f32 %v7244, %v7245
    %v7247 = vrot.slane %v7246, 2
    %v7248 = vmax.f32 %v7246, %v7247
    %v7249 = vrot.slane %v7248, 1
    %v7250 = vmax.f32 %v7248, %v7249
    %v7251 = vsel %vm2099, %v6888, -inf
    %v7252 = vrot.slane %v7251, 4
    %v7253 = vmax.f32 %v7251, %v7252
    %v7254 = vrot.slane %v7253, 2
    %v7255 = vmax.f32 %v7253, %v7254
    %v7256 = vrot.slane %v7255, 1
    %v7257 = vmax.f32 %v7255, %v7256
    %v7258 = vsel %vm2099, %v6896, -inf
    %v7259 = vrot.slane %v7258, 4
    %v7260 = vmax.f32 %v7258, %v7259
    %v7261 = vrot.slane %v7260, 2
    %v7262 = vmax.f32 %v7260, %v7261
    %v7263 = vrot.slane %v7262, 1
    %v7264 = vmax.f32 %v7262, %v7263
    %v7265 = vsel %vm2099, %v6904, -inf
    %v7266 = vrot.slane %v7265, 4
    %v7267 = vmax.f32 %v7265, %v7266
    %v7268 = vrot.slane %v7267, 2
    %v7269 = vmax.f32 %v7267, %v7268
    %v7270 = vrot.slane %v7269, 1
    %v7271 = vmax.f32 %v7269, %v7270
    %v7272 = vsel %vm2099, %v6903, -inf
    %v7273 = vrot.slane %v7272, 4
    %v7274 = vmax.f32 %v7272, %v7273
    %v7275 = vrot.slane %v7274, 2
    %v7276 = vmax.f32 %v7274, %v7275
    %v7277 = vrot.slane %v7276, 1
    %v7278 = vmax.f32 %v7276, %v7277
    %v7279 = vsel %vm2099, %v6905, -inf
    %v7280 = vrot.slane %v7279, 4
    %v7281 = vmax.f32 %v7279, %v7280
    %v7282 = vrot.slane %v7281, 2
    %v7283 = vmax.f32 %v7281, %v7282
    %v7284 = vrot.slane %v7283, 1
    %v7285 = vmax.f32 %v7283, %v7284
    %v7286 = vsel %vm2099, %v6913, -inf
    %v7287 = vrot.slane %v7286, 4
    %v7288 = vmax.f32 %v7286, %v7287
    %v7289 = vrot.slane %v7288, 2
    %v7290 = vmax.f32 %v7288, %v7289
    %v7291 = vrot.slane %v7290, 1
    %v7292 = vmax.f32 %v7290, %v7291
    %v7293 = vsel %vm2099, %v6921, -inf
    %v7294 = vrot.slane %v7293, 4
    %v7295 = vmax.f32 %v7293, %v7294
    %v7296 = vrot.slane %v7295, 2
    %v7297 = vmax.f32 %v7295, %v7296
    %v7298 = vrot.slane %v7297, 1
    %v7299 = vmax.f32 %v7297, %v7298
    %v7300 = vsel %vm2099, %v6920, -inf
    %v7301 = vrot.slane %v7300, 4
    %v7302 = vmax.f32 %v7300, %v7301
    %v7303 = vrot.slane %v7302, 2
    %v7304 = vmax.f32 %v7302, %v7303
    %v7305 = vrot.slane %v7304, 1
    %v7306 = vmax.f32 %v7304, %v7305
    %v7307 = vsel %vm2099, %v6922, -inf
    %v7308 = vrot.slane %v7307, 4
    %v7309 = vmax.f32 %v7307, %v7308
    %v7310 = vrot.slane %v7309, 2
    %v7311 = vmax.f32 %v7309, %v7310
    %v7312 = vrot.slane %v7311, 1
    %v7313 = vmax.f32 %v7311, %v7312
    %v7314 = vsel %vm2099, %v6930, -inf
    %v7315 = vrot.slane %v7314, 4
    %v7316 = vmax.f32 %v7314, %v7315
    %v7317 = vrot.slane %v7316, 2
    %v7318 = vmax.f32 %v7316, %v7317
    %v7319 = vrot.slane %v7318, 1
    %v7320 = vmax.f32 %v7318, %v7319
    %v7321 = vsel %vm2099, %v6938, -inf
    %v7322 = vrot.slane %v7321, 4
    %v7323 = vmax.f32 %v7321, %v7322
    %v7324 = vrot.slane %v7323, 2
    %v7325 = vmax.f32 %v7323, %v7324
    %v7326 = vrot.slane %v7325, 1
    %v7327 = vmax.f32 %v7325, %v7326
    %v7328 = vsel %vm2099, %v6937, -inf
    %v7329 = vrot.slane %v7328, 4
    %v7330 = vmax.f32 %v7328, %v7329
    %v7331 = vrot.slane %v7330, 2
    %v7332 = vmax.f32 %v7330, %v7331
    %v7333 = vrot.slane %v7332, 1
    %v7334 = vmax.f32 %v7332, %v7333
    %v7335 = vsel %vm2099, %v6939, -inf
    %v7336 = vrot.slane %v7335, 4
    %v7337 = vmax.f32 %v7335, %v7336
    %v7338 = vrot.slane %v7337, 2
    %v7339 = vmax.f32 %v7337, %v7338
    %v7340 = vrot.slane %v7339, 1
    %v7341 = vmax.f32 %v7339, %v7340
    %v7342 = vsel %vm2099, %v6947, -inf
    %v7343 = vrot.slane %v7342, 4
    %v7344 = vmax.f32 %v7342, %v7343
    %v7345 = vrot.slane %v7344, 2
    %v7346 = vmax.f32 %v7344, %v7345
    %v7347 = vrot.slane %v7346, 1
    %v7348 = vmax.f32 %v7346, %v7347
    %v7349 = vsel %vm2099, %v6955, -inf
    %v7350 = vrot.slane %v7349, 4
    %v7351 = vmax.f32 %v7349, %v7350
    %v7352 = vrot.slane %v7351, 2
    %v7353 = vmax.f32 %v7351, %v7352
    %v7354 = vrot.slane %v7353, 1
    %v7355 = vmax.f32 %v7353, %v7354
    %v7356 = vsel %vm2099, %v6954, -inf
    %v7357 = vrot.slane %v7356, 4
    %v7358 = vmax.f32 %v7356, %v7357
    %v7359 = vrot.slane %v7358, 2
    %v7360 = vmax.f32 %v7358, %v7359
    %v7361 = vrot.slane %v7360, 1
    %v7362 = vmax.f32 %v7360, %v7361
    %v7363 = vsel %vm2099, %v6956, -inf
    %v7364 = vrot.slane %v7363, 4
    %v7365 = vmax.f32 %v7363, %v7364
    %v7366 = vrot.slane %v7365, 2
    %v7367 = vmax.f32 %v7365, %v7366
    %v7368 = vrot.slane %v7367, 1
    %v7369 = vmax.f32 %v7367, %v7368
    %v7370 = vsel %vm2099, %v6964, -inf
    %v7371 = vrot.slane %v7370, 4
    %v7372 = vmax.f32 %v7370, %v7371
    %v7373 = vrot.slane %v7372, 2
    %v7374 = vmax.f32 %v7372, %v7373
    %v7375 = vrot.slane %v7374, 1
    %v7376 = vmax.f32 %v7374, %v7375
    %v7377 = vsel %vm2099, %v6972, -inf
    %v7378 = vrot.slane %v7377, 4
    %v7379 = vmax.f32 %v7377, %v7378
    %v7380 = vrot.slane %v7379, 2
    %v7381 = vmax.f32 %v7379, %v7380
    %v7382 = vrot.slane %v7381, 1
    %v7383 = vmax.f32 %v7381, %v7382
    %v7384 = vsel %vm2099, %v6971, -inf
    %v7385 = vrot.slane %v7384, 4
    %v7386 = vmax.f32 %v7384, %v7385
    %v7387 = vrot.slane %v7386, 2
    %v7388 = vmax.f32 %v7386, %v7387
    %v7389 = vrot.slane %v7388, 1
    %v7390 = vmax.f32 %v7388, %v7389
    %v7391 = vsel %vm2099, %v6973, -inf
    %v7392 = vrot.slane %v7391, 4
    %v7393 = vmax.f32 %v7391, %v7392
    %v7394 = vrot.slane %v7393, 2
    %v7395 = vmax.f32 %v7393, %v7394
    %v7396 = vrot.slane %v7395, 1
    %v7397 = vmax.f32 %v7395, %v7396
    %v7398 = vsel %vm2099, %v6981, -inf
    %v7399 = vrot.slane %v7398, 4
    %v7400 = vmax.f32 %v7398, %v7399
    %v7401 = vrot.slane %v7400, 2
    %v7402 = vmax.f32 %v7400, %v7401
    %v7403 = vrot.slane %v7402, 1
    %v7404 = vmax.f32 %v7402, %v7403
    %v7405 = vsel %vm2099, %v6989, -inf
    %v7406 = vrot.slane %v7405, 4
    %v7407 = vmax.f32 %v7405, %v7406
    %v7408 = vrot.slane %v7407, 2
    %v7409 = vmax.f32 %v7407, %v7408
    %v7410 = vrot.slane %v7409, 1
    %v7411 = vmax.f32 %v7409, %v7410
    %v7412 = vsel %vm2099, %v6988, -inf
    %v7413 = vrot.slane %v7412, 4
    %v7414 = vmax.f32 %v7412, %v7413
    %v7415 = vrot.slane %v7414, 2
    %v7416 = vmax.f32 %v7414, %v7415
    %v7417 = vrot.slane %v7416, 1
    %v7418 = vmax.f32 %v7416, %v7417
    %v7419 = vsel %vm2099, %v6990, -inf
    %v7420 = vrot.slane %v7419, 4
    %v7421 = vmax.f32 %v7419, %v7420
    %v7422 = vrot.slane %v7421, 2
    %v7423 = vmax.f32 %v7421, %v7422
    %v7424 = vrot.slane %v7423, 1
    %v7425 = vmax.f32 %v7423, %v7424
    %v7426 = vsel %vm2099, %v6998, -inf
    %v7427 = vrot.slane %v7426, 4
    %v7428 = vmax.f32 %v7426, %v7427
    %v7429 = vrot.slane %v7428, 2
    %v7430 = vmax.f32 %v7428, %v7429
    %v7431 = vrot.slane %v7430, 1
    %v7432 = vmax.f32 %v7430, %v7431
    %v7433 = vsel %vm2099, %v7006, -inf
    %v7434 = vrot.slane %v7433, 4
    %v7435 = vmax.f32 %v7433, %v7434
    %v7436 = vrot.slane %v7435, 2
    %v7437 = vmax.f32 %v7435, %v7436
    %v7438 = vrot.slane %v7437, 1
    %v7439 = vmax.f32 %v7437, %v7438
    %v7440 = vsel %vm2099, %v7005, -inf
    %v7441 = vrot.slane %v7440, 4
    %v7442 = vmax.f32 %v7440, %v7441
    %v7443 = vrot.slane %v7442, 2
    %v7444 = vmax.f32 %v7442, %v7443
    %v7445 = vrot.slane %v7444, 1
    %v7446 = vmax.f32 %v7444, %v7445
    %v7447 = vsel %vm2099, %v7007, -inf
    %v7448 = vrot.slane %v7447, 4
    %v7449 = vmax.f32 %v7447, %v7448
    %v7450 = vrot.slane %v7449, 2
    %v7451 = vmax.f32 %v7449, %v7450
    %v7452 = vrot.slane %v7451, 1
    %v7453 = vmax.f32 %v7451, %v7452
    %v7454 = vsel %vm2099, %v7015, -inf
    %v7455 = vrot.slane %v7454, 4
    %v7456 = vmax.f32 %v7454, %v7455
    %v7457 = vrot.slane %v7456, 2
    %v7458 = vmax.f32 %v7456, %v7457
    %v7459 = vrot.slane %v7458, 1
    %v7460 = vmax.f32 %v7458, %v7459
    %v7461 = vsel %vm2099, %v7023, -inf
    %v7462 = vrot.slane %v7461, 4
    %v7463 = vmax.f32 %v7461, %v7462
    %v7464 = vrot.slane %v7463, 2
    %v7465 = vmax.f32 %v7463, %v7464
    %v7466 = vrot.slane %v7465, 1
    %v7467 = vmax.f32 %v7465, %v7466
    %v7468 = vsel %vm2099, %v7022, -inf
    %v7469 = vrot.slane %v7468, 4
    %v7470 = vmax.f32 %v7468, %v7469
    %v7471 = vrot.slane %v7470, 2
    %v7472 = vmax.f32 %v7470, %v7471
    %v7473 = vrot.slane %v7472, 1
    %v7474 = vmax.f32 %v7472, %v7473
    %v7475 = vsel %vm2099, %v7024, -inf
    %v7476 = vrot.slane %v7475, 4
    %v7477 = vmax.f32 %v7475, %v7476
    %v7478 = vrot.slane %v7477, 2
    %v7479 = vmax.f32 %v7477, %v7478
    %v7480 = vrot.slane %v7479, 1
    %v7481 = vmax.f32 %v7479, %v7480
    %v7482 = vsel %vm2099, %v7032, -inf
    %v7483 = vrot.slane %v7482, 4
    %v7484 = vmax.f32 %v7482, %v7483
    %v7485 = vrot.slane %v7484, 2
    %v7486 = vmax.f32 %v7484, %v7485
    %v7487 = vrot.slane %v7486, 1
    %v7488 = vmax.f32 %v7486, %v7487
    %v7489 = vsel %vm2099, %v7040, -inf
    %v7490 = vrot.slane %v7489, 4
    %v7491 = vmax.f32 %v7489, %v7490
    %v7492 = vrot.slane %v7491, 2
    %v7493 = vmax.f32 %v7491, %v7492
    %v7494 = vrot.slane %v7493, 1
    %v7495 = vmax.f32 %v7493, %v7494
    %v7496 = vsel %vm2099, %v7039, -inf
    %v7497 = vrot.slane %v7496, 4
    %v7498 = vmax.f32 %v7496, %v7497
    %v7499 = vrot.slane %v7498, 2
    %v7500 = vmax.f32 %v7498, %v7499
    %v7501 = vrot.slane %v7500, 1
    %v7502 = vmax.f32 %v7500, %v7501
    %v7503 = vsel %vm2099, %v7041, -inf
    %v7504 = vrot.slane %v7503, 4
    %v7505 = vmax.f32 %v7503, %v7504
    %v7506 = vrot.slane %v7505, 2
    %v7507 = vmax.f32 %v7505, %v7506
    %v7508 = vrot.slane %v7507, 1
    %v7509 = vmax.f32 %v7507, %v7508
    %v7510 = vsel %vm2099, %v7049, -inf
    %v7511 = vrot.slane %v7510, 4
    %v7512 = vmax.f32 %v7510, %v7511
    %v7513 = vrot.slane %v7512, 2
    %v7514 = vmax.f32 %v7512, %v7513
    %v7515 = vrot.slane %v7514, 1
    %v7516 = vmax.f32 %v7514, %v7515
    %v7517 = vsel %vm2099, %v7057, -inf
    %v7518 = vrot.slane %v7517, 4
    %v7519 = vmax.f32 %v7517, %v7518
    %v7520 = vrot.slane %v7519, 2
    %v7521 = vmax.f32 %v7519, %v7520
    %v7522 = vrot.slane %v7521, 1
    %v7523 = vmax.f32 %v7521, %v7522
    %v7524 = vsel %vm2099, %v7056, -inf
    %v7525 = vrot.slane %v7524, 4
    %v7526 = vmax.f32 %v7524, %v7525
    %v7527 = vrot.slane %v7526, 2
    %v7528 = vmax.f32 %v7526, %v7527
    %v7529 = vrot.slane %v7528, 1
    %v7530 = vmax.f32 %v7528, %v7529
    %v7531 = vsel %vm2099, %v7058, -inf
    %v7532 = vrot.slane %v7531, 4
    %v7533 = vmax.f32 %v7531, %v7532
    %v7534 = vrot.slane %v7533, 2
    %v7535 = vmax.f32 %v7533, %v7534
    %v7536 = vrot.slane %v7535, 1
    %v7537 = vmax.f32 %v7535, %v7536
    %v7538 = vsel %vm2099, %v7066, -inf
    %v7539 = vrot.slane %v7538, 4
    %v7540 = vmax.f32 %v7538, %v7539
    %v7541 = vrot.slane %v7540, 2
    %v7542 = vmax.f32 %v7540, %v7541
    %v7543 = vrot.slane %v7542, 1
    %v7544 = vmax.f32 %v7542, %v7543
    %v7545 = vsel %vm2099, %v7074, -inf
    %v7546 = vrot.slane %v7545, 4
    %v7547 = vmax.f32 %v7545, %v7546
    %v7548 = vrot.slane %v7547, 2
    %v7549 = vmax.f32 %v7547, %v7548
    %v7550 = vrot.slane %v7549, 1
    %v7551 = vmax.f32 %v7549, %v7550
    %v7552 = vsel %vm2099, %v7073, -inf
    %v7553 = vrot.slane %v7552, 4
    %v7554 = vmax.f32 %v7552, %v7553
    %v7555 = vrot.slane %v7554, 2
    %v7556 = vmax.f32 %v7554, %v7555
    %v7557 = vrot.slane %v7556, 1
    %v7558 = vmax.f32 %v7556, %v7557
    %v7559 = vsel %vm2099, %v7075, -inf
    %v7560 = vrot.slane %v7559, 4
    %v7561 = vmax.f32 %v7559, %v7560
    %v7562 = vrot.slane %v7561, 2
    %v7563 = vmax.f32 %v7561, %v7562
    %v7564 = vrot.slane %v7563, 1
    %v7565 = vmax.f32 %v7563, %v7564
    %v7566 = vsel %vm2099, %v7083, -inf
    %v7567 = vrot.slane %v7566, 4
    %v7568 = vmax.f32 %v7566, %v7567
    %v7569 = vrot.slane %v7568, 2
    %v7570 = vmax.f32 %v7568, %v7569
    %v7571 = vrot.slane %v7570, 1
    %v7572 = vmax.f32 %v7570, %v7571
    %v7573 = vsel %vm2099, %v7091, -inf
    %v7574 = vrot.slane %v7573, 4
    %v7575 = vmax.f32 %v7573, %v7574
    %v7576 = vrot.slane %v7575, 2
    %v7577 = vmax.f32 %v7575, %v7576
    %v7578 = vrot.slane %v7577, 1
    %v7579 = vmax.f32 %v7577, %v7578
    %v7580 = vsel %vm2099, %v7090, -inf
    %v7581 = vrot.slane %v7580, 4
    %v7582 = vmax.f32 %v7580, %v7581
    %v7583 = vrot.slane %v7582, 2
    %v7584 = vmax.f32 %v7582, %v7583
    %v7585 = vrot.slane %v7584, 1
    %v7586 = vmax.f32 %v7584, %v7585
    %v7587 = vsel %vm2099, %v7092, -inf
    %v7588 = vrot.slane %v7587, 4
    %v7589 = vmax.f32 %v7587, %v7588
    %v7590 = vrot.slane %v7589, 2
    %v7591 = vmax.f32 %v7589, %v7590
    %v7592 = vrot.slane %v7591, 1
    %v7593 = vmax.f32 %v7591, %v7592
    %v7594 = vsel %vm2099, %v7100, -inf
    %v7595 = vrot.slane %v7594, 4
    %v7596 = vmax.f32 %v7594, %v7595
    %v7597 = vrot.slane %v7596, 2
    %v7598 = vmax.f32 %v7596, %v7597
    %v7599 = vrot.slane %v7598, 1
    %v7600 = vmax.f32 %v7598, %v7599
    %v7601 = vsel %vm2099, %v7108, -inf
    %v7602 = vrot.slane %v7601, 4
    %v7603 = vmax.f32 %v7601, %v7602
    %v7604 = vrot.slane %v7603, 2
    %v7605 = vmax.f32 %v7603, %v7604
    %v7606 = vrot.slane %v7605, 1
    %v7607 = vmax.f32 %v7605, %v7606
    %v7608 = vsel %vm2099, %v7107, -inf
    %v7609 = vrot.slane %v7608, 4
    %v7610 = vmax.f32 %v7608, %v7609
    %v7611 = vrot.slane %v7610, 2
    %v7612 = vmax.f32 %v7610, %v7611
    %v7613 = vrot.slane %v7612, 1
    %v7614 = vmax.f32 %v7612, %v7613
    %v7615 = vsel %vm2099, %v7109, -inf
    %v7616 = vrot.slane %v7615, 4
    %v7617 = vmax.f32 %v7615, %v7616
    %v7618 = vrot.slane %v7617, 2
    %v7619 = vmax.f32 %v7617, %v7618
    %v7620 = vrot.slane %v7619, 1
    %v7621 = vmax.f32 %v7619, %v7620
    %v7622 = vsel %vm3892, %v7180, -inf
    %v7623 = vsel %vm3892, %v7208, -inf
    %v7624 = vmax.f32 %v7622, %v7623
    %v7625 = vsel %vm3892, %v7187, -inf
    %v7626 = vsel %vm3892, %v7215, -inf
    %v7627 = vmax.f32 %v7625, %v7626
    %v7628 = vsel %vm3892, %v7194, -inf
    %v7629 = vsel %vm3892, %v7222, -inf
    %v7630 = vmax.f32 %v7628, %v7629
    %v7631 = vsel %vm3892, %v7201, -inf
    %v7632 = vsel %vm3892, %v7229, -inf
    %v7633 = vmax.f32 %v7631, %v7632
    %v7634 = vsel %vm3892, %v7236, -inf
    %v7635 = vsel %vm3892, %v7264, -inf
    %v7636 = vmax.f32 %v7634, %v7635
    %v7637 = vsel %vm3892, %v7243, -inf
    %v7638 = vsel %vm3892, %v7271, -inf
    %v7639 = vmax.f32 %v7637, %v7638
    %v7640 = vsel %vm3892, %v7250, -inf
    %v7641 = vsel %vm3892, %v7278, -inf
    %v7642 = vmax.f32 %v7640, %v7641
    %v7643 = vsel %vm3892, %v7257, -inf
    %v7644 = vsel %vm3892, %v7285, -inf
    %v7645 = vmax.f32 %v7643, %v7644
    %v7646 = vsel %vm3892, %v7292, -inf
    %v7647 = vsel %vm3892, %v7320, -inf
    %v7648 = vmax.f32 %v7646, %v7647
    %v7649 = vsel %vm3892, %v7299, -inf
    %v7650 = vsel %vm3892, %v7327, -inf
    %v7651 = vmax.f32 %v7649, %v7650
    %v7652 = vsel %vm3892, %v7306, -inf
    %v7653 = vsel %vm3892, %v7334, -inf
    %v7654 = vmax.f32 %v7652, %v7653
    %v7655 = vsel %vm3892, %v7313, -inf
    %v7656 = vsel %vm3892, %v7341, -inf
    %v7657 = vmax.f32 %v7655, %v7656
    %v7658 = vsel %vm3892, %v7348, -inf
    %v7659 = vsel %vm3892, %v7376, -inf
    %v7660 = vmax.f32 %v7658, %v7659
    %v7661 = vsel %vm3892, %v7355, -inf
    %v7662 = vsel %vm3892, %v7383, -inf
    %v7663 = vmax.f32 %v7661, %v7662
    %v7664 = vsel %vm3892, %v7362, -inf
    %v7665 = vsel %vm3892, %v7390, -inf
    %v7666 = vmax.f32 %v7664, %v7665
    %v7667 = vsel %vm3892, %v7369, -inf
    %v7668 = vsel %vm3892, %v7397, -inf
    %v7669 = vmax.f32 %v7667, %v7668
    %v7670 = vsel %vm3892, %v7404, -inf
    %v7671 = vsel %vm3892, %v7432, -inf
    %v7672 = vmax.f32 %v7670, %v7671
    %v7673 = vsel %vm3892, %v7411, -inf
    %v7674 = vsel %vm3892, %v7439, -inf
    %v7675 = vmax.f32 %v7673, %v7674
    %v7676 = vsel %vm3892, %v7418, -inf
    %v7677 = vsel %vm3892, %v7446, -inf
    %v7678 = vmax.f32 %v7676, %v7677
    %v7679 = vsel %vm3892, %v7425, -inf
    %v7680 = vsel %vm3892, %v7453, -inf
    %v7681 = vmax.f32 %v7679, %v7680
    %v7682 = vsel %vm3892, %v7460, -inf
    %v7683 = vsel %vm3892, %v7488, -inf
    %v7684 = vmax.f32 %v7682, %v7683
    %v7685 = vsel %vm3892, %v7467, -inf
    %v7686 = vsel %vm3892, %v7495, -inf
    %v7687 = vmax.f32 %v7685, %v7686
    %v7688 = vsel %vm3892, %v7474, -inf
    %v7689 = vsel %vm3892, %v7502, -inf
    %v7690 = vmax.f32 %v7688, %v7689
    %v7691 = vsel %vm3892, %v7481, -inf
    %v7692 = vsel %vm3892, %v7509, -inf
    %v7693 = vmax.f32 %v7691, %v7692
    %v7694 = vsel %vm3892, %v7516, -inf
    %v7695 = vsel %vm3892, %v7544, -inf
    %v7696 = vmax.f32 %v7694, %v7695
    %v7697 = vsel %vm3892, %v7523, -inf
    %v7698 = vsel %vm3892, %v7551, -inf
    %v7699 = vmax.f32 %v7697, %v7698
    %v7700 = vsel %vm3892, %v7530, -inf
    %v7701 = vsel %vm3892, %v7558, -inf
    %v7702 = vmax.f32 %v7700, %v7701
    %v7703 = vsel %vm3892, %v7537, -inf
    %v7704 = vsel %vm3892, %v7565, -inf
    %v7705 = vmax.f32 %v7703, %v7704
    %v7706 = vsel %vm3892, %v7572, -inf
    %v7707 = vsel %vm3892, %v7600, -inf
    %v7708 = vmax.f32 %v7706, %v7707
    %v7709 = vsel %vm3892, %v7579, -inf
    %v7710 = vsel %vm3892, %v7607, -inf
    %v7711 = vmax.f32 %v7709, %v7710
    %v7712 = vsel %vm3892, %v7586, -inf
    %v7713 = vsel %vm3892, %v7614, -inf
    %v7714 = vmax.f32 %v7712, %v7713
    %v7715 = vsel %vm3892, %v7593, -inf
    %v7716 = vsel %vm3892, %v7621, -inf
    %v7717 = vmax.f32 %v7715, %v7716
    %v7718 = vmax.f32 %v7624, 0.0
    %v7719 = vmax.f32 %v7627, 0.0
    %v7720 = vmax.f32 %v7630, 0.0
    %v7721 = vmax.f32 %v7633, 0.0
    %v7722 = vmax.f32 %v7636, 0.0
    %v7723 = vmax.f32 %v7639, 0.0
    %v7724 = vmax.f32 %v7642, 0.0
    %v7725 = vmax.f32 %v7645, 0.0
    %v7726 = vmax.f32 %v7648, 0.0
    %v7727 = vmax.f32 %v7651, 0.0
    %v7728 = vmax.f32 %v7654, 0.0
    %v7729 = vmax.f32 %v7657, 0.0
    %v7730 = vmax.f32 %v7660, 0.0
    %v7731 = vmax.f32 %v7663, 0.0
    %v7732 = vmax.f32 %v7666, 0.0
    %v7733 = vmax.f32 %v7669, 0.0
    %v7734 = vmax.f32 %v7672, 0.0
    %v7735 = vmax.f32 %v7675, 0.0
    %v7736 = vmax.f32 %v7678, 0.0
    %v7737 = vmax.f32 %v7681, 0.0
    %v7738 = vmax.f32 %v7684, 0.0
    %v7739 = vmax.f32 %v7687, 0.0
    %v7740 = vmax.f32 %v7690, 0.0
    %v7741 = vmax.f32 %v7693, 0.0
    %v7742 = vmax.f32 %v7696, 0.0
    %v7743 = vmax.f32 %v7699, 0.0
    %v7744 = vmax.f32 %v7702, 0.0
    %v7745 = vmax.f32 %v7705, 0.0
    %v7746 = vmax.f32 %v7708, 0.0
    %v7747 = vmax.f32 %v7711, 0.0
    %v7748 = vmax.f32 %v7714, 0.0
    %v7749 = vmax.f32 %v7717, 0.0
    %v7750 = vld [vmem:[%s5] sm:$0xff]
    %v7751 = vld [vmem:[%s5 + $0x8] sm:$0xff]
    %v7752 = vld [vmem:[%s5 + $0x10] sm:$0xff]
    %v7753 = vld [vmem:[%s5 + $0x18] sm:$0xff]
    %v7754 = vld [vmem:[%s5 + $0x20] sm:$0xff]
    %v7755 = vld [vmem:[%s5 + $0x28] sm:$0xff]
    %v7756 = vld [vmem:[%s5 + $0x30] sm:$0xff]
    %v7757 = vld [vmem:[%s5 + $0x38] sm:$0xff]
    %s7758 = scalar_lea.vmem %s5, 64
    %v7759 = vld [vmem:[%s7758] sm:$0xff]
    %v7760 = vld [vmem:[%s7758 + $0x8] sm:$0xff]
    %v7761 = vld [vmem:[%s7758 + $0x10] sm:$0xff]
    %v7762 = vld [vmem:[%s7758 + $0x18] sm:$0xff]
    %v7763 = vld [vmem:[%s7758 + $0x20] sm:$0xff]
    %v7764 = vld [vmem:[%s7758 + $0x28] sm:$0xff]
    %v7765 = vld [vmem:[%s7758 + $0x30] sm:$0xff]
    %v7766 = vld [vmem:[%s7758 + $0x38] sm:$0xff]
    %v7769 = vsel %vm4573, %v7735, %v7719
    %v7770 = vsel %vm3892, %v7769, 0
    %7772 = vmatprep.subr.mxu0 0.0
    %7773 = vmatpush1.msra.mxu0 %v7759
    %7774 = vmatprep.subr.mxu0 0.0
    %7775 = vmatpush1.msra.mxu0 %v7760
    %7776 = vmatprep.subr.mxu0 0.0
    %7777 = vmatpush1.msra.mxu0 %v7761
    %7778 = vmatprep.subr.mxu0 0.0
    %7779 = vmatpush1.msra.mxu0 %v7762
    %7780 = vmatprep.subr.mxu0 0.0
    %7781 = vmatpush1.msra.mxu0 %v7763
    %7782 = vmatprep.subr.mxu0 0.0
    %7783 = vmatpush1.msra.mxu0 %v7764
    %7784 = vmatprep.subr.mxu0 0.0
    %7785 = vmatpush1.msra.mxu0 %v7765
    %7786 = vmatprep.subr.mxu0 0.0
    %7787 = vmatpush1.msra.mxu0 %v7766
    %7788 = vmatprep.subr.mxu0 0.0
    %7789 = vmatpush1.msra.mxu0 0.0
    %7790 = vmatprep.subr.mxu0 0.0
    %7791 = vmatpush1.msra.mxu0 0.0
    %7792 = vmatprep.subr.mxu0 0.0
    %7793 = vmatpush1.msra.mxu0 0.0
    %7794 = vmatprep.subr.mxu0 0.0
    %7795 = vmatpush1.msra.mxu0 0.0
    %7796 = vmatprep.subr.mxu0 0.0
    %7797 = vmatpush1.msra.mxu0 0.0
    %7798 = vmatprep.subr.mxu0 0.0
    %7799 = vmatpush1.msra.mxu0 0.0
    %7800 = vmatprep.subr.mxu0 0.0
    %7801 = vmatpush1.msra.mxu0 0.0
    %7802 = vmatprep.subr.mxu0 0.0
    %7803 = vmatpush1.msra.mxu0 0.0
    %7804 = vmatprep.subr.mxu0 0.0
    %7805 = vmatpush1.msra.mxu0 0.0
    %7806 = vmatprep.subr.mxu0 0.0
    %7807 = vmatpush1.msra.mxu0 0.0
    %7808 = vmatprep.subr.mxu0 0.0
    %7809 = vmatpush1.msra.mxu0 0.0
    %7810 = vmatprep.subr.mxu0 0.0
    %7811 = vmatpush1.msra.mxu0 0.0
    %7812 = vmatprep.subr.mxu0 0.0
    %7813 = vmatpush1.msra.mxu0 0.0
    %7814 = vmatprep.subr.mxu0 0.0
    %7815 = vmatpush1.msra.mxu0 0.0
    %7816 = vmatprep.subr.mxu0 0.0
    %7817 = vmatpush1.msra.mxu0 0.0
    %7818 = vmatprep.subr.mxu0 0.0
    %7819 = vmatpush1.msra.mxu0 0.0
    %7820 = vmatprep.subr.mxu0 0.0
    %7821 = vmatpush1.msra.mxu0 0.0
    %7822 = vmatprep.subr.mxu0 0.0
    %7823 = vmatpush1.msra.mxu0 0.0
    %7824 = vmatprep.subr.mxu0 0.0
    %7825 = vmatpush1.msra.mxu0 0.0
    %7826 = vmatprep.subr.mxu0 0.0
    %7827 = vmatpush1.msra.mxu0 0.0
    %7828 = vmatprep.subr.mxu0 0.0
    %7829 = vmatpush1.msra.mxu0 0.0
    %7830 = vmatprep.subr.mxu0 0.0
    %7831 = vmatpush1.msra.mxu0 0.0
    %7832 = vmatprep.subr.mxu0 0.0
    %7833 = vmatpush1.msra.mxu0 0.0
    %7834 = vmatprep.subr.mxu0 0.0
    %7835 = vmatpush1.msra.mxu0 0.0
    %7836 = vmatprep.mubr.f32.mxu0 0.0
    %7837 = vmatmul.mubr.f32.gmra.mrb[0].mxu0 %v7770
    %v7838 = vpop.f32.mrb[0].mxu0
    %v7839 = vadd.f32 0.0, %v7838
    %v7840 = vpop.f32.mrb[0].mxu0
    %7841 = vdwg.mxu0
    %v7844 = vsel %vm4573, %v7734, %v7718
    %v7845 = vsel %vm3892, %v7844, 0
    %7847 = vmatprep.subr.mxu0 0.0
    %7848 = vmatpush1.msra.mxu0 %v7750
    %7849 = vmatprep.subr.mxu0 0.0
    %7850 = vmatpush1.msra.mxu0 %v7751
    %7851 = vmatprep.subr.mxu0 0.0
    %7852 = vmatpush1.msra.mxu0 %v7752
    %7853 = vmatprep.subr.mxu0 0.0
    %7854 = vmatpush1.msra.mxu0 %v7753
    %7855 = vmatprep.subr.mxu0 0.0
    %7856 = vmatpush1.msra.mxu0 %v7754
    %7857 = vmatprep.subr.mxu0 0.0
    %7858 = vmatpush1.msra.mxu0 %v7755
    %7859 = vmatprep.subr.mxu0 0.0
    %7860 = vmatpush1.msra.mxu0 %v7756
    %7861 = vmatprep.subr.mxu0 0.0
    %7862 = vmatpush1.msra.mxu0 %v7757
    %7863 = vmatprep.subr.mxu0 0.0
    %7864 = vmatpush1.msra.mxu0 0.0
    %7865 = vmatprep.subr.mxu0 0.0
    %7866 = vmatpush1.msra.mxu0 0.0
    %7867 = vmatprep.subr.mxu0 0.0
    %7868 = vmatpush1.msra.mxu0 0.0
    %7869 = vmatprep.subr.mxu0 0.0
    %7870 = vmatpush1.msra.mxu0 0.0
    %7871 = vmatprep.subr.mxu0 0.0
    %7872 = vmatpush1.msra.mxu0 0.0
    %7873 = vmatprep.subr.mxu0 0.0
    %7874 = vmatpush1.msra.mxu0 0.0
    %7875 = vmatprep.subr.mxu0 0.0
    %7876 = vmatpush1.msra.mxu0 0.0
    %7877 = vmatprep.subr.mxu0 0.0
    %7878 = vmatpush1.msra.mxu0 0.0
    %7879 = vmatprep.subr.mxu0 0.0
    %7880 = vmatpush1.msra.mxu0 0.0
    %7881 = vmatprep.subr.mxu0 0.0
    %7882 = vmatpush1.msra.mxu0 0.0
    %7883 = vmatprep.subr.mxu0 0.0
    %7884 = vmatpush1.msra.mxu0 0.0
    %7885 = vmatprep.subr.mxu0 0.0
    %7886 = vmatpush1.msra.mxu0 0.0
    %7887 = vmatprep.subr.mxu0 0.0
    %7888 = vmatpush1.msra.mxu0 0.0
    %7889 = vmatprep.subr.mxu0 0.0
    %7890 = vmatpush1.msra.mxu0 0.0
    %7891 = vmatprep.subr.mxu0 0.0
    %7892 = vmatpush1.msra.mxu0 0.0
    %7893 = vmatprep.subr.mxu0 0.0
    %7894 = vmatpush1.msra.mxu0 0.0
    %7895 = vmatprep.subr.mxu0 0.0
    %7896 = vmatpush1.msra.mxu0 0.0
    %7897 = vmatprep.subr.mxu0 0.0
    %7898 = vmatpush1.msra.mxu0 0.0
    %7899 = vmatprep.subr.mxu0 0.0
    %7900 = vmatpush1.msra.mxu0 0.0
    %7901 = vmatprep.subr.mxu0 0.0
    %7902 = vmatpush1.msra.mxu0 0.0
    %7903 = vmatprep.subr.mxu0 0.0
    %7904 = vmatpush1.msra.mxu0 0.0
    %7905 = vmatprep.subr.mxu0 0.0
    %7906 = vmatpush1.msra.mxu0 0.0
    %7907 = vmatprep.subr.mxu0 0.0
    %7908 = vmatpush1.msra.mxu0 0.0
    %7909 = vmatprep.subr.mxu0 0.0
    %7910 = vmatpush1.msra.mxu0 0.0
    %7911 = vmatprep.mubr.f32.mxu0 0.0
    %7912 = vmatmul.mubr.f32.gmra.mrb[0].mxu0 %v7845
    %v7913 = vpop.f32.mrb[0].mxu0
    %v7914 = vadd.f32 %v7839, %v7913
    %v7915 = vpop.f32.mrb[0].mxu0
    %7916 = vdwg.mxu0
    %s7917 = scalar_lea.vmem %s5, 128
    %v7918 = vld [vmem:[%s7917] sm:$0xff]
    %v7919 = vld [vmem:[%s7917 + $0x8] sm:$0xff]
    %v7920 = vld [vmem:[%s7917 + $0x10] sm:$0xff]
    %v7921 = vld [vmem:[%s7917 + $0x18] sm:$0xff]
    %v7922 = vld [vmem:[%s7917 + $0x20] sm:$0xff]
    %v7923 = vld [vmem:[%s7917 + $0x28] sm:$0xff]
    %v7924 = vld [vmem:[%s7917 + $0x30] sm:$0xff]
    %v7925 = vld [vmem:[%s7917 + $0x38] sm:$0xff]
    %v7928 = vsel %vm4573, %v7736, %v7720
    %v7929 = vsel %vm3892, %v7928, 0
    %7931 = vmatprep.subr.mxu0 0.0
    %7932 = vmatpush1.msra.mxu0 %v7918
    %7933 = vmatprep.subr.mxu0 0.0
    %7934 = vmatpush1.msra.mxu0 %v7919
    %7935 = vmatprep.subr.mxu0 0.0
    %7936 = vmatpush1.msra.mxu0 %v7920
    %7937 = vmatprep.subr.mxu0 0.0
    %7938 = vmatpush1.msra.mxu0 %v7921
    %7939 = vmatprep.subr.mxu0 0.0
    %7940 = vmatpush1.msra.mxu0 %v7922
    %7941 = vmatprep.subr.mxu0 0.0
    %7942 = vmatpush1.msra.mxu0 %v7923
    %7943 = vmatprep.subr.mxu0 0.0
    %7944 = vmatpush1.msra.mxu0 %v7924
    %7945 = vmatprep.subr.mxu0 0.0
    %7946 = vmatpush1.msra.mxu0 %v7925
    %7947 = vmatprep.subr.mxu0 0.0
    %7948 = vmatpush1.msra.mxu0 0.0
    %7949 = vmatprep.subr.mxu0 0.0
    %7950 = vmatpush1.msra.mxu0 0.0
    %7951 = vmatprep.subr.mxu0 0.0
    %7952 = vmatpush1.msra.mxu0 0.0
    %7953 = vmatprep.subr.mxu0 0.0
    %7954 = vmatpush1.msra.mxu0 0.0
    %7955 = vmatprep.subr.mxu0 0.0
    %7956 = vmatpush1.msra.mxu0 0.0
    %7957 = vmatprep.subr.mxu0 0.0
    %7958 = vmatpush1.msra.mxu0 0.0
    %7959 = vmatprep.subr.mxu0 0.0
    %7960 = vmatpush1.msra.mxu0 0.0
    %7961 = vmatprep.subr.mxu0 0.0
    %7962 = vmatpush1.msra.mxu0 0.0
    %7963 = vmatprep.subr.mxu0 0.0
    %7964 = vmatpush1.msra.mxu0 0.0
    %7965 = vmatprep.subr.mxu0 0.0
    %7966 = vmatpush1.msra.mxu0 0.0
    %7967 = vmatprep.subr.mxu0 0.0
    %7968 = vmatpush1.msra.mxu0 0.0
    %7969 = vmatprep.subr.mxu0 0.0
    %7970 = vmatpush1.msra.mxu0 0.0
    %7971 = vmatprep.subr.mxu0 0.0
    %7972 = vmatpush1.msra.mxu0 0.0
    %7973 = vmatprep.subr.mxu0 0.0
    %7974 = vmatpush1.msra.mxu0 0.0
    %7975 = vmatprep.subr.mxu0 0.0
    %7976 = vmatpush1.msra.mxu0 0.0
    %7977 = vmatprep.subr.mxu0 0.0
    %7978 = vmatpush1.msra.mxu0 0.0
    %7979 = vmatprep.subr.mxu0 0.0
    %7980 = vmatpush1.msra.mxu0 0.0
    %7981 = vmatprep.subr.mxu0 0.0
    %7982 = vmatpush1.msra.mxu0 0.0
    %7983 = vmatprep.subr.mxu0 0.0
    %7984 = vmatpush1.msra.mxu0 0.0
    %7985 = vmatprep.subr.mxu0 0.0
    %7986 = vmatpush1.msra.mxu0 0.0
    %7987 = vmatprep.subr.mxu0 0.0
    %7988 = vmatpush1.msra.mxu0 0.0
    %7989 = vmatprep.subr.mxu0 0.0
    %7990 = vmatpush1.msra.mxu0 0.0
    %7991 = vmatprep.subr.mxu0 0.0
    %7992 = vmatpush1.msra.mxu0 0.0
    %7993 = vmatprep.subr.mxu0 0.0
    %7994 = vmatpush1.msra.mxu0 0.0
    %7995 = vmatprep.mubr.f32.mxu0 0.0
    %7996 = vmatmul.mubr.f32.gmra.mrb[0].mxu0 %v7929
    %v7997 = vpop.f32.mrb[0].mxu0
    %v7998 = vadd.f32 0.0, %v7997
    %v7999 = vpop.f32.mrb[0].mxu0
    %8000 = vdwg.mxu0
    %v8001 = vadd.f32 %v7914, %v7998
    %s8002 = scalar_lea.vmem %s5, 192
    %v8003 = vld [vmem:[%s8002] sm:$0xff]
    %v8004 = vld [vmem:[%s8002 + $0x8] sm:$0xff]
    %v8005 = vld [vmem:[%s8002 + $0x10] sm:$0xff]
    %v8006 = vld [vmem:[%s8002 + $0x18] sm:$0xff]
    %v8007 = vld [vmem:[%s8002 + $0x20] sm:$0xff]
    %v8008 = vld [vmem:[%s8002 + $0x28] sm:$0xff]
    %v8009 = vld [vmem:[%s8002 + $0x30] sm:$0xff]
    %v8010 = vld [vmem:[%s8002 + $0x38] sm:$0xff]
    %v8013 = vsel %vm4573, %v7737, %v7721
    %v8014 = vsel %vm3892, %v8013, 0
    %8016 = vmatprep.subr.mxu0 0.0
    %8017 = vmatpush1.msra.mxu0 %v8003
    %8018 = vmatprep.subr.mxu0 0.0
    %8019 = vmatpush1.msra.mxu0 %v8004
    %8020 = vmatprep.subr.mxu0 0.0
    %8021 = vmatpush1.msra.mxu0 %v8005
    %8022 = vmatprep.subr.mxu0 0.0
    %8023 = vmatpush1.msra.mxu0 %v8006
    %8024 = vmatprep.subr.mxu0 0.0
    %8025 = vmatpush1.msra.mxu0 %v8007
    %8026 = vmatprep.subr.mxu0 0.0
    %8027 = vmatpush1.msra.mxu0 %v8008
    %8028 = vmatprep.subr.mxu0 0.0
    %8029 = vmatpush1.msra.mxu0 %v8009
    %8030 = vmatprep.subr.mxu0 0.0
    %8031 = vmatpush1.msra.mxu0 %v8010
    %8032 = vmatprep.subr.mxu0 0.0
    %8033 = vmatpush1.msra.mxu0 0.0
    %8034 = vmatprep.subr.mxu0 0.0
    %8035 = vmatpush1.msra.mxu0 0.0
    %8036 = vmatprep.subr.mxu0 0.0
    %8037 = vmatpush1.msra.mxu0 0.0
    %8038 = vmatprep.subr.mxu0 0.0
    %8039 = vmatpush1.msra.mxu0 0.0
    %8040 = vmatprep.subr.mxu0 0.0
    %8041 = vmatpush1.msra.mxu0 0.0
    %8042 = vmatprep.subr.mxu0 0.0
    %8043 = vmatpush1.msra.mxu0 0.0
    %8044 = vmatprep.subr.mxu0 0.0
    %8045 = vmatpush1.msra.mxu0 0.0
    %8046 = vmatprep.subr.mxu0 0.0
    %8047 = vmatpush1.msra.mxu0 0.0
    %8048 = vmatprep.subr.mxu0 0.0
    %8049 = vmatpush1.msra.mxu0 0.0
    %8050 = vmatprep.subr.mxu0 0.0
    %8051 = vmatpush1.msra.mxu0 0.0
    %8052 = vmatprep.subr.mxu0 0.0
    %8053 = vmatpush1.msra.mxu0 0.0
    %8054 = vmatprep.subr.mxu0 0.0
    %8055 = vmatpush1.msra.mxu0 0.0
    %8056 = vmatprep.subr.mxu0 0.0
    %8057 = vmatpush1.msra.mxu0 0.0
    %8058 = vmatprep.subr.mxu0 0.0
    %8059 = vmatpush1.msra.mxu0 0.0
    %8060 = vmatprep.subr.mxu0 0.0
    %8061 = vmatpush1.msra.mxu0 0.0
    %8062 = vmatprep.subr.mxu0 0.0
    %8063 = vmatpush1.msra.mxu0 0.0
    %8064 = vmatprep.subr.mxu0 0.0
    %8065 = vmatpush1.msra.mxu0 0.0
    %8066 = vmatprep.subr.mxu0 0.0
    %8067 = vmatpush1.msra.mxu0 0.0
    %8068 = vmatprep.subr.mxu0 0.0
    %8069 = vmatpush1.msra.mxu0 0.0
    %8070 = vmatprep.subr.mxu0 0.0
    %8071 = vmatpush1.msra.mxu0 0.0
    %8072 = vmatprep.subr.mxu0 0.0
    %8073 = vmatpush1.msra.mxu0 0.0
    %8074 = vmatprep.subr.mxu0 0.0
    %8075 = vmatpush1.msra.mxu0 0.0
    %8076 = vmatprep.subr.mxu0 0.0
    %8077 = vmatpush1.msra.mxu0 0.0
    %8078 = vmatprep.subr.mxu0 0.0
    %8079 = vmatpush1.msra.mxu0 0.0
    %8080 = vmatprep.mubr.f32.mxu0 0.0
    %8081 = vmatmul.mubr.f32.gmra.mrb[0].mxu0 %v8014
    %v8082 = vpop.f32.mrb[0].mxu0
    %v8083 = vadd.f32 0.0, %v8082
    %v8084 = vpop.f32.mrb[0].mxu0
    %8085 = vdwg.mxu0
    %v8086 = vadd.f32 %v8001, %v8083
    %s8087 = scalar_lea.vmem %s5, 256
    %v8088 = vld [vmem:[%s8087] sm:$0xff]
    %v8089 = vld [vmem:[%s8087 + $0x8] sm:$0xff]
    %v8090 = vld [vmem:[%s8087 + $0x10] sm:$0xff]
    %v8091 = vld [vmem:[%s8087 + $0x18] sm:$0xff]
    %v8092 = vld [vmem:[%s8087 + $0x20] sm:$0xff]
    %v8093 = vld [vmem:[%s8087 + $0x28] sm:$0xff]
    %v8094 = vld [vmem:[%s8087 + $0x30] sm:$0xff]
    %v8095 = vld [vmem:[%s8087 + $0x38] sm:$0xff]
    %v8098 = vsel %vm4573, %v7738, %v7722
    %v8099 = vsel %vm3892, %v8098, 0
    %8101 = vmatprep.subr.mxu0 0.0
    %8102 = vmatpush1.msra.mxu0 %v8088
    %8103 = vmatprep.subr.mxu0 0.0
    %8104 = vmatpush1.msra.mxu0 %v8089
    %8105 = vmatprep.subr.mxu0 0.0
    %8106 = vmatpush1.msra.mxu0 %v8090
    %8107 = vmatprep.subr.mxu0 0.0
    %8108 = vmatpush1.msra.mxu0 %v8091
    %8109 = vmatprep.subr.mxu0 0.0
    %8110 = vmatpush1.msra.mxu0 %v8092
    %8111 = vmatprep.subr.mxu0 0.0
    %8112 = vmatpush1.msra.mxu0 %v8093
    %8113 = vmatprep.subr.mxu0 0.0
    %8114 = vmatpush1.msra.mxu0 %v8094
    %8115 = vmatprep.subr.mxu0 0.0
    %8116 = vmatpush1.msra.mxu0 %v8095
    %8117 = vmatprep.subr.mxu0 0.0
    %8118 = vmatpush1.msra.mxu0 0.0
    %8119 = vmatprep.subr.mxu0 0.0
    %8120 = vmatpush1.msra.mxu0 0.0
    %8121 = vmatprep.subr.mxu0 0.0
    %8122 = vmatpush1.msra.mxu0 0.0
    %8123 = vmatprep.subr.mxu0 0.0
    %8124 = vmatpush1.msra.mxu0 0.0
    %8125 = vmatprep.subr.mxu0 0.0
    %8126 = vmatpush1.msra.mxu0 0.0
    %8127 = vmatprep.subr.mxu0 0.0
    %8128 = vmatpush1.msra.mxu0 0.0
    %8129 = vmatprep.subr.mxu0 0.0
    %8130 = vmatpush1.msra.mxu0 0.0
    %8131 = vmatprep.subr.mxu0 0.0
    %8132 = vmatpush1.msra.mxu0 0.0
    %8133 = vmatprep.subr.mxu0 0.0
    %8134 = vmatpush1.msra.mxu0 0.0
    %8135 = vmatprep.subr.mxu0 0.0
    %8136 = vmatpush1.msra.mxu0 0.0
    %8137 = vmatprep.subr.mxu0 0.0
    %8138 = vmatpush1.msra.mxu0 0.0
    %8139 = vmatprep.subr.mxu0 0.0
    %8140 = vmatpush1.msra.mxu0 0.0
    %8141 = vmatprep.subr.mxu0 0.0
    %8142 = vmatpush1.msra.mxu0 0.0
    %8143 = vmatprep.subr.mxu0 0.0
    %8144 = vmatpush1.msra.mxu0 0.0
    %8145 = vmatprep.subr.mxu0 0.0
    %8146 = vmatpush1.msra.mxu0 0.0
    %8147 = vmatprep.subr.mxu0 0.0
    %8148 = vmatpush1.msra.mxu0 0.0
    %8149 = vmatprep.subr.mxu0 0.0
    %8150 = vmatpush1.msra.mxu0 0.0
    %8151 = vmatprep.subr.mxu0 0.0
    %8152 = vmatpush1.msra.mxu0 0.0
    %8153 = vmatprep.subr.mxu0 0.0
    %8154 = vmatpush1.msra.mxu0 0.0
    %8155 = vmatprep.subr.mxu0 0.0
    %8156 = vmatpush1.msra.mxu0 0.0
    %8157 = vmatprep.subr.mxu0 0.0
    %8158 = vmatpush1.msra.mxu0 0.0
    %8159 = vmatprep.subr.mxu0 0.0
    %8160 = vmatpush1.msra.mxu0 0.0
    %8161 = vmatprep.subr.mxu0 0.0
    %8162 = vmatpush1.msra.mxu0 0.0
    %8163 = vmatprep.subr.mxu0 0.0
    %8164 = vmatpush1.msra.mxu0 0.0
    %8165 = vmatprep.mubr.f32.mxu0 0.0
    %8166 = vmatmul.mubr.f32.gmra.mrb[0].mxu0 %v8099
    %v8167 = vpop.f32.mrb[0].mxu0
    %v8168 = vadd.f32 0.0, %v8167
    %v8169 = vpop.f32.mrb[0].mxu0
    %8170 = vdwg.mxu0
    %v8171 = vadd.f32 %v8086, %v8168
    %s8172 = scalar_lea.vmem %s5, 320
    %v8173 = vld [vmem:[%s8172] sm:$0xff]
    %v8174 = vld [vmem:[%s8172 + $0x8] sm:$0xff]
    %v8175 = vld [vmem:[%s8172 + $0x10] sm:$0xff]
    %v8176 = vld [vmem:[%s8172 + $0x18] sm:$0xff]
    %v8177 = vld [vmem:[%s8172 + $0x20] sm:$0xff]
    %v8178 = vld [vmem:[%s8172 + $0x28] sm:$0xff]
    %v8179 = vld [vmem:[%s8172 + $0x30] sm:$0xff]
    %v8180 = vld [vmem:[%s8172 + $0x38] sm:$0xff]
    %v8183 = vsel %vm4573, %v7739, %v7723
    %v8184 = vsel %vm3892, %v8183, 0
    %8186 = vmatprep.subr.mxu0 0.0
    %8187 = vmatpush1.msra.mxu0 %v8173
    %8188 = vmatprep.subr.mxu0 0.0
    %8189 = vmatpush1.msra.mxu0 %v8174
    %8190 = vmatprep.subr.mxu0 0.0
    %8191 = vmatpush1.msra.mxu0 %v8175
    %8192 = vmatprep.subr.mxu0 0.0
    %8193 = vmatpush1.msra.mxu0 %v8176
    %8194 = vmatprep.subr.mxu0 0.0
    %8195 = vmatpush1.msra.mxu0 %v8177
    %8196 = vmatprep.subr.mxu0 0.0
    %8197 = vmatpush1.msra.mxu0 %v8178
    %8198 = vmatprep.subr.mxu0 0.0
    %8199 = vmatpush1.msra.mxu0 %v8179
    %8200 = vmatprep.subr.mxu0 0.0
    %8201 = vmatpush1.msra.mxu0 %v8180
    %8202 = vmatprep.subr.mxu0 0.0
    %8203 = vmatpush1.msra.mxu0 0.0
    %8204 = vmatprep.subr.mxu0 0.0
    %8205 = vmatpush1.msra.mxu0 0.0
    %8206 = vmatprep.subr.mxu0 0.0
    %8207 = vmatpush1.msra.mxu0 0.0
    %8208 = vmatprep.subr.mxu0 0.0
    %8209 = vmatpush1.msra.mxu0 0.0
    %8210 = vmatprep.subr.mxu0 0.0
    %8211 = vmatpush1.msra.mxu0 0.0
    %8212 = vmatprep.subr.mxu0 0.0
    %8213 = vmatpush1.msra.mxu0 0.0
    %8214 = vmatprep.subr.mxu0 0.0
    %8215 = vmatpush1.msra.mxu0 0.0
    %8216 = vmatprep.subr.mxu0 0.0
    %8217 = vmatpush1.msra.mxu0 0.0
    %8218 = vmatprep.subr.mxu0 0.0
    %8219 = vmatpush1.msra.mxu0 0.0
    %8220 = vmatprep.subr.mxu0 0.0
    %8221 = vmatpush1.msra.mxu0 0.0
    %8222 = vmatprep.subr.mxu0 0.0
    %8223 = vmatpush1.msra.mxu0 0.0
    %8224 = vmatprep.subr.mxu0 0.0
    %8225 = vmatpush1.msra.mxu0 0.0
    %8226 = vmatprep.subr.mxu0 0.0
    %8227 = vmatpush1.msra.mxu0 0.0
    %8228 = vmatprep.subr.mxu0 0.0
    %8229 = vmatpush1.msra.mxu0 0.0
    %8230 = vmatprep.subr.mxu0 0.0
    %8231 = vmatpush1.msra.mxu0 0.0
    %8232 = vmatprep.subr.mxu0 0.0
    %8233 = vmatpush1.msra.mxu0 0.0
    %8234 = vmatprep.subr.mxu0 0.0
    %8235 = vmatpush1.msra.mxu0 0.0
    %8236 = vmatprep.subr.mxu0 0.0
    %8237 = vmatpush1.msra.mxu0 0.0
    %8238 = vmatprep.subr.mxu0 0.0
    %8239 = vmatpush1.msra.mxu0 0.0
    %8240 = vmatprep.subr.mxu0 0.0
    %8241 = vmatpush1.msra.mxu0 0.0
    %8242 = vmatprep.subr.mxu0 0.0
    %8243 = vmatpush1.msra.mxu0 0.0
    %8244 = vmatprep.subr.mxu0 0.0
    %8245 = vmatpush1.msra.mxu0 0.0
    %8246 = vmatprep.subr.mxu0 0.0
    %8247 = vmatpush1.msra.mxu0 0.0
    %8248 = vmatprep.subr.mxu0 0.0
    %8249 = vmatpush1.msra.mxu0 0.0
    %8250 = vmatprep.mubr.f32.mxu0 0.0
    %8251 = vmatmul.mubr.f32.gmra.mrb[0].mxu0 %v8184
    %v8252 = vpop.f32.mrb[0].mxu0
    %v8253 = vadd.f32 0.0, %v8252
    %v8254 = vpop.f32.mrb[0].mxu0
    %8255 = vdwg.mxu0
    %v8256 = vadd.f32 %v8171, %v8253
    %s8257 = scalar_lea.vmem %s5, 384
    %v8258 = vld [vmem:[%s8257] sm:$0xff]
    %v8259 = vld [vmem:[%s8257 + $0x8] sm:$0xff]
    %v8260 = vld [vmem:[%s8257 + $0x10] sm:$0xff]
    %v8261 = vld [vmem:[%s8257 + $0x18] sm:$0xff]
    %v8262 = vld [vmem:[%s8257 + $0x20] sm:$0xff]
    %v8263 = vld [vmem:[%s8257 + $0x28] sm:$0xff]
    %v8264 = vld [vmem:[%s8257 + $0x30] sm:$0xff]
    %v8265 = vld [vmem:[%s8257 + $0x38] sm:$0xff]
    %v8268 = vsel %vm4573, %v7740, %v7724
    %v8269 = vsel %vm3892, %v8268, 0
    %8271 = vmatprep.subr.mxu0 0.0
    %8272 = vmatpush1.msra.mxu0 %v8258
    %8273 = vmatprep.subr.mxu0 0.0
    %8274 = vmatpush1.msra.mxu0 %v8259
    %8275 = vmatprep.subr.mxu0 0.0
    %8276 = vmatpush1.msra.mxu0 %v8260
    %8277 = vmatprep.subr.mxu0 0.0
    %8278 = vmatpush1.msra.mxu0 %v8261
    %8279 = vmatprep.subr.mxu0 0.0
    %8280 = vmatpush1.msra.mxu0 %v8262
    %8281 = vmatprep.subr.mxu0 0.0
    %8282 = vmatpush1.msra.mxu0 %v8263
    %8283 = vmatprep.subr.mxu0 0.0
    %8284 = vmatpush1.msra.mxu0 %v8264
    %8285 = vmatprep.subr.mxu0 0.0
    %8286 = vmatpush1.msra.mxu0 %v8265
    %8287 = vmatprep.subr.mxu0 0.0
    %8288 = vmatpush1.msra.mxu0 0.0
    %8289 = vmatprep.subr.mxu0 0.0
    %8290 = vmatpush1.msra.mxu0 0.0
    %8291 = vmatprep.subr.mxu0 0.0
    %8292 = vmatpush1.msra.mxu0 0.0
    %8293 = vmatprep.subr.mxu0 0.0
    %8294 = vmatpush1.msra.mxu0 0.0
    %8295 = vmatprep.subr.mxu0 0.0
    %8296 = vmatpush1.msra.mxu0 0.0
    %8297 = vmatprep.subr.mxu0 0.0
    %8298 = vmatpush1.msra.mxu0 0.0
    %8299 = vmatprep.subr.mxu0 0.0
    %8300 = vmatpush1.msra.mxu0 0.0
    %8301 = vmatprep.subr.mxu0 0.0
    %8302 = vmatpush1.msra.mxu0 0.0
    %8303 = vmatprep.subr.mxu0 0.0
    %8304 = vmatpush1.msra.mxu0 0.0
    %8305 = vmatprep.subr.mxu0 0.0
    %8306 = vmatpush1.msra.mxu0 0.0
    %8307 = vmatprep.subr.mxu0 0.0
    %8308 = vmatpush1.msra.mxu0 0.0
    %8309 = vmatprep.subr.mxu0 0.0
    %8310 = vmatpush1.msra.mxu0 0.0
    %8311 = vmatprep.subr.mxu0 0.0
    %8312 = vmatpush1.msra.mxu0 0.0
    %8313 = vmatprep.subr.mxu0 0.0
    %8314 = vmatpush1.msra.mxu0 0.0
    %8315 = vmatprep.subr.mxu0 0.0
    %8316 = vmatpush1.msra.mxu0 0.0
    %8317 = vmatprep.subr.mxu0 0.0
    %8318 = vmatpush1.msra.mxu0 0.0
    %8319 = vmatprep.subr.mxu0 0.0
    %8320 = vmatpush1.msra.mxu0 0.0
    %8321 = vmatprep.subr.mxu0 0.0
    %8322 = vmatpush1.msra.mxu0 0.0
    %8323 = vmatprep.subr.mxu0 0.0
    %8324 = vmatpush1.msra.mxu0 0.0
    %8325 = vmatprep.subr.mxu0 0.0
    %8326 = vmatpush1.msra.mxu0 0.0
    %8327 = vmatprep.subr.mxu0 0.0
    %8328 = vmatpush1.msra.mxu0 0.0
    %8329 = vmatprep.subr.mxu0 0.0
    %8330 = vmatpush1.msra.mxu0 0.0
    %8331 = vmatprep.subr.mxu0 0.0
    %8332 = vmatpush1.msra.mxu0 0.0
    %8333 = vmatprep.subr.mxu0 0.0
    %8334 = vmatpush1.msra.mxu0 0.0
    %8335 = vmatprep.mubr.f32.mxu0 0.0
    %8336 = vmatmul.mubr.f32.gmra.mrb[0].mxu0 %v8269
    %v8337 = vpop.f32.mrb[0].mxu0
    %v8338 = vadd.f32 0.0, %v8337
    %v8339 = vpop.f32.mrb[0].mxu0
    %8340 = vdwg.mxu0
    %v8341 = vadd.f32 %v8256, %v8338
    %s8342 = scalar_lea.vmem %s5, 448
    %v8343 = vld [vmem:[%s8342] sm:$0xff]
    %v8344 = vld [vmem:[%s8342 + $0x8] sm:$0xff]
    %v8345 = vld [vmem:[%s8342 + $0x10] sm:$0xff]
    %v8346 = vld [vmem:[%s8342 + $0x18] sm:$0xff]
    %v8347 = vld [vmem:[%s8342 + $0x20] sm:$0xff]
    %v8348 = vld [vmem:[%s8342 + $0x28] sm:$0xff]
    %v8349 = vld [vmem:[%s8342 + $0x30] sm:$0xff]
    %v8350 = vld [vmem:[%s8342 + $0x38] sm:$0xff]
    %v8353 = vsel %vm4573, %v7741, %v7725
    %v8354 = vsel %vm3892, %v8353, 0
    %8356 = vmatprep.subr.mxu0 0.0
    %8357 = vmatpush1.msra.mxu0 %v8343
    %8358 = vmatprep.subr.mxu0 0.0
    %8359 = vmatpush1.msra.mxu0 %v8344
    %8360 = vmatprep.subr.mxu0 0.0
    %8361 = vmatpush1.msra.mxu0 %v8345
    %8362 = vmatprep.subr.mxu0 0.0
    %8363 = vmatpush1.msra.mxu0 %v8346
    %8364 = vmatprep.subr.mxu0 0.0
    %8365 = vmatpush1.msra.mxu0 %v8347
    %8366 = vmatprep.subr.mxu0 0.0
    %8367 = vmatpush1.msra.mxu0 %v8348
    %8368 = vmatprep.subr.mxu0 0.0
    %8369 = vmatpush1.msra.mxu0 %v8349
    %8370 = vmatprep.subr.mxu0 0.0
    %8371 = vmatpush1.msra.mxu0 %v8350
    %8372 = vmatprep.subr.mxu0 0.0
    %8373 = vmatpush1.msra.mxu0 0.0
    %8374 = vmatprep.subr.mxu0 0.0
    %8375 = vmatpush1.msra.mxu0 0.0
    %8376 = vmatprep.subr.mxu0 0.0
    %8377 = vmatpush1.msra.mxu0 0.0
    %8378 = vmatprep.subr.mxu0 0.0
    %8379 = vmatpush1.msra.mxu0 0.0
    %8380 = vmatprep.subr.mxu0 0.0
    %8381 = vmatpush1.msra.mxu0 0.0
    %8382 = vmatprep.subr.mxu0 0.0
    %8383 = vmatpush1.msra.mxu0 0.0
    %8384 = vmatprep.subr.mxu0 0.0
    %8385 = vmatpush1.msra.mxu0 0.0
    %8386 = vmatprep.subr.mxu0 0.0
    %8387 = vmatpush1.msra.mxu0 0.0
    %8388 = vmatprep.subr.mxu0 0.0
    %8389 = vmatpush1.msra.mxu0 0.0
    %8390 = vmatprep.subr.mxu0 0.0
    %8391 = vmatpush1.msra.mxu0 0.0
    %8392 = vmatprep.subr.mxu0 0.0
    %8393 = vmatpush1.msra.mxu0 0.0
    %8394 = vmatprep.subr.mxu0 0.0
    %8395 = vmatpush1.msra.mxu0 0.0
    %8396 = vmatprep.subr.mxu0 0.0
    %8397 = vmatpush1.msra.mxu0 0.0
    %8398 = vmatprep.subr.mxu0 0.0
    %8399 = vmatpush1.msra.mxu0 0.0
    %8400 = vmatprep.subr.mxu0 0.0
    %8401 = vmatpush1.msra.mxu0 0.0
    %8402 = vmatprep.subr.mxu0 0.0
    %8403 = vmatpush1.msra.mxu0 0.0
    %8404 = vmatprep.subr.mxu0 0.0
    %8405 = vmatpush1.msra.mxu0 0.0
    %8406 = vmatprep.subr.mxu0 0.0
    %8407 = vmatpush1.msra.mxu0 0.0
    %8408 = vmatprep.subr.mxu0 0.0
    %8409 = vmatpush1.msra.mxu0 0.0
    %8410 = vmatprep.subr.mxu0 0.0
    %8411 = vmatpush1.msra.mxu0 0.0
    %8412 = vmatprep.subr.mxu0 0.0
    %8413 = vmatpush1.msra.mxu0 0.0
    %8414 = vmatprep.subr.mxu0 0.0
    %8415 = vmatpush1.msra.mxu0 0.0
    %8416 = vmatprep.subr.mxu0 0.0
    %8417 = vmatpush1.msra.mxu0 0.0
    %8418 = vmatprep.subr.mxu0 0.0
    %8419 = vmatpush1.msra.mxu0 0.0
    %8420 = vmatprep.mubr.f32.mxu0 0.0
    %8421 = vmatmul.mubr.f32.gmra.mrb[0].mxu0 %v8354
    %v8422 = vpop.f32.mrb[0].mxu0
    %v8423 = vadd.f32 0.0, %v8422
    %v8424 = vpop.f32.mrb[0].mxu0
    %8425 = vdwg.mxu0
    %v8426 = vadd.f32 %v8341, %v8423
    %s8427 = scalar_lea.vmem %s5, 512
    %v8428 = vld [vmem:[%s8427] sm:$0xff]
    %v8429 = vld [vmem:[%s8427 + $0x8] sm:$0xff]
    %v8430 = vld [vmem:[%s8427 + $0x10] sm:$0xff]
    %v8431 = vld [vmem:[%s8427 + $0x18] sm:$0xff]
    %v8432 = vld [vmem:[%s8427 + $0x20] sm:$0xff]
    %v8433 = vld [vmem:[%s8427 + $0x28] sm:$0xff]
    %v8434 = vld [vmem:[%s8427 + $0x30] sm:$0xff]
    %v8435 = vld [vmem:[%s8427 + $0x38] sm:$0xff]
    %v8438 = vsel %vm4573, %v7742, %v7726
    %v8439 = vsel %vm3892, %v8438, 0
    %8441 = vmatprep.subr.mxu0 0.0
    %8442 = vmatpush1.msra.mxu0 %v8428
    %8443 = vmatprep.subr.mxu0 0.0
    %8444 = vmatpush1.msra.mxu0 %v8429
    %8445 = vmatprep.subr.mxu0 0.0
    %8446 = vmatpush1.msra.mxu0 %v8430
    %8447 = vmatprep.subr.mxu0 0.0
    %8448 = vmatpush1.msra.mxu0 %v8431
    %8449 = vmatprep.subr.mxu0 0.0
    %8450 = vmatpush1.msra.mxu0 %v8432
    %8451 = vmatprep.subr.mxu0 0.0
    %8452 = vmatpush1.msra.mxu0 %v8433
    %8453 = vmatprep.subr.mxu0 0.0
    %8454 = vmatpush1.msra.mxu0 %v8434
    %8455 = vmatprep.subr.mxu0 0.0
    %8456 = vmatpush1.msra.mxu0 %v8435
    %8457 = vmatprep.subr.mxu0 0.0
    %8458 = vmatpush1.msra.mxu0 0.0
    %8459 = vmatprep.subr.mxu0 0.0
    %8460 = vmatpush1.msra.mxu0 0.0
    %8461 = vmatprep.subr.mxu0 0.0
    %8462 = vmatpush1.msra.mxu0 0.0
    %8463 = vmatprep.subr.mxu0 0.0
    %8464 = vmatpush1.msra.mxu0 0.0
    %8465 = vmatprep.subr.mxu0 0.0
    %8466 = vmatpush1.msra.mxu0 0.0
    %8467 = vmatprep.subr.mxu0 0.0
    %8468 = vmatpush1.msra.mxu0 0.0
    %8469 = vmatprep.subr.mxu0 0.0
    %8470 = vmatpush1.msra.mxu0 0.0
    %8471 = vmatprep.subr.mxu0 0.0
    %8472 = vmatpush1.msra.mxu0 0.0
    %8473 = vmatprep.subr.mxu0 0.0
    %8474 = vmatpush1.msra.mxu0 0.0
    %8475 = vmatprep.subr.mxu0 0.0
    %8476 = vmatpush1.msra.mxu0 0.0
    %8477 = vmatprep.subr.mxu0 0.0
    %8478 = vmatpush1.msra.mxu0 0.0
    %8479 = vmatprep.subr.mxu0 0.0
    %8480 = vmatpush1.msra.mxu0 0.0
    %8481 = vmatprep.subr.mxu0 0.0
    %8482 = vmatpush1.msra.mxu0 0.0
    %8483 = vmatprep.subr.mxu0 0.0
    %8484 = vmatpush1.msra.mxu0 0.0
    %8485 = vmatprep.subr.mxu0 0.0
    %8486 = vmatpush1.msra.mxu0 0.0
    %8487 = vmatprep.subr.mxu0 0.0
    %8488 = vmatpush1.msra.mxu0 0.0
    %8489 = vmatprep.subr.mxu0 0.0
    %8490 = vmatpush1.msra.mxu0 0.0
    %8491 = vmatprep.subr.mxu0 0.0
    %8492 = vmatpush1.msra.mxu0 0.0
    %8493 = vmatprep.subr.mxu0 0.0
    %8494 = vmatpush1.msra.mxu0 0.0
    %8495 = vmatprep.subr.mxu0 0.0
    %8496 = vmatpush1.msra.mxu0 0.0
    %8497 = vmatprep.subr.mxu0 0.0
    %8498 = vmatpush1.msra.mxu0 0.0
    %8499 = vmatprep.subr.mxu0 0.0
    %8500 = vmatpush1.msra.mxu0 0.0
    %8501 = vmatprep.subr.mxu0 0.0
    %8502 = vmatpush1.msra.mxu0 0.0
    %8503 = vmatprep.subr.mxu0 0.0
    %8504 = vmatpush1.msra.mxu0 0.0
    %8505 = vmatprep.mubr.f32.mxu0 0.0
    %8506 = vmatmul.mubr.f32.gmra.mrb[0].mxu0 %v8439
    %v8507 = vpop.f32.mrb[0].mxu0
    %v8508 = vadd.f32 0.0, %v8507
    %v8509 = vpop.f32.mrb[0].mxu0
    %8510 = vdwg.mxu0
    %v8511 = vadd.f32 %v8426, %v8508
    %s8512 = scalar_lea.vmem %s5, 576
    %v8513 = vld [vmem:[%s8512] sm:$0xff]
    %v8514 = vld [vmem:[%s8512 + $0x8] sm:$0xff]
    %v8515 = vld [vmem:[%s8512 + $0x10] sm:$0xff]
    %v8516 = vld [vmem:[%s8512 + $0x18] sm:$0xff]
    %v8517 = vld [vmem:[%s8512 + $0x20] sm:$0xff]
    %v8518 = vld [vmem:[%s8512 + $0x28] sm:$0xff]
    %v8519 = vld [vmem:[%s8512 + $0x30] sm:$0xff]
    %v8520 = vld [vmem:[%s8512 + $0x38] sm:$0xff]
    %v8523 = vsel %vm4573, %v7743, %v7727
    %v8524 = vsel %vm3892, %v8523, 0
    %8526 = vmatprep.subr.mxu0 0.0
    %8527 = vmatpush1.msra.mxu0 %v8513
    %8528 = vmatprep.subr.mxu0 0.0
    %8529 = vmatpush1.msra.mxu0 %v8514
    %8530 = vmatprep.subr.mxu0 0.0
    %8531 = vmatpush1.msra.mxu0 %v8515
    %8532 = vmatprep.subr.mxu0 0.0
    %8533 = vmatpush1.msra.mxu0 %v8516
    %8534 = vmatprep.subr.mxu0 0.0
    %8535 = vmatpush1.msra.mxu0 %v8517
    %8536 = vmatprep.subr.mxu0 0.0
    %8537 = vmatpush1.msra.mxu0 %v8518
    %8538 = vmatprep.subr.mxu0 0.0
    %8539 = vmatpush1.msra.mxu0 %v8519
    %8540 = vmatprep.subr.mxu0 0.0
    %8541 = vmatpush1.msra.mxu0 %v8520
    %8542 = vmatprep.subr.mxu0 0.0
    %8543 = vmatpush1.msra.mxu0 0.0
    %8544 = vmatprep.subr.mxu0 0.0
    %8545 = vmatpush1.msra.mxu0 0.0
    %8546 = vmatprep.subr.mxu0 0.0
    %8547 = vmatpush1.msra.mxu0 0.0
    %8548 = vmatprep.subr.mxu0 0.0
    %8549 = vmatpush1.msra.mxu0 0.0
    %8550 = vmatprep.subr.mxu0 0.0
    %8551 = vmatpush1.msra.mxu0 0.0
    %8552 = vmatprep.subr.mxu0 0.0
    %8553 = vmatpush1.msra.mxu0 0.0
    %8554 = vmatprep.subr.mxu0 0.0
    %8555 = vmatpush1.msra.mxu0 0.0
    %8556 = vmatprep.subr.mxu0 0.0
    %8557 = vmatpush1.msra.mxu0 0.0
    %8558 = vmatprep.subr.mxu0 0.0
    %8559 = vmatpush1.msra.mxu0 0.0
    %8560 = vmatprep.subr.mxu0 0.0
    %8561 = vmatpush1.msra.mxu0 0.0
    %8562 = vmatprep.subr.mxu0 0.0
    %8563 = vmatpush1.msra.mxu0 0.0
    %8564 = vmatprep.subr.mxu0 0.0
    %8565 = vmatpush1.msra.mxu0 0.0
    %8566 = vmatprep.subr.mxu0 0.0
    %8567 = vmatpush1.msra.mxu0 0.0
    %8568 = vmatprep.subr.mxu0 0.0
    %8569 = vmatpush1.msra.mxu0 0.0
    %8570 = vmatprep.subr.mxu0 0.0
    %8571 = vmatpush1.msra.mxu0 0.0
    %8572 = vmatprep.subr.mxu0 0.0
    %8573 = vmatpush1.msra.mxu0 0.0
    %8574 = vmatprep.subr.mxu0 0.0
    %8575 = vmatpush1.msra.mxu0 0.0
    %8576 = vmatprep.subr.mxu0 0.0
    %8577 = vmatpush1.msra.mxu0 0.0
    %8578 = vmatprep.subr.mxu0 0.0
    %8579 = vmatpush1.msra.mxu0 0.0
    %8580 = vmatprep.subr.mxu0 0.0
    %8581 = vmatpush1.msra.mxu0 0.0
    %8582 = vmatprep.subr.mxu0 0.0
    %8583 = vmatpush1.msra.mxu0 0.0
    %8584 = vmatprep.subr.mxu0 0.0
    %8585 = vmatpush1.msra.mxu0 0.0
    %8586 = vmatprep.subr.mxu0 0.0
    %8587 = vmatpush1.msra.mxu0 0.0
    %8588 = vmatprep.subr.mxu0 0.0
    %8589 = vmatpush1.msra.mxu0 0.0
    %8590 = vmatprep.mubr.f32.mxu0 0.0
    %8591 = vmatmul.mubr.f32.gmra.mrb[0].mxu0 %v8524
    %v8592 = vpop.f32.mrb[0].mxu0
    %v8593 = vadd.f32 0.0, %v8592
    %v8594 = vpop.f32.mrb[0].mxu0
    %8595 = vdwg.mxu0
    %v8596 = vadd.f32 %v8511, %v8593
    %s8597 = scalar_lea.vmem %s5, 640
    %v8598 = vld [vmem:[%s8597] sm:$0xff]
    %v8599 = vld [vmem:[%s8597 + $0x8] sm:$0xff]
    %v8600 = vld [vmem:[%s8597 + $0x10] sm:$0xff]
    %v8601 = vld [vmem:[%s8597 + $0x18] sm:$0xff]
    %v8602 = vld [vmem:[%s8597 + $0x20] sm:$0xff]
    %v8603 = vld [vmem:[%s8597 + $0x28] sm:$0xff]
    %v8604 = vld [vmem:[%s8597 + $0x30] sm:$0xff]
    %v8605 = vld [vmem:[%s8597 + $0x38] sm:$0xff]
    %v8608 = vsel %vm4573, %v7744, %v7728
    %v8609 = vsel %vm3892, %v8608, 0
    %8611 = vmatprep.subr.mxu0 0.0
    %8612 = vmatpush1.msra.mxu0 %v8598
    %8613 = vmatprep.subr.mxu0 0.0
    %8614 = vmatpush1.msra.mxu0 %v8599
    %8615 = vmatprep.subr.mxu0 0.0
    %8616 = vmatpush1.msra.mxu0 %v8600
    %8617 = vmatprep.subr.mxu0 0.0
    %8618 = vmatpush1.msra.mxu0 %v8601
    %8619 = vmatprep.subr.mxu0 0.0
    %8620 = vmatpush1.msra.mxu0 %v8602
    %8621 = vmatprep.subr.mxu0 0.0
    %8622 = vmatpush1.msra.mxu0 %v8603
    %8623 = vmatprep.subr.mxu0 0.0
    %8624 = vmatpush1.msra.mxu0 %v8604
    %8625 = vmatprep.subr.mxu0 0.0
    %8626 = vmatpush1.msra.mxu0 %v8605
    %8627 = vmatprep.subr.mxu0 0.0
    %8628 = vmatpush1.msra.mxu0 0.0
    %8629 = vmatprep.subr.mxu0 0.0
    %8630 = vmatpush1.msra.mxu0 0.0
    %8631 = vmatprep.subr.mxu0 0.0
    %8632 = vmatpush1.msra.mxu0 0.0
    %8633 = vmatprep.subr.mxu0 0.0
    %8634 = vmatpush1.msra.mxu0 0.0
    %8635 = vmatprep.subr.mxu0 0.0
    %8636 = vmatpush1.msra.mxu0 0.0
    %8637 = vmatprep.subr.mxu0 0.0
    %8638 = vmatpush1.msra.mxu0 0.0
    %8639 = vmatprep.subr.mxu0 0.0
    %8640 = vmatpush1.msra.mxu0 0.0
    %8641 = vmatprep.subr.mxu0 0.0
    %8642 = vmatpush1.msra.mxu0 0.0
    %8643 = vmatprep.subr.mxu0 0.0
    %8644 = vmatpush1.msra.mxu0 0.0
    %8645 = vmatprep.subr.mxu0 0.0
    %8646 = vmatpush1.msra.mxu0 0.0
    %8647 = vmatprep.subr.mxu0 0.0
    %8648 = vmatpush1.msra.mxu0 0.0
    %8649 = vmatprep.subr.mxu0 0.0
    %8650 = vmatpush1.msra.mxu0 0.0
    %8651 = vmatprep.subr.mxu0 0.0
    %8652 = vmatpush1.msra.mxu0 0.0
    %8653 = vmatprep.subr.mxu0 0.0
    %8654 = vmatpush1.msra.mxu0 0.0
    %8655 = vmatprep.subr.mxu0 0.0
    %8656 = vmatpush1.msra.mxu0 0.0
    %8657 = vmatprep.subr.mxu0 0.0
    %8658 = vmatpush1.msra.mxu0 0.0
    %8659 = vmatprep.subr.mxu0 0.0
    %8660 = vmatpush1.msra.mxu0 0.0
    %8661 = vmatprep.subr.mxu0 0.0
    %8662 = vmatpush1.msra.mxu0 0.0
    %8663 = vmatprep.subr.mxu0 0.0
    %8664 = vmatpush1.msra.mxu0 0.0
    %8665 = vmatprep.subr.mxu0 0.0
    %8666 = vmatpush1.msra.mxu0 0.0
    %8667 = vmatprep.subr.mxu0 0.0
    %8668 = vmatpush1.msra.mxu0 0.0
    %8669 = vmatprep.subr.mxu0 0.0
    %8670 = vmatpush1.msra.mxu0 0.0
    %8671 = vmatprep.subr.mxu0 0.0
    %8672 = vmatpush1.msra.mxu0 0.0
    %8673 = vmatprep.subr.mxu0 0.0
    %8674 = vmatpush1.msra.mxu0 0.0
    %8675 = vmatprep.mubr.f32.mxu0 0.0
    %8676 = vmatmul.mubr.f32.gmra.mrb[0].mxu0 %v8609
    %v8677 = vpop.f32.mrb[0].mxu0
    %v8678 = vadd.f32 0.0, %v8677
    %v8679 = vpop.f32.mrb[0].mxu0
    %8680 = vdwg.mxu0
    %v8681 = vadd.f32 %v8596, %v8678
    %s8682 = scalar_lea.vmem %s5, 704
    %v8683 = vld [vmem:[%s8682] sm:$0xff]
    %v8684 = vld [vmem:[%s8682 + $0x8] sm:$0xff]
    %v8685 = vld [vmem:[%s8682 + $0x10] sm:$0xff]
    %v8686 = vld [vmem:[%s8682 + $0x18] sm:$0xff]
    %v8687 = vld [vmem:[%s8682 + $0x20] sm:$0xff]
    %v8688 = vld [vmem:[%s8682 + $0x28] sm:$0xff]
    %v8689 = vld [vmem:[%s8682 + $0x30] sm:$0xff]
    %v8690 = vld [vmem:[%s8682 + $0x38] sm:$0xff]
    %v8693 = vsel %vm4573, %v7745, %v7729
    %v8694 = vsel %vm3892, %v8693, 0
    %8696 = vmatprep.subr.mxu0 0.0
    %8697 = vmatpush1.msra.mxu0 %v8683
    %8698 = vmatprep.subr.mxu0 0.0
    %8699 = vmatpush1.msra.mxu0 %v8684
    %8700 = vmatprep.subr.mxu0 0.0
    %8701 = vmatpush1.msra.mxu0 %v8685
    %8702 = vmatprep.subr.mxu0 0.0
    %8703 = vmatpush1.msra.mxu0 %v8686
    %8704 = vmatprep.subr.mxu0 0.0
    %8705 = vmatpush1.msra.mxu0 %v8687
    %8706 = vmatprep.subr.mxu0 0.0
    %8707 = vmatpush1.msra.mxu0 %v8688
    %8708 = vmatprep.subr.mxu0 0.0
    %8709 = vmatpush1.msra.mxu0 %v8689
    %8710 = vmatprep.subr.mxu0 0.0
    %8711 = vmatpush1.msra.mxu0 %v8690
    %8712 = vmatprep.subr.mxu0 0.0
    %8713 = vmatpush1.msra.mxu0 0.0
    %8714 = vmatprep.subr.mxu0 0.0
    %8715 = vmatpush1.msra.mxu0 0.0
    %8716 = vmatprep.subr.mxu0 0.0
    %8717 = vmatpush1.msra.mxu0 0.0
    %8718 = vmatprep.subr.mxu0 0.0
    %8719 = vmatpush1.msra.mxu0 0.0
    %8720 = vmatprep.subr.mxu0 0.0
    %8721 = vmatpush1.msra.mxu0 0.0
    %8722 = vmatprep.subr.mxu0 0.0
    %8723 = vmatpush1.msra.mxu0 0.0
    %8724 = vmatprep.subr.mxu0 0.0
    %8725 = vmatpush1.msra.mxu0 0.0
    %8726 = vmatprep.subr.mxu0 0.0
    %8727 = vmatpush1.msra.mxu0 0.0
    %8728 = vmatprep.subr.mxu0 0.0
    %8729 = vmatpush1.msra.mxu0 0.0
    %8730 = vmatprep.subr.mxu0 0.0
    %8731 = vmatpush1.msra.mxu0 0.0
    %8732 = vmatprep.subr.mxu0 0.0
    %8733 = vmatpush1.msra.mxu0 0.0
    %8734 = vmatprep.subr.mxu0 0.0
    %8735 = vmatpush1.msra.mxu0 0.0
    %8736 = vmatprep.subr.mxu0 0.0
    %8737 = vmatpush1.msra.mxu0 0.0
    %8738 = vmatprep.subr.mxu0 0.0
    %8739 = vmatpush1.msra.mxu0 0.0
    %8740 = vmatprep.subr.mxu0 0.0
    %8741 = vmatpush1.msra.mxu0 0.0
    %8742 = vmatprep.subr.mxu0 0.0
    %8743 = vmatpush1.msra.mxu0 0.0
    %8744 = vmatprep.subr.mxu0 0.0
    %8745 = vmatpush1.msra.mxu0 0.0
    %8746 = vmatprep.subr.mxu0 0.0
    %8747 = vmatpush1.msra.mxu0 0.0
    %8748 = vmatprep.subr.mxu0 0.0
    %8749 = vmatpush1.msra.mxu0 0.0
    %8750 = vmatprep.subr.mxu0 0.0
    %8751 = vmatpush1.msra.mxu0 0.0
    %8752 = vmatprep.subr.mxu0 0.0
    %8753 = vmatpush1.msra.mxu0 0.0
    %8754 = vmatprep.subr.mxu0 0.0
    %8755 = vmatpush1.msra.mxu0 0.0
    %8756 = vmatprep.subr.mxu0 0.0
    %8757 = vmatpush1.msra.mxu0 0.0
    %8758 = vmatprep.subr.mxu0 0.0
    %8759 = vmatpush1.msra.mxu0 0.0
    %8760 = vmatprep.mubr.f32.mxu0 0.0
    %8761 = vmatmul.mubr.f32.gmra.mrb[0].mxu0 %v8694
    %v8762 = vpop.f32.mrb[0].mxu0
    %v8763 = vadd.f32 0.0, %v8762
    %v8764 = vpop.f32.mrb[0].mxu0
    %8765 = vdwg.mxu0
    %v8766 = vadd.f32 %v8681, %v8763
    %s8767 = scalar_lea.vmem %s5, 768
    %v8768 = vld [vmem:[%s8767] sm:$0xff]
    %v8769 = vld [vmem:[%s8767 + $0x8] sm:$0xff]
    %v8770 = vld [vmem:[%s8767 + $0x10] sm:$0xff]
    %v8771 = vld [vmem:[%s8767 + $0x18] sm:$0xff]
    %v8772 = vld [vmem:[%s8767 + $0x20] sm:$0xff]
    %v8773 = vld [vmem:[%s8767 + $0x28] sm:$0xff]
    %v8774 = vld [vmem:[%s8767 + $0x30] sm:$0xff]
    %v8775 = vld [vmem:[%s8767 + $0x38] sm:$0xff]
    %v8778 = vsel %vm4573, %v7746, %v7730
    %v8779 = vsel %vm3892, %v8778, 0
    %8781 = vmatprep.subr.mxu0 0.0
    %8782 = vmatpush1.msra.mxu0 %v8768
    %8783 = vmatprep.subr.mxu0 0.0
    %8784 = vmatpush1.msra.mxu0 %v8769
    %8785 = vmatprep.subr.mxu0 0.0
    %8786 = vmatpush1.msra.mxu0 %v8770
    %8787 = vmatprep.subr.mxu0 0.0
    %8788 = vmatpush1.msra.mxu0 %v8771
    %8789 = vmatprep.subr.mxu0 0.0
    %8790 = vmatpush1.msra.mxu0 %v8772
    %8791 = vmatprep.subr.mxu0 0.0
    %8792 = vmatpush1.msra.mxu0 %v8773
    %8793 = vmatprep.subr.mxu0 0.0
    %8794 = vmatpush1.msra.mxu0 %v8774
    %8795 = vmatprep.subr.mxu0 0.0
    %8796 = vmatpush1.msra.mxu0 %v8775
    %8797 = vmatprep.subr.mxu0 0.0
    %8798 = vmatpush1.msra.mxu0 0.0
    %8799 = vmatprep.subr.mxu0 0.0
    %8800 = vmatpush1.msra.mxu0 0.0
    %8801 = vmatprep.subr.mxu0 0.0
    %8802 = vmatpush1.msra.mxu0 0.0
    %8803 = vmatprep.subr.mxu0 0.0
    %8804 = vmatpush1.msra.mxu0 0.0
    %8805 = vmatprep.subr.mxu0 0.0
    %8806 = vmatpush1.msra.mxu0 0.0
    %8807 = vmatprep.subr.mxu0 0.0
    %8808 = vmatpush1.msra.mxu0 0.0
    %8809 = vmatprep.subr.mxu0 0.0
    %8810 = vmatpush1.msra.mxu0 0.0
    %8811 = vmatprep.subr.mxu0 0.0
    %8812 = vmatpush1.msra.mxu0 0.0
    %8813 = vmatprep.subr.mxu0 0.0
    %8814 = vmatpush1.msra.mxu0 0.0
    %8815 = vmatprep.subr.mxu0 0.0
    %8816 = vmatpush1.msra.mxu0 0.0
    %8817 = vmatprep.subr.mxu0 0.0
    %8818 = vmatpush1.msra.mxu0 0.0
    %8819 = vmatprep.subr.mxu0 0.0
    %8820 = vmatpush1.msra.mxu0 0.0
    %8821 = vmatprep.subr.mxu0 0.0
    %8822 = vmatpush1.msra.mxu0 0.0
    %8823 = vmatprep.subr.mxu0 0.0
    %8824 = vmatpush1.msra.mxu0 0.0
    %8825 = vmatprep.subr.mxu0 0.0
    %8826 = vmatpush1.msra.mxu0 0.0
    %8827 = vmatprep.subr.mxu0 0.0
    %8828 = vmatpush1.msra.mxu0 0.0
    %8829 = vmatprep.subr.mxu0 0.0
    %8830 = vmatpush1.msra.mxu0 0.0
    %8831 = vmatprep.subr.mxu0 0.0
    %8832 = vmatpush1.msra.mxu0 0.0
    %8833 = vmatprep.subr.mxu0 0.0
    %8834 = vmatpush1.msra.mxu0 0.0
    %8835 = vmatprep.subr.mxu0 0.0
    %8836 = vmatpush1.msra.mxu0 0.0
    %8837 = vmatprep.subr.mxu0 0.0
    %8838 = vmatpush1.msra.mxu0 0.0
    %8839 = vmatprep.subr.mxu0 0.0
    %8840 = vmatpush1.msra.mxu0 0.0
    %8841 = vmatprep.subr.mxu0 0.0
    %8842 = vmatpush1.msra.mxu0 0.0
    %8843 = vmatprep.subr.mxu0 0.0
    %8844 = vmatpush1.msra.mxu0 0.0
    %8845 = vmatprep.mubr.f32.mxu0 0.0
    %8846 = vmatmul.mubr.f32.gmra.mrb[0].mxu0 %v8779
    %v8847 = vpop.f32.mrb[0].mxu0
    %v8848 = vadd.f32 0.0, %v8847
    %v8849 = vpop.f32.mrb[0].mxu0
    %8850 = vdwg.mxu0
    %v8851 = vadd.f32 %v8766, %v8848
    %s8852 = scalar_lea.vmem %s5, 832
    %v8853 = vld [vmem:[%s8852] sm:$0xff]
    %v8854 = vld [vmem:[%s8852 + $0x8] sm:$0xff]
    %v8855 = vld [vmem:[%s8852 + $0x10] sm:$0xff]
    %v8856 = vld [vmem:[%s8852 + $0x18] sm:$0xff]
    %v8857 = vld [vmem:[%s8852 + $0x20] sm:$0xff]
    %v8858 = vld [vmem:[%s8852 + $0x28] sm:$0xff]
    %v8859 = vld [vmem:[%s8852 + $0x30] sm:$0xff]
    %v8860 = vld [vmem:[%s8852 + $0x38] sm:$0xff]
    %v8863 = vsel %vm4573, %v7747, %v7731
    %v8864 = vsel %vm3892, %v8863, 0
    %8866 = vmatprep.subr.mxu0 0.0
    %8867 = vmatpush1.msra.mxu0 %v8853
    %8868 = vmatprep.subr.mxu0 0.0
    %8869 = vmatpush1.msra.mxu0 %v8854
    %8870 = vmatprep.subr.mxu0 0.0
    %8871 = vmatpush1.msra.mxu0 %v8855
    %8872 = vmatprep.subr.mxu0 0.0
    %8873 = vmatpush1.msra.mxu0 %v8856
    %8874 = vmatprep.subr.mxu0 0.0
    %8875 = vmatpush1.msra.mxu0 %v8857
    %8876 = vmatprep.subr.mxu0 0.0
    %8877 = vmatpush1.msra.mxu0 %v8858
    %8878 = vmatprep.subr.mxu0 0.0
    %8879 = vmatpush1.msra.mxu0 %v8859
    %8880 = vmatprep.subr.mxu0 0.0
    %8881 = vmatpush1.msra.mxu0 %v8860
    %8882 = vmatprep.subr.mxu0 0.0
    %8883 = vmatpush1.msra.mxu0 0.0
    %8884 = vmatprep.subr.mxu0 0.0
    %8885 = vmatpush1.msra.mxu0 0.0
    %8886 = vmatprep.subr.mxu0 0.0
    %8887 = vmatpush1.msra.mxu0 0.0
    %8888 = vmatprep.subr.mxu0 0.0
    %8889 = vmatpush1.msra.mxu0 0.0
    %8890 = vmatprep.subr.mxu0 0.0
    %8891 = vmatpush1.msra.mxu0 0.0
    %8892 = vmatprep.subr.mxu0 0.0
    %8893 = vmatpush1.msra.mxu0 0.0
    %8894 = vmatprep.subr.mxu0 0.0
    %8895 = vmatpush1.msra.mxu0 0.0
    %8896 = vmatprep.subr.mxu0 0.0
    %8897 = vmatpush1.msra.mxu0 0.0
    %8898 = vmatprep.subr.mxu0 0.0
    %8899 = vmatpush1.msra.mxu0 0.0
    %8900 = vmatprep.subr.mxu0 0.0
    %8901 = vmatpush1.msra.mxu0 0.0
    %8902 = vmatprep.subr.mxu0 0.0
    %8903 = vmatpush1.msra.mxu0 0.0
    %8904 = vmatprep.subr.mxu0 0.0
    %8905 = vmatpush1.msra.mxu0 0.0
    %8906 = vmatprep.subr.mxu0 0.0
    %8907 = vmatpush1.msra.mxu0 0.0
    %8908 = vmatprep.subr.mxu0 0.0
    %8909 = vmatpush1.msra.mxu0 0.0
    %8910 = vmatprep.subr.mxu0 0.0
    %8911 = vmatpush1.msra.mxu0 0.0
    %8912 = vmatprep.subr.mxu0 0.0
    %8913 = vmatpush1.msra.mxu0 0.0
    %8914 = vmatprep.subr.mxu0 0.0
    %8915 = vmatpush1.msra.mxu0 0.0
    %8916 = vmatprep.subr.mxu0 0.0
    %8917 = vmatpush1.msra.mxu0 0.0
    %8918 = vmatprep.subr.mxu0 0.0
    %8919 = vmatpush1.msra.mxu0 0.0
    %8920 = vmatprep.subr.mxu0 0.0
    %8921 = vmatpush1.msra.mxu0 0.0
    %8922 = vmatprep.subr.mxu0 0.0
    %8923 = vmatpush1.msra.mxu0 0.0
    %8924 = vmatprep.subr.mxu0 0.0
    %8925 = vmatpush1.msra.mxu0 0.0
    %8926 = vmatprep.subr.mxu0 0.0
    %8927 = vmatpush1.msra.mxu0 0.0
    %8928 = vmatprep.subr.mxu0 0.0
    %8929 = vmatpush1.msra.mxu0 0.0
    %8930 = vmatprep.mubr.f32.mxu0 0.0
    %8931 = vmatmul.mubr.f32.gmra.mrb[0].mxu0 %v8864
    %v8932 = vpop.f32.mrb[0].mxu0
    %v8933 = vadd.f32 0.0, %v8932
    %v8934 = vpop.f32.mrb[0].mxu0
    %8935 = vdwg.mxu0
    %v8936 = vadd.f32 %v8851, %v8933
    %s8937 = scalar_lea.vmem %s5, 896
    %v8938 = vld [vmem:[%s8937] sm:$0xff]
    %v8939 = vld [vmem:[%s8937 + $0x8] sm:$0xff]
    %v8940 = vld [vmem:[%s8937 + $0x10] sm:$0xff]
    %v8941 = vld [vmem:[%s8937 + $0x18] sm:$0xff]
    %v8942 = vld [vmem:[%s8937 + $0x20] sm:$0xff]
    %v8943 = vld [vmem:[%s8937 + $0x28] sm:$0xff]
    %v8944 = vld [vmem:[%s8937 + $0x30] sm:$0xff]
    %v8945 = vld [vmem:[%s8937 + $0x38] sm:$0xff]
    %v8948 = vsel %vm4573, %v7748, %v7732
    %v8949 = vsel %vm3892, %v8948, 0
    %8951 = vmatprep.subr.mxu0 0.0
    %8952 = vmatpush1.msra.mxu0 %v8938
    %8953 = vmatprep.subr.mxu0 0.0
    %8954 = vmatpush1.msra.mxu0 %v8939
    %8955 = vmatprep.subr.mxu0 0.0
    %8956 = vmatpush1.msra.mxu0 %v8940
    %8957 = vmatprep.subr.mxu0 0.0
    %8958 = vmatpush1.msra.mxu0 %v8941
    %8959 = vmatprep.subr.mxu0 0.0
    %8960 = vmatpush1.msra.mxu0 %v8942
    %8961 = vmatprep.subr.mxu0 0.0
    %8962 = vmatpush1.msra.mxu0 %v8943
    %8963 = vmatprep.subr.mxu0 0.0
    %8964 = vmatpush1.msra.mxu0 %v8944
    %8965 = vmatprep.subr.mxu0 0.0
    %8966 = vmatpush1.msra.mxu0 %v8945
    %8967 = vmatprep.subr.mxu0 0.0
    %8968 = vmatpush1.msra.mxu0 0.0
    %8969 = vmatprep.subr.mxu0 0.0
    %8970 = vmatpush1.msra.mxu0 0.0
    %8971 = vmatprep.subr.mxu0 0.0
    %8972 = vmatpush1.msra.mxu0 0.0
    %8973 = vmatprep.subr.mxu0 0.0
    %8974 = vmatpush1.msra.mxu0 0.0
    %8975 = vmatprep.subr.mxu0 0.0
    %8976 = vmatpush1.msra.mxu0 0.0
    %8977 = vmatprep.subr.mxu0 0.0
    %8978 = vmatpush1.msra.mxu0 0.0
    %8979 = vmatprep.subr.mxu0 0.0
    %8980 = vmatpush1.msra.mxu0 0.0
    %8981 = vmatprep.subr.mxu0 0.0
    %8982 = vmatpush1.msra.mxu0 0.0
    %8983 = vmatprep.subr.mxu0 0.0
    %8984 = vmatpush1.msra.mxu0 0.0
    %8985 = vmatprep.subr.mxu0 0.0
    %8986 = vmatpush1.msra.mxu0 0.0
    %8987 = vmatprep.subr.mxu0 0.0
    %8988 = vmatpush1.msra.mxu0 0.0
    %8989 = vmatprep.subr.mxu0 0.0
    %8990 = vmatpush1.msra.mxu0 0.0
    %8991 = vmatprep.subr.mxu0 0.0
    %8992 = vmatpush1.msra.mxu0 0.0
    %8993 = vmatprep.subr.mxu0 0.0
    %8994 = vmatpush1.msra.mxu0 0.0
    %8995 = vmatprep.subr.mxu0 0.0
    %8996 = vmatpush1.msra.mxu0 0.0
    %8997 = vmatprep.subr.mxu0 0.0
    %8998 = vmatpush1.msra.mxu0 0.0
    %8999 = vmatprep.subr.mxu0 0.0
    %9000 = vmatpush1.msra.mxu0 0.0
    %9001 = vmatprep.subr.mxu0 0.0
    %9002 = vmatpush1.msra.mxu0 0.0
    %9003 = vmatprep.subr.mxu0 0.0
    %9004 = vmatpush1.msra.mxu0 0.0
    %9005 = vmatprep.subr.mxu0 0.0
    %9006 = vmatpush1.msra.mxu0 0.0
    %9007 = vmatprep.subr.mxu0 0.0
    %9008 = vmatpush1.msra.mxu0 0.0
    %9009 = vmatprep.subr.mxu0 0.0
    %9010 = vmatpush1.msra.mxu0 0.0
    %9011 = vmatprep.subr.mxu0 0.0
    %9012 = vmatpush1.msra.mxu0 0.0
    %9013 = vmatprep.subr.mxu0 0.0
    %9014 = vmatpush1.msra.mxu0 0.0
    %9015 = vmatprep.mubr.f32.mxu0 0.0
    %9016 = vmatmul.mubr.f32.gmra.mrb[0].mxu0 %v8949
    %v9017 = vpop.f32.mrb[0].mxu0
    %v9018 = vadd.f32 0.0, %v9017
    %v9019 = vpop.f32.mrb[0].mxu0
    %9020 = vdwg.mxu0
    %v9021 = vadd.f32 %v8936, %v9018
    %s9022 = scalar_lea.vmem %s5, 960
    %v9023 = vld [vmem:[%s9022] sm:$0xff]
    %v9024 = vld [vmem:[%s9022 + $0x8] sm:$0xff]
    %v9025 = vld [vmem:[%s9022 + $0x10] sm:$0xff]
    %v9026 = vld [vmem:[%s9022 + $0x18] sm:$0xff]
    %v9027 = vld [vmem:[%s9022 + $0x20] sm:$0xff]
    %v9028 = vld [vmem:[%s9022 + $0x28] sm:$0xff]
    %v9029 = vld [vmem:[%s9022 + $0x30] sm:$0xff]
    %v9030 = vld [vmem:[%s9022 + $0x38] sm:$0xff]
    %v9033 = vsel %vm4573, %v7749, %v7733
    %v9034 = vsel %vm3892, %v9033, 0
    %9036 = vmatprep.subr.mxu0 0.0
    %9037 = vmatpush1.msra.mxu0 %v9023
    %9038 = vmatprep.subr.mxu0 0.0
    %9039 = vmatpush1.msra.mxu0 %v9024
    %9040 = vmatprep.subr.mxu0 0.0
    %9041 = vmatpush1.msra.mxu0 %v9025
    %9042 = vmatprep.subr.mxu0 0.0
    %9043 = vmatpush1.msra.mxu0 %v9026
    %9044 = vmatprep.subr.mxu0 0.0
    %9045 = vmatpush1.msra.mxu0 %v9027
    %9046 = vmatprep.subr.mxu0 0.0
    %9047 = vmatpush1.msra.mxu0 %v9028
    %9048 = vmatprep.subr.mxu0 0.0
    %9049 = vmatpush1.msra.mxu0 %v9029
    %9050 = vmatprep.subr.mxu0 0.0
    %9051 = vmatpush1.msra.mxu0 %v9030
    %9052 = vmatprep.subr.mxu0 0.0
    %9053 = vmatpush1.msra.mxu0 0.0
    %9054 = vmatprep.subr.mxu0 0.0
    %9055 = vmatpush1.msra.mxu0 0.0
    %9056 = vmatprep.subr.mxu0 0.0
    %9057 = vmatpush1.msra.mxu0 0.0
    %9058 = vmatprep.subr.mxu0 0.0
    %9059 = vmatpush1.msra.mxu0 0.0
    %9060 = vmatprep.subr.mxu0 0.0
    %9061 = vmatpush1.msra.mxu0 0.0
    %9062 = vmatprep.subr.mxu0 0.0
    %9063 = vmatpush1.msra.mxu0 0.0
    %9064 = vmatprep.subr.mxu0 0.0
    %9065 = vmatpush1.msra.mxu0 0.0
    %9066 = vmatprep.subr.mxu0 0.0
    %9067 = vmatpush1.msra.mxu0 0.0
    %9068 = vmatprep.subr.mxu0 0.0
    %9069 = vmatpush1.msra.mxu0 0.0
    %9070 = vmatprep.subr.mxu0 0.0
    %9071 = vmatpush1.msra.mxu0 0.0
    %9072 = vmatprep.subr.mxu0 0.0
    %9073 = vmatpush1.msra.mxu0 0.0
    %9074 = vmatprep.subr.mxu0 0.0
    %9075 = vmatpush1.msra.mxu0 0.0
    %9076 = vmatprep.subr.mxu0 0.0
    %9077 = vmatpush1.msra.mxu0 0.0
    %9078 = vmatprep.subr.mxu0 0.0
    %9079 = vmatpush1.msra.mxu0 0.0
    %9080 = vmatprep.subr.mxu0 0.0
    %9081 = vmatpush1.msra.mxu0 0.0
    %9082 = vmatprep.subr.mxu0 0.0
    %9083 = vmatpush1.msra.mxu0 0.0
    %9084 = vmatprep.subr.mxu0 0.0
    %9085 = vmatpush1.msra.mxu0 0.0
    %9086 = vmatprep.subr.mxu0 0.0
    %9087 = vmatpush1.msra.mxu0 0.0
    %9088 = vmatprep.subr.mxu0 0.0
    %9089 = vmatpush1.msra.mxu0 0.0
    %9090 = vmatprep.subr.mxu0 0.0
    %9091 = vmatpush1.msra.mxu0 0.0
    %9092 = vmatprep.subr.mxu0 0.0
    %9093 = vmatpush1.msra.mxu0 0.0
    %9094 = vmatprep.subr.mxu0 0.0
    %9095 = vmatpush1.msra.mxu0 0.0
    %9096 = vmatprep.subr.mxu0 0.0
    %9097 = vmatpush1.msra.mxu0 0.0
    %9098 = vmatprep.subr.mxu0 0.0
    %9099 = vmatpush1.msra.mxu0 0.0
    %9100 = vmatprep.mubr.f32.mxu0 0.0
    %9101 = vmatmul.mubr.f32.gmra.mrb[0].mxu0 %v9034
    %v9102 = vpop.f32.mrb[0].mxu0
    %v9103 = vadd.f32 0.0, %v9102
    %v9104 = vpop.f32.mrb[0].mxu0
    %9105 = vdwg.mxu0
    %v9106 = vadd.f32 %v9021, %v9103
    %v9107 = vld [vmem:[%s6] sm:$0x1]
    %v9109 = vlaneseq
    %v9110 = vshrl.u32 %v9109, 7
    %v9111 = vsub.s32 0, %v9110
    %v9112 = vrot.slane %v9107, %v9111
    %v9114 = vadd.f32 %v9106, %v9112
    %v9115 = vmax.f32 %v9114, 0.0
    %v9116 = vld [vmem:[%s7] sm:$0xff]
    %v9117 = vld [vmem:[%s7 + $0x8] sm:$0xff]
    %v9118 = vld [vmem:[%s7 + $0x10] sm:$0xff]
    %v9119 = vld [vmem:[%s7 + $0x18] sm:$0xff]
    %v9120 = vld [vmem:[%s7 + $0x20] sm:$0xff]
    %v9121 = vld [vmem:[%s7 + $0x28] sm:$0xff]
    %v9122 = vld [vmem:[%s7 + $0x30] sm:$0xff]
    %v9123 = vld [vmem:[%s7 + $0x38] sm:$0xff]
    %v9124 = vld [vmem:[%s8] sm:$0x1]
    %v9126 = vlaneseq
    %v9127 = vshrl.u32 %v9126, 7
    %v9128 = vsub.s32 0, %v9127
    %v9129 = vrot.slane %v9124, %v9128
    %v9132 = vsel %vm3892, %v9115, 0
    %9134 = vmatprep.subr.mxu0 0.0
    %9135 = vmatpush1.msra.mxu0 %v9116
    %9136 = vmatprep.subr.mxu0 0.0
    %9137 = vmatpush1.msra.mxu0 %v9117
    %9138 = vmatprep.subr.mxu0 0.0
    %9139 = vmatpush1.msra.mxu0 %v9118
    %9140 = vmatprep.subr.mxu0 0.0
    %9141 = vmatpush1.msra.mxu0 %v9119
    %9142 = vmatprep.subr.mxu0 0.0
    %9143 = vmatpush1.msra.mxu0 %v9120
    %9144 = vmatprep.subr.mxu0 0.0
    %9145 = vmatpush1.msra.mxu0 %v9121
    %9146 = vmatprep.subr.mxu0 0.0
    %9147 = vmatpush1.msra.mxu0 %v9122
    %9148 = vmatprep.subr.mxu0 0.0
    %9149 = vmatpush1.msra.mxu0 %v9123
    %9150 = vmatprep.subr.mxu0 0.0
    %9151 = vmatpush1.msra.mxu0 0.0
    %9152 = vmatprep.subr.mxu0 0.0
    %9153 = vmatpush1.msra.mxu0 0.0
    %9154 = vmatprep.subr.mxu0 0.0
    %9155 = vmatpush1.msra.mxu0 0.0
    %9156 = vmatprep.subr.mxu0 0.0
    %9157 = vmatpush1.msra.mxu0 0.0
    %9158 = vmatprep.subr.mxu0 0.0
    %9159 = vmatpush1.msra.mxu0 0.0
    %9160 = vmatprep.subr.mxu0 0.0
    %9161 = vmatpush1.msra.mxu0 0.0
    %9162 = vmatprep.subr.mxu0 0.0
    %9163 = vmatpush1.msra.mxu0 0.0
    %9164 = vmatprep.subr.mxu0 0.0
    %9165 = vmatpush1.msra.mxu0 0.0
    %9166 = vmatprep.subr.mxu0 0.0
    %9167 = vmatpush1.msra.mxu0 0.0
    %9168 = vmatprep.subr.mxu0 0.0
    %9169 = vmatpush1.msra.mxu0 0.0
    %9170 = vmatprep.subr.mxu0 0.0
    %9171 = vmatpush1.msra.mxu0 0.0
    %9172 = vmatprep.subr.mxu0 0.0
    %9173 = vmatpush1.msra.mxu0 0.0
    %9174 = vmatprep.subr.mxu0 0.0
    %9175 = vmatpush1.msra.mxu0 0.0
    %9176 = vmatprep.subr.mxu0 0.0
    %9177 = vmatpush1.msra.mxu0 0.0
    %9178 = vmatprep.subr.mxu0 0.0
    %9179 = vmatpush1.msra.mxu0 0.0
    %9180 = vmatprep.subr.mxu0 0.0
    %9181 = vmatpush1.msra.mxu0 0.0
    %9182 = vmatprep.subr.mxu0 0.0
    %9183 = vmatpush1.msra.mxu0 0.0
    %9184 = vmatprep.subr.mxu0 0.0
    %9185 = vmatpush1.msra.mxu0 0.0
    %9186 = vmatprep.subr.mxu0 0.0
    %9187 = vmatpush1.msra.mxu0 0.0
    %9188 = vmatprep.subr.mxu0 0.0
    %9189 = vmatpush1.msra.mxu0 0.0
    %9190 = vmatprep.subr.mxu0 0.0
    %9191 = vmatpush1.msra.mxu0 0.0
    %9192 = vmatprep.subr.mxu0 0.0
    %9193 = vmatpush1.msra.mxu0 0.0
    %9194 = vmatprep.subr.mxu0 0.0
    %9195 = vmatpush1.msra.mxu0 0.0
    %9196 = vmatprep.subr.mxu0 0.0
    %9197 = vmatpush1.msra.mxu0 0.0
    %9198 = vmatprep.mubr.f32.mxu0 0.0
    %9199 = vmatmul.mubr.f32.gmra.mrb[0].mxu0 %v9132
    %v9200 = vpop.f32.mrb[0].mxu0
    %v9201 = vadd.f32 %v9129, %v9200
    %v9202 = vpop.f32.mrb[0].mxu0
    %9203 = vdwg.mxu0
    %vm9204 = vcmask 74752
    %v9205 = vsel %vm9204, %v9201, -inf
    %9206 = vmax.xlane.f32.xlu0 %v9205
    %v9207 = vpop.xlane.xlu0 %9206
    %v9208 = vsub.f32 %v9201, %v9207
    %v9209 = vmul.f32 %v9208, 1.442695
    %v9210 = vpow.pop %v9209
    %v9211 = vsel %vm9204, %v9210, 0.0
    %9212 = vadd.xlane.f32.xlu0 %v9211
    %v9213 = vpop.xlane.xlu0 %9212
    %v9214 = vlog2.pop %v9213
    %v9215 = vmul.f32 %v9214, 0.6931472
    %v9216 = vadd.f32 %v9215, %v9207
    %v9217 = vsub.f32 %v9201, %v9216
    %9218 = vst.msk [vmem:[#allocation3] sm:$0x3] %vm9204, %v9217
    // Predicated region
    $region38: #{cnn_forward.1} parent=1 // pred_check
      _
    $region39: #{cnn_forward.1} parent=1 // pred_check_branch
      %9220 = sbr.rel (0) target = $region41
    $region40: #{cnn_forward.1} parent=1 // pred_region
      %s9222 = ssub.s32 32, 32
      %9223 = vsyncadd [#allocation4], %s9222
      %s9225 = sshll.u32 [#allocation3], 4
      %s9226 = int_to_ptr.vmem [resolvable:$true] %s9225
      %9228 = dma.vmem_to_hbm [thread:$0]  %s9226, 32, %s9, [#allocation4]
    $region41: #{cnn_forward.1} parent=1 // pred_fallthru
      _
    // Predicated region
    $region42: #{cnn_forward.1} parent=1 // pred_check
      _
    $region43: #{cnn_forward.1} parent=1 // pred_check_branch
      %9230 = sbr.rel (0) target = $region45
    $region44: #{cnn_forward.1} parent=1 // pred_region
      %9231 = dma.done [#allocation4], 32
    $region45: #{cnn_forward.1} parent=1 // pred_fallthru
      _
    %9232 = vsyncpa [#allocation4], 1

</llo_original>
